<compile_context>
chip_gen: v7x
topology: tpu7x:2x2x1
jax: 0.10.0
libtpu: 0.0.40
codegen_flags: <defaults>
</compile_context>

<pallas_src>
import numpy as np

import jax
import jax.numpy as jnp
from jax import lax
from jax.experimental import pallas as pl
from jax.experimental.pallas import tpu as pltpu

# --- model hyper-parameters (from the PyTorch source) -----------------------
MODEL_DIM = 64
NUM_HEADS = 2
HEAD_SIZE = MODEL_DIM // NUM_HEADS          # 32
BLOCK_SIZE = 32                             # sequence length / pos-table size
N_LAYER = 4
WINDOW_SIZE = 8
FFW_DIM = 4 * MODEL_DIM                     # 256
VOCAB_SIZE = 128                            # lane-dense logits
LN_EPS = 1e-5
MASK_VALUE = -1e30                          # additive mask; exp underflows to 0

# packed QKV column offsets: [q_h0 | q_h1 | k_h0 | k_h1 | v_h0 | v_h1]
Q_OFF = 0
K_OFF = NUM_HEADS * HEAD_SIZE               # 64
V_OFF = 2 * NUM_HEADS * HEAD_SIZE           # 128
QKV_DIM = 3 * NUM_HEADS * HEAD_SIZE         # 192


def _layer_norm(x, g, b):
    # torch.nn.LayerNorm (biased variance, eps=1e-5); one-pass variance so the
    # two cross-lane reductions are independent, gamma folded into rsqrt.
    mu = jnp.mean(x, axis=-1, keepdims=True)
    var = jnp.mean(x * x, axis=-1, keepdims=True) - mu * mu
    s = lax.rsqrt(var + LN_EPS) * g
    return x * s + (b - mu * s)


def _bf16_dot(a, b):
    # bf16 operands on the MXU, f32 accumulation.
    return jnp.dot(a.astype(jnp.bfloat16), b.astype(jnp.bfloat16),
                   preferred_element_type=jnp.float32)


def _local_window_allowed(t, window):
    """allowed[i, j] == True where the torch buffer `attention_mask` is False."""
    i = np.arange(t)[:, None]
    j = np.arange(t)[None, :]
    return (j <= i) & (j >= i - (window - 1))


# ---------------------------------------------------------------------------
# Pallas kernel: whole SparseDecoderModel forward for one (B*T)-row problem.
# ---------------------------------------------------------------------------
def decoder_kernel(x0_ref,
                   ln1g_ref, ln1b_ref, wqkv_ref, wproj_ref, bproj_ref,
                   ln2g_ref, ln2b_ref, w1_ref, b1_ref, w2_ref, b2_ref,
                   lnfg_ref, lnfb_ref, wlm_ref, blm_ref,
                   logits_ref, attn_ref):
    m = x0_ref.shape[0]                     # M = B*T (flattened rows)
    x = x0_ref[...]                         # (M, C) f32 residual stream

    # --- block-diagonal local-window additive mask, built in-kernel ----------
    rows = lax.broadcasted_iota(jnp.int32, (m, m), 0)
    cols = lax.broadcasted_iota(jnp.int32, (m, m), 1)
    blk = jnp.int32(~(BLOCK_SIZE - 1))      # power-of-2 T: AND instead of div
    same_batch = (rows & blk) == (cols & blk)
    diff = rows - cols                      # equals t_i - t_j within a batch
    allowed = same_batch & (diff >= 0) & (diff < WINDOW_SIZE)
    bias = jnp.where(allowed, jnp.float32(0.0), jnp.float32(MASK_VALUE))

    scale = jnp.float32(HEAD_SIZE ** (-0.5))

    for l in range(N_LAYER):
        # ---- attention sublayer (LocalWindowMaskedHead x 2, fused QKV) ------
        xn = _layer_norm(x, ln1g_ref[l], ln1b_ref[l])            # (M, C) f32
        qkv = jnp.dot(xn.astype(jnp.bfloat16), wqkv_ref[l],
                      preferred_element_type=jnp.float32)        # (M, 192) f32
        wproj_l = wproj_ref[l]                                   # (H*hs, C) bf16

        sa = None
        for h in range(NUM_HEADS):
            q = qkv[:, Q_OFF + h * HEAD_SIZE: Q_OFF + (h + 1) * HEAD_SIZE] * scale
            k = qkv[:, K_OFF + h * HEAD_SIZE: K_OFF + (h + 1) * HEAD_SIZE]
            v = qkv[:, V_OFF + h * HEAD_SIZE: V_OFF + (h + 1) * HEAD_SIZE]

            # q @ k^T without materializing the transpose (contract last dims)
            s = lax.dot_general(q.astype(jnp.bfloat16), k.astype(jnp.bfloat16),
                                (((1,), (1,)), ((), ())),
                                preferred_element_type=jnp.float32)
            s = s + bias                     # local-window + same-batch mask
            s = s - jnp.max(s, axis=-1, keepdims=True)
            e = jnp.exp(s)
            p = e * pl.reciprocal(jnp.sum(e, axis=-1, keepdims=True),
                                  approx=False)                  # (M, M) f32

            # lane-dense attention-map store: one full (M, M) slice per
            # (layer, head); cross-batch entries are exactly zero.
            attn_ref[l * NUM_HEADS + h] = p

            o = _bf16_dot(p, v)                                  # (M, hs) f32
            # accumulate this head's slice of the output projection instead of
            # concatenating head outputs (cat @ Wp == sum_h o_h @ Wp[h-rows]).
            contrib = jnp.dot(o.astype(jnp.bfloat16),
                              wproj_l[h * HEAD_SIZE:(h + 1) * HEAD_SIZE, :],
                              preferred_element_type=jnp.float32)
            sa = contrib if sa is None else sa + contrib

        x = x + sa + bproj_ref[l]                                # residual 1

        # ---- feed-forward sublayer -------------------------------------------
        x2n = _layer_norm(x, ln2g_ref[l], ln2b_ref[l])
        hdn = jnp.maximum(
            jnp.dot(x2n.astype(jnp.bfloat16), w1_ref[l],
                    preferred_element_type=jnp.float32) + b1_ref[l], 0.0)
        x = x + jnp.dot(hdn.astype(jnp.bfloat16), w2_ref[l],
                        preferred_element_type=jnp.float32) + b2_ref[l]

    # ---- final LayerNorm + lm_head --------------------------------------------
    xf = _layer_norm(x, lnfg_ref[...], lnfb_ref[...])
    logits_ref[...] = jnp.dot(xf.astype(jnp.bfloat16), wlm_ref[...],
                              preferred_element_type=jnp.float32) + blm_ref[...]


# ---------------------------------------------------------------------------
# Wrapper: layout plumbing + pallas_call.
# ---------------------------------------------------------------------------
@jax.jit
def sparse_decoder_forward(idx, params):
    B, T = idx.shape
    assert T == BLOCK_SIZE, "this script fixes T == block_size (32)"
    M = B * T
    C = MODEL_DIM
    V = params["w_lm"].shape[1]
    L = N_LAYER

    # embedding gather + position add hoisted out of the kernel (free in XLA)
    x0 = (params["tok_emb"][idx] + params["pos_emb"][:T]).reshape(M, C)
    x0 = x0.astype(jnp.float32)

    # MXU weight operands pre-cast to bf16 (halves weight DMA); biases / LN
    # parameters stay f32.
    bf = jnp.bfloat16
    wqkv = params["wqkv"].astype(bf)
    wproj = params["wproj"].astype(bf)
    w1 = params["w1"].astype(bf)
    w2 = params["w2"].astype(bf)
    w_lm = params["w_lm"].astype(bf)

    def full(shape):
        return pl.BlockSpec(shape, lambda i, _s=shape: (0,) * len(_s))

    in_specs = [
        full((M, C)),                         # x0 = tok_emb[idx] + pos
        full((L, 1, C)), full((L, 1, C)),     # ln1 gamma / beta
        full((L, C, QKV_DIM)),                # fused QKV weights (bf16)
        full((L, NUM_HEADS * HEAD_SIZE, C)),  # attention output projection W (bf16)
        full((L, 1, C)),                      # projection bias
        full((L, 1, C)), full((L, 1, C)),     # ln2 gamma / beta
        full((L, C, FFW_DIM)), full((L, 1, FFW_DIM)),   # ffw W1 (bf16) / b1
        full((L, FFW_DIM, C)), full((L, 1, C)),         # ffw W2 (bf16) / b2
        full((1, C)), full((1, C)),           # final LN gamma / beta
        full((C, V)), full((1, V)),           # lm_head W (bf16) / b
    ]
    out_specs = [
        full((M, V)),                         # logits (lane dense: V = 128)
        full((L * NUM_HEADS, M, M)),          # full attention maps per (l, h)
    ]
    out_shape = (
        jax.ShapeDtypeStruct((M, V), jnp.float32),
        jax.ShapeDtypeStruct((L * NUM_HEADS, M, M), jnp.float32),
    )

    logits_flat, attn_full = pl.pallas_call(
        decoder_kernel,
        out_shape=out_shape,
        grid_spec=pltpu.PrefetchScalarGridSpec(
            num_scalar_prefetch=0,
            grid=(1,),                        # whole problem in one grid step
            in_specs=in_specs,
            out_specs=out_specs,
        ),
        compiler_params=pltpu.CompilerParams(
            dimension_semantics=("arbitrary",)),
    )(x0,
      params["ln1_g"], params["ln1_b"],
      wqkv, wproj, params["bproj"],
      params["ln2_g"], params["ln2_b"],
      w1, params["b1"], w2, params["b2"],
      params["lnf_g"], params["lnf_b"],
      w_lm, params["b_lm"])

    logits = logits_flat.reshape(B, T, V)
    # extract per-batch (T, T) diagonal blocks (layout plumbing, not compute)
    a6 = attn_full.reshape(L, NUM_HEADS, B, T, B, T)
    attn_maps = jnp.stack([a6[:, :, b, :, b, :] for b in range(B)], axis=2)
    # mirrors torch forward: (logits, loss, attention_maps); loss is None since
    # targets are not provided.
    return logits, None, attn_maps


# ---------------------------------------------------------------------------
# Pure-JAX reference of the PyTorch forward (eval mode), mirroring the same
# bf16-operand / f32-accumulation matmul policy used on the MXU.
# ---------------------------------------------------------------------------
def reference(idx, p):
    B, T = idx.shape
    x = p["tok_emb"][idx] + p["pos_emb"][:T]              # (B, T, C) f32
    allowed = jnp.asarray(_local_window_allowed(T, WINDOW_SIZE))
    scale = jnp.float32(HEAD_SIZE ** (-0.5))
    bf = jnp.bfloat16
    maps = []
    for l in range(N_LAYER):
        xn = _layer_norm(x, p["ln1_g"][l], p["ln1_b"][l])
        outs, attns = [], []
        for h in range(NUM_HEADS):
            wq = p["wqkv"][l][:, Q_OFF + h * HEAD_SIZE: Q_OFF + (h + 1) * HEAD_SIZE]
            wk = p["wqkv"][l][:, K_OFF + h * HEAD_SIZE: K_OFF + (h + 1) * HEAD_SIZE]
            wv = p["wqkv"][l][:, V_OFF + h * HEAD_SIZE: V_OFF + (h + 1) * HEAD_SIZE]
            q = _bf16_dot(xn, wq) * scale
            k = _bf16_dot(xn, wk)
            v = _bf16_dot(xn, wv)
            s = jnp.einsum("btd,bsd->bts", q.astype(bf), k.astype(bf),
                           preferred_element_type=jnp.float32)
            s = jnp.where(allowed[None], s, jnp.float32(MASK_VALUE))
            s = s - jnp.max(s, axis=-1, keepdims=True)
            e = jnp.exp(s)
            a = e / jnp.sum(e, axis=-1, keepdims=True)
            attns.append(a)
            outs.append(jnp.einsum("bts,bsd->btd", a.astype(bf), v.astype(bf),
                                   preferred_element_type=jnp.float32))
        cat = jnp.concatenate(outs, axis=-1)
        x = x + (_bf16_dot(cat, p["wproj"][l]) + p["bproj"][l])
        x2n = _layer_norm(x, p["ln2_g"][l], p["ln2_b"][l])
        hdn = jnp.maximum(_bf16_dot(x2n, p["w1"][l]) + p["b1"][l], 0.0)
        x = x + (_bf16_dot(hdn, p["w2"][l]) + p["b2"][l])
        maps.append(jnp.stack(attns))                      # (H, B, T, T)
    xf = _layer_norm(x, p["lnf_g"], p["lnf_b"])
    logits = _bf16_dot(xf, p["w_lm"]) + p["b_lm"]
    return logits, jnp.stack(maps)                         # (L, H, B, T, T)


def init_params(key):
    ks = jax.random.split(key, 8)
    std = 0.02
    nrm = lambda k, s: std * jax.random.normal(k, s, jnp.float32)
    L, C, F, V = N_LAYER, MODEL_DIM, FFW_DIM, VOCAB_SIZE
    return {
        "tok_emb": nrm(ks[0], (V, C)),
        "pos_emb": nrm(ks[1], (BLOCK_SIZE, C)),
        "ln1_g": jnp.ones((L, 1, C), jnp.float32),
        "ln1_b": jnp.zeros((L, 1, C), jnp.float32),
        "wqkv": nrm(ks[2], (L, C, QKV_DIM)),
        "wproj": nrm(ks[3], (L, NUM_HEADS * HEAD_SIZE, C)),
        "bproj": jnp.zeros((L, 1, C), jnp.float32),
        "ln2_g": jnp.ones((L, 1, C), jnp.float32),
        "ln2_b": jnp.zeros((L, 1, C), jnp.float32),
        "w1": nrm(ks[4], (L, C, F)),
        "b1": jnp.zeros((L, 1, F), jnp.float32),
        "w2": nrm(ks[5], (L, F, C)),
        "b2": jnp.zeros((L, 1, C), jnp.float32),
        "lnf_g": jnp.ones((1, C), jnp.float32),
        "lnf_b": jnp.zeros((1, C), jnp.float32),
        "w_lm": nrm(ks[6], (C, V)),
        "b_lm": jnp.zeros((1, V), jnp.float32),
    }


if __name__ == "__main__":
    key = jax.random.PRNGKey(0)
    pkey, ikey = jax.random.split(key)
    params = init_params(pkey)

    B, T = 2, BLOCK_SIZE
    idx = jax.random.randint(ikey, (B, T), 0, VOCAB_SIZE, dtype=jnp.int32)

    logits, loss, attn_maps = sparse_decoder_forward(idx, params)
    logits = jax.block_until_ready(logits)
    attn_maps = jax.block_until_ready(attn_maps)

    ref_logits, ref_attn = reference(idx, params)
    # kernel and reference share the same bf16-operand / f32-accumulation
    # matmul policy, so tolerances stay tight despite the bf16 MXU path.
    np.testing.assert_allclose(np.asarray(logits), np.asarray(ref_logits),
                               rtol=5e-3, atol=5e-4)
    np.testing.assert_allclose(np.asarray(attn_maps), np.asarray(ref_attn),
                               rtol=5e-3, atol=5e-4)

    # TODO(synk): cross-entropy loss / generate() multinomial sampling are
    # host-side extras, not part of the targets=None forward implemented here.
    print("KERNEL_OK")
</pallas_src>

<mosaic_0001>
module attributes {stable_mosaic.version = 11 : i64} {
  func.func @decoder_kernel(%arg0: i32, %arg1: memref<64x64xf32, #tpu.memory_space<vmem>>, %arg2: memref<4x1x64xf32, #tpu.memory_space<vmem>>, %arg3: memref<4x1x64xf32, #tpu.memory_space<vmem>>, %arg4: memref<4x64x192xbf16, #tpu.memory_space<vmem>>, %arg5: memref<4x64x64xbf16, #tpu.memory_space<vmem>>, %arg6: memref<4x1x64xf32, #tpu.memory_space<vmem>>, %arg7: memref<4x1x64xf32, #tpu.memory_space<vmem>>, %arg8: memref<4x1x64xf32, #tpu.memory_space<vmem>>, %arg9: memref<4x64x256xbf16, #tpu.memory_space<vmem>>, %arg10: memref<4x1x256xf32, #tpu.memory_space<vmem>>, %arg11: memref<4x256x64xbf16, #tpu.memory_space<vmem>>, %arg12: memref<4x1x64xf32, #tpu.memory_space<vmem>>, %arg13: memref<1x64xf32, #tpu.memory_space<vmem>>, %arg14: memref<1x64xf32, #tpu.memory_space<vmem>>, %arg15: memref<64x128xbf16, #tpu.memory_space<vmem>>, %arg16: memref<1x128xf32, #tpu.memory_space<vmem>>, %arg17: memref<64x128xf32, #tpu.memory_space<vmem>>, %arg18: memref<8x64x64xf32, #tpu.memory_space<vmem>>) attributes {dimension_semantics = [#tpu.dimension_semantics<arbitrary>], iteration_bounds = array<i64: 1>, scalar_prefetch = 0 : i64, scratch_operands = 0 : i64, tpu.core_type = #tpu.core_type<tc>, window_params = [{pipeline_mode = #tpu.pipeline_mode<synchronous>, transform_indices = @transform_0, window_bounds = array<i64: 64, 64>}, {pipeline_mode = #tpu.pipeline_mode<synchronous>, transform_indices = @transform_1, window_bounds = array<i64: 4, 1, 64>}, {pipeline_mode = #tpu.pipeline_mode<synchronous>, transform_indices = @transform_2, window_bounds = array<i64: 4, 1, 64>}, {pipeline_mode = #tpu.pipeline_mode<synchronous>, transform_indices = @transform_3, window_bounds = array<i64: 4, 64, 192>}, {pipeline_mode = #tpu.pipeline_mode<synchronous>, transform_indices = @transform_4, window_bounds = array<i64: 4, 64, 64>}, {pipeline_mode = #tpu.pipeline_mode<synchronous>, transform_indices = @transform_5, window_bounds = array<i64: 4, 1, 64>}, {pipeline_mode = #tpu.pipeline_mode<synchronous>, transform_indices = @transform_6, window_bounds = array<i64: 4, 1, 64>}, {pipeline_mode = #tpu.pipeline_mode<synchronous>, transform_indices = @transform_7, window_bounds = array<i64: 4, 1, 64>}, {pipeline_mode = #tpu.pipeline_mode<synchronous>, transform_indices = @transform_8, window_bounds = array<i64: 4, 64, 256>}, {pipeline_mode = #tpu.pipeline_mode<synchronous>, transform_indices = @transform_9, window_bounds = array<i64: 4, 1, 256>}, {pipeline_mode = #tpu.pipeline_mode<synchronous>, transform_indices = @transform_10, window_bounds = array<i64: 4, 256, 64>}, {pipeline_mode = #tpu.pipeline_mode<synchronous>, transform_indices = @transform_11, window_bounds = array<i64: 4, 1, 64>}, {pipeline_mode = #tpu.pipeline_mode<synchronous>, transform_indices = @transform_12, window_bounds = array<i64: 1, 64>}, {pipeline_mode = #tpu.pipeline_mode<synchronous>, transform_indices = @transform_13, window_bounds = array<i64: 1, 64>}, {pipeline_mode = #tpu.pipeline_mode<synchronous>, transform_indices = @transform_14, window_bounds = array<i64: 64, 128>}, {pipeline_mode = #tpu.pipeline_mode<synchronous>, transform_indices = @transform_15, window_bounds = array<i64: 1, 128>}, {pipeline_mode = #tpu.pipeline_mode<synchronous>, transform_indices = @transform_16, window_bounds = array<i64: 64, 128>}, {pipeline_mode = #tpu.pipeline_mode<synchronous>, transform_indices = @transform_17, window_bounds = array<i64: 8, 64, 64>}]} {
    %c0 = arith.constant 0 : index
    %c0_0 = arith.constant 0 : index
    %0 = vector.load %arg1[%c0, %c0_0] : memref<64x64xf32, #tpu.memory_space<vmem>>, vector<64x64xf32>
    %1 = tpu.iota {dimensions = array<i32: 0>} : vector<64x64xi32>
    %2 = tpu.iota {dimensions = array<i32: 1>} : vector<64x64xi32>
    %c-32_i32 = arith.constant -32 : i32
    %3 = vector.broadcast %c-32_i32 : i32 to vector<64x64xi32>
    %4 = arith.andi %1, %3 : vector<64x64xi32>
    %c-32_i32_1 = arith.constant -32 : i32
    %5 = vector.broadcast %c-32_i32_1 : i32 to vector<64x64xi32>
    %6 = arith.andi %2, %5 : vector<64x64xi32>
    %7 = arith.cmpi eq, %4, %6 : vector<64x64xi32>
    %8 = arith.subi %1, %2 : vector<64x64xi32>
    %c0_i32 = arith.constant 0 : i32
    %9 = vector.broadcast %c0_i32 : i32 to vector<64x64xi32>
    %10 = arith.cmpi sge, %8, %9 : vector<64x64xi32>
    %11 = arith.andi %7, %10 : vector<64x64xi1>
    %c8_i32 = arith.constant 8 : i32
    %12 = vector.broadcast %c8_i32 : i32 to vector<64x64xi32>
    %13 = arith.cmpi slt, %8, %12 : vector<64x64xi32>
    %14 = arith.andi %11, %13 : vector<64x64xi1>
    %cst = arith.constant 0.000000e+00 : f32
    %cst_2 = arith.constant -1.000000e+30 : f32
    %15 = vector.broadcast %cst : f32 to vector<64x64xf32>
    %16 = vector.broadcast %cst_2 : f32 to vector<64x64xf32>
    %17 = arith.select %14, %15, %16 : vector<64x64xi1>, vector<64x64xf32>
    %c0_3 = arith.constant 0 : index
    %c0_4 = arith.constant 0 : index
    %c0_5 = arith.constant 0 : index
    %18 = vector.load %arg2[%c0_3, %c0_4, %c0_5] : memref<4x1x64xf32, #tpu.memory_space<vmem>>, vector<1x1x64xf32>
    %19 = vector.shape_cast %18 : vector<1x1x64xf32> to vector<1x64xf32>
    %c0_6 = arith.constant 0 : index
    %c0_7 = arith.constant 0 : index
    %c0_8 = arith.constant 0 : index
    %20 = vector.load %arg3[%c0_6, %c0_7, %c0_8] : memref<4x1x64xf32, #tpu.memory_space<vmem>>, vector<1x1x64xf32>
    %21 = vector.shape_cast %20 : vector<1x1x64xf32> to vector<1x64xf32>
    %cst_9 = arith.constant dense<0.000000e+00> : vector<64xf32>
    %22 = vector.multi_reduction <add>, %0, %cst_9 [1] : vector<64x64xf32> to vector<64xf32>
    %23 = vector.shape_cast %22 : vector<64xf32> to vector<64x1xf32>
    %cst_10 = arith.constant 6.400000e+01 : f32
    %24 = vector.broadcast %cst_10 : f32 to vector<64x1xf32>
    %25 = arith.divf %23, %24 : vector<64x1xf32>
    %26 = arith.mulf %0, %0 : vector<64x64xf32>
    %cst_11 = arith.constant dense<0.000000e+00> : vector<64xf32>
    %27 = vector.multi_reduction <add>, %26, %cst_11 [1] : vector<64x64xf32> to vector<64xf32>
    %28 = vector.shape_cast %27 : vector<64xf32> to vector<64x1xf32>
    %cst_12 = arith.constant 6.400000e+01 : f32
    %29 = vector.broadcast %cst_12 : f32 to vector<64x1xf32>
    %30 = arith.divf %28, %29 : vector<64x1xf32>
    %31 = arith.mulf %25, %25 : vector<64x1xf32>
    %32 = arith.subf %30, %31 : vector<64x1xf32>
    %cst_13 = arith.constant 9.99999974E-6 : f32
    %33 = vector.broadcast %cst_13 : f32 to vector<64x1xf32>
    %34 = arith.addf %32, %33 : vector<64x1xf32>
    %35 = math.rsqrt %34 : vector<64x1xf32>
    %36 = vector.broadcast %35 : vector<64x1xf32> to vector<64x64xf32>
    %37 = vector.broadcast %19 : vector<1x64xf32> to vector<64x64xf32>
    %38 = arith.mulf %36, %37 : vector<64x64xf32>
    %39 = arith.mulf %0, %38 : vector<64x64xf32>
    %40 = vector.broadcast %25 : vector<64x1xf32> to vector<64x64xf32>
    %41 = arith.mulf %40, %38 : vector<64x64xf32>
    %42 = vector.broadcast %21 : vector<1x64xf32> to vector<64x64xf32>
    %43 = arith.subf %42, %41 : vector<64x64xf32>
    %44 = arith.addf %39, %43 : vector<64x64xf32>
    %45 = arith.truncf %44 : vector<64x64xf32> to vector<64x64xbf16>
    %c0_14 = arith.constant 0 : index
    %c0_15 = arith.constant 0 : index
    %c0_16 = arith.constant 0 : index
    %46 = vector.load %arg4[%c0_14, %c0_15, %c0_16] : memref<4x64x192xbf16, #tpu.memory_space<vmem>>, vector<1x64x192xbf16>
    %47 = vector.shape_cast %46 : vector<1x64x192xbf16> to vector<64x192xbf16>
    %cst_17 = arith.constant dense<0.000000e+00> : vector<64x192xf32>
    %48 = tpu.matmul %45, %47, %cst_17 {dimension_numbers = #tpu.dot_dimension_numbers<[1], [0], [0], [1], [0, 0, 1, 1], [], []>} : vector<64x64xbf16>, vector<64x192xbf16>, vector<64x192xf32> -> vector<64x192xf32>
    %c0_18 = arith.constant 0 : index
    %c0_19 = arith.constant 0 : index
    %c0_20 = arith.constant 0 : index
    %49 = vector.load %arg5[%c0_18, %c0_19, %c0_20] : memref<4x64x64xbf16, #tpu.memory_space<vmem>>, vector<1x64x64xbf16>
    %50 = vector.shape_cast %49 : vector<1x64x64xbf16> to vector<64x64xbf16>
    %51 = vector.extract_strided_slice %48 {offsets = [0, 0], sizes = [64, 32], strides = [1, 1]} : vector<64x192xf32> to vector<64x32xf32>
    %cst_21 = arith.constant 0.176776692 : f32
    %52 = vector.broadcast %cst_21 : f32 to vector<64x32xf32>
    %53 = arith.mulf %51, %52 : vector<64x32xf32>
    %54 = vector.extract_strided_slice %48 {offsets = [0, 64], sizes = [64, 32], strides = [1, 1]} : vector<64x192xf32> to vector<64x32xf32>
    %55 = vector.extract_strided_slice %48 {offsets = [0, 128], sizes = [64, 32], strides = [1, 1]} : vector<64x192xf32> to vector<64x32xf32>
    %56 = arith.truncf %53 : vector<64x32xf32> to vector<64x32xbf16>
    %57 = arith.truncf %54 : vector<64x32xf32> to vector<64x32xbf16>
    %cst_22 = arith.constant dense<0.000000e+00> : vector<64x64xf32>
    %58 = tpu.matmul %56, %57, %cst_22 {dimension_numbers = #tpu.dot_dimension_numbers<[1], [1], [0], [0], [0, 0, 1, 0], [], []>} : vector<64x32xbf16>, vector<64x32xbf16>, vector<64x64xf32> -> vector<64x64xf32>
    %59 = arith.addf %58, %17 : vector<64x64xf32>
    %cst_23 = arith.constant dense<0xFF800000> : vector<64xf32>
    %60 = vector.multi_reduction <maximumf>, %59, %cst_23 [1] : vector<64x64xf32> to vector<64xf32>
    %61 = vector.shape_cast %60 : vector<64xf32> to vector<64x1xf32>
    %62 = vector.broadcast %61 : vector<64x1xf32> to vector<64x64xf32>
    %63 = arith.subf %59, %62 : vector<64x64xf32>
    %64 = math.exp %63 : vector<64x64xf32>
    %cst_24 = arith.constant dense<0.000000e+00> : vector<64xf32>
    %65 = vector.multi_reduction <add>, %64, %cst_24 [1] : vector<64x64xf32> to vector<64xf32>
    %66 = vector.shape_cast %65 : vector<64xf32> to vector<64x1xf32>
    %67 = tpu.reciprocal %66 : vector<64x1xf32> -> vector<64x1xf32>
    %68 = vector.broadcast %67 : vector<64x1xf32> to vector<64x64xf32>
    %69 = arith.mulf %64, %68 : vector<64x64xf32>
    %c0_25 = arith.constant 0 : index
    %c0_26 = arith.constant 0 : index
    %c0_27 = arith.constant 0 : index
    %70 = vector.load %arg18[%c0_25, %c0_26, %c0_27] : memref<8x64x64xf32, #tpu.memory_space<vmem>>, vector<1x64x64xf32>
    %71 = vector.shape_cast %70 : vector<1x64x64xf32> to vector<64x64xf32>
    %72 = vector.shape_cast %69 : vector<64x64xf32> to vector<1x64x64xf32>
    tpu.vector_store %arg18[%c0_25, %c0_26, %c0_27], %72 {strides = array<i32>} : memref<8x64x64xf32, #tpu.memory_space<vmem>>, vector<1x64x64xf32>,
    %73 = arith.truncf %69 : vector<64x64xf32> to vector<64x64xbf16>
    %74 = arith.truncf %55 : vector<64x32xf32> to vector<64x32xbf16>
    %cst_28 = arith.constant dense<0.000000e+00> : vector<64x32xf32>
    %75 = tpu.matmul %73, %74, %cst_28 {dimension_numbers = #tpu.dot_dimension_numbers<[1], [0], [0], [1], [0, 0, 1, 1], [], []>} : vector<64x64xbf16>, vector<64x32xbf16>, vector<64x32xf32> -> vector<64x32xf32>
    %76 = arith.truncf %75 : vector<64x32xf32> to vector<64x32xbf16>
    %77 = vector.extract_strided_slice %50 {offsets = [0, 0], sizes = [32, 64], strides = [1, 1]} : vector<64x64xbf16> to vector<32x64xbf16>
    %cst_29 = arith.constant dense<0.000000e+00> : vector<64x64xf32>
    %78 = tpu.matmul %76, %77, %cst_29 {dimension_numbers = #tpu.dot_dimension_numbers<[1], [0], [0], [1], [0, 0, 1, 1], [], []>} : vector<64x32xbf16>, vector<32x64xbf16>, vector<64x64xf32> -> vector<64x64xf32>
    %79 = vector.extract_strided_slice %48 {offsets = [0, 32], sizes = [64, 32], strides = [1, 1]} : vector<64x192xf32> to vector<64x32xf32>
    %cst_30 = arith.constant 0.176776692 : f32
    %80 = vector.broadcast %cst_30 : f32 to vector<64x32xf32>
    %81 = arith.mulf %79, %80 : vector<64x32xf32>
    %82 = vector.extract_strided_slice %48 {offsets = [0, 96], sizes = [64, 32], strides = [1, 1]} : vector<64x192xf32> to vector<64x32xf32>
    %83 = vector.extract_strided_slice %48 {offsets = [0, 160], sizes = [64, 32], strides = [1, 1]} : vector<64x192xf32> to vector<64x32xf32>
    %84 = arith.truncf %81 : vector<64x32xf32> to vector<64x32xbf16>
    %85 = arith.truncf %82 : vector<64x32xf32> to vector<64x32xbf16>
    %cst_31 = arith.constant dense<0.000000e+00> : vector<64x64xf32>
    %86 = tpu.matmul %84, %85, %cst_31 {dimension_numbers = #tpu.dot_dimension_numbers<[1], [1], [0], [0], [0, 0, 1, 0], [], []>} : vector<64x32xbf16>, vector<64x32xbf16>, vector<64x64xf32> -> vector<64x64xf32>
    %87 = arith.addf %86, %17 : vector<64x64xf32>
    %cst_32 = arith.constant dense<0xFF800000> : vector<64xf32>
    %88 = vector.multi_reduction <maximumf>, %87, %cst_32 [1] : vector<64x64xf32> to vector<64xf32>
    %89 = vector.shape_cast %88 : vector<64xf32> to vector<64x1xf32>
    %90 = vector.broadcast %89 : vector<64x1xf32> to vector<64x64xf32>
    %91 = arith.subf %87, %90 : vector<64x64xf32>
    %92 = math.exp %91 : vector<64x64xf32>
    %cst_33 = arith.constant dense<0.000000e+00> : vector<64xf32>
    %93 = vector.multi_reduction <add>, %92, %cst_33 [1] : vector<64x64xf32> to vector<64xf32>
    %94 = vector.shape_cast %93 : vector<64xf32> to vector<64x1xf32>
    %95 = tpu.reciprocal %94 : vector<64x1xf32> -> vector<64x1xf32>
    %96 = vector.broadcast %95 : vector<64x1xf32> to vector<64x64xf32>
    %97 = arith.mulf %92, %96 : vector<64x64xf32>
    %c1 = arith.constant 1 : index
    %c0_34 = arith.constant 0 : index
    %c0_35 = arith.constant 0 : index
    %98 = vector.load %arg18[%c1, %c0_34, %c0_35] : memref<8x64x64xf32, #tpu.memory_space<vmem>>, vector<1x64x64xf32>
    %99 = vector.shape_cast %98 : vector<1x64x64xf32> to vector<64x64xf32>
    %100 = vector.shape_cast %97 : vector<64x64xf32> to vector<1x64x64xf32>
    tpu.vector_store %arg18[%c1, %c0_34, %c0_35], %100 {strides = array<i32>} : memref<8x64x64xf32, #tpu.memory_space<vmem>>, vector<1x64x64xf32>,
    %101 = arith.truncf %97 : vector<64x64xf32> to vector<64x64xbf16>
    %102 = arith.truncf %83 : vector<64x32xf32> to vector<64x32xbf16>
    %cst_36 = arith.constant dense<0.000000e+00> : vector<64x32xf32>
    %103 = tpu.matmul %101, %102, %cst_36 {dimension_numbers = #tpu.dot_dimension_numbers<[1], [0], [0], [1], [0, 0, 1, 1], [], []>} : vector<64x64xbf16>, vector<64x32xbf16>, vector<64x32xf32> -> vector<64x32xf32>
    %104 = arith.truncf %103 : vector<64x32xf32> to vector<64x32xbf16>
    %105 = vector.extract_strided_slice %50 {offsets = [32, 0], sizes = [32, 64], strides = [1, 1]} : vector<64x64xbf16> to vector<32x64xbf16>
    %cst_37 = arith.constant dense<0.000000e+00> : vector<64x64xf32>
    %106 = tpu.matmul %104, %105, %cst_37 {dimension_numbers = #tpu.dot_dimension_numbers<[1], [0], [0], [1], [0, 0, 1, 1], [], []>} : vector<64x32xbf16>, vector<32x64xbf16>, vector<64x64xf32> -> vector<64x64xf32>
    %107 = arith.addf %78, %106 : vector<64x64xf32>
    %108 = arith.addf %0, %107 : vector<64x64xf32>
    %c0_38 = arith.constant 0 : index
    %c0_39 = arith.constant 0 : index
    %c0_40 = arith.constant 0 : index
    %109 = vector.load %arg6[%c0_38, %c0_39, %c0_40] : memref<4x1x64xf32, #tpu.memory_space<vmem>>, vector<1x1x64xf32>
    %110 = vector.shape_cast %109 : vector<1x1x64xf32> to vector<1x64xf32>
    %111 = vector.broadcast %110 : vector<1x64xf32> to vector<64x64xf32>
    %112 = arith.addf %108, %111 : vector<64x64xf32>
    %c0_41 = arith.constant 0 : index
    %c0_42 = arith.constant 0 : index
    %c0_43 = arith.constant 0 : index
    %113 = vector.load %arg7[%c0_41, %c0_42, %c0_43] : memref<4x1x64xf32, #tpu.memory_space<vmem>>, vector<1x1x64xf32>
    %114 = vector.shape_cast %113 : vector<1x1x64xf32> to vector<1x64xf32>
    %c0_44 = arith.constant 0 : index
    %c0_45 = arith.constant 0 : index
    %c0_46 = arith.constant 0 : index
    %115 = vector.load %arg8[%c0_44, %c0_45, %c0_46] : memref<4x1x64xf32, #tpu.memory_space<vmem>>, vector<1x1x64xf32>
    %116 = vector.shape_cast %115 : vector<1x1x64xf32> to vector<1x64xf32>
    %cst_47 = arith.constant dense<0.000000e+00> : vector<64xf32>
    %117 = vector.multi_reduction <add>, %112, %cst_47 [1] : vector<64x64xf32> to vector<64xf32>
    %118 = vector.shape_cast %117 : vector<64xf32> to vector<64x1xf32>
    %cst_48 = arith.constant 6.400000e+01 : f32
    %119 = vector.broadcast %cst_48 : f32 to vector<64x1xf32>
    %120 = arith.divf %118, %119 : vector<64x1xf32>
    %121 = arith.mulf %112, %112 : vector<64x64xf32>
    %cst_49 = arith.constant dense<0.000000e+00> : vector<64xf32>
    %122 = vector.multi_reduction <add>, %121, %cst_49 [1] : vector<64x64xf32> to vector<64xf32>
    %123 = vector.shape_cast %122 : vector<64xf32> to vector<64x1xf32>
    %cst_50 = arith.constant 6.400000e+01 : f32
    %124 = vector.broadcast %cst_50 : f32 to vector<64x1xf32>
    %125 = arith.divf %123, %124 : vector<64x1xf32>
    %126 = arith.mulf %120, %120 : vector<64x1xf32>
    %127 = arith.subf %125, %126 : vector<64x1xf32>
    %cst_51 = arith.constant 9.99999974E-6 : f32
    %128 = vector.broadcast %cst_51 : f32 to vector<64x1xf32>
    %129 = arith.addf %127, %128 : vector<64x1xf32>
    %130 = math.rsqrt %129 : vector<64x1xf32>
    %131 = vector.broadcast %130 : vector<64x1xf32> to vector<64x64xf32>
    %132 = vector.broadcast %114 : vector<1x64xf32> to vector<64x64xf32>
    %133 = arith.mulf %131, %132 : vector<64x64xf32>
    %134 = arith.mulf %112, %133 : vector<64x64xf32>
    %135 = vector.broadcast %120 : vector<64x1xf32> to vector<64x64xf32>
    %136 = arith.mulf %135, %133 : vector<64x64xf32>
    %137 = vector.broadcast %116 : vector<1x64xf32> to vector<64x64xf32>
    %138 = arith.subf %137, %136 : vector<64x64xf32>
    %139 = arith.addf %134, %138 : vector<64x64xf32>
    %140 = arith.truncf %139 : vector<64x64xf32> to vector<64x64xbf16>
    %c0_52 = arith.constant 0 : index
    %c0_53 = arith.constant 0 : index
    %c0_54 = arith.constant 0 : index
    %141 = vector.load %arg9[%c0_52, %c0_53, %c0_54] : memref<4x64x256xbf16, #tpu.memory_space<vmem>>, vector<1x64x256xbf16>
    %142 = vector.shape_cast %141 : vector<1x64x256xbf16> to vector<64x256xbf16>
    %cst_55 = arith.constant dense<0.000000e+00> : vector<64x256xf32>
    %143 = tpu.matmul %140, %142, %cst_55 {dimension_numbers = #tpu.dot_dimension_numbers<[1], [0], [0], [1], [0, 0, 1, 1], [], []>} : vector<64x64xbf16>, vector<64x256xbf16>, vector<64x256xf32> -> vector<64x256xf32>
    %c0_56 = arith.constant 0 : index
    %c0_57 = arith.constant 0 : index
    %c0_58 = arith.constant 0 : index
    %144 = vector.load %arg10[%c0_56, %c0_57, %c0_58] : memref<4x1x256xf32, #tpu.memory_space<vmem>>, vector<1x1x256xf32>
    %145 = vector.shape_cast %144 : vector<1x1x256xf32> to vector<1x256xf32>
    %146 = vector.broadcast %145 : vector<1x256xf32> to vector<64x256xf32>
    %147 = arith.addf %143, %146 : vector<64x256xf32>
    %cst_59 = arith.constant 0.000000e+00 : f32
    %148 = vector.broadcast %cst_59 : f32 to vector<64x256xf32>
    %149 = arith.maximumf %147, %148 : vector<64x256xf32>
    %150 = arith.truncf %149 : vector<64x256xf32> to vector<64x256xbf16>
    %c0_60 = arith.constant 0 : index
    %c0_61 = arith.constant 0 : index
    %c0_62 = arith.constant 0 : index
    %151 = vector.load %arg11[%c0_60, %c0_61, %c0_62] : memref<4x256x64xbf16, #tpu.memory_space<vmem>>, vector<1x256x64xbf16>
    %152 = vector.shape_cast %151 : vector<1x256x64xbf16> to vector<256x64xbf16>
    %cst_63 = arith.constant dense<0.000000e+00> : vector<64x64xf32>
    %153 = tpu.matmul %150, %152, %cst_63 {dimension_numbers = #tpu.dot_dimension_numbers<[1], [0], [0], [1], [0, 0, 1, 1], [], []>} : vector<64x256xbf16>, vector<256x64xbf16>, vector<64x64xf32> -> vector<64x64xf32>
    %154 = arith.addf %112, %153 : vector<64x64xf32>
    %c0_64 = arith.constant 0 : index
    %c0_65 = arith.constant 0 : index
    %c0_66 = arith.constant 0 : index
    %155 = vector.load %arg12[%c0_64, %c0_65, %c0_66] : memref<4x1x64xf32, #tpu.memory_space<vmem>>, vector<1x1x64xf32>
    %156 = vector.shape_cast %155 : vector<1x1x64xf32> to vector<1x64xf32>
    %157 = vector.broadcast %156 : vector<1x64xf32> to vector<64x64xf32>
    %158 = arith.addf %154, %157 : vector<64x64xf32>
    %c1_67 = arith.constant 1 : index
    %c0_68 = arith.constant 0 : index
    %c0_69 = arith.constant 0 : index
    %159 = vector.load %arg2[%c1_67, %c0_68, %c0_69] : memref<4x1x64xf32, #tpu.memory_space<vmem>>, vector<1x1x64xf32>
    %160 = vector.shape_cast %159 : vector<1x1x64xf32> to vector<1x64xf32>
    %c1_70 = arith.constant 1 : index
    %c0_71 = arith.constant 0 : index
    %c0_72 = arith.constant 0 : index
    %161 = vector.load %arg3[%c1_70, %c0_71, %c0_72] : memref<4x1x64xf32, #tpu.memory_space<vmem>>, vector<1x1x64xf32>
    %162 = vector.shape_cast %161 : vector<1x1x64xf32> to vector<1x64xf32>
    %cst_73 = arith.constant dense<0.000000e+00> : vector<64xf32>
    %163 = vector.multi_reduction <add>, %158, %cst_73 [1] : vector<64x64xf32> to vector<64xf32>
    %164 = vector.shape_cast %163 : vector<64xf32> to vector<64x1xf32>
    %cst_74 = arith.constant 6.400000e+01 : f32
    %165 = vector.broadcast %cst_74 : f32 to vector<64x1xf32>
    %166 = arith.divf %164, %165 : vector<64x1xf32>
    %167 = arith.mulf %158, %158 : vector<64x64xf32>
    %cst_75 = arith.constant dense<0.000000e+00> : vector<64xf32>
    %168 = vector.multi_reduction <add>, %167, %cst_75 [1] : vector<64x64xf32> to vector<64xf32>
    %169 = vector.shape_cast %168 : vector<64xf32> to vector<64x1xf32>
    %cst_76 = arith.constant 6.400000e+01 : f32
    %170 = vector.broadcast %cst_76 : f32 to vector<64x1xf32>
    %171 = arith.divf %169, %170 : vector<64x1xf32>
    %172 = arith.mulf %166, %166 : vector<64x1xf32>
    %173 = arith.subf %171, %172 : vector<64x1xf32>
    %cst_77 = arith.constant 9.99999974E-6 : f32
    %174 = vector.broadcast %cst_77 : f32 to vector<64x1xf32>
    %175 = arith.addf %173, %174 : vector<64x1xf32>
    %176 = math.rsqrt %175 : vector<64x1xf32>
    %177 = vector.broadcast %176 : vector<64x1xf32> to vector<64x64xf32>
    %178 = vector.broadcast %160 : vector<1x64xf32> to vector<64x64xf32>
    %179 = arith.mulf %177, %178 : vector<64x64xf32>
    %180 = arith.mulf %158, %179 : vector<64x64xf32>
    %181 = vector.broadcast %166 : vector<64x1xf32> to vector<64x64xf32>
    %182 = arith.mulf %181, %179 : vector<64x64xf32>
    %183 = vector.broadcast %162 : vector<1x64xf32> to vector<64x64xf32>
    %184 = arith.subf %183, %182 : vector<64x64xf32>
    %185 = arith.addf %180, %184 : vector<64x64xf32>
    %186 = arith.truncf %185 : vector<64x64xf32> to vector<64x64xbf16>
    %c1_78 = arith.constant 1 : index
    %c0_79 = arith.constant 0 : index
    %c0_80 = arith.constant 0 : index
    %187 = vector.load %arg4[%c1_78, %c0_79, %c0_80] : memref<4x64x192xbf16, #tpu.memory_space<vmem>>, vector<1x64x192xbf16>
    %188 = vector.shape_cast %187 : vector<1x64x192xbf16> to vector<64x192xbf16>
    %cst_81 = arith.constant dense<0.000000e+00> : vector<64x192xf32>
    %189 = tpu.matmul %186, %188, %cst_81 {dimension_numbers = #tpu.dot_dimension_numbers<[1], [0], [0], [1], [0, 0, 1, 1], [], []>} : vector<64x64xbf16>, vector<64x192xbf16>, vector<64x192xf32> -> vector<64x192xf32>
    %c1_82 = arith.constant 1 : index
    %c0_83 = arith.constant 0 : index
    %c0_84 = arith.constant 0 : index
    %190 = vector.load %arg5[%c1_82, %c0_83, %c0_84] : memref<4x64x64xbf16, #tpu.memory_space<vmem>>, vector<1x64x64xbf16>
    %191 = vector.shape_cast %190 : vector<1x64x64xbf16> to vector<64x64xbf16>
    %192 = vector.extract_strided_slice %189 {offsets = [0, 0], sizes = [64, 32], strides = [1, 1]} : vector<64x192xf32> to vector<64x32xf32>
    %cst_85 = arith.constant 0.176776692 : f32
    %193 = vector.broadcast %cst_85 : f32 to vector<64x32xf32>
    %194 = arith.mulf %192, %193 : vector<64x32xf32>
    %195 = vector.extract_strided_slice %189 {offsets = [0, 64], sizes = [64, 32], strides = [1, 1]} : vector<64x192xf32> to vector<64x32xf32>
    %196 = vector.extract_strided_slice %189 {offsets = [0, 128], sizes = [64, 32], strides = [1, 1]} : vector<64x192xf32> to vector<64x32xf32>
    %197 = arith.truncf %194 : vector<64x32xf32> to vector<64x32xbf16>
    %198 = arith.truncf %195 : vector<64x32xf32> to vector<64x32xbf16>
    %cst_86 = arith.constant dense<0.000000e+00> : vector<64x64xf32>
    %199 = tpu.matmul %197, %198, %cst_86 {dimension_numbers = #tpu.dot_dimension_numbers<[1], [1], [0], [0], [0, 0, 1, 0], [], []>} : vector<64x32xbf16>, vector<64x32xbf16>, vector<64x64xf32> -> vector<64x64xf32>
    %200 = arith.addf %199, %17 : vector<64x64xf32>
    %cst_87 = arith.constant dense<0xFF800000> : vector<64xf32>
    %201 = vector.multi_reduction <maximumf>, %200, %cst_87 [1] : vector<64x64xf32> to vector<64xf32>
    %202 = vector.shape_cast %201 : vector<64xf32> to vector<64x1xf32>
    %203 = vector.broadcast %202 : vector<64x1xf32> to vector<64x64xf32>
    %204 = arith.subf %200, %203 : vector<64x64xf32>
    %205 = math.exp %204 : vector<64x64xf32>
    %cst_88 = arith.constant dense<0.000000e+00> : vector<64xf32>
    %206 = vector.multi_reduction <add>, %205, %cst_88 [1] : vector<64x64xf32> to vector<64xf32>
    %207 = vector.shape_cast %206 : vector<64xf32> to vector<64x1xf32>
    %208 = tpu.reciprocal %207 : vector<64x1xf32> -> vector<64x1xf32>
    %209 = vector.broadcast %208 : vector<64x1xf32> to vector<64x64xf32>
    %210 = arith.mulf %205, %209 : vector<64x64xf32>
    %c2 = arith.constant 2 : index
    %c0_89 = arith.constant 0 : index
    %c0_90 = arith.constant 0 : index
    %211 = vector.load %arg18[%c2, %c0_89, %c0_90] : memref<8x64x64xf32, #tpu.memory_space<vmem>>, vector<1x64x64xf32>
    %212 = vector.shape_cast %211 : vector<1x64x64xf32> to vector<64x64xf32>
    %213 = vector.shape_cast %210 : vector<64x64xf32> to vector<1x64x64xf32>
    tpu.vector_store %arg18[%c2, %c0_89, %c0_90], %213 {strides = array<i32>} : memref<8x64x64xf32, #tpu.memory_space<vmem>>, vector<1x64x64xf32>,
    %214 = arith.truncf %210 : vector<64x64xf32> to vector<64x64xbf16>
    %215 = arith.truncf %196 : vector<64x32xf32> to vector<64x32xbf16>
    %cst_91 = arith.constant dense<0.000000e+00> : vector<64x32xf32>
    %216 = tpu.matmul %214, %215, %cst_91 {dimension_numbers = #tpu.dot_dimension_numbers<[1], [0], [0], [1], [0, 0, 1, 1], [], []>} : vector<64x64xbf16>, vector<64x32xbf16>, vector<64x32xf32> -> vector<64x32xf32>
    %217 = arith.truncf %216 : vector<64x32xf32> to vector<64x32xbf16>
    %218 = vector.extract_strided_slice %191 {offsets = [0, 0], sizes = [32, 64], strides = [1, 1]} : vector<64x64xbf16> to vector<32x64xbf16>
    %cst_92 = arith.constant dense<0.000000e+00> : vector<64x64xf32>
    %219 = tpu.matmul %217, %218, %cst_92 {dimension_numbers = #tpu.dot_dimension_numbers<[1], [0], [0], [1], [0, 0, 1, 1], [], []>} : vector<64x32xbf16>, vector<32x64xbf16>, vector<64x64xf32> -> vector<64x64xf32>
    %220 = vector.extract_strided_slice %189 {offsets = [0, 32], sizes = [64, 32], strides = [1, 1]} : vector<64x192xf32> to vector<64x32xf32>
    %cst_93 = arith.constant 0.176776692 : f32
    %221 = vector.broadcast %cst_93 : f32 to vector<64x32xf32>
    %222 = arith.mulf %220, %221 : vector<64x32xf32>
    %223 = vector.extract_strided_slice %189 {offsets = [0, 96], sizes = [64, 32], strides = [1, 1]} : vector<64x192xf32> to vector<64x32xf32>
    %224 = vector.extract_strided_slice %189 {offsets = [0, 160], sizes = [64, 32], strides = [1, 1]} : vector<64x192xf32> to vector<64x32xf32>
    %225 = arith.truncf %222 : vector<64x32xf32> to vector<64x32xbf16>
    %226 = arith.truncf %223 : vector<64x32xf32> to vector<64x32xbf16>
    %cst_94 = arith.constant dense<0.000000e+00> : vector<64x64xf32>
    %227 = tpu.matmul %225, %226, %cst_94 {dimension_numbers = #tpu.dot_dimension_numbers<[1], [1], [0], [0], [0, 0, 1, 0], [], []>} : vector<64x32xbf16>, vector<64x32xbf16>, vector<64x64xf32> -> vector<64x64xf32>
    %228 = arith.addf %227, %17 : vector<64x64xf32>
    %cst_95 = arith.constant dense<0xFF800000> : vector<64xf32>
    %229 = vector.multi_reduction <maximumf>, %228, %cst_95 [1] : vector<64x64xf32> to vector<64xf32>
    %230 = vector.shape_cast %229 : vector<64xf32> to vector<64x1xf32>
    %231 = vector.broadcast %230 : vector<64x1xf32> to vector<64x64xf32>
    %232 = arith.subf %228, %231 : vector<64x64xf32>
    %233 = math.exp %232 : vector<64x64xf32>
    %cst_96 = arith.constant dense<0.000000e+00> : vector<64xf32>
    %234 = vector.multi_reduction <add>, %233, %cst_96 [1] : vector<64x64xf32> to vector<64xf32>
    %235 = vector.shape_cast %234 : vector<64xf32> to vector<64x1xf32>
    %236 = tpu.reciprocal %235 : vector<64x1xf32> -> vector<64x1xf32>
    %237 = vector.broadcast %236 : vector<64x1xf32> to vector<64x64xf32>
    %238 = arith.mulf %233, %237 : vector<64x64xf32>
    %c3 = arith.constant 3 : index
    %c0_97 = arith.constant 0 : index
    %c0_98 = arith.constant 0 : index
    %239 = vector.load %arg18[%c3, %c0_97, %c0_98] : memref<8x64x64xf32, #tpu.memory_space<vmem>>, vector<1x64x64xf32>
    %240 = vector.shape_cast %239 : vector<1x64x64xf32> to vector<64x64xf32>
    %241 = vector.shape_cast %238 : vector<64x64xf32> to vector<1x64x64xf32>
    tpu.vector_store %arg18[%c3, %c0_97, %c0_98], %241 {strides = array<i32>} : memref<8x64x64xf32, #tpu.memory_space<vmem>>, vector<1x64x64xf32>,
    %242 = arith.truncf %238 : vector<64x64xf32> to vector<64x64xbf16>
    %243 = arith.truncf %224 : vector<64x32xf32> to vector<64x32xbf16>
    %cst_99 = arith.constant dense<0.000000e+00> : vector<64x32xf32>
    %244 = tpu.matmul %242, %243, %cst_99 {dimension_numbers = #tpu.dot_dimension_numbers<[1], [0], [0], [1], [0, 0, 1, 1], [], []>} : vector<64x64xbf16>, vector<64x32xbf16>, vector<64x32xf32> -> vector<64x32xf32>
    %245 = arith.truncf %244 : vector<64x32xf32> to vector<64x32xbf16>
    %246 = vector.extract_strided_slice %191 {offsets = [32, 0], sizes = [32, 64], strides = [1, 1]} : vector<64x64xbf16> to vector<32x64xbf16>
    %cst_100 = arith.constant dense<0.000000e+00> : vector<64x64xf32>
    %247 = tpu.matmul %245, %246, %cst_100 {dimension_numbers = #tpu.dot_dimension_numbers<[1], [0], [0], [1], [0, 0, 1, 1], [], []>} : vector<64x32xbf16>, vector<32x64xbf16>, vector<64x64xf32> -> vector<64x64xf32>
    %248 = arith.addf %219, %247 : vector<64x64xf32>
    %249 = arith.addf %158, %248 : vector<64x64xf32>
    %c1_101 = arith.constant 1 : index
    %c0_102 = arith.constant 0 : index
    %c0_103 = arith.constant 0 : index
    %250 = vector.load %arg6[%c1_101, %c0_102, %c0_103] : memref<4x1x64xf32, #tpu.memory_space<vmem>>, vector<1x1x64xf32>
    %251 = vector.shape_cast %250 : vector<1x1x64xf32> to vector<1x64xf32>
    %252 = vector.broadcast %251 : vector<1x64xf32> to vector<64x64xf32>
    %253 = arith.addf %249, %252 : vector<64x64xf32>
    %c1_104 = arith.constant 1 : index
    %c0_105 = arith.constant 0 : index
    %c0_106 = arith.constant 0 : index
    %254 = vector.load %arg7[%c1_104, %c0_105, %c0_106] : memref<4x1x64xf32, #tpu.memory_space<vmem>>, vector<1x1x64xf32>
    %255 = vector.shape_cast %254 : vector<1x1x64xf32> to vector<1x64xf32>
    %c1_107 = arith.constant 1 : index
    %c0_108 = arith.constant 0 : index
    %c0_109 = arith.constant 0 : index
    %256 = vector.load %arg8[%c1_107, %c0_108, %c0_109] : memref<4x1x64xf32, #tpu.memory_space<vmem>>, vector<1x1x64xf32>
    %257 = vector.shape_cast %256 : vector<1x1x64xf32> to vector<1x64xf32>
    %cst_110 = arith.constant dense<0.000000e+00> : vector<64xf32>
    %258 = vector.multi_reduction <add>, %253, %cst_110 [1] : vector<64x64xf32> to vector<64xf32>
    %259 = vector.shape_cast %258 : vector<64xf32> to vector<64x1xf32>
    %cst_111 = arith.constant 6.400000e+01 : f32
    %260 = vector.broadcast %cst_111 : f32 to vector<64x1xf32>
    %261 = arith.divf %259, %260 : vector<64x1xf32>
    %262 = arith.mulf %253, %253 : vector<64x64xf32>
    %cst_112 = arith.constant dense<0.000000e+00> : vector<64xf32>
    %263 = vector.multi_reduction <add>, %262, %cst_112 [1] : vector<64x64xf32> to vector<64xf32>
    %264 = vector.shape_cast %263 : vector<64xf32> to vector<64x1xf32>
    %cst_113 = arith.constant 6.400000e+01 : f32
    %265 = vector.broadcast %cst_113 : f32 to vector<64x1xf32>
    %266 = arith.divf %264, %265 : vector<64x1xf32>
    %267 = arith.mulf %261, %261 : vector<64x1xf32>
    %268 = arith.subf %266, %267 : vector<64x1xf32>
    %cst_114 = arith.constant 9.99999974E-6 : f32
    %269 = vector.broadcast %cst_114 : f32 to vector<64x1xf32>
    %270 = arith.addf %268, %269 : vector<64x1xf32>
    %271 = math.rsqrt %270 : vector<64x1xf32>
    %272 = vector.broadcast %271 : vector<64x1xf32> to vector<64x64xf32>
    %273 = vector.broadcast %255 : vector<1x64xf32> to vector<64x64xf32>
    %274 = arith.mulf %272, %273 : vector<64x64xf32>
    %275 = arith.mulf %253, %274 : vector<64x64xf32>
    %276 = vector.broadcast %261 : vector<64x1xf32> to vector<64x64xf32>
    %277 = arith.mulf %276, %274 : vector<64x64xf32>
    %278 = vector.broadcast %257 : vector<1x64xf32> to vector<64x64xf32>
    %279 = arith.subf %278, %277 : vector<64x64xf32>
    %280 = arith.addf %275, %279 : vector<64x64xf32>
    %281 = arith.truncf %280 : vector<64x64xf32> to vector<64x64xbf16>
    %c1_115 = arith.constant 1 : index
    %c0_116 = arith.constant 0 : index
    %c0_117 = arith.constant 0 : index
    %282 = vector.load %arg9[%c1_115, %c0_116, %c0_117] : memref<4x64x256xbf16, #tpu.memory_space<vmem>>, vector<1x64x256xbf16>
    %283 = vector.shape_cast %282 : vector<1x64x256xbf16> to vector<64x256xbf16>
    %cst_118 = arith.constant dense<0.000000e+00> : vector<64x256xf32>
    %284 = tpu.matmul %281, %283, %cst_118 {dimension_numbers = #tpu.dot_dimension_numbers<[1], [0], [0], [1], [0, 0, 1, 1], [], []>} : vector<64x64xbf16>, vector<64x256xbf16>, vector<64x256xf32> -> vector<64x256xf32>
    %c1_119 = arith.constant 1 : index
    %c0_120 = arith.constant 0 : index
    %c0_121 = arith.constant 0 : index
    %285 = vector.load %arg10[%c1_119, %c0_120, %c0_121] : memref<4x1x256xf32, #tpu.memory_space<vmem>>, vector<1x1x256xf32>
    %286 = vector.shape_cast %285 : vector<1x1x256xf32> to vector<1x256xf32>
    %287 = vector.broadcast %286 : vector<1x256xf32> to vector<64x256xf32>
    %288 = arith.addf %284, %287 : vector<64x256xf32>
    %cst_122 = arith.constant 0.000000e+00 : f32
    %289 = vector.broadcast %cst_122 : f32 to vector<64x256xf32>
    %290 = arith.maximumf %288, %289 : vector<64x256xf32>
    %291 = arith.truncf %290 : vector<64x256xf32> to vector<64x256xbf16>
    %c1_123 = arith.constant 1 : index
    %c0_124 = arith.constant 0 : index
    %c0_125 = arith.constant 0 : index
    %292 = vector.load %arg11[%c1_123, %c0_124, %c0_125] : memref<4x256x64xbf16, #tpu.memory_space<vmem>>, vector<1x256x64xbf16>
    %293 = vector.shape_cast %292 : vector<1x256x64xbf16> to vector<256x64xbf16>
    %cst_126 = arith.constant dense<0.000000e+00> : vector<64x64xf32>
    %294 = tpu.matmul %291, %293, %cst_126 {dimension_numbers = #tpu.dot_dimension_numbers<[1], [0], [0], [1], [0, 0, 1, 1], [], []>} : vector<64x256xbf16>, vector<256x64xbf16>, vector<64x64xf32> -> vector<64x64xf32>
    %295 = arith.addf %253, %294 : vector<64x64xf32>
    %c1_127 = arith.constant 1 : index
    %c0_128 = arith.constant 0 : index
    %c0_129 = arith.constant 0 : index
    %296 = vector.load %arg12[%c1_127, %c0_128, %c0_129] : memref<4x1x64xf32, #tpu.memory_space<vmem>>, vector<1x1x64xf32>
    %297 = vector.shape_cast %296 : vector<1x1x64xf32> to vector<1x64xf32>
    %298 = vector.broadcast %297 : vector<1x64xf32> to vector<64x64xf32>
    %299 = arith.addf %295, %298 : vector<64x64xf32>
    %c2_130 = arith.constant 2 : index
    %c0_131 = arith.constant 0 : index
    %c0_132 = arith.constant 0 : index
    %300 = vector.load %arg2[%c2_130, %c0_131, %c0_132] : memref<4x1x64xf32, #tpu.memory_space<vmem>>, vector<1x1x64xf32>
    %301 = vector.shape_cast %300 : vector<1x1x64xf32> to vector<1x64xf32>
    %c2_133 = arith.constant 2 : index
    %c0_134 = arith.constant 0 : index
    %c0_135 = arith.constant 0 : index
    %302 = vector.load %arg3[%c2_133, %c0_134, %c0_135] : memref<4x1x64xf32, #tpu.memory_space<vmem>>, vector<1x1x64xf32>
    %303 = vector.shape_cast %302 : vector<1x1x64xf32> to vector<1x64xf32>
    %cst_136 = arith.constant dense<0.000000e+00> : vector<64xf32>
    %304 = vector.multi_reduction <add>, %299, %cst_136 [1] : vector<64x64xf32> to vector<64xf32>
    %305 = vector.shape_cast %304 : vector<64xf32> to vector<64x1xf32>
    %cst_137 = arith.constant 6.400000e+01 : f32
    %306 = vector.broadcast %cst_137 : f32 to vector<64x1xf32>
    %307 = arith.divf %305, %306 : vector<64x1xf32>
    %308 = arith.mulf %299, %299 : vector<64x64xf32>
    %cst_138 = arith.constant dense<0.000000e+00> : vector<64xf32>
    %309 = vector.multi_reduction <add>, %308, %cst_138 [1] : vector<64x64xf32> to vector<64xf32>
    %310 = vector.shape_cast %309 : vector<64xf32> to vector<64x1xf32>
    %cst_139 = arith.constant 6.400000e+01 : f32
    %311 = vector.broadcast %cst_139 : f32 to vector<64x1xf32>
    %312 = arith.divf %310, %311 : vector<64x1xf32>
    %313 = arith.mulf %307, %307 : vector<64x1xf32>
    %314 = arith.subf %312, %313 : vector<64x1xf32>
    %cst_140 = arith.constant 9.99999974E-6 : f32
    %315 = vector.broadcast %cst_140 : f32 to vector<64x1xf32>
    %316 = arith.addf %314, %315 : vector<64x1xf32>
    %317 = math.rsqrt %316 : vector<64x1xf32>
    %318 = vector.broadcast %317 : vector<64x1xf32> to vector<64x64xf32>
    %319 = vector.broadcast %301 : vector<1x64xf32> to vector<64x64xf32>
    %320 = arith.mulf %318, %319 : vector<64x64xf32>
    %321 = arith.mulf %299, %320 : vector<64x64xf32>
    %322 = vector.broadcast %307 : vector<64x1xf32> to vector<64x64xf32>
    %323 = arith.mulf %322, %320 : vector<64x64xf32>
    %324 = vector.broadcast %303 : vector<1x64xf32> to vector<64x64xf32>
    %325 = arith.subf %324, %323 : vector<64x64xf32>
    %326 = arith.addf %321, %325 : vector<64x64xf32>
    %327 = arith.truncf %326 : vector<64x64xf32> to vector<64x64xbf16>
    %c2_141 = arith.constant 2 : index
    %c0_142 = arith.constant 0 : index
    %c0_143 = arith.constant 0 : index
    %328 = vector.load %arg4[%c2_141, %c0_142, %c0_143] : memref<4x64x192xbf16, #tpu.memory_space<vmem>>, vector<1x64x192xbf16>
    %329 = vector.shape_cast %328 : vector<1x64x192xbf16> to vector<64x192xbf16>
    %cst_144 = arith.constant dense<0.000000e+00> : vector<64x192xf32>
    %330 = tpu.matmul %327, %329, %cst_144 {dimension_numbers = #tpu.dot_dimension_numbers<[1], [0], [0], [1], [0, 0, 1, 1], [], []>} : vector<64x64xbf16>, vector<64x192xbf16>, vector<64x192xf32> -> vector<64x192xf32>
    %c2_145 = arith.constant 2 : index
    %c0_146 = arith.constant 0 : index
    %c0_147 = arith.constant 0 : index
    %331 = vector.load %arg5[%c2_145, %c0_146, %c0_147] : memref<4x64x64xbf16, #tpu.memory_space<vmem>>, vector<1x64x64xbf16>
    %332 = vector.shape_cast %331 : vector<1x64x64xbf16> to vector<64x64xbf16>
    %333 = vector.extract_strided_slice %330 {offsets = [0, 0], sizes = [64, 32], strides = [1, 1]} : vector<64x192xf32> to vector<64x32xf32>
    %cst_148 = arith.constant 0.176776692 : f32
    %334 = vector.broadcast %cst_148 : f32 to vector<64x32xf32>
    %335 = arith.mulf %333, %334 : vector<64x32xf32>
    %336 = vector.extract_strided_slice %330 {offsets = [0, 64], sizes = [64, 32], strides = [1, 1]} : vector<64x192xf32> to vector<64x32xf32>
    %337 = vector.extract_strided_slice %330 {offsets = [0, 128], sizes = [64, 32], strides = [1, 1]} : vector<64x192xf32> to vector<64x32xf32>
    %338 = arith.truncf %335 : vector<64x32xf32> to vector<64x32xbf16>
    %339 = arith.truncf %336 : vector<64x32xf32> to vector<64x32xbf16>
    %cst_149 = arith.constant dense<0.000000e+00> : vector<64x64xf32>
    %340 = tpu.matmul %338, %339, %cst_149 {dimension_numbers = #tpu.dot_dimension_numbers<[1], [1], [0], [0], [0, 0, 1, 0], [], []>} : vector<64x32xbf16>, vector<64x32xbf16>, vector<64x64xf32> -> vector<64x64xf32>
    %341 = arith.addf %340, %17 : vector<64x64xf32>
    %cst_150 = arith.constant dense<0xFF800000> : vector<64xf32>
    %342 = vector.multi_reduction <maximumf>, %341, %cst_150 [1] : vector<64x64xf32> to vector<64xf32>
    %343 = vector.shape_cast %342 : vector<64xf32> to vector<64x1xf32>
    %344 = vector.broadcast %343 : vector<64x1xf32> to vector<64x64xf32>
    %345 = arith.subf %341, %344 : vector<64x64xf32>
    %346 = math.exp %345 : vector<64x64xf32>
    %cst_151 = arith.constant dense<0.000000e+00> : vector<64xf32>
    %347 = vector.multi_reduction <add>, %346, %cst_151 [1] : vector<64x64xf32> to vector<64xf32>
    %348 = vector.shape_cast %347 : vector<64xf32> to vector<64x1xf32>
    %349 = tpu.reciprocal %348 : vector<64x1xf32> -> vector<64x1xf32>
    %350 = vector.broadcast %349 : vector<64x1xf32> to vector<64x64xf32>
    %351 = arith.mulf %346, %350 : vector<64x64xf32>
    %c4 = arith.constant 4 : index
    %c0_152 = arith.constant 0 : index
    %c0_153 = arith.constant 0 : index
    %352 = vector.load %arg18[%c4, %c0_152, %c0_153] : memref<8x64x64xf32, #tpu.memory_space<vmem>>, vector<1x64x64xf32>
    %353 = vector.shape_cast %352 : vector<1x64x64xf32> to vector<64x64xf32>
    %354 = vector.shape_cast %351 : vector<64x64xf32> to vector<1x64x64xf32>
    tpu.vector_store %arg18[%c4, %c0_152, %c0_153], %354 {strides = array<i32>} : memref<8x64x64xf32, #tpu.memory_space<vmem>>, vector<1x64x64xf32>,
    %355 = arith.truncf %351 : vector<64x64xf32> to vector<64x64xbf16>
    %356 = arith.truncf %337 : vector<64x32xf32> to vector<64x32xbf16>
    %cst_154 = arith.constant dense<0.000000e+00> : vector<64x32xf32>
    %357 = tpu.matmul %355, %356, %cst_154 {dimension_numbers = #tpu.dot_dimension_numbers<[1], [0], [0], [1], [0, 0, 1, 1], [], []>} : vector<64x64xbf16>, vector<64x32xbf16>, vector<64x32xf32> -> vector<64x32xf32>
    %358 = arith.truncf %357 : vector<64x32xf32> to vector<64x32xbf16>
    %359 = vector.extract_strided_slice %332 {offsets = [0, 0], sizes = [32, 64], strides = [1, 1]} : vector<64x64xbf16> to vector<32x64xbf16>
    %cst_155 = arith.constant dense<0.000000e+00> : vector<64x64xf32>
    %360 = tpu.matmul %358, %359, %cst_155 {dimension_numbers = #tpu.dot_dimension_numbers<[1], [0], [0], [1], [0, 0, 1, 1], [], []>} : vector<64x32xbf16>, vector<32x64xbf16>, vector<64x64xf32> -> vector<64x64xf32>
    %361 = vector.extract_strided_slice %330 {offsets = [0, 32], sizes = [64, 32], strides = [1, 1]} : vector<64x192xf32> to vector<64x32xf32>
    %cst_156 = arith.constant 0.176776692 : f32
    %362 = vector.broadcast %cst_156 : f32 to vector<64x32xf32>
    %363 = arith.mulf %361, %362 : vector<64x32xf32>
    %364 = vector.extract_strided_slice %330 {offsets = [0, 96], sizes = [64, 32], strides = [1, 1]} : vector<64x192xf32> to vector<64x32xf32>
    %365 = vector.extract_strided_slice %330 {offsets = [0, 160], sizes = [64, 32], strides = [1, 1]} : vector<64x192xf32> to vector<64x32xf32>
    %366 = arith.truncf %363 : vector<64x32xf32> to vector<64x32xbf16>
    %367 = arith.truncf %364 : vector<64x32xf32> to vector<64x32xbf16>
    %cst_157 = arith.constant dense<0.000000e+00> : vector<64x64xf32>
    %368 = tpu.matmul %366, %367, %cst_157 {dimension_numbers = #tpu.dot_dimension_numbers<[1], [1], [0], [0], [0, 0, 1, 0], [], []>} : vector<64x32xbf16>, vector<64x32xbf16>, vector<64x64xf32> -> vector<64x64xf32>
    %369 = arith.addf %368, %17 : vector<64x64xf32>
    %cst_158 = arith.constant dense<0xFF800000> : vector<64xf32>
    %370 = vector.multi_reduction <maximumf>, %369, %cst_158 [1] : vector<64x64xf32> to vector<64xf32>
    %371 = vector.shape_cast %370 : vector<64xf32> to vector<64x1xf32>
    %372 = vector.broadcast %371 : vector<64x1xf32> to vector<64x64xf32>
    %373 = arith.subf %369, %372 : vector<64x64xf32>
    %374 = math.exp %373 : vector<64x64xf32>
    %cst_159 = arith.constant dense<0.000000e+00> : vector<64xf32>
    %375 = vector.multi_reduction <add>, %374, %cst_159 [1] : vector<64x64xf32> to vector<64xf32>
    %376 = vector.shape_cast %375 : vector<64xf32> to vector<64x1xf32>
    %377 = tpu.reciprocal %376 : vector<64x1xf32> -> vector<64x1xf32>
    %378 = vector.broadcast %377 : vector<64x1xf32> to vector<64x64xf32>
    %379 = arith.mulf %374, %378 : vector<64x64xf32>
    %c5 = arith.constant 5 : index
    %c0_160 = arith.constant 0 : index
    %c0_161 = arith.constant 0 : index
    %380 = vector.load %arg18[%c5, %c0_160, %c0_161] : memref<8x64x64xf32, #tpu.memory_space<vmem>>, vector<1x64x64xf32>
    %381 = vector.shape_cast %380 : vector<1x64x64xf32> to vector<64x64xf32>
    %382 = vector.shape_cast %379 : vector<64x64xf32> to vector<1x64x64xf32>
    tpu.vector_store %arg18[%c5, %c0_160, %c0_161], %382 {strides = array<i32>} : memref<8x64x64xf32, #tpu.memory_space<vmem>>, vector<1x64x64xf32>,
    %383 = arith.truncf %379 : vector<64x64xf32> to vector<64x64xbf16>
    %384 = arith.truncf %365 : vector<64x32xf32> to vector<64x32xbf16>
    %cst_162 = arith.constant dense<0.000000e+00> : vector<64x32xf32>
    %385 = tpu.matmul %383, %384, %cst_162 {dimension_numbers = #tpu.dot_dimension_numbers<[1], [0], [0], [1], [0, 0, 1, 1], [], []>} : vector<64x64xbf16>, vector<64x32xbf16>, vector<64x32xf32> -> vector<64x32xf32>
    %386 = arith.truncf %385 : vector<64x32xf32> to vector<64x32xbf16>
    %387 = vector.extract_strided_slice %332 {offsets = [32, 0], sizes = [32, 64], strides = [1, 1]} : vector<64x64xbf16> to vector<32x64xbf16>
    %cst_163 = arith.constant dense<0.000000e+00> : vector<64x64xf32>
    %388 = tpu.matmul %386, %387, %cst_163 {dimension_numbers = #tpu.dot_dimension_numbers<[1], [0], [0], [1], [0, 0, 1, 1], [], []>} : vector<64x32xbf16>, vector<32x64xbf16>, vector<64x64xf32> -> vector<64x64xf32>
    %389 = arith.addf %360, %388 : vector<64x64xf32>
    %390 = arith.addf %299, %389 : vector<64x64xf32>
    %c2_164 = arith.constant 2 : index
    %c0_165 = arith.constant 0 : index
    %c0_166 = arith.constant 0 : index
    %391 = vector.load %arg6[%c2_164, %c0_165, %c0_166] : memref<4x1x64xf32, #tpu.memory_space<vmem>>, vector<1x1x64xf32>
    %392 = vector.shape_cast %391 : vector<1x1x64xf32> to vector<1x64xf32>
    %393 = vector.broadcast %392 : vector<1x64xf32> to vector<64x64xf32>
    %394 = arith.addf %390, %393 : vector<64x64xf32>
    %c2_167 = arith.constant 2 : index
    %c0_168 = arith.constant 0 : index
    %c0_169 = arith.constant 0 : index
    %395 = vector.load %arg7[%c2_167, %c0_168, %c0_169] : memref<4x1x64xf32, #tpu.memory_space<vmem>>, vector<1x1x64xf32>
    %396 = vector.shape_cast %395 : vector<1x1x64xf32> to vector<1x64xf32>
    %c2_170 = arith.constant 2 : index
    %c0_171 = arith.constant 0 : index
    %c0_172 = arith.constant 0 : index
    %397 = vector.load %arg8[%c2_170, %c0_171, %c0_172] : memref<4x1x64xf32, #tpu.memory_space<vmem>>, vector<1x1x64xf32>
    %398 = vector.shape_cast %397 : vector<1x1x64xf32> to vector<1x64xf32>
    %cst_173 = arith.constant dense<0.000000e+00> : vector<64xf32>
    %399 = vector.multi_reduction <add>, %394, %cst_173 [1] : vector<64x64xf32> to vector<64xf32>
    %400 = vector.shape_cast %399 : vector<64xf32> to vector<64x1xf32>
    %cst_174 = arith.constant 6.400000e+01 : f32
    %401 = vector.broadcast %cst_174 : f32 to vector<64x1xf32>
    %402 = arith.divf %400, %401 : vector<64x1xf32>
    %403 = arith.mulf %394, %394 : vector<64x64xf32>
    %cst_175 = arith.constant dense<0.000000e+00> : vector<64xf32>
    %404 = vector.multi_reduction <add>, %403, %cst_175 [1] : vector<64x64xf32> to vector<64xf32>
    %405 = vector.shape_cast %404 : vector<64xf32> to vector<64x1xf32>
    %cst_176 = arith.constant 6.400000e+01 : f32
    %406 = vector.broadcast %cst_176 : f32 to vector<64x1xf32>
    %407 = arith.divf %405, %406 : vector<64x1xf32>
    %408 = arith.mulf %402, %402 : vector<64x1xf32>
    %409 = arith.subf %407, %408 : vector<64x1xf32>
    %cst_177 = arith.constant 9.99999974E-6 : f32
    %410 = vector.broadcast %cst_177 : f32 to vector<64x1xf32>
    %411 = arith.addf %409, %410 : vector<64x1xf32>
    %412 = math.rsqrt %411 : vector<64x1xf32>
    %413 = vector.broadcast %412 : vector<64x1xf32> to vector<64x64xf32>
    %414 = vector.broadcast %396 : vector<1x64xf32> to vector<64x64xf32>
    %415 = arith.mulf %413, %414 : vector<64x64xf32>
    %416 = arith.mulf %394, %415 : vector<64x64xf32>
    %417 = vector.broadcast %402 : vector<64x1xf32> to vector<64x64xf32>
    %418 = arith.mulf %417, %415 : vector<64x64xf32>
    %419 = vector.broadcast %398 : vector<1x64xf32> to vector<64x64xf32>
    %420 = arith.subf %419, %418 : vector<64x64xf32>
    %421 = arith.addf %416, %420 : vector<64x64xf32>
    %422 = arith.truncf %421 : vector<64x64xf32> to vector<64x64xbf16>
    %c2_178 = arith.constant 2 : index
    %c0_179 = arith.constant 0 : index
    %c0_180 = arith.constant 0 : index
    %423 = vector.load %arg9[%c2_178, %c0_179, %c0_180] : memref<4x64x256xbf16, #tpu.memory_space<vmem>>, vector<1x64x256xbf16>
    %424 = vector.shape_cast %423 : vector<1x64x256xbf16> to vector<64x256xbf16>
    %cst_181 = arith.constant dense<0.000000e+00> : vector<64x256xf32>
    %425 = tpu.matmul %422, %424, %cst_181 {dimension_numbers = #tpu.dot_dimension_numbers<[1], [0], [0], [1], [0, 0, 1, 1], [], []>} : vector<64x64xbf16>, vector<64x256xbf16>, vector<64x256xf32> -> vector<64x256xf32>
    %c2_182 = arith.constant 2 : index
    %c0_183 = arith.constant 0 : index
    %c0_184 = arith.constant 0 : index
    %426 = vector.load %arg10[%c2_182, %c0_183, %c0_184] : memref<4x1x256xf32, #tpu.memory_space<vmem>>, vector<1x1x256xf32>
    %427 = vector.shape_cast %426 : vector<1x1x256xf32> to vector<1x256xf32>
    %428 = vector.broadcast %427 : vector<1x256xf32> to vector<64x256xf32>
    %429 = arith.addf %425, %428 : vector<64x256xf32>
    %cst_185 = arith.constant 0.000000e+00 : f32
    %430 = vector.broadcast %cst_185 : f32 to vector<64x256xf32>
    %431 = arith.maximumf %429, %430 : vector<64x256xf32>
    %432 = arith.truncf %431 : vector<64x256xf32> to vector<64x256xbf16>
    %c2_186 = arith.constant 2 : index
    %c0_187 = arith.constant 0 : index
    %c0_188 = arith.constant 0 : index
    %433 = vector.load %arg11[%c2_186, %c0_187, %c0_188] : memref<4x256x64xbf16, #tpu.memory_space<vmem>>, vector<1x256x64xbf16>
    %434 = vector.shape_cast %433 : vector<1x256x64xbf16> to vector<256x64xbf16>
    %cst_189 = arith.constant dense<0.000000e+00> : vector<64x64xf32>
    %435 = tpu.matmul %432, %434, %cst_189 {dimension_numbers = #tpu.dot_dimension_numbers<[1], [0], [0], [1], [0, 0, 1, 1], [], []>} : vector<64x256xbf16>, vector<256x64xbf16>, vector<64x64xf32> -> vector<64x64xf32>
    %436 = arith.addf %394, %435 : vector<64x64xf32>
    %c2_190 = arith.constant 2 : index
    %c0_191 = arith.constant 0 : index
    %c0_192 = arith.constant 0 : index
    %437 = vector.load %arg12[%c2_190, %c0_191, %c0_192] : memref<4x1x64xf32, #tpu.memory_space<vmem>>, vector<1x1x64xf32>
    %438 = vector.shape_cast %437 : vector<1x1x64xf32> to vector<1x64xf32>
    %439 = vector.broadcast %438 : vector<1x64xf32> to vector<64x64xf32>
    %440 = arith.addf %436, %439 : vector<64x64xf32>
    %c3_193 = arith.constant 3 : index
    %c0_194 = arith.constant 0 : index
    %c0_195 = arith.constant 0 : index
    %441 = vector.load %arg2[%c3_193, %c0_194, %c0_195] : memref<4x1x64xf32, #tpu.memory_space<vmem>>, vector<1x1x64xf32>
    %442 = vector.shape_cast %441 : vector<1x1x64xf32> to vector<1x64xf32>
    %c3_196 = arith.constant 3 : index
    %c0_197 = arith.constant 0 : index
    %c0_198 = arith.constant 0 : index
    %443 = vector.load %arg3[%c3_196, %c0_197, %c0_198] : memref<4x1x64xf32, #tpu.memory_space<vmem>>, vector<1x1x64xf32>
    %444 = vector.shape_cast %443 : vector<1x1x64xf32> to vector<1x64xf32>
    %cst_199 = arith.constant dense<0.000000e+00> : vector<64xf32>
    %445 = vector.multi_reduction <add>, %440, %cst_199 [1] : vector<64x64xf32> to vector<64xf32>
    %446 = vector.shape_cast %445 : vector<64xf32> to vector<64x1xf32>
    %cst_200 = arith.constant 6.400000e+01 : f32
    %447 = vector.broadcast %cst_200 : f32 to vector<64x1xf32>
    %448 = arith.divf %446, %447 : vector<64x1xf32>
    %449 = arith.mulf %440, %440 : vector<64x64xf32>
    %cst_201 = arith.constant dense<0.000000e+00> : vector<64xf32>
    %450 = vector.multi_reduction <add>, %449, %cst_201 [1] : vector<64x64xf32> to vector<64xf32>
    %451 = vector.shape_cast %450 : vector<64xf32> to vector<64x1xf32>
    %cst_202 = arith.constant 6.400000e+01 : f32
    %452 = vector.broadcast %cst_202 : f32 to vector<64x1xf32>
    %453 = arith.divf %451, %452 : vector<64x1xf32>
    %454 = arith.mulf %448, %448 : vector<64x1xf32>
    %455 = arith.subf %453, %454 : vector<64x1xf32>
    %cst_203 = arith.constant 9.99999974E-6 : f32
    %456 = vector.broadcast %cst_203 : f32 to vector<64x1xf32>
    %457 = arith.addf %455, %456 : vector<64x1xf32>
    %458 = math.rsqrt %457 : vector<64x1xf32>
    %459 = vector.broadcast %458 : vector<64x1xf32> to vector<64x64xf32>
    %460 = vector.broadcast %442 : vector<1x64xf32> to vector<64x64xf32>
    %461 = arith.mulf %459, %460 : vector<64x64xf32>
    %462 = arith.mulf %440, %461 : vector<64x64xf32>
    %463 = vector.broadcast %448 : vector<64x1xf32> to vector<64x64xf32>
    %464 = arith.mulf %463, %461 : vector<64x64xf32>
    %465 = vector.broadcast %444 : vector<1x64xf32> to vector<64x64xf32>
    %466 = arith.subf %465, %464 : vector<64x64xf32>
    %467 = arith.addf %462, %466 : vector<64x64xf32>
    %468 = arith.truncf %467 : vector<64x64xf32> to vector<64x64xbf16>
    %c3_204 = arith.constant 3 : index
    %c0_205 = arith.constant 0 : index
    %c0_206 = arith.constant 0 : index
    %469 = vector.load %arg4[%c3_204, %c0_205, %c0_206] : memref<4x64x192xbf16, #tpu.memory_space<vmem>>, vector<1x64x192xbf16>
    %470 = vector.shape_cast %469 : vector<1x64x192xbf16> to vector<64x192xbf16>
    %cst_207 = arith.constant dense<0.000000e+00> : vector<64x192xf32>
    %471 = tpu.matmul %468, %470, %cst_207 {dimension_numbers = #tpu.dot_dimension_numbers<[1], [0], [0], [1], [0, 0, 1, 1], [], []>} : vector<64x64xbf16>, vector<64x192xbf16>, vector<64x192xf32> -> vector<64x192xf32>
    %c3_208 = arith.constant 3 : index
    %c0_209 = arith.constant 0 : index
    %c0_210 = arith.constant 0 : index
    %472 = vector.load %arg5[%c3_208, %c0_209, %c0_210] : memref<4x64x64xbf16, #tpu.memory_space<vmem>>, vector<1x64x64xbf16>
    %473 = vector.shape_cast %472 : vector<1x64x64xbf16> to vector<64x64xbf16>
    %474 = vector.extract_strided_slice %471 {offsets = [0, 0], sizes = [64, 32], strides = [1, 1]} : vector<64x192xf32> to vector<64x32xf32>
    %cst_211 = arith.constant 0.176776692 : f32
    %475 = vector.broadcast %cst_211 : f32 to vector<64x32xf32>
    %476 = arith.mulf %474, %475 : vector<64x32xf32>
    %477 = vector.extract_strided_slice %471 {offsets = [0, 64], sizes = [64, 32], strides = [1, 1]} : vector<64x192xf32> to vector<64x32xf32>
    %478 = vector.extract_strided_slice %471 {offsets = [0, 128], sizes = [64, 32], strides = [1, 1]} : vector<64x192xf32> to vector<64x32xf32>
    %479 = arith.truncf %476 : vector<64x32xf32> to vector<64x32xbf16>
    %480 = arith.truncf %477 : vector<64x32xf32> to vector<64x32xbf16>
    %cst_212 = arith.constant dense<0.000000e+00> : vector<64x64xf32>
    %481 = tpu.matmul %479, %480, %cst_212 {dimension_numbers = #tpu.dot_dimension_numbers<[1], [1], [0], [0], [0, 0, 1, 0], [], []>} : vector<64x32xbf16>, vector<64x32xbf16>, vector<64x64xf32> -> vector<64x64xf32>
    %482 = arith.addf %481, %17 : vector<64x64xf32>
    %cst_213 = arith.constant dense<0xFF800000> : vector<64xf32>
    %483 = vector.multi_reduction <maximumf>, %482, %cst_213 [1] : vector<64x64xf32> to vector<64xf32>
    %484 = vector.shape_cast %483 : vector<64xf32> to vector<64x1xf32>
    %485 = vector.broadcast %484 : vector<64x1xf32> to vector<64x64xf32>
    %486 = arith.subf %482, %485 : vector<64x64xf32>
    %487 = math.exp %486 : vector<64x64xf32>
    %cst_214 = arith.constant dense<0.000000e+00> : vector<64xf32>
    %488 = vector.multi_reduction <add>, %487, %cst_214 [1] : vector<64x64xf32> to vector<64xf32>
    %489 = vector.shape_cast %488 : vector<64xf32> to vector<64x1xf32>
    %490 = tpu.reciprocal %489 : vector<64x1xf32> -> vector<64x1xf32>
    %491 = vector.broadcast %490 : vector<64x1xf32> to vector<64x64xf32>
    %492 = arith.mulf %487, %491 : vector<64x64xf32>
    %c6 = arith.constant 6 : index
    %c0_215 = arith.constant 0 : index
    %c0_216 = arith.constant 0 : index
    %493 = vector.load %arg18[%c6, %c0_215, %c0_216] : memref<8x64x64xf32, #tpu.memory_space<vmem>>, vector<1x64x64xf32>
    %494 = vector.shape_cast %493 : vector<1x64x64xf32> to vector<64x64xf32>
    %495 = vector.shape_cast %492 : vector<64x64xf32> to vector<1x64x64xf32>
    tpu.vector_store %arg18[%c6, %c0_215, %c0_216], %495 {strides = array<i32>} : memref<8x64x64xf32, #tpu.memory_space<vmem>>, vector<1x64x64xf32>,
    %496 = arith.truncf %492 : vector<64x64xf32> to vector<64x64xbf16>
    %497 = arith.truncf %478 : vector<64x32xf32> to vector<64x32xbf16>
    %cst_217 = arith.constant dense<0.000000e+00> : vector<64x32xf32>
    %498 = tpu.matmul %496, %497, %cst_217 {dimension_numbers = #tpu.dot_dimension_numbers<[1], [0], [0], [1], [0, 0, 1, 1], [], []>} : vector<64x64xbf16>, vector<64x32xbf16>, vector<64x32xf32> -> vector<64x32xf32>
    %499 = arith.truncf %498 : vector<64x32xf32> to vector<64x32xbf16>
    %500 = vector.extract_strided_slice %473 {offsets = [0, 0], sizes = [32, 64], strides = [1, 1]} : vector<64x64xbf16> to vector<32x64xbf16>
    %cst_218 = arith.constant dense<0.000000e+00> : vector<64x64xf32>
    %501 = tpu.matmul %499, %500, %cst_218 {dimension_numbers = #tpu.dot_dimension_numbers<[1], [0], [0], [1], [0, 0, 1, 1], [], []>} : vector<64x32xbf16>, vector<32x64xbf16>, vector<64x64xf32> -> vector<64x64xf32>
    %502 = vector.extract_strided_slice %471 {offsets = [0, 32], sizes = [64, 32], strides = [1, 1]} : vector<64x192xf32> to vector<64x32xf32>
    %cst_219 = arith.constant 0.176776692 : f32
    %503 = vector.broadcast %cst_219 : f32 to vector<64x32xf32>
    %504 = arith.mulf %502, %503 : vector<64x32xf32>
    %505 = vector.extract_strided_slice %471 {offsets = [0, 96], sizes = [64, 32], strides = [1, 1]} : vector<64x192xf32> to vector<64x32xf32>
    %506 = vector.extract_strided_slice %471 {offsets = [0, 160], sizes = [64, 32], strides = [1, 1]} : vector<64x192xf32> to vector<64x32xf32>
    %507 = arith.truncf %504 : vector<64x32xf32> to vector<64x32xbf16>
    %508 = arith.truncf %505 : vector<64x32xf32> to vector<64x32xbf16>
    %cst_220 = arith.constant dense<0.000000e+00> : vector<64x64xf32>
    %509 = tpu.matmul %507, %508, %cst_220 {dimension_numbers = #tpu.dot_dimension_numbers<[1], [1], [0], [0], [0, 0, 1, 0], [], []>} : vector<64x32xbf16>, vector<64x32xbf16>, vector<64x64xf32> -> vector<64x64xf32>
    %510 = arith.addf %509, %17 : vector<64x64xf32>
    %cst_221 = arith.constant dense<0xFF800000> : vector<64xf32>
    %511 = vector.multi_reduction <maximumf>, %510, %cst_221 [1] : vector<64x64xf32> to vector<64xf32>
    %512 = vector.shape_cast %511 : vector<64xf32> to vector<64x1xf32>
    %513 = vector.broadcast %512 : vector<64x1xf32> to vector<64x64xf32>
    %514 = arith.subf %510, %513 : vector<64x64xf32>
    %515 = math.exp %514 : vector<64x64xf32>
    %cst_222 = arith.constant dense<0.000000e+00> : vector<64xf32>
    %516 = vector.multi_reduction <add>, %515, %cst_222 [1] : vector<64x64xf32> to vector<64xf32>
    %517 = vector.shape_cast %516 : vector<64xf32> to vector<64x1xf32>
    %518 = tpu.reciprocal %517 : vector<64x1xf32> -> vector<64x1xf32>
    %519 = vector.broadcast %518 : vector<64x1xf32> to vector<64x64xf32>
    %520 = arith.mulf %515, %519 : vector<64x64xf32>
    %c7 = arith.constant 7 : index
    %c0_223 = arith.constant 0 : index
    %c0_224 = arith.constant 0 : index
    %521 = vector.load %arg18[%c7, %c0_223, %c0_224] : memref<8x64x64xf32, #tpu.memory_space<vmem>>, vector<1x64x64xf32>
    %522 = vector.shape_cast %521 : vector<1x64x64xf32> to vector<64x64xf32>
    %523 = vector.shape_cast %520 : vector<64x64xf32> to vector<1x64x64xf32>
    tpu.vector_store %arg18[%c7, %c0_223, %c0_224], %523 {strides = array<i32>} : memref<8x64x64xf32, #tpu.memory_space<vmem>>, vector<1x64x64xf32>,
    %524 = arith.truncf %520 : vector<64x64xf32> to vector<64x64xbf16>
    %525 = arith.truncf %506 : vector<64x32xf32> to vector<64x32xbf16>
    %cst_225 = arith.constant dense<0.000000e+00> : vector<64x32xf32>
    %526 = tpu.matmul %524, %525, %cst_225 {dimension_numbers = #tpu.dot_dimension_numbers<[1], [0], [0], [1], [0, 0, 1, 1], [], []>} : vector<64x64xbf16>, vector<64x32xbf16>, vector<64x32xf32> -> vector<64x32xf32>
    %527 = arith.truncf %526 : vector<64x32xf32> to vector<64x32xbf16>
    %528 = vector.extract_strided_slice %473 {offsets = [32, 0], sizes = [32, 64], strides = [1, 1]} : vector<64x64xbf16> to vector<32x64xbf16>
    %cst_226 = arith.constant dense<0.000000e+00> : vector<64x64xf32>
    %529 = tpu.matmul %527, %528, %cst_226 {dimension_numbers = #tpu.dot_dimension_numbers<[1], [0], [0], [1], [0, 0, 1, 1], [], []>} : vector<64x32xbf16>, vector<32x64xbf16>, vector<64x64xf32> -> vector<64x64xf32>
    %530 = arith.addf %501, %529 : vector<64x64xf32>
    %531 = arith.addf %440, %530 : vector<64x64xf32>
    %c3_227 = arith.constant 3 : index
    %c0_228 = arith.constant 0 : index
    %c0_229 = arith.constant 0 : index
    %532 = vector.load %arg6[%c3_227, %c0_228, %c0_229] : memref<4x1x64xf32, #tpu.memory_space<vmem>>, vector<1x1x64xf32>
    %533 = vector.shape_cast %532 : vector<1x1x64xf32> to vector<1x64xf32>
    %534 = vector.broadcast %533 : vector<1x64xf32> to vector<64x64xf32>
    %535 = arith.addf %531, %534 : vector<64x64xf32>
    %c3_230 = arith.constant 3 : index
    %c0_231 = arith.constant 0 : index
    %c0_232 = arith.constant 0 : index
    %536 = vector.load %arg7[%c3_230, %c0_231, %c0_232] : memref<4x1x64xf32, #tpu.memory_space<vmem>>, vector<1x1x64xf32>
    %537 = vector.shape_cast %536 : vector<1x1x64xf32> to vector<1x64xf32>
    %c3_233 = arith.constant 3 : index
    %c0_234 = arith.constant 0 : index
    %c0_235 = arith.constant 0 : index
    %538 = vector.load %arg8[%c3_233, %c0_234, %c0_235] : memref<4x1x64xf32, #tpu.memory_space<vmem>>, vector<1x1x64xf32>
    %539 = vector.shape_cast %538 : vector<1x1x64xf32> to vector<1x64xf32>
    %cst_236 = arith.constant dense<0.000000e+00> : vector<64xf32>
    %540 = vector.multi_reduction <add>, %535, %cst_236 [1] : vector<64x64xf32> to vector<64xf32>
    %541 = vector.shape_cast %540 : vector<64xf32> to vector<64x1xf32>
    %cst_237 = arith.constant 6.400000e+01 : f32
    %542 = vector.broadcast %cst_237 : f32 to vector<64x1xf32>
    %543 = arith.divf %541, %542 : vector<64x1xf32>
    %544 = arith.mulf %535, %535 : vector<64x64xf32>
    %cst_238 = arith.constant dense<0.000000e+00> : vector<64xf32>
    %545 = vector.multi_reduction <add>, %544, %cst_238 [1] : vector<64x64xf32> to vector<64xf32>
    %546 = vector.shape_cast %545 : vector<64xf32> to vector<64x1xf32>
    %cst_239 = arith.constant 6.400000e+01 : f32
    %547 = vector.broadcast %cst_239 : f32 to vector<64x1xf32>
    %548 = arith.divf %546, %547 : vector<64x1xf32>
    %549 = arith.mulf %543, %543 : vector<64x1xf32>
    %550 = arith.subf %548, %549 : vector<64x1xf32>
    %cst_240 = arith.constant 9.99999974E-6 : f32
    %551 = vector.broadcast %cst_240 : f32 to vector<64x1xf32>
    %552 = arith.addf %550, %551 : vector<64x1xf32>
    %553 = math.rsqrt %552 : vector<64x1xf32>
    %554 = vector.broadcast %553 : vector<64x1xf32> to vector<64x64xf32>
    %555 = vector.broadcast %537 : vector<1x64xf32> to vector<64x64xf32>
    %556 = arith.mulf %554, %555 : vector<64x64xf32>
    %557 = arith.mulf %535, %556 : vector<64x64xf32>
    %558 = vector.broadcast %543 : vector<64x1xf32> to vector<64x64xf32>
    %559 = arith.mulf %558, %556 : vector<64x64xf32>
    %560 = vector.broadcast %539 : vector<1x64xf32> to vector<64x64xf32>
    %561 = arith.subf %560, %559 : vector<64x64xf32>
    %562 = arith.addf %557, %561 : vector<64x64xf32>
    %563 = arith.truncf %562 : vector<64x64xf32> to vector<64x64xbf16>
    %c3_241 = arith.constant 3 : index
    %c0_242 = arith.constant 0 : index
    %c0_243 = arith.constant 0 : index
    %564 = vector.load %arg9[%c3_241, %c0_242, %c0_243] : memref<4x64x256xbf16, #tpu.memory_space<vmem>>, vector<1x64x256xbf16>
    %565 = vector.shape_cast %564 : vector<1x64x256xbf16> to vector<64x256xbf16>
    %cst_244 = arith.constant dense<0.000000e+00> : vector<64x256xf32>
    %566 = tpu.matmul %563, %565, %cst_244 {dimension_numbers = #tpu.dot_dimension_numbers<[1], [0], [0], [1], [0, 0, 1, 1], [], []>} : vector<64x64xbf16>, vector<64x256xbf16>, vector<64x256xf32> -> vector<64x256xf32>
    %c3_245 = arith.constant 3 : index
    %c0_246 = arith.constant 0 : index
    %c0_247 = arith.constant 0 : index
    %567 = vector.load %arg10[%c3_245, %c0_246, %c0_247] : memref<4x1x256xf32, #tpu.memory_space<vmem>>, vector<1x1x256xf32>
    %568 = vector.shape_cast %567 : vector<1x1x256xf32> to vector<1x256xf32>
    %569 = vector.broadcast %568 : vector<1x256xf32> to vector<64x256xf32>
    %570 = arith.addf %566, %569 : vector<64x256xf32>
    %cst_248 = arith.constant 0.000000e+00 : f32
    %571 = vector.broadcast %cst_248 : f32 to vector<64x256xf32>
    %572 = arith.maximumf %570, %571 : vector<64x256xf32>
    %573 = arith.truncf %572 : vector<64x256xf32> to vector<64x256xbf16>
    %c3_249 = arith.constant 3 : index
    %c0_250 = arith.constant 0 : index
    %c0_251 = arith.constant 0 : index
    %574 = vector.load %arg11[%c3_249, %c0_250, %c0_251] : memref<4x256x64xbf16, #tpu.memory_space<vmem>>, vector<1x256x64xbf16>
    %575 = vector.shape_cast %574 : vector<1x256x64xbf16> to vector<256x64xbf16>
    %cst_252 = arith.constant dense<0.000000e+00> : vector<64x64xf32>
    %576 = tpu.matmul %573, %575, %cst_252 {dimension_numbers = #tpu.dot_dimension_numbers<[1], [0], [0], [1], [0, 0, 1, 1], [], []>} : vector<64x256xbf16>, vector<256x64xbf16>, vector<64x64xf32> -> vector<64x64xf32>
    %577 = arith.addf %535, %576 : vector<64x64xf32>
    %c3_253 = arith.constant 3 : index
    %c0_254 = arith.constant 0 : index
    %c0_255 = arith.constant 0 : index
    %578 = vector.load %arg12[%c3_253, %c0_254, %c0_255] : memref<4x1x64xf32, #tpu.memory_space<vmem>>, vector<1x1x64xf32>
    %579 = vector.shape_cast %578 : vector<1x1x64xf32> to vector<1x64xf32>
    %580 = vector.broadcast %579 : vector<1x64xf32> to vector<64x64xf32>
    %581 = arith.addf %577, %580 : vector<64x64xf32>
    %c0_256 = arith.constant 0 : index
    %c0_257 = arith.constant 0 : index
    %582 = vector.load %arg13[%c0_256, %c0_257] : memref<1x64xf32, #tpu.memory_space<vmem>>, vector<1x64xf32>
    %c0_258 = arith.constant 0 : index
    %c0_259 = arith.constant 0 : index
    %583 = vector.load %arg14[%c0_258, %c0_259] : memref<1x64xf32, #tpu.memory_space<vmem>>, vector<1x64xf32>
    %cst_260 = arith.constant dense<0.000000e+00> : vector<64xf32>
    %584 = vector.multi_reduction <add>, %581, %cst_260 [1] : vector<64x64xf32> to vector<64xf32>
    %585 = vector.shape_cast %584 : vector<64xf32> to vector<64x1xf32>
    %cst_261 = arith.constant 6.400000e+01 : f32
    %586 = vector.broadcast %cst_261 : f32 to vector<64x1xf32>
    %587 = arith.divf %585, %586 : vector<64x1xf32>
    %588 = arith.mulf %581, %581 : vector<64x64xf32>
    %cst_262 = arith.constant dense<0.000000e+00> : vector<64xf32>
    %589 = vector.multi_reduction <add>, %588, %cst_262 [1] : vector<64x64xf32> to vector<64xf32>
    %590 = vector.shape_cast %589 : vector<64xf32> to vector<64x1xf32>
    %cst_263 = arith.constant 6.400000e+01 : f32
    %591 = vector.broadcast %cst_263 : f32 to vector<64x1xf32>
    %592 = arith.divf %590, %591 : vector<64x1xf32>
    %593 = arith.mulf %587, %587 : vector<64x1xf32>
    %594 = arith.subf %592, %593 : vector<64x1xf32>
    %cst_264 = arith.constant 9.99999974E-6 : f32
    %595 = vector.broadcast %cst_264 : f32 to vector<64x1xf32>
    %596 = arith.addf %594, %595 : vector<64x1xf32>
    %597 = math.rsqrt %596 : vector<64x1xf32>
    %598 = vector.broadcast %597 : vector<64x1xf32> to vector<64x64xf32>
    %599 = vector.broadcast %582 : vector<1x64xf32> to vector<64x64xf32>
    %600 = arith.mulf %598, %599 : vector<64x64xf32>
    %601 = arith.mulf %581, %600 : vector<64x64xf32>
    %602 = vector.broadcast %587 : vector<64x1xf32> to vector<64x64xf32>
    %603 = arith.mulf %602, %600 : vector<64x64xf32>
    %604 = vector.broadcast %583 : vector<1x64xf32> to vector<64x64xf32>
    %605 = arith.subf %604, %603 : vector<64x64xf32>
    %606 = arith.addf %601, %605 : vector<64x64xf32>
    %607 = arith.truncf %606 : vector<64x64xf32> to vector<64x64xbf16>
    %c0_265 = arith.constant 0 : index
    %c0_266 = arith.constant 0 : index
    %608 = vector.load %arg15[%c0_265, %c0_266] : memref<64x128xbf16, #tpu.memory_space<vmem>>, vector<64x128xbf16>
    %cst_267 = arith.constant dense<0.000000e+00> : vector<64x128xf32>
    %609 = tpu.matmul %607, %608, %cst_267 {dimension_numbers = #tpu.dot_dimension_numbers<[1], [0], [0], [1], [0, 0, 1, 1], [], []>} : vector<64x64xbf16>, vector<64x128xbf16>, vector<64x128xf32> -> vector<64x128xf32>
    %c0_268 = arith.constant 0 : index
    %c0_269 = arith.constant 0 : index
    %610 = vector.load %arg16[%c0_268, %c0_269] : memref<1x128xf32, #tpu.memory_space<vmem>>, vector<1x128xf32>
    %611 = vector.broadcast %610 : vector<1x128xf32> to vector<64x128xf32>
    %612 = arith.addf %609, %611 : vector<64x128xf32>
    %c0_270 = arith.constant 0 : index
    %c0_271 = arith.constant 0 : index
    %613 = vector.load %arg17[%c0_270, %c0_271] : memref<64x128xf32, #tpu.memory_space<vmem>>, vector<64x128xf32>
    tpu.vector_store %arg17[%c0_270, %c0_271], %612 {strides = array<i32>} : memref<64x128xf32, #tpu.memory_space<vmem>>, vector<64x128xf32>,
    return
  }
  func.func @transform_0(%arg0: i32) -> (i32, i32) {
    %c0_i32 = arith.constant 0 : i32
    %c0_i32_0 = arith.constant 0 : i32
    %c0_i32_1 = arith.constant 0 : i32
    return %c0_i32, %c0_i32_0 : i32, i32
  }
  func.func @transform_1(%arg0: i32) -> (i32, i32, i32) {
    %c0_i32 = arith.constant 0 : i32
    %c0_i32_0 = arith.constant 0 : i32
    %c0_i32_1 = arith.constant 0 : i32
    %c0_i32_2 = arith.constant 0 : i32
    return %c0_i32, %c0_i32_0, %c0_i32_1 : i32, i32, i32
  }
  func.func @transform_2(%arg0: i32) -> (i32, i32, i32) {
    %c0_i32 = arith.constant 0 : i32
    %c0_i32_0 = arith.constant 0 : i32
    %c0_i32_1 = arith.constant 0 : i32
    %c0_i32_2 = arith.constant 0 : i32
    return %c0_i32, %c0_i32_0, %c0_i32_1 : i32, i32, i32
  }
  func.func @transform_3(%arg0: i32) -> (i32, i32, i32) {
    %c0_i32 = arith.constant 0 : i32
    %c0_i32_0 = arith.constant 0 : i32
    %c0_i32_1 = arith.constant 0 : i32
    %c0_i32_2 = arith.constant 0 : i32
    return %c0_i32, %c0_i32_0, %c0_i32_1 : i32, i32, i32
  }
  func.func @transform_4(%arg0: i32) -> (i32, i32, i32) {
    %c0_i32 = arith.constant 0 : i32
    %c0_i32_0 = arith.constant 0 : i32
    %c0_i32_1 = arith.constant 0 : i32
    %c0_i32_2 = arith.constant 0 : i32
    return %c0_i32, %c0_i32_0, %c0_i32_1 : i32, i32, i32
  }
  func.func @transform_5(%arg0: i32) -> (i32, i32, i32) {
    %c0_i32 = arith.constant 0 : i32
    %c0_i32_0 = arith.constant 0 : i32
    %c0_i32_1 = arith.constant 0 : i32
    %c0_i32_2 = arith.constant 0 : i32
    return %c0_i32, %c0_i32_0, %c0_i32_1 : i32, i32, i32
  }
  func.func @transform_6(%arg0: i32) -> (i32, i32, i32) {
    %c0_i32 = arith.constant 0 : i32
    %c0_i32_0 = arith.constant 0 : i32
    %c0_i32_1 = arith.constant 0 : i32
    %c0_i32_2 = arith.constant 0 : i32
    return %c0_i32, %c0_i32_0, %c0_i32_1 : i32, i32, i32
  }
  func.func @transform_7(%arg0: i32) -> (i32, i32, i32) {
    %c0_i32 = arith.constant 0 : i32
    %c0_i32_0 = arith.constant 0 : i32
    %c0_i32_1 = arith.constant 0 : i32
    %c0_i32_2 = arith.constant 0 : i32
    return %c0_i32, %c0_i32_0, %c0_i32_1 : i32, i32, i32
  }
  func.func @transform_8(%arg0: i32) -> (i32, i32, i32) {
    %c0_i32 = arith.constant 0 : i32
    %c0_i32_0 = arith.constant 0 : i32
    %c0_i32_1 = arith.constant 0 : i32
    %c0_i32_2 = arith.constant 0 : i32
    return %c0_i32, %c0_i32_0, %c0_i32_1 : i32, i32, i32
  }
  func.func @transform_9(%arg0: i32) -> (i32, i32, i32) {
    %c0_i32 = arith.constant 0 : i32
    %c0_i32_0 = arith.constant 0 : i32
    %c0_i32_1 = arith.constant 0 : i32
    %c0_i32_2 = arith.constant 0 : i32
    return %c0_i32, %c0_i32_0, %c0_i32_1 : i32, i32, i32
  }
  func.func @transform_10(%arg0: i32) -> (i32, i32, i32) {
    %c0_i32 = arith.constant 0 : i32
    %c0_i32_0 = arith.constant 0 : i32
    %c0_i32_1 = arith.constant 0 : i32
    %c0_i32_2 = arith.constant 0 : i32
    return %c0_i32, %c0_i32_0, %c0_i32_1 : i32, i32, i32
  }
  func.func @transform_11(%arg0: i32) -> (i32, i32, i32) {
    %c0_i32 = arith.constant 0 : i32
    %c0_i32_0 = arith.constant 0 : i32
    %c0_i32_1 = arith.constant 0 : i32
    %c0_i32_2 = arith.constant 0 : i32
    return %c0_i32, %c0_i32_0, %c0_i32_1 : i32, i32, i32
  }
  func.func @transform_12(%arg0: i32) -> (i32, i32) {
    %c0_i32 = arith.constant 0 : i32
    %c0_i32_0 = arith.constant 0 : i32
    %c0_i32_1 = arith.constant 0 : i32
    return %c0_i32, %c0_i32_0 : i32, i32
  }
  func.func @transform_13(%arg0: i32) -> (i32, i32) {
    %c0_i32 = arith.constant 0 : i32
    %c0_i32_0 = arith.constant 0 : i32
    %c0_i32_1 = arith.constant 0 : i32
    return %c0_i32, %c0_i32_0 : i32, i32
  }
  func.func @transform_14(%arg0: i32) -> (i32, i32) {
    %c0_i32 = arith.constant 0 : i32
    %c0_i32_0 = arith.constant 0 : i32
    %c0_i32_1 = arith.constant 0 : i32
    return %c0_i32, %c0_i32_0 : i32, i32
  }
  func.func @transform_15(%arg0: i32) -> (i32, i32) {
    %c0_i32 = arith.constant 0 : i32
    %c0_i32_0 = arith.constant 0 : i32
    %c0_i32_1 = arith.constant 0 : i32
    return %c0_i32, %c0_i32_0 : i32, i32
  }
  func.func @transform_16(%arg0: i32) -> (i32, i32) {
    %c0_i32 = arith.constant 0 : i32
    %c0_i32_0 = arith.constant 0 : i32
    %c0_i32_1 = arith.constant 0 : i32
    return %c0_i32, %c0_i32_0 : i32, i32
  }
  func.func @transform_17(%arg0: i32) -> (i32, i32, i32) {
    %c0_i32 = arith.constant 0 : i32
    %c0_i32_0 = arith.constant 0 : i32
    %c0_i32_1 = arith.constant 0 : i32
    %c0_i32_2 = arith.constant 0 : i32
    return %c0_i32, %c0_i32_0, %c0_i32_1 : i32, i32, i32
  }
}

</mosaic_0001>

<llo_original>
// kernel: sparse_decoder_forward.1
$region0: #{sparse_decoder_forward.1}
  #allocation0 [shape = 'u32[]', space=smem, size = 0x4, offset = 0x4, fixed_abs, tag = 'smem constant byte address 0x4 - core index']
  #allocation1 [shape = 'u32[144,128]{1,0:T(1,128)}', space=vmem, size = 0x12000, scoped, tag = 'internal scratch']
  %s0 = inlined_call_operand.vmem [shape: f32[64,64], index: 0, kind: input, shape index: {}]
  %s1 = inlined_call_operand.vmem [shape: f32[4,1,64], index: 1, kind: input, shape index: {}]
  %s2 = inlined_call_operand.vmem [shape: f32[4,1,64], index: 2, kind: input, shape index: {}]
  %s3 = inlined_call_operand.vmem [shape: bf16[4,64,192], index: 3, kind: input, shape index: {}]
  %s4 = inlined_call_operand.vmem [shape: bf16[4,64,64], index: 4, kind: input, shape index: {}]
  %s5 = inlined_call_operand.vmem [shape: f32[4,1,64], index: 5, kind: input, shape index: {}]
  %s6 = inlined_call_operand.vmem [shape: f32[4,1,64], index: 6, kind: input, shape index: {}]
  %s7 = inlined_call_operand.vmem [shape: f32[4,1,64], index: 7, kind: input, shape index: {}]
  %s8 = inlined_call_operand.vmem [shape: bf16[4,64,256], index: 8, kind: input, shape index: {}]
  %s9 = inlined_call_operand.vmem [shape: f32[4,1,256], index: 9, kind: input, shape index: {}]
  %s10 = inlined_call_operand.vmem [shape: bf16[4,256,64], index: 10, kind: input, shape index: {}]
  %s11 = inlined_call_operand.vmem [shape: f32[4,1,64], index: 11, kind: input, shape index: {}]
  %s12 = inlined_call_operand.vmem [shape: f32[1,64], index: 12, kind: input, shape index: {}]
  %s13 = inlined_call_operand.vmem [shape: f32[1,64], index: 13, kind: input, shape index: {}]
  %s14 = inlined_call_operand.vmem [shape: bf16[64,128], index: 14, kind: input, shape index: {}]
  %s15 = inlined_call_operand.vmem [shape: f32[1,128], index: 15, kind: input, shape index: {}]
  %s16 = inlined_call_operand.hbm [shape: f32[64,128], index: 16, kind: output, shape index: {0}]
  %s17 = inlined_call_operand.vmem [shape: f32[8,64,64], index: 17, kind: output, shape index: {1}]
  %18 = xla_tuple %s16, %s17
  %s19 = sld [smem:[#allocation0]]
  $region82: #{sparse_decoder_forward.1} parent=0
    _
  %s21 = ssub.s32 1, %s19
  %s22 = scalar_select 0, %s21, %s19
  $region1: #{sparse_decoder_forward.1} parent=0
    #allocation2 [shape = 'u8[32768]{0}', space=vmem, size = 0x8000, scoped, tag = 'output window, operand 0, single buffered']
    #allocation3 [shape = 's32[1]{0}', space=sflag, size = 0x4, scoped, tag = 'scoped memory for sparse_decoder_forward.1']
    %23 = vsyncpa [#allocation3], 0
    // Predicated region
    $region2: #{sparse_decoder_forward.1} parent=1 // pred_check
      _
    $region3: #{sparse_decoder_forward.1} parent=1 // pred_check_branch
      %25 = sbr.rel (0) target = $region5
    $region4: #{sparse_decoder_forward.1} parent=1 // pred_region
      _
    $region5: #{sparse_decoder_forward.1} parent=1 // pred_fallthru
      _
    // Predicated region
    $region6: #{sparse_decoder_forward.1} parent=1 // pred_check
      _
    $region7: #{sparse_decoder_forward.1} parent=1 // pred_check_branch
      %27 = sbr.rel (0) target = $region9
    $region8: #{sparse_decoder_forward.1} parent=1 // pred_region
      _
    $region9: #{sparse_decoder_forward.1} parent=1 // pred_fallthru
      _
    // Predicated region
    $region10: #{sparse_decoder_forward.1} parent=1 // pred_check
      _
    $region11: #{sparse_decoder_forward.1} parent=1 // pred_check_branch
      %29 = sbr.rel (0) target = $region13
    $region12: #{sparse_decoder_forward.1} parent=1 // pred_region
      _
    $region13: #{sparse_decoder_forward.1} parent=1 // pred_fallthru
      _
    // Predicated region
    $region14: #{sparse_decoder_forward.1} parent=1 // pred_check
      _
    $region15: #{sparse_decoder_forward.1} parent=1 // pred_check_branch
      %31 = sbr.rel (0) target = $region17
    $region16: #{sparse_decoder_forward.1} parent=1 // pred_region
      _
    $region17: #{sparse_decoder_forward.1} parent=1 // pred_fallthru
      _
    // Predicated region
    $region18: #{sparse_decoder_forward.1} parent=1 // pred_check
      _
    $region19: #{sparse_decoder_forward.1} parent=1 // pred_check_branch
      %33 = sbr.rel (0) target = $region21
    $region20: #{sparse_decoder_forward.1} parent=1 // pred_region
      _
    $region21: #{sparse_decoder_forward.1} parent=1 // pred_fallthru
      _
    // Predicated region
    $region22: #{sparse_decoder_forward.1} parent=1 // pred_check
      _
    $region23: #{sparse_decoder_forward.1} parent=1 // pred_check_branch
      %35 = sbr.rel (0) target = $region25
    $region24: #{sparse_decoder_forward.1} parent=1 // pred_region
      _
    $region25: #{sparse_decoder_forward.1} parent=1 // pred_fallthru
      _
    // Predicated region
    $region26: #{sparse_decoder_forward.1} parent=1 // pred_check
      _
    $region27: #{sparse_decoder_forward.1} parent=1 // pred_check_branch
      %37 = sbr.rel (0) target = $region29
    $region28: #{sparse_decoder_forward.1} parent=1 // pred_region
      _
    $region29: #{sparse_decoder_forward.1} parent=1 // pred_fallthru
      _
    // Predicated region
    $region30: #{sparse_decoder_forward.1} parent=1 // pred_check
      _
    $region31: #{sparse_decoder_forward.1} parent=1 // pred_check_branch
      %39 = sbr.rel (0) target = $region33
    $region32: #{sparse_decoder_forward.1} parent=1 // pred_region
      _
    $region33: #{sparse_decoder_forward.1} parent=1 // pred_fallthru
      _
    // Predicated region
    $region34: #{sparse_decoder_forward.1} parent=1 // pred_check
      _
    $region35: #{sparse_decoder_forward.1} parent=1 // pred_check_branch
      %41 = sbr.rel (0) target = $region37
    $region36: #{sparse_decoder_forward.1} parent=1 // pred_region
      _
    $region37: #{sparse_decoder_forward.1} parent=1 // pred_fallthru
      _
    // Predicated region
    $region38: #{sparse_decoder_forward.1} parent=1 // pred_check
      _
    $region39: #{sparse_decoder_forward.1} parent=1 // pred_check_branch
      %43 = sbr.rel (0) target = $region41
    $region40: #{sparse_decoder_forward.1} parent=1 // pred_region
      _
    $region41: #{sparse_decoder_forward.1} parent=1 // pred_fallthru
      _
    // Predicated region
    $region42: #{sparse_decoder_forward.1} parent=1 // pred_check
      _
    $region43: #{sparse_decoder_forward.1} parent=1 // pred_check_branch
      %45 = sbr.rel (0) target = $region45
    $region44: #{sparse_decoder_forward.1} parent=1 // pred_region
      _
    $region45: #{sparse_decoder_forward.1} parent=1 // pred_fallthru
      _
    // Predicated region
    $region46: #{sparse_decoder_forward.1} parent=1 // pred_check
      _
    $region47: #{sparse_decoder_forward.1} parent=1 // pred_check_branch
      %47 = sbr.rel (0) target = $region49
    $region48: #{sparse_decoder_forward.1} parent=1 // pred_region
      _
    $region49: #{sparse_decoder_forward.1} parent=1 // pred_fallthru
      _
    // Predicated region
    $region50: #{sparse_decoder_forward.1} parent=1 // pred_check
      _
    $region51: #{sparse_decoder_forward.1} parent=1 // pred_check_branch
      %49 = sbr.rel (0) target = $region53
    $region52: #{sparse_decoder_forward.1} parent=1 // pred_region
      _
    $region53: #{sparse_decoder_forward.1} parent=1 // pred_fallthru
      _
    // Predicated region
    $region54: #{sparse_decoder_forward.1} parent=1 // pred_check
      _
    $region55: #{sparse_decoder_forward.1} parent=1 // pred_check_branch
      %51 = sbr.rel (0) target = $region57
    $region56: #{sparse_decoder_forward.1} parent=1 // pred_region
      _
    $region57: #{sparse_decoder_forward.1} parent=1 // pred_fallthru
      _
    // Predicated region
    $region58: #{sparse_decoder_forward.1} parent=1 // pred_check
      _
    $region59: #{sparse_decoder_forward.1} parent=1 // pred_check_branch
      %53 = sbr.rel (0) target = $region61
    $region60: #{sparse_decoder_forward.1} parent=1 // pred_region
      _
    $region61: #{sparse_decoder_forward.1} parent=1 // pred_fallthru
      _
    // Predicated region
    $region62: #{sparse_decoder_forward.1} parent=1 // pred_check
      _
    $region63: #{sparse_decoder_forward.1} parent=1 // pred_check_branch
      %55 = sbr.rel (0) target = $region65
    $region64: #{sparse_decoder_forward.1} parent=1 // pred_region
      _
    $region65: #{sparse_decoder_forward.1} parent=1 // pred_fallthru
      _
    %v57 = vld [vmem:[%s0] sm:$0xff]
    %v58 = vld [vmem:[%s0 + $0x8] sm:$0xff]
    %v59 = vld [vmem:[%s0 + $0x10] sm:$0xff]
    %v60 = vld [vmem:[%s0 + $0x18] sm:$0xff]
    %v61 = vld [vmem:[%s0 + $0x20] sm:$0xff]
    %v62 = vld [vmem:[%s0 + $0x28] sm:$0xff]
    %v63 = vld [vmem:[%s0 + $0x30] sm:$0xff]
    %v64 = vld [vmem:[%s0 + $0x38] sm:$0xff]
    %v65 = vlaneseq
    %v66 = vshrl.u32 %v65, 7
    %v67 = vadd.s32 %v66, 8
    %v68 = vadd.s32 %v66, 16
    %v69 = vadd.s32 %v66, 24
    %v70 = vadd.s32 %v66, 32
    %v71 = vadd.s32 %v66, 40
    %v72 = vadd.s32 %v66, 48
    %v73 = vadd.s32 %v66, 56
    %v74 = vlaneseq
    %v75 = vand.u32 %v74, 127
    %v76 = vand.u32 %v66, 4294967264
    %v77 = vand.u32 %v67, 4294967264
    %v78 = vand.u32 %v68, 4294967264
    %v79 = vand.u32 %v69, 4294967264
    %v80 = vand.u32 %v70, 4294967264
    %v81 = vand.u32 %v71, 4294967264
    %v82 = vand.u32 %v72, 4294967264
    %v83 = vand.u32 %v73, 4294967264
    %v84 = vand.u32 %v75, 4294967264
    %vm85 = vcmp.eq.s32.totalorder %v76, %v84
    %vm86 = vcmp.eq.s32.totalorder %v77, %v84
    %vm87 = vcmp.eq.s32.totalorder %v78, %v84
    %vm88 = vcmp.eq.s32.totalorder %v79, %v84
    %vm89 = vcmp.eq.s32.totalorder %v80, %v84
    %vm90 = vcmp.eq.s32.totalorder %v81, %v84
    %vm91 = vcmp.eq.s32.totalorder %v82, %v84
    %vm92 = vcmp.eq.s32.totalorder %v83, %v84
    %v93 = vsub.s32 %v66, %v75
    %v94 = vsub.s32 %v67, %v75
    %v95 = vsub.s32 %v68, %v75
    %v96 = vsub.s32 %v69, %v75
    %v97 = vsub.s32 %v70, %v75
    %v98 = vsub.s32 %v71, %v75
    %v99 = vsub.s32 %v72, %v75
    %v100 = vsub.s32 %v73, %v75
    %vm101 = vcmp.ge.s32.totalorder %v93, 0
    %vm102 = vcmp.ge.s32.totalorder %v94, 0
    %vm103 = vcmp.ge.s32.totalorder %v95, 0
    %vm104 = vcmp.ge.s32.totalorder %v96, 0
    %vm105 = vcmp.ge.s32.totalorder %v97, 0
    %vm106 = vcmp.ge.s32.totalorder %v98, 0
    %vm107 = vcmp.ge.s32.totalorder %v99, 0
    %vm108 = vcmp.ge.s32.totalorder %v100, 0
    %vm109 = vmand %vm85, %vm101
    %vm110 = vmand %vm86, %vm102
    %vm111 = vmand %vm87, %vm103
    %vm112 = vmand %vm88, %vm104
    %vm113 = vmand %vm89, %vm105
    %vm114 = vmand %vm90, %vm106
    %vm115 = vmand %vm91, %vm107
    %vm116 = vmand %vm92, %vm108
    %vm117 = vcmp.lt.s32.totalorder %v93, 8
    %vm118 = vcmp.lt.s32.totalorder %v94, 8
    %vm119 = vcmp.lt.s32.totalorder %v95, 8
    %vm120 = vcmp.lt.s32.totalorder %v96, 8
    %vm121 = vcmp.lt.s32.totalorder %v97, 8
    %vm122 = vcmp.lt.s32.totalorder %v98, 8
    %vm123 = vcmp.lt.s32.totalorder %v99, 8
    %vm124 = vcmp.lt.s32.totalorder %v100, 8
    %vm125 = vmand %vm109, %vm117
    %vm126 = vmand %vm110, %vm118
    %vm127 = vmand %vm111, %vm119
    %vm128 = vmand %vm112, %vm120
    %vm129 = vmand %vm113, %vm121
    %vm130 = vmand %vm114, %vm122
    %vm131 = vmand %vm115, %vm123
    %vm132 = vmand %vm116, %vm124
    %v133 = vsel %vm125, 0.0, -1e+30
    %v134 = vsel %vm126, 0.0, -1e+30
    %v135 = vsel %vm127, 0.0, -1e+30
    %v136 = vsel %vm128, 0.0, -1e+30
    %v137 = vsel %vm129, 0.0, -1e+30
    %v138 = vsel %vm130, 0.0, -1e+30
    %v139 = vsel %vm131, 0.0, -1e+30
    %v140 = vsel %vm132, 0.0, -1e+30
    %v141 = vld [vmem:[%s1] sm:$0x1]
    %v142 = vld [vmem:[%s2] sm:$0x1]
    %vm143 = vcmask 523264
    %v144 = vsel %vm143, %v57, 0.0
    %145 = vadd.xlane.f32.xlu0 %v144
    %v146 = vpop.xlane.xlu0 %145
    %v147 = vsel %vm143, %v58, 0.0
    %148 = vadd.xlane.f32.xlu0 %v147
    %v149 = vpop.xlane.xlu0 %148
    %v150 = vsel %vm143, %v59, 0.0
    %151 = vadd.xlane.f32.xlu0 %v150
    %v152 = vpop.xlane.xlu0 %151
    %v153 = vsel %vm143, %v60, 0.0
    %154 = vadd.xlane.f32.xlu0 %v153
    %v155 = vpop.xlane.xlu0 %154
    %v156 = vsel %vm143, %v61, 0.0
    %157 = vadd.xlane.f32.xlu0 %v156
    %v158 = vpop.xlane.xlu0 %157
    %v159 = vsel %vm143, %v62, 0.0
    %160 = vadd.xlane.f32.xlu0 %v159
    %v161 = vpop.xlane.xlu0 %160
    %v162 = vsel %vm143, %v63, 0.0
    %163 = vadd.xlane.f32.xlu0 %v162
    %v164 = vpop.xlane.xlu0 %163
    %v165 = vsel %vm143, %v64, 0.0
    %166 = vadd.xlane.f32.xlu0 %v165
    %v167 = vpop.xlane.xlu0 %166
    %v168 = vrcp.pop 64.0
    %v169 = vmul.f32 %v146, %v168
    %v170 = vmul.f32 %v149, %v168
    %v171 = vmul.f32 %v152, %v168
    %v172 = vmul.f32 %v155, %v168
    %v173 = vmul.f32 %v158, %v168
    %v174 = vmul.f32 %v161, %v168
    %v175 = vmul.f32 %v164, %v168
    %v176 = vmul.f32 %v167, %v168
    %v177 = vmul.f32 %v57, %v57
    %v178 = vmul.f32 %v58, %v58
    %v179 = vmul.f32 %v59, %v59
    %v180 = vmul.f32 %v60, %v60
    %v181 = vmul.f32 %v61, %v61
    %v182 = vmul.f32 %v62, %v62
    %v183 = vmul.f32 %v63, %v63
    %v184 = vmul.f32 %v64, %v64
    %v185 = vsel %vm143, %v177, 0.0
    %186 = vadd.xlane.f32.xlu0 %v185
    %v187 = vpop.xlane.xlu0 %186
    %v188 = vsel %vm143, %v178, 0.0
    %189 = vadd.xlane.f32.xlu0 %v188
    %v190 = vpop.xlane.xlu0 %189
    %v191 = vsel %vm143, %v179, 0.0
    %192 = vadd.xlane.f32.xlu0 %v191
    %v193 = vpop.xlane.xlu0 %192
    %v194 = vsel %vm143, %v180, 0.0
    %195 = vadd.xlane.f32.xlu0 %v194
    %v196 = vpop.xlane.xlu0 %195
    %v197 = vsel %vm143, %v181, 0.0
    %198 = vadd.xlane.f32.xlu0 %v197
    %v199 = vpop.xlane.xlu0 %198
    %v200 = vsel %vm143, %v182, 0.0
    %201 = vadd.xlane.f32.xlu0 %v200
    %v202 = vpop.xlane.xlu0 %201
    %v203 = vsel %vm143, %v183, 0.0
    %204 = vadd.xlane.f32.xlu0 %v203
    %v205 = vpop.xlane.xlu0 %204
    %v206 = vsel %vm143, %v184, 0.0
    %207 = vadd.xlane.f32.xlu0 %v206
    %v208 = vpop.xlane.xlu0 %207
    %v209 = vmul.f32 %v187, %v168
    %v210 = vmul.f32 %v190, %v168
    %v211 = vmul.f32 %v193, %v168
    %v212 = vmul.f32 %v196, %v168
    %v213 = vmul.f32 %v199, %v168
    %v214 = vmul.f32 %v202, %v168
    %v215 = vmul.f32 %v205, %v168
    %v216 = vmul.f32 %v208, %v168
    %v217 = vmul.f32 %v169, %v169
    %v218 = vmul.f32 %v170, %v170
    %v219 = vmul.f32 %v171, %v171
    %v220 = vmul.f32 %v172, %v172
    %v221 = vmul.f32 %v173, %v173
    %v222 = vmul.f32 %v174, %v174
    %v223 = vmul.f32 %v175, %v175
    %v224 = vmul.f32 %v176, %v176
    %v225 = vsub.f32 %v209, %v217
    %v226 = vsub.f32 %v210, %v218
    %v227 = vsub.f32 %v211, %v219
    %v228 = vsub.f32 %v212, %v220
    %v229 = vsub.f32 %v213, %v221
    %v230 = vsub.f32 %v214, %v222
    %v231 = vsub.f32 %v215, %v223
    %v232 = vsub.f32 %v216, %v224
    %v233 = vadd.f32 %v225, 1e-05
    %v234 = vadd.f32 %v226, 1e-05
    %v235 = vadd.f32 %v227, 1e-05
    %v236 = vadd.f32 %v228, 1e-05
    %v237 = vadd.f32 %v229, 1e-05
    %v238 = vadd.f32 %v230, 1e-05
    %v239 = vadd.f32 %v231, 1e-05
    %v240 = vadd.f32 %v232, 1e-05
    %v241 = vrsqrt.pop %v233
    %v242 = vrsqrt.pop %v234
    %v243 = vrsqrt.pop %v235
    %v244 = vrsqrt.pop %v236
    %v245 = vrsqrt.pop %v237
    %v246 = vrsqrt.pop %v238
    %v247 = vrsqrt.pop %v239
    %v248 = vrsqrt.pop %v240
    %v250 = vlaneseq
    %v251 = vshrl.u32 %v250, 7
    %v252 = vsub.s32 0, %v251
    %v253 = vrot.slane %v141, %v252
    %v255 = vmul.f32 %v241, %v253
    %v256 = vmul.f32 %v242, %v253
    %v257 = vmul.f32 %v243, %v253
    %v258 = vmul.f32 %v244, %v253
    %v259 = vmul.f32 %v245, %v253
    %v260 = vmul.f32 %v246, %v253
    %v261 = vmul.f32 %v247, %v253
    %v262 = vmul.f32 %v248, %v253
    %v263 = vmul.f32 %v57, %v255
    %v264 = vmul.f32 %v58, %v256
    %v265 = vmul.f32 %v59, %v257
    %v266 = vmul.f32 %v60, %v258
    %v267 = vmul.f32 %v61, %v259
    %v268 = vmul.f32 %v62, %v260
    %v269 = vmul.f32 %v63, %v261
    %v270 = vmul.f32 %v64, %v262
    %v271 = vmul.f32 %v169, %v255
    %v272 = vmul.f32 %v170, %v256
    %v273 = vmul.f32 %v171, %v257
    %v274 = vmul.f32 %v172, %v258
    %v275 = vmul.f32 %v173, %v259
    %v276 = vmul.f32 %v174, %v260
    %v277 = vmul.f32 %v175, %v261
    %v278 = vmul.f32 %v176, %v262
    %v280 = vlaneseq
    %v281 = vshrl.u32 %v280, 7
    %v282 = vsub.s32 0, %v281
    %v283 = vrot.slane %v142, %v282
    %v285 = vsub.f32 %v283, %v271
    %v286 = vsub.f32 %v283, %v272
    %v287 = vsub.f32 %v283, %v273
    %v288 = vsub.f32 %v283, %v274
    %v289 = vsub.f32 %v283, %v275
    %v290 = vsub.f32 %v283, %v276
    %v291 = vsub.f32 %v283, %v277
    %v292 = vsub.f32 %v283, %v278
    %v293 = vadd.f32 %v263, %v285
    %v294 = vadd.f32 %v264, %v286
    %v295 = vadd.f32 %v265, %v287
    %v296 = vadd.f32 %v266, %v288
    %v297 = vadd.f32 %v267, %v289
    %v298 = vadd.f32 %v268, %v290
    %v299 = vadd.f32 %v269, %v291
    %v300 = vadd.f32 %v270, %v292
    %v301 = vpack.c.bf16 %v294, %v293
    %v302 = vpack.c.bf16 %v296, %v295
    %v303 = vpack.c.bf16 %v298, %v297
    %v304 = vpack.c.bf16 %v300, %v299
    %v305 = vld [vmem:[%s3] sm:$0xff]
    %v306 = vld [vmem:[%s3 + $0x8] sm:$0xff]
    %v307 = vld [vmem:[%s3 + $0x10] sm:$0xff]
    %v308 = vld [vmem:[%s3 + $0x18] sm:$0xff]
    %v309 = vld [vmem:[%s3 + $0x20] sm:$0xff]
    %v310 = vld [vmem:[%s3 + $0x28] sm:$0xff]
    %v311 = vld [vmem:[%s3 + $0x30] sm:$0xff]
    %v312 = vld [vmem:[%s3 + $0x38] sm:$0xff]
    %v321 = vunpack.c.l.b16 %v305
    %v322 = vunpack.c.h.b16 %v305
    %v323 = vunpack.c.l.b16 %v306
    %v324 = vunpack.c.h.b16 %v306
    %v325 = vunpack.c.l.b16 %v307
    %v326 = vunpack.c.h.b16 %v307
    %v327 = vunpack.c.l.b16 %v308
    %v328 = vunpack.c.h.b16 %v308
    %v329 = vunpack.c.l.b16 %v309
    %v330 = vunpack.c.h.b16 %v309
    %v331 = vunpack.c.l.b16 %v310
    %v332 = vunpack.c.h.b16 %v310
    %v333 = vunpack.c.l.b16 %v311
    %v334 = vunpack.c.h.b16 %v311
    %v335 = vunpack.c.l.b16 %v312
    %v336 = vunpack.c.h.b16 %v312
    %v337 = vpack.c.b16 %v323, %v321
    %v338 = vpack.c.b16 %v324, %v322
    %v339 = vpack.c.b16 %v327, %v325
    %v340 = vpack.c.b16 %v328, %v326
    %v341 = vpack.c.b16 %v331, %v329
    %v342 = vpack.c.b16 %v332, %v330
    %v343 = vpack.c.b16 %v335, %v333
    %v344 = vpack.c.b16 %v336, %v334
    %v354 = vsel %vm143, %v301, 0
    %v357 = vsel %vm143, %v302, 0
    %v360 = vsel %vm143, %v303, 0
    %v363 = vsel %vm143, %v304, 0
    %365 = vmatprep.subr.bf16.mxu0 %v338
    %366 = vmatpush1.bf16.msra.mxu0 %v337
    %367 = vmatprep.subr.bf16.mxu0 %v340
    %368 = vmatpush1.bf16.msra.mxu0 %v339
    %369 = vmatprep.subr.bf16.mxu0 %v342
    %370 = vmatpush1.bf16.msra.mxu0 %v341
    %371 = vmatprep.subr.bf16.mxu0 %v344
    %372 = vmatpush1.bf16.msra.mxu0 %v343
    %373 = vmatprep.subr.bf16.mxu0 0
    %374 = vmatpush1.bf16.msra.mxu0 0
    %375 = vmatprep.subr.bf16.mxu0 0
    %376 = vmatpush1.bf16.msra.mxu0 0
    %377 = vmatprep.subr.bf16.mxu0 0
    %378 = vmatpush1.bf16.msra.mxu0 0
    %379 = vmatprep.subr.bf16.mxu0 0
    %380 = vmatpush1.bf16.msra.mxu0 0
    %381 = vmatprep.subr.bf16.mxu0 0
    %382 = vmatpush1.bf16.msra.mxu0 0
    %383 = vmatprep.subr.bf16.mxu0 0
    %384 = vmatpush1.bf16.msra.mxu0 0
    %385 = vmatprep.subr.bf16.mxu0 0
    %386 = vmatpush1.bf16.msra.mxu0 0
    %387 = vmatprep.subr.bf16.mxu0 0
    %388 = vmatpush1.bf16.msra.mxu0 0
    %389 = vmatprep.subr.bf16.mxu0 0
    %390 = vmatpush1.bf16.msra.mxu0 0
    %391 = vmatprep.subr.bf16.mxu0 0
    %392 = vmatpush1.bf16.msra.mxu0 0
    %393 = vmatprep.subr.bf16.mxu0 0
    %394 = vmatpush1.bf16.msra.mxu0 0
    %395 = vmatprep.subr.bf16.mxu0 0
    %396 = vmatpush1.bf16.msra.mxu0 0
    %397 = vmatprep.mubr.bf16.mxu0 0
    %398 = vmatmul.mubr.bf16.gmra.mrb[0].mxu0 %v354
    %v399 = vpop.f32.mrb[0].mxu0
    %v400 = vadd.f32 0.0, %v399
    %v401 = vpop.f32.mrb[0].mxu0
    %v402 = vadd.f32 0.0, %v401
    %v403 = vpop.f32.mrb[0].mxu0
    %v404 = vadd.f32 0.0, %v403
    %v405 = vpop.f32.mrb[0].mxu0
    %v406 = vadd.f32 0.0, %v405
    %407 = vmatprep.mubr.bf16.mxu0 0
    %408 = vmatmul.mubr.bf16.gmra.mrb[0].mxu0 %v357
    %v409 = vpop.f32.mrb[0].mxu0
    %v410 = vadd.f32 0.0, %v409
    %v411 = vpop.f32.mrb[0].mxu0
    %v412 = vadd.f32 0.0, %v411
    %v413 = vpop.f32.mrb[0].mxu0
    %v414 = vadd.f32 0.0, %v413
    %v415 = vpop.f32.mrb[0].mxu0
    %v416 = vadd.f32 0.0, %v415
    %417 = vmatprep.mubr.bf16.mxu0 0
    %418 = vmatmul.mubr.bf16.gmra.mrb[0].mxu0 %v360
    %v419 = vpop.f32.mrb[0].mxu0
    %v420 = vadd.f32 0.0, %v419
    %v421 = vpop.f32.mrb[0].mxu0
    %v422 = vadd.f32 0.0, %v421
    %v423 = vpop.f32.mrb[0].mxu0
    %v424 = vadd.f32 0.0, %v423
    %v425 = vpop.f32.mrb[0].mxu0
    %v426 = vadd.f32 0.0, %v425
    %427 = vmatprep.mubr.bf16.mxu0 0
    %428 = vmatmul.mubr.bf16.gmra.mrb[0].mxu0 %v363
    %v429 = vpop.f32.mrb[0].mxu0
    %v430 = vadd.f32 0.0, %v429
    %v431 = vpop.f32.mrb[0].mxu0
    %v432 = vadd.f32 0.0, %v431
    %v433 = vpop.f32.mrb[0].mxu0
    %v434 = vadd.f32 0.0, %v433
    %v435 = vpop.f32.mrb[0].mxu0
    %v436 = vadd.f32 0.0, %v435
    %437 = vdwg.mxu0
    %v438 = vld [vmem:[%s4] sm:$0xf]
    %v439 = vld [vmem:[%s4 + $0x4] sm:$0xf]
    %v440 = vld [vmem:[%s4 + $0x8] sm:$0xf]
    %v441 = vld [vmem:[%s4 + $0xc] sm:$0xf]
    %v442 = vld [vmem:[%s4 + $0x10] sm:$0xf]
    %v443 = vld [vmem:[%s4 + $0x14] sm:$0xf]
    %v444 = vld [vmem:[%s4 + $0x18] sm:$0xf]
    %v445 = vld [vmem:[%s4 + $0x1c] sm:$0xf]
    %v446 = vmul.f32 %v400, 0.17677669
    %v447 = vmul.f32 %v404, 0.17677669
    %v448 = vmul.f32 %v410, 0.17677669
    %v449 = vmul.f32 %v414, 0.17677669
    %v450 = vmul.f32 %v420, 0.17677669
    %v451 = vmul.f32 %v424, 0.17677669
    %v452 = vmul.f32 %v430, 0.17677669
    %v453 = vmul.f32 %v434, 0.17677669
    %v454 = vpack.c.bf16 %v447, %v446
    %v455 = vpack.c.bf16 %v449, %v448
    %v456 = vpack.c.bf16 %v451, %v450
    %v457 = vpack.c.bf16 %v453, %v452
    %v458 = vpack.c.bf16 %v404, %v400
    %v459 = vpack.c.bf16 %v414, %v410
    %v460 = vpack.c.bf16 %v424, %v420
    %v461 = vpack.c.bf16 %v434, %v430
    %466 = vrot.lane.b32.xlu0 %v458, 64
    %v467 = vpop.permute.xlu0 %466
    %468 = vrot.lane.b32.xlu0 %v459, 64
    %v469 = vpop.permute.xlu0 %468
    %470 = vrot.lane.b32.xlu0 %v460, 64
    %v471 = vpop.permute.xlu0 %470
    %472 = vrot.lane.b32.xlu0 %v461, 64
    %v473 = vpop.permute.xlu0 %472
    %vm474 = vcmask 261120
    %v476 = vsel %vm474, %v454, 0
    %v479 = vsel %vm474, %v455, 0
    %v482 = vsel %vm474, %v456, 0
    %v485 = vsel %vm474, %v457, 0
    %v488 = vsel %vm474, %v467, 0
    %v491 = vsel %vm474, %v469, 0
    %v494 = vsel %vm474, %v471, 0
    %v497 = vsel %vm474, %v473, 0
    %499 = vmatprep.subr.bf16.mxu0 0
    %500 = vmatpush1.bf16.xpose.msra.mxu0 %v488
    %501 = vmatprep.subr.bf16.mxu0 0
    %502 = vmatpush1.bf16.xpose.msra.mxu0 %v491
    %503 = vmatprep.subr.bf16.mxu0 0
    %504 = vmatpush1.bf16.xpose.msra.mxu0 %v494
    %505 = vmatprep.subr.bf16.mxu0 0
    %506 = vmatpush1.bf16.xpose.msra.mxu0 %v497
    %507 = vmatprep.subr.bf16.mxu0 0
    %508 = vmatpush1.bf16.xpose.msra.mxu0 0
    %509 = vmatprep.subr.bf16.mxu0 0
    %510 = vmatpush1.bf16.xpose.msra.mxu0 0
    %511 = vmatprep.subr.bf16.mxu0 0
    %512 = vmatpush1.bf16.xpose.msra.mxu0 0
    %513 = vmatprep.subr.bf16.mxu0 0
    %514 = vmatpush1.bf16.xpose.msra.mxu0 0
    %515 = vmatprep.subr.bf16.mxu0 0
    %516 = vmatpush1.bf16.xpose.msra.mxu0 0
    %517 = vmatprep.subr.bf16.mxu0 0
    %518 = vmatpush1.bf16.xpose.msra.mxu0 0
    %519 = vmatprep.subr.bf16.mxu0 0
    %520 = vmatpush1.bf16.xpose.msra.mxu0 0
    %521 = vmatprep.subr.bf16.mxu0 0
    %522 = vmatpush1.bf16.xpose.msra.mxu0 0
    %523 = vmatprep.subr.bf16.mxu0 0
    %524 = vmatpush1.bf16.xpose.msra.mxu0 0
    %525 = vmatprep.subr.bf16.mxu0 0
    %526 = vmatpush1.bf16.xpose.msra.mxu0 0
    %527 = vmatprep.subr.bf16.mxu0 0
    %528 = vmatpush1.bf16.xpose.msra.mxu0 0
    %529 = vmatprep.subr.bf16.mxu0 0
    %530 = vmatpush1.bf16.xpose.msra.mxu0 0
    %531 = vmatprep.mubr.bf16.mxu0 0
    %532 = vmatmul.mubr.bf16.gmra.mrb[0].mxu0 %v476
    %v533 = vpop.f32.mrb[0].mxu0
    %v534 = vadd.f32 %v133, %v533
    %v535 = vpop.f32.mrb[0].mxu0
    %v536 = vpop.f32.mrb[0].mxu0
    %v537 = vadd.f32 %v134, %v536
    %v538 = vpop.f32.mrb[0].mxu0
    %539 = vmatprep.mubr.bf16.mxu0 0
    %540 = vmatmul.mubr.bf16.gmra.mrb[0].mxu0 %v479
    %v541 = vpop.f32.mrb[0].mxu0
    %v542 = vadd.f32 %v135, %v541
    %v543 = vpop.f32.mrb[0].mxu0
    %v544 = vpop.f32.mrb[0].mxu0
    %v545 = vadd.f32 %v136, %v544
    %v546 = vpop.f32.mrb[0].mxu0
    %547 = vmatprep.mubr.bf16.mxu0 0
    %548 = vmatmul.mubr.bf16.gmra.mrb[0].mxu0 %v482
    %v549 = vpop.f32.mrb[0].mxu0
    %v550 = vadd.f32 %v137, %v549
    %v551 = vpop.f32.mrb[0].mxu0
    %v552 = vpop.f32.mrb[0].mxu0
    %v553 = vadd.f32 %v138, %v552
    %v554 = vpop.f32.mrb[0].mxu0
    %555 = vmatprep.mubr.bf16.mxu0 0
    %556 = vmatmul.mubr.bf16.gmra.mrb[0].mxu0 %v485
    %v557 = vpop.f32.mrb[0].mxu0
    %v558 = vadd.f32 %v139, %v557
    %v559 = vpop.f32.mrb[0].mxu0
    %v560 = vpop.f32.mrb[0].mxu0
    %v561 = vadd.f32 %v140, %v560
    %v562 = vpop.f32.mrb[0].mxu0
    %563 = vdwg.mxu0
    %v564 = vsel %vm143, %v534, -inf
    %565 = vmax.xlane.f32.xlu0 %v564
    %v566 = vpop.xlane.xlu0 %565
    %v567 = vsel %vm143, %v537, -inf
    %568 = vmax.xlane.f32.xlu0 %v567
    %v569 = vpop.xlane.xlu0 %568
    %v570 = vsel %vm143, %v542, -inf
    %571 = vmax.xlane.f32.xlu0 %v570
    %v572 = vpop.xlane.xlu0 %571
    %v573 = vsel %vm143, %v545, -inf
    %574 = vmax.xlane.f32.xlu0 %v573
    %v575 = vpop.xlane.xlu0 %574
    %v576 = vsel %vm143, %v550, -inf
    %577 = vmax.xlane.f32.xlu0 %v576
    %v578 = vpop.xlane.xlu0 %577
    %v579 = vsel %vm143, %v553, -inf
    %580 = vmax.xlane.f32.xlu0 %v579
    %v581 = vpop.xlane.xlu0 %580
    %v582 = vsel %vm143, %v558, -inf
    %583 = vmax.xlane.f32.xlu0 %v582
    %v584 = vpop.xlane.xlu0 %583
    %v585 = vsel %vm143, %v561, -inf
    %586 = vmax.xlane.f32.xlu0 %v585
    %v587 = vpop.xlane.xlu0 %586
    %v588 = vsub.f32 %v534, %v566
    %v589 = vsub.f32 %v537, %v569
    %v590 = vsub.f32 %v542, %v572
    %v591 = vsub.f32 %v545, %v575
    %v592 = vsub.f32 %v550, %v578
    %v593 = vsub.f32 %v553, %v581
    %v594 = vsub.f32 %v558, %v584
    %v595 = vsub.f32 %v561, %v587
    %v596 = vmul.f32 %v588, 1.442695
    %v597 = vpow.pop %v596
    %v598 = vmul.f32 %v589, 1.442695
    %v599 = vpow.pop %v598
    %v600 = vmul.f32 %v590, 1.442695
    %v601 = vpow.pop %v600
    %v602 = vmul.f32 %v591, 1.442695
    %v603 = vpow.pop %v602
    %v604 = vmul.f32 %v592, 1.442695
    %v605 = vpow.pop %v604
    %v606 = vmul.f32 %v593, 1.442695
    %v607 = vpow.pop %v606
    %v608 = vmul.f32 %v594, 1.442695
    %v609 = vpow.pop %v608
    %v610 = vmul.f32 %v595, 1.442695
    %v611 = vpow.pop %v610
    %v612 = vsel %vm143, %v597, 0.0
    %613 = vadd.xlane.f32.xlu0 %v612
    %v614 = vpop.xlane.xlu0 %613
    %v615 = vsel %vm143, %v599, 0.0
    %616 = vadd.xlane.f32.xlu0 %v615
    %v617 = vpop.xlane.xlu0 %616
    %v618 = vsel %vm143, %v601, 0.0
    %619 = vadd.xlane.f32.xlu0 %v618
    %v620 = vpop.xlane.xlu0 %619
    %v621 = vsel %vm143, %v603, 0.0
    %622 = vadd.xlane.f32.xlu0 %v621
    %v623 = vpop.xlane.xlu0 %622
    %v624 = vsel %vm143, %v605, 0.0
    %625 = vadd.xlane.f32.xlu0 %v624
    %v626 = vpop.xlane.xlu0 %625
    %v627 = vsel %vm143, %v607, 0.0
    %628 = vadd.xlane.f32.xlu0 %v627
    %v629 = vpop.xlane.xlu0 %628
    %v630 = vsel %vm143, %v609, 0.0
    %631 = vadd.xlane.f32.xlu0 %v630
    %v632 = vpop.xlane.xlu0 %631
    %v633 = vsel %vm143, %v611, 0.0
    %634 = vadd.xlane.f32.xlu0 %v633
    %v635 = vpop.xlane.xlu0 %634
    %v636 = vrcp.pop %v614
    %v637 = vrcp.pop %v617
    %v638 = vrcp.pop %v620
    %v639 = vrcp.pop %v623
    %v640 = vrcp.pop %v626
    %v641 = vrcp.pop %v629
    %v642 = vrcp.pop %v632
    %v643 = vrcp.pop %v635
    %v644 = vmul.f32 %v597, %v636
    %v645 = vmul.f32 %v599, %v637
    %v646 = vmul.f32 %v601, %v638
    %v647 = vmul.f32 %v603, %v639
    %v648 = vmul.f32 %v605, %v640
    %v649 = vmul.f32 %v607, %v641
    %v650 = vmul.f32 %v609, %v642
    %v651 = vmul.f32 %v611, %v643
    %652 = vst.msk [vmem:[%s17] sm:$0xff] %vm143, %v644
    %653 = vst.msk [vmem:[%s17 + $0x8] sm:$0xff] %vm143, %v645
    %654 = vst.msk [vmem:[%s17 + $0x10] sm:$0xff] %vm143, %v646
    %655 = vst.msk [vmem:[%s17 + $0x18] sm:$0xff] %vm143, %v647
    %656 = vst.msk [vmem:[%s17 + $0x20] sm:$0xff] %vm143, %v648
    %657 = vst.msk [vmem:[%s17 + $0x28] sm:$0xff] %vm143, %v649
    %658 = vst.msk [vmem:[%s17 + $0x30] sm:$0xff] %vm143, %v650
    %659 = vst.msk [vmem:[%s17 + $0x38] sm:$0xff] %vm143, %v651
    %v660 = vpack.c.bf16 %v645, %v644
    %v661 = vpack.c.bf16 %v647, %v646
    %v662 = vpack.c.bf16 %v649, %v648
    %v663 = vpack.c.bf16 %v651, %v650
    %v664 = vpack.c.bf16 %v406, %v402
    %v665 = vpack.c.bf16 %v416, %v412
    %v666 = vpack.c.bf16 %v426, %v422
    %v667 = vpack.c.bf16 %v436, %v432
    %v669 = vsel %vm143, %v660, 0
    %v672 = vsel %vm143, %v661, 0
    %v675 = vsel %vm143, %v662, 0
    %v678 = vsel %vm143, %v663, 0
    %680 = vmatprep.subr.bf16.mxu0 0
    %681 = vmatpush1.bf16.msra.mxu0 %v664
    %682 = vmatprep.subr.bf16.mxu0 0
    %683 = vmatpush1.bf16.msra.mxu0 %v665
    %684 = vmatprep.subr.bf16.mxu0 0
    %685 = vmatpush1.bf16.msra.mxu0 %v666
    %686 = vmatprep.subr.bf16.mxu0 0
    %687 = vmatpush1.bf16.msra.mxu0 %v667
    %688 = vmatprep.subr.bf16.mxu0 0
    %689 = vmatpush1.bf16.msra.mxu0 0
    %690 = vmatprep.subr.bf16.mxu0 0
    %691 = vmatpush1.bf16.msra.mxu0 0
    %692 = vmatprep.subr.bf16.mxu0 0
    %693 = vmatpush1.bf16.msra.mxu0 0
    %694 = vmatprep.subr.bf16.mxu0 0
    %695 = vmatpush1.bf16.msra.mxu0 0
    %696 = vmatprep.subr.bf16.mxu0 0
    %697 = vmatpush1.bf16.msra.mxu0 0
    %698 = vmatprep.subr.bf16.mxu0 0
    %699 = vmatpush1.bf16.msra.mxu0 0
    %700 = vmatprep.subr.bf16.mxu0 0
    %701 = vmatpush1.bf16.msra.mxu0 0
    %702 = vmatprep.subr.bf16.mxu0 0
    %703 = vmatpush1.bf16.msra.mxu0 0
    %704 = vmatprep.subr.bf16.mxu0 0
    %705 = vmatpush1.bf16.msra.mxu0 0
    %706 = vmatprep.subr.bf16.mxu0 0
    %707 = vmatpush1.bf16.msra.mxu0 0
    %708 = vmatprep.subr.bf16.mxu0 0
    %709 = vmatpush1.bf16.msra.mxu0 0
    %710 = vmatprep.subr.bf16.mxu0 0
    %711 = vmatpush1.bf16.msra.mxu0 0
    %712 = vmatprep.mubr.bf16.mxu0 0
    %713 = vmatmul.mubr.bf16.gmra.mrb[0].mxu0 %v669
    %v714 = vpop.f32.mrb[0].mxu0
    %v715 = vadd.f32 0.0, %v714
    %v716 = vpop.f32.mrb[0].mxu0
    %v717 = vpop.f32.mrb[0].mxu0
    %v718 = vadd.f32 0.0, %v717
    %v719 = vpop.f32.mrb[0].mxu0
    %720 = vmatprep.mubr.bf16.mxu0 0
    %721 = vmatmul.mubr.bf16.gmra.mrb[0].mxu0 %v672
    %v722 = vpop.f32.mrb[0].mxu0
    %v723 = vadd.f32 0.0, %v722
    %v724 = vpop.f32.mrb[0].mxu0
    %v725 = vpop.f32.mrb[0].mxu0
    %v726 = vadd.f32 0.0, %v725
    %v727 = vpop.f32.mrb[0].mxu0
    %728 = vmatprep.mubr.bf16.mxu0 0
    %729 = vmatmul.mubr.bf16.gmra.mrb[0].mxu0 %v675
    %v730 = vpop.f32.mrb[0].mxu0
    %v731 = vadd.f32 0.0, %v730
    %v732 = vpop.f32.mrb[0].mxu0
    %v733 = vpop.f32.mrb[0].mxu0
    %v734 = vadd.f32 0.0, %v733
    %v735 = vpop.f32.mrb[0].mxu0
    %736 = vmatprep.mubr.bf16.mxu0 0
    %737 = vmatmul.mubr.bf16.gmra.mrb[0].mxu0 %v678
    %v738 = vpop.f32.mrb[0].mxu0
    %v739 = vadd.f32 0.0, %v738
    %v740 = vpop.f32.mrb[0].mxu0
    %v741 = vpop.f32.mrb[0].mxu0
    %v742 = vadd.f32 0.0, %v741
    %v743 = vpop.f32.mrb[0].mxu0
    %744 = vdwg.mxu0
    %v745 = vpack.c.bf16 %v718, %v715
    %v746 = vpack.c.bf16 %v726, %v723
    %v747 = vpack.c.bf16 %v734, %v731
    %v748 = vpack.c.bf16 %v742, %v739
    %753 = vrot.lane.b32.xlu0 %v454, 96
    %v754 = vpop.permute.xlu0 %753
    %755 = vrot.lane.b32.xlu0 %v455, 96
    %v756 = vpop.permute.xlu0 %755
    %757 = vrot.lane.b32.xlu0 %v456, 96
    %v758 = vpop.permute.xlu0 %757
    %759 = vrot.lane.b32.xlu0 %v457, 96
    %v760 = vpop.permute.xlu0 %759
    %761 = vrot.lane.b32.xlu0 %v458, 32
    %v762 = vpop.permute.xlu0 %761
    %763 = vrot.lane.b32.xlu0 %v459, 32
    %v764 = vpop.permute.xlu0 %763
    %765 = vrot.lane.b32.xlu0 %v460, 32
    %v766 = vpop.permute.xlu0 %765
    %767 = vrot.lane.b32.xlu0 %v461, 32
    %v768 = vpop.permute.xlu0 %767
    %v770 = vsel %vm474, %v754, 0
    %v773 = vsel %vm474, %v756, 0
    %v776 = vsel %vm474, %v758, 0
    %v779 = vsel %vm474, %v760, 0
    %v782 = vsel %vm474, %v762, 0
    %v785 = vsel %vm474, %v764, 0
    %v788 = vsel %vm474, %v766, 0
    %v791 = vsel %vm474, %v768, 0
    %793 = vmatprep.subr.bf16.mxu0 0
    %794 = vmatpush1.bf16.xpose.msra.mxu0 %v782
    %795 = vmatprep.subr.bf16.mxu0 0
    %796 = vmatpush1.bf16.xpose.msra.mxu0 %v785
    %797 = vmatprep.subr.bf16.mxu0 0
    %798 = vmatpush1.bf16.xpose.msra.mxu0 %v788
    %799 = vmatprep.subr.bf16.mxu0 0
    %800 = vmatpush1.bf16.xpose.msra.mxu0 %v791
    %801 = vmatprep.subr.bf16.mxu0 0
    %802 = vmatpush1.bf16.xpose.msra.mxu0 0
    %803 = vmatprep.subr.bf16.mxu0 0
    %804 = vmatpush1.bf16.xpose.msra.mxu0 0
    %805 = vmatprep.subr.bf16.mxu0 0
    %806 = vmatpush1.bf16.xpose.msra.mxu0 0
    %807 = vmatprep.subr.bf16.mxu0 0
    %808 = vmatpush1.bf16.xpose.msra.mxu0 0
    %809 = vmatprep.subr.bf16.mxu0 0
    %810 = vmatpush1.bf16.xpose.msra.mxu0 0
    %811 = vmatprep.subr.bf16.mxu0 0
    %812 = vmatpush1.bf16.xpose.msra.mxu0 0
    %813 = vmatprep.subr.bf16.mxu0 0
    %814 = vmatpush1.bf16.xpose.msra.mxu0 0
    %815 = vmatprep.subr.bf16.mxu0 0
    %816 = vmatpush1.bf16.xpose.msra.mxu0 0
    %817 = vmatprep.subr.bf16.mxu0 0
    %818 = vmatpush1.bf16.xpose.msra.mxu0 0
    %819 = vmatprep.subr.bf16.mxu0 0
    %820 = vmatpush1.bf16.xpose.msra.mxu0 0
    %821 = vmatprep.subr.bf16.mxu0 0
    %822 = vmatpush1.bf16.xpose.msra.mxu0 0
    %823 = vmatprep.subr.bf16.mxu0 0
    %824 = vmatpush1.bf16.xpose.msra.mxu0 0
    %825 = vmatprep.mubr.bf16.mxu0 0
    %826 = vmatmul.mubr.bf16.gmra.mrb[0].mxu0 %v770
    %v827 = vpop.f32.mrb[0].mxu0
    %v828 = vadd.f32 %v133, %v827
    %v829 = vpop.f32.mrb[0].mxu0
    %v830 = vpop.f32.mrb[0].mxu0
    %v831 = vadd.f32 %v134, %v830
    %v832 = vpop.f32.mrb[0].mxu0
    %833 = vmatprep.mubr.bf16.mxu0 0
    %834 = vmatmul.mubr.bf16.gmra.mrb[0].mxu0 %v773
    %v835 = vpop.f32.mrb[0].mxu0
    %v836 = vadd.f32 %v135, %v835
    %v837 = vpop.f32.mrb[0].mxu0
    %v838 = vpop.f32.mrb[0].mxu0
    %v839 = vadd.f32 %v136, %v838
    %v840 = vpop.f32.mrb[0].mxu0
    %841 = vmatprep.mubr.bf16.mxu0 0
    %842 = vmatmul.mubr.bf16.gmra.mrb[0].mxu0 %v776
    %v843 = vpop.f32.mrb[0].mxu0
    %v844 = vadd.f32 %v137, %v843
    %v845 = vpop.f32.mrb[0].mxu0
    %v846 = vpop.f32.mrb[0].mxu0
    %v847 = vadd.f32 %v138, %v846
    %v848 = vpop.f32.mrb[0].mxu0
    %849 = vmatprep.mubr.bf16.mxu0 0
    %850 = vmatmul.mubr.bf16.gmra.mrb[0].mxu0 %v779
    %v851 = vpop.f32.mrb[0].mxu0
    %v852 = vadd.f32 %v139, %v851
    %v853 = vpop.f32.mrb[0].mxu0
    %v854 = vpop.f32.mrb[0].mxu0
    %v855 = vadd.f32 %v140, %v854
    %v856 = vpop.f32.mrb[0].mxu0
    %857 = vdwg.mxu0
    %v858 = vsel %vm143, %v828, -inf
    %859 = vmax.xlane.f32.xlu0 %v858
    %v860 = vpop.xlane.xlu0 %859
    %v861 = vsel %vm143, %v831, -inf
    %862 = vmax.xlane.f32.xlu0 %v861
    %v863 = vpop.xlane.xlu0 %862
    %v864 = vsel %vm143, %v836, -inf
    %865 = vmax.xlane.f32.xlu0 %v864
    %v866 = vpop.xlane.xlu0 %865
    %v867 = vsel %vm143, %v839, -inf
    %868 = vmax.xlane.f32.xlu0 %v867
    %v869 = vpop.xlane.xlu0 %868
    %v870 = vsel %vm143, %v844, -inf
    %871 = vmax.xlane.f32.xlu0 %v870
    %v872 = vpop.xlane.xlu0 %871
    %v873 = vsel %vm143, %v847, -inf
    %874 = vmax.xlane.f32.xlu0 %v873
    %v875 = vpop.xlane.xlu0 %874
    %v876 = vsel %vm143, %v852, -inf
    %877 = vmax.xlane.f32.xlu0 %v876
    %v878 = vpop.xlane.xlu0 %877
    %v879 = vsel %vm143, %v855, -inf
    %880 = vmax.xlane.f32.xlu0 %v879
    %v881 = vpop.xlane.xlu0 %880
    %v882 = vsub.f32 %v828, %v860
    %v883 = vsub.f32 %v831, %v863
    %v884 = vsub.f32 %v836, %v866
    %v885 = vsub.f32 %v839, %v869
    %v886 = vsub.f32 %v844, %v872
    %v887 = vsub.f32 %v847, %v875
    %v888 = vsub.f32 %v852, %v878
    %v889 = vsub.f32 %v855, %v881
    %v890 = vmul.f32 %v882, 1.442695
    %v891 = vpow.pop %v890
    %v892 = vmul.f32 %v883, 1.442695
    %v893 = vpow.pop %v892
    %v894 = vmul.f32 %v884, 1.442695
    %v895 = vpow.pop %v894
    %v896 = vmul.f32 %v885, 1.442695
    %v897 = vpow.pop %v896
    %v898 = vmul.f32 %v886, 1.442695
    %v899 = vpow.pop %v898
    %v900 = vmul.f32 %v887, 1.442695
    %v901 = vpow.pop %v900
    %v902 = vmul.f32 %v888, 1.442695
    %v903 = vpow.pop %v902
    %v904 = vmul.f32 %v889, 1.442695
    %v905 = vpow.pop %v904
    %v906 = vsel %vm143, %v891, 0.0
    %907 = vadd.xlane.f32.xlu0 %v906
    %v908 = vpop.xlane.xlu0 %907
    %v909 = vsel %vm143, %v893, 0.0
    %910 = vadd.xlane.f32.xlu0 %v909
    %v911 = vpop.xlane.xlu0 %910
    %v912 = vsel %vm143, %v895, 0.0
    %913 = vadd.xlane.f32.xlu0 %v912
    %v914 = vpop.xlane.xlu0 %913
    %v915 = vsel %vm143, %v897, 0.0
    %916 = vadd.xlane.f32.xlu0 %v915
    %v917 = vpop.xlane.xlu0 %916
    %v918 = vsel %vm143, %v899, 0.0
    %919 = vadd.xlane.f32.xlu0 %v918
    %v920 = vpop.xlane.xlu0 %919
    %v921 = vsel %vm143, %v901, 0.0
    %922 = vadd.xlane.f32.xlu0 %v921
    %v923 = vpop.xlane.xlu0 %922
    %v924 = vsel %vm143, %v903, 0.0
    %925 = vadd.xlane.f32.xlu0 %v924
    %v926 = vpop.xlane.xlu0 %925
    %v927 = vsel %vm143, %v905, 0.0
    %928 = vadd.xlane.f32.xlu0 %v927
    %v929 = vpop.xlane.xlu0 %928
    %v930 = vrcp.pop %v908
    %v931 = vrcp.pop %v911
    %v932 = vrcp.pop %v914
    %v933 = vrcp.pop %v917
    %v934 = vrcp.pop %v920
    %v935 = vrcp.pop %v923
    %v936 = vrcp.pop %v926
    %v937 = vrcp.pop %v929
    %v938 = vmul.f32 %v891, %v930
    %v939 = vmul.f32 %v893, %v931
    %v940 = vmul.f32 %v895, %v932
    %v941 = vmul.f32 %v897, %v933
    %v942 = vmul.f32 %v899, %v934
    %v943 = vmul.f32 %v901, %v935
    %v944 = vmul.f32 %v903, %v936
    %v945 = vmul.f32 %v905, %v937
    %s946 = scalar_lea.vmem %s17, 64
    %947 = vst.msk [vmem:[%s946] sm:$0xff] %vm143, %v938
    %948 = vst.msk [vmem:[%s946 + $0x8] sm:$0xff] %vm143, %v939
    %949 = vst.msk [vmem:[%s946 + $0x10] sm:$0xff] %vm143, %v940
    %950 = vst.msk [vmem:[%s946 + $0x18] sm:$0xff] %vm143, %v941
    %951 = vst.msk [vmem:[%s946 + $0x20] sm:$0xff] %vm143, %v942
    %952 = vst.msk [vmem:[%s946 + $0x28] sm:$0xff] %vm143, %v943
    %953 = vst.msk [vmem:[%s946 + $0x30] sm:$0xff] %vm143, %v944
    %954 = vst.msk [vmem:[%s946 + $0x38] sm:$0xff] %vm143, %v945
    %v955 = vpack.c.bf16 %v939, %v938
    %v956 = vpack.c.bf16 %v941, %v940
    %v957 = vpack.c.bf16 %v943, %v942
    %v958 = vpack.c.bf16 %v945, %v944
    %963 = vrot.lane.b32.xlu0 %v664, 96
    %v964 = vpop.permute.xlu0 %963
    %965 = vrot.lane.b32.xlu0 %v665, 96
    %v966 = vpop.permute.xlu0 %965
    %967 = vrot.lane.b32.xlu0 %v666, 96
    %v968 = vpop.permute.xlu0 %967
    %969 = vrot.lane.b32.xlu0 %v667, 96
    %v970 = vpop.permute.xlu0 %969
    %v976 = vsel %vm143, %v955, 0
    %v979 = vsel %vm143, %v956, 0
    %v982 = vsel %vm143, %v957, 0
    %v985 = vsel %vm143, %v958, 0
    %987 = vmatprep.subr.bf16.mxu0 0
    %988 = vmatpush1.bf16.msra.mxu0 %v964
    %989 = vmatprep.subr.bf16.mxu0 0
    %990 = vmatpush1.bf16.msra.mxu0 %v966
    %991 = vmatprep.subr.bf16.mxu0 0
    %992 = vmatpush1.bf16.msra.mxu0 %v968
    %993 = vmatprep.subr.bf16.mxu0 0
    %994 = vmatpush1.bf16.msra.mxu0 %v970
    %995 = vmatprep.subr.bf16.mxu0 0
    %996 = vmatpush1.bf16.msra.mxu0 0
    %997 = vmatprep.subr.bf16.mxu0 0
    %998 = vmatpush1.bf16.msra.mxu0 0
    %999 = vmatprep.subr.bf16.mxu0 0
    %1000 = vmatpush1.bf16.msra.mxu0 0
    %1001 = vmatprep.subr.bf16.mxu0 0
    %1002 = vmatpush1.bf16.msra.mxu0 0
    %1003 = vmatprep.subr.bf16.mxu0 0
    %1004 = vmatpush1.bf16.msra.mxu0 0
    %1005 = vmatprep.subr.bf16.mxu0 0
    %1006 = vmatpush1.bf16.msra.mxu0 0
    %1007 = vmatprep.subr.bf16.mxu0 0
    %1008 = vmatpush1.bf16.msra.mxu0 0
    %1009 = vmatprep.subr.bf16.mxu0 0
    %1010 = vmatpush1.bf16.msra.mxu0 0
    %1011 = vmatprep.subr.bf16.mxu0 0
    %1012 = vmatpush1.bf16.msra.mxu0 0
    %1013 = vmatprep.subr.bf16.mxu0 0
    %1014 = vmatpush1.bf16.msra.mxu0 0
    %1015 = vmatprep.subr.bf16.mxu0 0
    %1016 = vmatpush1.bf16.msra.mxu0 0
    %1017 = vmatprep.subr.bf16.mxu0 0
    %1018 = vmatpush1.bf16.msra.mxu0 0
    %1019 = vmatprep.mubr.bf16.mxu0 0
    %1020 = vmatmul.mubr.bf16.gmra.mrb[0].mxu0 %v976
    %v1021 = vpop.f32.mrb[0].mxu0
    %v1022 = vadd.f32 0.0, %v1021
    %v1023 = vpop.f32.mrb[0].mxu0
    %v1024 = vpop.f32.mrb[0].mxu0
    %v1025 = vadd.f32 0.0, %v1024
    %v1026 = vpop.f32.mrb[0].mxu0
    %1027 = vmatprep.mubr.bf16.mxu0 0
    %1028 = vmatmul.mubr.bf16.gmra.mrb[0].mxu0 %v979
    %v1029 = vpop.f32.mrb[0].mxu0
    %v1030 = vadd.f32 0.0, %v1029
    %v1031 = vpop.f32.mrb[0].mxu0
    %v1032 = vpop.f32.mrb[0].mxu0
    %v1033 = vadd.f32 0.0, %v1032
    %v1034 = vpop.f32.mrb[0].mxu0
    %1035 = vmatprep.mubr.bf16.mxu0 0
    %1036 = vmatmul.mubr.bf16.gmra.mrb[0].mxu0 %v982
    %v1037 = vpop.f32.mrb[0].mxu0
    %v1038 = vadd.f32 0.0, %v1037
    %v1039 = vpop.f32.mrb[0].mxu0
    %v1040 = vpop.f32.mrb[0].mxu0
    %v1041 = vadd.f32 0.0, %v1040
    %v1042 = vpop.f32.mrb[0].mxu0
    %1043 = vmatprep.mubr.bf16.mxu0 0
    %1044 = vmatmul.mubr.bf16.gmra.mrb[0].mxu0 %v985
    %v1045 = vpop.f32.mrb[0].mxu0
    %v1046 = vadd.f32 0.0, %v1045
    %v1047 = vpop.f32.mrb[0].mxu0
    %v1048 = vpop.f32.mrb[0].mxu0
    %v1049 = vadd.f32 0.0, %v1048
    %v1050 = vpop.f32.mrb[0].mxu0
    %1051 = vdwg.mxu0
    %v1052 = vpack.c.bf16 %v1025, %v1022
    %v1053 = vpack.c.bf16 %v1033, %v1030
    %v1054 = vpack.c.bf16 %v1041, %v1038
    %v1055 = vpack.c.bf16 %v1049, %v1046
    %v1060 = vunpack.c.l.b16 %v442
    %v1061 = vunpack.c.l.b16 %v443
    %v1062 = vunpack.c.l.b16 %v444
    %v1063 = vunpack.c.l.b16 %v445
    %v1064 = vpack.c.b16 %v1061, %v1060
    %v1065 = vpack.c.b16 %v1063, %v1062
    %v1069 = vsel %vm474, %v1052, 0
    %v1072 = vsel %vm474, %v1053, 0
    %v1075 = vsel %vm474, %v1054, 0
    %v1078 = vsel %vm474, %v1055, 0
    %1080 = vmatprep.subr.bf16.mxu0 0
    %1081 = vmatpush1.bf16.msra.mxu0 %v1064
    %1082 = vmatprep.subr.bf16.mxu0 0
    %1083 = vmatpush1.bf16.msra.mxu0 %v1065
    %1084 = vmatprep.subr.bf16.mxu0 0
    %1085 = vmatpush1.bf16.msra.mxu0 0
    %1086 = vmatprep.subr.bf16.mxu0 0
    %1087 = vmatpush1.bf16.msra.mxu0 0
    %1088 = vmatprep.subr.bf16.mxu0 0
    %1089 = vmatpush1.bf16.msra.mxu0 0
    %1090 = vmatprep.subr.bf16.mxu0 0
    %1091 = vmatpush1.bf16.msra.mxu0 0
    %1092 = vmatprep.subr.bf16.mxu0 0
    %1093 = vmatpush1.bf16.msra.mxu0 0
    %1094 = vmatprep.subr.bf16.mxu0 0
    %1095 = vmatpush1.bf16.msra.mxu0 0
    %1096 = vmatprep.subr.bf16.mxu0 0
    %1097 = vmatpush1.bf16.msra.mxu0 0
    %1098 = vmatprep.subr.bf16.mxu0 0
    %1099 = vmatpush1.bf16.msra.mxu0 0
    %1100 = vmatprep.subr.bf16.mxu0 0
    %1101 = vmatpush1.bf16.msra.mxu0 0
    %1102 = vmatprep.subr.bf16.mxu0 0
    %1103 = vmatpush1.bf16.msra.mxu0 0
    %1104 = vmatprep.subr.bf16.mxu0 0
    %1105 = vmatpush1.bf16.msra.mxu0 0
    %1106 = vmatprep.subr.bf16.mxu0 0
    %1107 = vmatpush1.bf16.msra.mxu0 0
    %1108 = vmatprep.subr.bf16.mxu0 0
    %1109 = vmatpush1.bf16.msra.mxu0 0
    %1110 = vmatprep.subr.bf16.mxu0 0
    %1111 = vmatpush1.bf16.msra.mxu0 0
    %1112 = vmatprep.mubr.bf16.mxu0 0
    %1113 = vmatmul.mubr.bf16.gmra.mrb[0].mxu0 %v1069
    %v1114 = vpop.f32.mrb[0].mxu0
    %v1115 = vadd.f32 0.0, %v1114
    %v1116 = vpop.f32.mrb[0].mxu0
    %v1117 = vpop.f32.mrb[0].mxu0
    %v1118 = vadd.f32 0.0, %v1117
    %v1119 = vpop.f32.mrb[0].mxu0
    %1120 = vmatprep.mubr.bf16.mxu0 0
    %1121 = vmatmul.mubr.bf16.gmra.mrb[0].mxu0 %v1072
    %v1122 = vpop.f32.mrb[0].mxu0
    %v1123 = vadd.f32 0.0, %v1122
    %v1124 = vpop.f32.mrb[0].mxu0
    %v1125 = vpop.f32.mrb[0].mxu0
    %v1126 = vadd.f32 0.0, %v1125
    %v1127 = vpop.f32.mrb[0].mxu0
    %1128 = vmatprep.mubr.bf16.mxu0 0
    %1129 = vmatmul.mubr.bf16.gmra.mrb[0].mxu0 %v1075
    %v1130 = vpop.f32.mrb[0].mxu0
    %v1131 = vadd.f32 0.0, %v1130
    %v1132 = vpop.f32.mrb[0].mxu0
    %v1133 = vpop.f32.mrb[0].mxu0
    %v1134 = vadd.f32 0.0, %v1133
    %v1135 = vpop.f32.mrb[0].mxu0
    %1136 = vmatprep.mubr.bf16.mxu0 0
    %1137 = vmatmul.mubr.bf16.gmra.mrb[0].mxu0 %v1078
    %v1138 = vpop.f32.mrb[0].mxu0
    %v1139 = vadd.f32 0.0, %v1138
    %v1140 = vpop.f32.mrb[0].mxu0
    %v1141 = vpop.f32.mrb[0].mxu0
    %v1142 = vadd.f32 0.0, %v1141
    %v1143 = vpop.f32.mrb[0].mxu0
    %1144 = vdwg.mxu0
    %v1149 = vunpack.c.l.b16 %v438
    %v1150 = vunpack.c.l.b16 %v439
    %v1151 = vunpack.c.l.b16 %v440
    %v1152 = vunpack.c.l.b16 %v441
    %v1153 = vpack.c.b16 %v1150, %v1149
    %v1154 = vpack.c.b16 %v1152, %v1151
    %v1158 = vsel %vm474, %v745, 0
    %v1161 = vsel %vm474, %v746, 0
    %v1164 = vsel %vm474, %v747, 0
    %v1167 = vsel %vm474, %v748, 0
    %1169 = vmatprep.subr.bf16.mxu0 0
    %1170 = vmatpush1.bf16.msra.mxu0 %v1153
    %1171 = vmatprep.subr.bf16.mxu0 0
    %1172 = vmatpush1.bf16.msra.mxu0 %v1154
    %1173 = vmatprep.subr.bf16.mxu0 0
    %1174 = vmatpush1.bf16.msra.mxu0 0
    %1175 = vmatprep.subr.bf16.mxu0 0
    %1176 = vmatpush1.bf16.msra.mxu0 0
    %1177 = vmatprep.subr.bf16.mxu0 0
    %1178 = vmatpush1.bf16.msra.mxu0 0
    %1179 = vmatprep.subr.bf16.mxu0 0
    %1180 = vmatpush1.bf16.msra.mxu0 0
    %1181 = vmatprep.subr.bf16.mxu0 0
    %1182 = vmatpush1.bf16.msra.mxu0 0
    %1183 = vmatprep.subr.bf16.mxu0 0
    %1184 = vmatpush1.bf16.msra.mxu0 0
    %1185 = vmatprep.subr.bf16.mxu0 0
    %1186 = vmatpush1.bf16.msra.mxu0 0
    %1187 = vmatprep.subr.bf16.mxu0 0
    %1188 = vmatpush1.bf16.msra.mxu0 0
    %1189 = vmatprep.subr.bf16.mxu0 0
    %1190 = vmatpush1.bf16.msra.mxu0 0
    %1191 = vmatprep.subr.bf16.mxu0 0
    %1192 = vmatpush1.bf16.msra.mxu0 0
    %1193 = vmatprep.subr.bf16.mxu0 0
    %1194 = vmatpush1.bf16.msra.mxu0 0
    %1195 = vmatprep.subr.bf16.mxu0 0
    %1196 = vmatpush1.bf16.msra.mxu0 0
    %1197 = vmatprep.subr.bf16.mxu0 0
    %1198 = vmatpush1.bf16.msra.mxu0 0
    %1199 = vmatprep.subr.bf16.mxu0 0
    %1200 = vmatpush1.bf16.msra.mxu0 0
    %1201 = vmatprep.mubr.bf16.mxu0 0
    %1202 = vmatmul.mubr.bf16.gmra.mrb[0].mxu0 %v1158
    %v1203 = vpop.f32.mrb[0].mxu0
    %v1204 = vadd.f32 %v1115, %v1203
    %v1205 = vpop.f32.mrb[0].mxu0
    %v1206 = vpop.f32.mrb[0].mxu0
    %v1207 = vadd.f32 %v1118, %v1206
    %v1208 = vpop.f32.mrb[0].mxu0
    %1209 = vmatprep.mubr.bf16.mxu0 0
    %1210 = vmatmul.mubr.bf16.gmra.mrb[0].mxu0 %v1161
    %v1211 = vpop.f32.mrb[0].mxu0
    %v1212 = vadd.f32 %v1123, %v1211
    %v1213 = vpop.f32.mrb[0].mxu0
    %v1214 = vpop.f32.mrb[0].mxu0
    %v1215 = vadd.f32 %v1126, %v1214
    %v1216 = vpop.f32.mrb[0].mxu0
    %1217 = vmatprep.mubr.bf16.mxu0 0
    %1218 = vmatmul.mubr.bf16.gmra.mrb[0].mxu0 %v1164
    %v1219 = vpop.f32.mrb[0].mxu0
    %v1220 = vadd.f32 %v1131, %v1219
    %v1221 = vpop.f32.mrb[0].mxu0
    %v1222 = vpop.f32.mrb[0].mxu0
    %v1223 = vadd.f32 %v1134, %v1222
    %v1224 = vpop.f32.mrb[0].mxu0
    %1225 = vmatprep.mubr.bf16.mxu0 0
    %1226 = vmatmul.mubr.bf16.gmra.mrb[0].mxu0 %v1167
    %v1227 = vpop.f32.mrb[0].mxu0
    %v1228 = vadd.f32 %v1139, %v1227
    %v1229 = vpop.f32.mrb[0].mxu0
    %v1230 = vpop.f32.mrb[0].mxu0
    %v1231 = vadd.f32 %v1142, %v1230
    %v1232 = vpop.f32.mrb[0].mxu0
    %1233 = vdwg.mxu0
    %v1234 = vadd.f32 %v57, %v1204
    %v1235 = vadd.f32 %v58, %v1207
    %v1236 = vadd.f32 %v59, %v1212
    %v1237 = vadd.f32 %v60, %v1215
    %v1238 = vadd.f32 %v61, %v1220
    %v1239 = vadd.f32 %v62, %v1223
    %v1240 = vadd.f32 %v63, %v1228
    %v1241 = vadd.f32 %v64, %v1231
    %v1242 = vld [vmem:[%s5] sm:$0x1]
    %v1244 = vlaneseq
    %v1245 = vshrl.u32 %v1244, 7
    %v1246 = vsub.s32 0, %v1245
    %v1247 = vrot.slane %v1242, %v1246
    %v1249 = vadd.f32 %v1234, %v1247
    %v1250 = vadd.f32 %v1235, %v1247
    %v1251 = vadd.f32 %v1236, %v1247
    %v1252 = vadd.f32 %v1237, %v1247
    %v1253 = vadd.f32 %v1238, %v1247
    %v1254 = vadd.f32 %v1239, %v1247
    %v1255 = vadd.f32 %v1240, %v1247
    %v1256 = vadd.f32 %v1241, %v1247
    %v1257 = vld [vmem:[%s6] sm:$0x1]
    %v1258 = vld [vmem:[%s7] sm:$0x1]
    %v1259 = vsel %vm143, %v1249, 0.0
    %1260 = vadd.xlane.f32.xlu0 %v1259
    %v1261 = vpop.xlane.xlu0 %1260
    %v1262 = vsel %vm143, %v1250, 0.0
    %1263 = vadd.xlane.f32.xlu0 %v1262
    %v1264 = vpop.xlane.xlu0 %1263
    %v1265 = vsel %vm143, %v1251, 0.0
    %1266 = vadd.xlane.f32.xlu0 %v1265
    %v1267 = vpop.xlane.xlu0 %1266
    %v1268 = vsel %vm143, %v1252, 0.0
    %1269 = vadd.xlane.f32.xlu0 %v1268
    %v1270 = vpop.xlane.xlu0 %1269
    %v1271 = vsel %vm143, %v1253, 0.0
    %1272 = vadd.xlane.f32.xlu0 %v1271
    %v1273 = vpop.xlane.xlu0 %1272
    %v1274 = vsel %vm143, %v1254, 0.0
    %1275 = vadd.xlane.f32.xlu0 %v1274
    %v1276 = vpop.xlane.xlu0 %1275
    %v1277 = vsel %vm143, %v1255, 0.0
    %1278 = vadd.xlane.f32.xlu0 %v1277
    %v1279 = vpop.xlane.xlu0 %1278
    %v1280 = vsel %vm143, %v1256, 0.0
    %1281 = vadd.xlane.f32.xlu0 %v1280
    %v1282 = vpop.xlane.xlu0 %1281
    %v1283 = vmul.f32 %v1261, %v168
    %v1284 = vmul.f32 %v1264, %v168
    %v1285 = vmul.f32 %v1267, %v168
    %v1286 = vmul.f32 %v1270, %v168
    %v1287 = vmul.f32 %v1273, %v168
    %v1288 = vmul.f32 %v1276, %v168
    %v1289 = vmul.f32 %v1279, %v168
    %v1290 = vmul.f32 %v1282, %v168
    %v1291 = vmul.f32 %v1249, %v1249
    %v1292 = vmul.f32 %v1250, %v1250
    %v1293 = vmul.f32 %v1251, %v1251
    %v1294 = vmul.f32 %v1252, %v1252
    %v1295 = vmul.f32 %v1253, %v1253
    %v1296 = vmul.f32 %v1254, %v1254
    %v1297 = vmul.f32 %v1255, %v1255
    %v1298 = vmul.f32 %v1256, %v1256
    %v1299 = vsel %vm143, %v1291, 0.0
    %1300 = vadd.xlane.f32.xlu0 %v1299
    %v1301 = vpop.xlane.xlu0 %1300
    %v1302 = vsel %vm143, %v1292, 0.0
    %1303 = vadd.xlane.f32.xlu0 %v1302
    %v1304 = vpop.xlane.xlu0 %1303
    %v1305 = vsel %vm143, %v1293, 0.0
    %1306 = vadd.xlane.f32.xlu0 %v1305
    %v1307 = vpop.xlane.xlu0 %1306
    %v1308 = vsel %vm143, %v1294, 0.0
    %1309 = vadd.xlane.f32.xlu0 %v1308
    %v1310 = vpop.xlane.xlu0 %1309
    %v1311 = vsel %vm143, %v1295, 0.0
    %1312 = vadd.xlane.f32.xlu0 %v1311
    %v1313 = vpop.xlane.xlu0 %1312
    %v1314 = vsel %vm143, %v1296, 0.0
    %1315 = vadd.xlane.f32.xlu0 %v1314
    %v1316 = vpop.xlane.xlu0 %1315
    %v1317 = vsel %vm143, %v1297, 0.0
    %1318 = vadd.xlane.f32.xlu0 %v1317
    %v1319 = vpop.xlane.xlu0 %1318
    %v1320 = vsel %vm143, %v1298, 0.0
    %1321 = vadd.xlane.f32.xlu0 %v1320
    %v1322 = vpop.xlane.xlu0 %1321
    %v1323 = vmul.f32 %v1301, %v168
    %v1324 = vmul.f32 %v1304, %v168
    %v1325 = vmul.f32 %v1307, %v168
    %v1326 = vmul.f32 %v1310, %v168
    %v1327 = vmul.f32 %v1313, %v168
    %v1328 = vmul.f32 %v1316, %v168
    %v1329 = vmul.f32 %v1319, %v168
    %v1330 = vmul.f32 %v1322, %v168
    %v1331 = vmul.f32 %v1283, %v1283
    %v1332 = vmul.f32 %v1284, %v1284
    %v1333 = vmul.f32 %v1285, %v1285
    %v1334 = vmul.f32 %v1286, %v1286
    %v1335 = vmul.f32 %v1287, %v1287
    %v1336 = vmul.f32 %v1288, %v1288
    %v1337 = vmul.f32 %v1289, %v1289
    %v1338 = vmul.f32 %v1290, %v1290
    %v1339 = vsub.f32 %v1323, %v1331
    %v1340 = vsub.f32 %v1324, %v1332
    %v1341 = vsub.f32 %v1325, %v1333
    %v1342 = vsub.f32 %v1326, %v1334
    %v1343 = vsub.f32 %v1327, %v1335
    %v1344 = vsub.f32 %v1328, %v1336
    %v1345 = vsub.f32 %v1329, %v1337
    %v1346 = vsub.f32 %v1330, %v1338
    %v1347 = vadd.f32 %v1339, 1e-05
    %v1348 = vadd.f32 %v1340, 1e-05
    %v1349 = vadd.f32 %v1341, 1e-05
    %v1350 = vadd.f32 %v1342, 1e-05
    %v1351 = vadd.f32 %v1343, 1e-05
    %v1352 = vadd.f32 %v1344, 1e-05
    %v1353 = vadd.f32 %v1345, 1e-05
    %v1354 = vadd.f32 %v1346, 1e-05
    %v1355 = vrsqrt.pop %v1347
    %v1356 = vrsqrt.pop %v1348
    %v1357 = vrsqrt.pop %v1349
    %v1358 = vrsqrt.pop %v1350
    %v1359 = vrsqrt.pop %v1351
    %v1360 = vrsqrt.pop %v1352
    %v1361 = vrsqrt.pop %v1353
    %v1362 = vrsqrt.pop %v1354
    %v1364 = vlaneseq
    %v1365 = vshrl.u32 %v1364, 7
    %v1366 = vsub.s32 0, %v1365
    %v1367 = vrot.slane %v1257, %v1366
    %v1369 = vmul.f32 %v1355, %v1367
    %v1370 = vmul.f32 %v1356, %v1367
    %v1371 = vmul.f32 %v1357, %v1367
    %v1372 = vmul.f32 %v1358, %v1367
    %v1373 = vmul.f32 %v1359, %v1367
    %v1374 = vmul.f32 %v1360, %v1367
    %v1375 = vmul.f32 %v1361, %v1367
    %v1376 = vmul.f32 %v1362, %v1367
    %v1377 = vmul.f32 %v1249, %v1369
    %v1378 = vmul.f32 %v1250, %v1370
    %v1379 = vmul.f32 %v1251, %v1371
    %v1380 = vmul.f32 %v1252, %v1372
    %v1381 = vmul.f32 %v1253, %v1373
    %v1382 = vmul.f32 %v1254, %v1374
    %v1383 = vmul.f32 %v1255, %v1375
    %v1384 = vmul.f32 %v1256, %v1376
    %v1385 = vmul.f32 %v1283, %v1369
    %v1386 = vmul.f32 %v1284, %v1370
    %v1387 = vmul.f32 %v1285, %v1371
    %v1388 = vmul.f32 %v1286, %v1372
    %v1389 = vmul.f32 %v1287, %v1373
    %v1390 = vmul.f32 %v1288, %v1374
    %v1391 = vmul.f32 %v1289, %v1375
    %v1392 = vmul.f32 %v1290, %v1376
    %v1394 = vlaneseq
    %v1395 = vshrl.u32 %v1394, 7
    %v1396 = vsub.s32 0, %v1395
    %v1397 = vrot.slane %v1258, %v1396
    %v1399 = vsub.f32 %v1397, %v1385
    %v1400 = vsub.f32 %v1397, %v1386
    %v1401 = vsub.f32 %v1397, %v1387
    %v1402 = vsub.f32 %v1397, %v1388
    %v1403 = vsub.f32 %v1397, %v1389
    %v1404 = vsub.f32 %v1397, %v1390
    %v1405 = vsub.f32 %v1397, %v1391
    %v1406 = vsub.f32 %v1397, %v1392
    %v1407 = vadd.f32 %v1377, %v1399
    %v1408 = vadd.f32 %v1378, %v1400
    %v1409 = vadd.f32 %v1379, %v1401
    %v1410 = vadd.f32 %v1380, %v1402
    %v1411 = vadd.f32 %v1381, %v1403
    %v1412 = vadd.f32 %v1382, %v1404
    %v1413 = vadd.f32 %v1383, %v1405
    %v1414 = vadd.f32 %v1384, %v1406
    %v1415 = vpack.c.bf16 %v1408, %v1407
    %v1416 = vpack.c.bf16 %v1410, %v1409
    %v1417 = vpack.c.bf16 %v1412, %v1411
    %v1418 = vpack.c.bf16 %v1414, %v1413
    %v1419 = vld [vmem:[%s8] sm:$0xff]
    %v1420 = vld [vmem:[%s8 + $0x8] sm:$0xff]
    %v1421 = vld [vmem:[%s8 + $0x10] sm:$0xff]
    %v1422 = vld [vmem:[%s8 + $0x18] sm:$0xff]
    %v1423 = vld [vmem:[%s8 + $0x20] sm:$0xff]
    %v1424 = vld [vmem:[%s8 + $0x28] sm:$0xff]
    %v1425 = vld [vmem:[%s8 + $0x30] sm:$0xff]
    %v1426 = vld [vmem:[%s8 + $0x38] sm:$0xff]
    %v1427 = vld [vmem:[%s9] sm:$0x3]
    %v1429 = vlaneseq
    %v1430 = vshrl.u32 %v1429, 7
    %v1431 = vsub.s32 0, %v1430
    %v1432 = vrot.slane %v1427, %v1431
    %v1433 = vlaneseq
    %v1434 = vshrl.u32 %v1433, 7
    %v1435 = vsub.s32 1, %v1434
    %v1436 = vrot.slane %v1427, %v1435
    %v1447 = vunpack.c.l.b16 %v1419
    %v1448 = vunpack.c.h.b16 %v1419
    %v1449 = vunpack.c.l.b16 %v1420
    %v1450 = vunpack.c.h.b16 %v1420
    %v1451 = vunpack.c.l.b16 %v1421
    %v1452 = vunpack.c.h.b16 %v1421
    %v1453 = vunpack.c.l.b16 %v1422
    %v1454 = vunpack.c.h.b16 %v1422
    %v1455 = vunpack.c.l.b16 %v1423
    %v1456 = vunpack.c.h.b16 %v1423
    %v1457 = vunpack.c.l.b16 %v1424
    %v1458 = vunpack.c.h.b16 %v1424
    %v1459 = vunpack.c.l.b16 %v1425
    %v1460 = vunpack.c.h.b16 %v1425
    %v1461 = vunpack.c.l.b16 %v1426
    %v1462 = vunpack.c.h.b16 %v1426
    %v1463 = vpack.c.b16 %v1449, %v1447
    %v1464 = vpack.c.b16 %v1450, %v1448
    %v1465 = vpack.c.b16 %v1453, %v1451
    %v1466 = vpack.c.b16 %v1454, %v1452
    %v1467 = vpack.c.b16 %v1457, %v1455
    %v1468 = vpack.c.b16 %v1458, %v1456
    %v1469 = vpack.c.b16 %v1461, %v1459
    %v1470 = vpack.c.b16 %v1462, %v1460
    %v1480 = vsel %vm143, %v1415, 0
    %v1483 = vsel %vm143, %v1416, 0
    %v1486 = vsel %vm143, %v1417, 0
    %v1489 = vsel %vm143, %v1418, 0
    %1491 = vmatprep.subr.bf16.mxu0 %v1464
    %1492 = vmatpush1.bf16.msra.mxu0 %v1463
    %1493 = vmatprep.subr.bf16.mxu0 %v1466
    %1494 = vmatpush1.bf16.msra.mxu0 %v1465
    %1495 = vmatprep.subr.bf16.mxu0 %v1468
    %1496 = vmatpush1.bf16.msra.mxu0 %v1467
    %1497 = vmatprep.subr.bf16.mxu0 %v1470
    %1498 = vmatpush1.bf16.msra.mxu0 %v1469
    %1499 = vmatprep.subr.bf16.mxu0 0
    %1500 = vmatpush1.bf16.msra.mxu0 0
    %1501 = vmatprep.subr.bf16.mxu0 0
    %1502 = vmatpush1.bf16.msra.mxu0 0
    %1503 = vmatprep.subr.bf16.mxu0 0
    %1504 = vmatpush1.bf16.msra.mxu0 0
    %1505 = vmatprep.subr.bf16.mxu0 0
    %1506 = vmatpush1.bf16.msra.mxu0 0
    %1507 = vmatprep.subr.bf16.mxu0 0
    %1508 = vmatpush1.bf16.msra.mxu0 0
    %1509 = vmatprep.subr.bf16.mxu0 0
    %1510 = vmatpush1.bf16.msra.mxu0 0
    %1511 = vmatprep.subr.bf16.mxu0 0
    %1512 = vmatpush1.bf16.msra.mxu0 0
    %1513 = vmatprep.subr.bf16.mxu0 0
    %1514 = vmatpush1.bf16.msra.mxu0 0
    %1515 = vmatprep.subr.bf16.mxu0 0
    %1516 = vmatpush1.bf16.msra.mxu0 0
    %1517 = vmatprep.subr.bf16.mxu0 0
    %1518 = vmatpush1.bf16.msra.mxu0 0
    %1519 = vmatprep.subr.bf16.mxu0 0
    %1520 = vmatpush1.bf16.msra.mxu0 0
    %1521 = vmatprep.subr.bf16.mxu0 0
    %1522 = vmatpush1.bf16.msra.mxu0 0
    %1523 = vmatprep.mubr.bf16.mxu0 0
    %1524 = vmatmul.mubr.bf16.gmra.mrb[0].mxu0 %v1480
    %v1525 = vpop.f32.mrb[0].mxu0
    %v1526 = vadd.f32 %v1432, %v1525
    %v1527 = vpop.f32.mrb[0].mxu0
    %v1528 = vadd.f32 %v1436, %v1527
    %v1529 = vpop.f32.mrb[0].mxu0
    %v1530 = vadd.f32 %v1432, %v1529
    %v1531 = vpop.f32.mrb[0].mxu0
    %v1532 = vadd.f32 %v1436, %v1531
    %1533 = vmatprep.mubr.bf16.mxu0 0
    %1534 = vmatmul.mubr.bf16.gmra.mrb[0].mxu0 %v1483
    %v1535 = vpop.f32.mrb[0].mxu0
    %v1536 = vadd.f32 %v1432, %v1535
    %v1537 = vpop.f32.mrb[0].mxu0
    %v1538 = vadd.f32 %v1436, %v1537
    %v1539 = vpop.f32.mrb[0].mxu0
    %v1540 = vadd.f32 %v1432, %v1539
    %v1541 = vpop.f32.mrb[0].mxu0
    %v1542 = vadd.f32 %v1436, %v1541
    %1543 = vmatprep.mubr.bf16.mxu0 0
    %1544 = vmatmul.mubr.bf16.gmra.mrb[0].mxu0 %v1486
    %v1545 = vpop.f32.mrb[0].mxu0
    %v1546 = vadd.f32 %v1432, %v1545
    %v1547 = vpop.f32.mrb[0].mxu0
    %v1548 = vadd.f32 %v1436, %v1547
    %v1549 = vpop.f32.mrb[0].mxu0
    %v1550 = vadd.f32 %v1432, %v1549
    %v1551 = vpop.f32.mrb[0].mxu0
    %v1552 = vadd.f32 %v1436, %v1551
    %1553 = vmatprep.mubr.bf16.mxu0 0
    %1554 = vmatmul.mubr.bf16.gmra.mrb[0].mxu0 %v1489
    %v1555 = vpop.f32.mrb[0].mxu0
    %v1556 = vadd.f32 %v1432, %v1555
    %v1557 = vpop.f32.mrb[0].mxu0
    %v1558 = vadd.f32 %v1436, %v1557
    %v1559 = vpop.f32.mrb[0].mxu0
    %v1560 = vadd.f32 %v1432, %v1559
    %v1561 = vpop.f32.mrb[0].mxu0
    %v1562 = vadd.f32 %v1436, %v1561
    %1563 = vdwg.mxu0
    %v1564 = vmax.f32 %v1526, 0.0
    %v1565 = vmax.f32 %v1528, 0.0
    %v1566 = vmax.f32 %v1530, 0.0
    %v1567 = vmax.f32 %v1532, 0.0
    %v1568 = vmax.f32 %v1536, 0.0
    %v1569 = vmax.f32 %v1538, 0.0
    %v1570 = vmax.f32 %v1540, 0.0
    %v1571 = vmax.f32 %v1542, 0.0
    %v1572 = vmax.f32 %v1546, 0.0
    %v1573 = vmax.f32 %v1548, 0.0
    %v1574 = vmax.f32 %v1550, 0.0
    %v1575 = vmax.f32 %v1552, 0.0
    %v1576 = vmax.f32 %v1556, 0.0
    %v1577 = vmax.f32 %v1558, 0.0
    %v1578 = vmax.f32 %v1560, 0.0
    %v1579 = vmax.f32 %v1562, 0.0
    %v1580 = vpack.c.bf16 %v1566, %v1564
    %v1581 = vpack.c.bf16 %v1567, %v1565
    %v1582 = vpack.c.bf16 %v1570, %v1568
    %v1583 = vpack.c.bf16 %v1571, %v1569
    %v1584 = vpack.c.bf16 %v1574, %v1572
    %v1585 = vpack.c.bf16 %v1575, %v1573
    %v1586 = vpack.c.bf16 %v1578, %v1576
    %v1587 = vpack.c.bf16 %v1579, %v1577
    %v1588 = vld [vmem:[%s10] sm:$0xf]
    %v1589 = vld [vmem:[%s10 + $0x4] sm:$0xf]
    %v1590 = vld [vmem:[%s10 + $0x8] sm:$0xf]
    %v1591 = vld [vmem:[%s10 + $0xc] sm:$0xf]
    %v1592 = vld [vmem:[%s10 + $0x10] sm:$0xf]
    %v1593 = vld [vmem:[%s10 + $0x14] sm:$0xf]
    %v1594 = vld [vmem:[%s10 + $0x18] sm:$0xf]
    %v1595 = vld [vmem:[%s10 + $0x1c] sm:$0xf]
    %v1596 = vld [vmem:[%s10 + $0x20] sm:$0xf]
    %v1597 = vld [vmem:[%s10 + $0x24] sm:$0xf]
    %v1598 = vld [vmem:[%s10 + $0x28] sm:$0xf]
    %v1599 = vld [vmem:[%s10 + $0x2c] sm:$0xf]
    %v1600 = vld [vmem:[%s10 + $0x30] sm:$0xf]
    %v1601 = vld [vmem:[%s10 + $0x34] sm:$0xf]
    %v1602 = vld [vmem:[%s10 + $0x38] sm:$0xf]
    %v1603 = vld [vmem:[%s10 + $0x3c] sm:$0xf]
    %v1604 = vld [vmem:[%s10 + $0x40] sm:$0xf]
    %v1605 = vld [vmem:[%s10 + $0x44] sm:$0xf]
    %v1606 = vld [vmem:[%s10 + $0x48] sm:$0xf]
    %v1607 = vld [vmem:[%s10 + $0x4c] sm:$0xf]
    %v1608 = vld [vmem:[%s10 + $0x50] sm:$0xf]
    %v1609 = vld [vmem:[%s10 + $0x54] sm:$0xf]
    %v1610 = vld [vmem:[%s10 + $0x58] sm:$0xf]
    %v1611 = vld [vmem:[%s10 + $0x5c] sm:$0xf]
    %v1612 = vld [vmem:[%s10 + $0x60] sm:$0xf]
    %v1613 = vld [vmem:[%s10 + $0x64] sm:$0xf]
    %v1614 = vld [vmem:[%s10 + $0x68] sm:$0xf]
    %v1615 = vld [vmem:[%s10 + $0x6c] sm:$0xf]
    %v1616 = vld [vmem:[%s10 + $0x70] sm:$0xf]
    %v1617 = vld [vmem:[%s10 + $0x74] sm:$0xf]
    %v1618 = vld [vmem:[%s10 + $0x78] sm:$0xf]
    %v1619 = vld [vmem:[%s10 + $0x7c] sm:$0xf]
    %v1652 = vunpack.c.l.b16 %v1588
    %v1653 = vunpack.c.l.b16 %v1589
    %v1654 = vunpack.c.l.b16 %v1590
    %v1655 = vunpack.c.l.b16 %v1591
    %v1656 = vunpack.c.l.b16 %v1592
    %v1657 = vunpack.c.l.b16 %v1593
    %v1658 = vunpack.c.l.b16 %v1594
    %v1659 = vunpack.c.l.b16 %v1595
    %v1660 = vunpack.c.l.b16 %v1596
    %v1661 = vunpack.c.l.b16 %v1597
    %v1662 = vunpack.c.l.b16 %v1598
    %v1663 = vunpack.c.l.b16 %v1599
    %v1664 = vunpack.c.l.b16 %v1600
    %v1665 = vunpack.c.l.b16 %v1601
    %v1666 = vunpack.c.l.b16 %v1602
    %v1667 = vunpack.c.l.b16 %v1603
    %v1668 = vunpack.c.l.b16 %v1604
    %v1669 = vunpack.c.l.b16 %v1605
    %v1670 = vunpack.c.l.b16 %v1606
    %v1671 = vunpack.c.l.b16 %v1607
    %v1672 = vunpack.c.l.b16 %v1608
    %v1673 = vunpack.c.l.b16 %v1609
    %v1674 = vunpack.c.l.b16 %v1610
    %v1675 = vunpack.c.l.b16 %v1611
    %v1676 = vunpack.c.l.b16 %v1612
    %v1677 = vunpack.c.l.b16 %v1613
    %v1678 = vunpack.c.l.b16 %v1614
    %v1679 = vunpack.c.l.b16 %v1615
    %v1680 = vunpack.c.l.b16 %v1616
    %v1681 = vunpack.c.l.b16 %v1617
    %v1682 = vunpack.c.l.b16 %v1618
    %v1683 = vunpack.c.l.b16 %v1619
    %v1684 = vpack.c.b16 %v1653, %v1652
    %v1685 = vpack.c.b16 %v1655, %v1654
    %v1686 = vpack.c.b16 %v1657, %v1656
    %v1687 = vpack.c.b16 %v1659, %v1658
    %v1688 = vpack.c.b16 %v1661, %v1660
    %v1689 = vpack.c.b16 %v1663, %v1662
    %v1690 = vpack.c.b16 %v1665, %v1664
    %v1691 = vpack.c.b16 %v1667, %v1666
    %v1692 = vpack.c.b16 %v1669, %v1668
    %v1693 = vpack.c.b16 %v1671, %v1670
    %v1694 = vpack.c.b16 %v1673, %v1672
    %v1695 = vpack.c.b16 %v1675, %v1674
    %v1696 = vpack.c.b16 %v1677, %v1676
    %v1697 = vpack.c.b16 %v1679, %v1678
    %v1698 = vpack.c.b16 %v1681, %v1680
    %v1699 = vpack.c.b16 %v1683, %v1682
    %1716 = vmatprep.subr.bf16.mxu0 0
    %1717 = vmatpush1.bf16.msra.mxu0 %v1684
    %1718 = vmatprep.subr.bf16.mxu0 0
    %1719 = vmatpush1.bf16.msra.mxu0 %v1685
    %1720 = vmatprep.subr.bf16.mxu0 0
    %1721 = vmatpush1.bf16.msra.mxu0 %v1686
    %1722 = vmatprep.subr.bf16.mxu0 0
    %1723 = vmatpush1.bf16.msra.mxu0 %v1687
    %1724 = vmatprep.subr.bf16.mxu0 0
    %1725 = vmatpush1.bf16.msra.mxu0 %v1688
    %1726 = vmatprep.subr.bf16.mxu0 0
    %1727 = vmatpush1.bf16.msra.mxu0 %v1689
    %1728 = vmatprep.subr.bf16.mxu0 0
    %1729 = vmatpush1.bf16.msra.mxu0 %v1690
    %1730 = vmatprep.subr.bf16.mxu0 0
    %1731 = vmatpush1.bf16.msra.mxu0 %v1691
    %1732 = vmatprep.subr.bf16.mxu0 0
    %1733 = vmatpush1.bf16.msra.mxu0 %v1692
    %1734 = vmatprep.subr.bf16.mxu0 0
    %1735 = vmatpush1.bf16.msra.mxu0 %v1693
    %1736 = vmatprep.subr.bf16.mxu0 0
    %1737 = vmatpush1.bf16.msra.mxu0 %v1694
    %1738 = vmatprep.subr.bf16.mxu0 0
    %1739 = vmatpush1.bf16.msra.mxu0 %v1695
    %1740 = vmatprep.subr.bf16.mxu0 0
    %1741 = vmatpush1.bf16.msra.mxu0 %v1696
    %1742 = vmatprep.subr.bf16.mxu0 0
    %1743 = vmatpush1.bf16.msra.mxu0 %v1697
    %1744 = vmatprep.subr.bf16.mxu0 0
    %1745 = vmatpush1.bf16.msra.mxu0 %v1698
    %1746 = vmatprep.subr.bf16.mxu0 0
    %1747 = vmatpush1.bf16.msra.mxu0 %v1699
    %1748 = vmatprep.mubr.bf16.mxu0 %v1581
    %1749 = vmatmul.mubr.bf16.gmra.mrb[0].mxu0 %v1580
    %v1750 = vpop.f32.mrb[0].mxu0
    %v1751 = vadd.f32 0.0, %v1750
    %v1752 = vpop.f32.mrb[0].mxu0
    %v1753 = vpop.f32.mrb[0].mxu0
    %v1754 = vadd.f32 0.0, %v1753
    %v1755 = vpop.f32.mrb[0].mxu0
    %1756 = vmatprep.mubr.bf16.mxu0 %v1583
    %1757 = vmatmul.mubr.bf16.gmra.mrb[0].mxu0 %v1582
    %v1758 = vpop.f32.mrb[0].mxu0
    %v1759 = vadd.f32 0.0, %v1758
    %v1760 = vpop.f32.mrb[0].mxu0
    %v1761 = vpop.f32.mrb[0].mxu0
    %v1762 = vadd.f32 0.0, %v1761
    %v1763 = vpop.f32.mrb[0].mxu0
    %1764 = vmatprep.mubr.bf16.mxu0 %v1585
    %1765 = vmatmul.mubr.bf16.gmra.mrb[0].mxu0 %v1584
    %v1766 = vpop.f32.mrb[0].mxu0
    %v1767 = vadd.f32 0.0, %v1766
    %v1768 = vpop.f32.mrb[0].mxu0
    %v1769 = vpop.f32.mrb[0].mxu0
    %v1770 = vadd.f32 0.0, %v1769
    %v1771 = vpop.f32.mrb[0].mxu0
    %1772 = vmatprep.mubr.bf16.mxu0 %v1587
    %1773 = vmatmul.mubr.bf16.gmra.mrb[0].mxu0 %v1586
    %v1774 = vpop.f32.mrb[0].mxu0
    %v1775 = vadd.f32 0.0, %v1774
    %v1776 = vpop.f32.mrb[0].mxu0
    %v1777 = vpop.f32.mrb[0].mxu0
    %v1778 = vadd.f32 0.0, %v1777
    %v1779 = vpop.f32.mrb[0].mxu0
    %1780 = vdwg.mxu0
    %v1781 = vadd.f32 %v1249, %v1751
    %v1782 = vadd.f32 %v1250, %v1754
    %v1783 = vadd.f32 %v1251, %v1759
    %v1784 = vadd.f32 %v1252, %v1762
    %v1785 = vadd.f32 %v1253, %v1767
    %v1786 = vadd.f32 %v1254, %v1770
    %v1787 = vadd.f32 %v1255, %v1775
    %v1788 = vadd.f32 %v1256, %v1778
    %v1789 = vld [vmem:[%s11] sm:$0x1]
    %v1791 = vlaneseq
    %v1792 = vshrl.u32 %v1791, 7
    %v1793 = vsub.s32 0, %v1792
    %v1794 = vrot.slane %v1789, %v1793
    %v1796 = vadd.f32 %v1781, %v1794
    %v1797 = vadd.f32 %v1782, %v1794
    %v1798 = vadd.f32 %v1783, %v1794
    %v1799 = vadd.f32 %v1784, %v1794
    %v1800 = vadd.f32 %v1785, %v1794
    %v1801 = vadd.f32 %v1786, %v1794
    %v1802 = vadd.f32 %v1787, %v1794
    %v1803 = vadd.f32 %v1788, %v1794
    %s1804 = scalar_lea.vmem %s1, 1
    %v1805 = vld [vmem:[%s1804] sm:$0x1]
    %s1806 = scalar_lea.vmem %s2, 1
    %v1807 = vld [vmem:[%s1806] sm:$0x1]
    %v1808 = vsel %vm143, %v1796, 0.0
    %1809 = vadd.xlane.f32.xlu0 %v1808
    %v1810 = vpop.xlane.xlu0 %1809
    %v1811 = vsel %vm143, %v1797, 0.0
    %1812 = vadd.xlane.f32.xlu0 %v1811
    %v1813 = vpop.xlane.xlu0 %1812
    %v1814 = vsel %vm143, %v1798, 0.0
    %1815 = vadd.xlane.f32.xlu0 %v1814
    %v1816 = vpop.xlane.xlu0 %1815
    %v1817 = vsel %vm143, %v1799, 0.0
    %1818 = vadd.xlane.f32.xlu0 %v1817
    %v1819 = vpop.xlane.xlu0 %1818
    %v1820 = vsel %vm143, %v1800, 0.0
    %1821 = vadd.xlane.f32.xlu0 %v1820
    %v1822 = vpop.xlane.xlu0 %1821
    %v1823 = vsel %vm143, %v1801, 0.0
    %1824 = vadd.xlane.f32.xlu0 %v1823
    %v1825 = vpop.xlane.xlu0 %1824
    %v1826 = vsel %vm143, %v1802, 0.0
    %1827 = vadd.xlane.f32.xlu0 %v1826
    %v1828 = vpop.xlane.xlu0 %1827
    %v1829 = vsel %vm143, %v1803, 0.0
    %1830 = vadd.xlane.f32.xlu0 %v1829
    %v1831 = vpop.xlane.xlu0 %1830
    %v1832 = vmul.f32 %v1810, %v168
    %v1833 = vmul.f32 %v1813, %v168
    %v1834 = vmul.f32 %v1816, %v168
    %v1835 = vmul.f32 %v1819, %v168
    %v1836 = vmul.f32 %v1822, %v168
    %v1837 = vmul.f32 %v1825, %v168
    %v1838 = vmul.f32 %v1828, %v168
    %v1839 = vmul.f32 %v1831, %v168
    %v1840 = vmul.f32 %v1796, %v1796
    %v1841 = vmul.f32 %v1797, %v1797
    %v1842 = vmul.f32 %v1798, %v1798
    %v1843 = vmul.f32 %v1799, %v1799
    %v1844 = vmul.f32 %v1800, %v1800
    %v1845 = vmul.f32 %v1801, %v1801
    %v1846 = vmul.f32 %v1802, %v1802
    %v1847 = vmul.f32 %v1803, %v1803
    %v1848 = vsel %vm143, %v1840, 0.0
    %1849 = vadd.xlane.f32.xlu0 %v1848
    %v1850 = vpop.xlane.xlu0 %1849
    %v1851 = vsel %vm143, %v1841, 0.0
    %1852 = vadd.xlane.f32.xlu0 %v1851
    %v1853 = vpop.xlane.xlu0 %1852
    %v1854 = vsel %vm143, %v1842, 0.0
    %1855 = vadd.xlane.f32.xlu0 %v1854
    %v1856 = vpop.xlane.xlu0 %1855
    %v1857 = vsel %vm143, %v1843, 0.0
    %1858 = vadd.xlane.f32.xlu0 %v1857
    %v1859 = vpop.xlane.xlu0 %1858
    %v1860 = vsel %vm143, %v1844, 0.0
    %1861 = vadd.xlane.f32.xlu0 %v1860
    %v1862 = vpop.xlane.xlu0 %1861
    %v1863 = vsel %vm143, %v1845, 0.0
    %1864 = vadd.xlane.f32.xlu0 %v1863
    %v1865 = vpop.xlane.xlu0 %1864
    %v1866 = vsel %vm143, %v1846, 0.0
    %1867 = vadd.xlane.f32.xlu0 %v1866
    %v1868 = vpop.xlane.xlu0 %1867
    %v1869 = vsel %vm143, %v1847, 0.0
    %1870 = vadd.xlane.f32.xlu0 %v1869
    %v1871 = vpop.xlane.xlu0 %1870
    %v1872 = vmul.f32 %v1850, %v168
    %v1873 = vmul.f32 %v1853, %v168
    %v1874 = vmul.f32 %v1856, %v168
    %v1875 = vmul.f32 %v1859, %v168
    %v1876 = vmul.f32 %v1862, %v168
    %v1877 = vmul.f32 %v1865, %v168
    %v1878 = vmul.f32 %v1868, %v168
    %v1879 = vmul.f32 %v1871, %v168
    %v1880 = vmul.f32 %v1832, %v1832
    %v1881 = vmul.f32 %v1833, %v1833
    %v1882 = vmul.f32 %v1834, %v1834
    %v1883 = vmul.f32 %v1835, %v1835
    %v1884 = vmul.f32 %v1836, %v1836
    %v1885 = vmul.f32 %v1837, %v1837
    %v1886 = vmul.f32 %v1838, %v1838
    %v1887 = vmul.f32 %v1839, %v1839
    %v1888 = vsub.f32 %v1872, %v1880
    %v1889 = vsub.f32 %v1873, %v1881
    %v1890 = vsub.f32 %v1874, %v1882
    %v1891 = vsub.f32 %v1875, %v1883
    %v1892 = vsub.f32 %v1876, %v1884
    %v1893 = vsub.f32 %v1877, %v1885
    %v1894 = vsub.f32 %v1878, %v1886
    %v1895 = vsub.f32 %v1879, %v1887
    %v1896 = vadd.f32 %v1888, 1e-05
    %v1897 = vadd.f32 %v1889, 1e-05
    %v1898 = vadd.f32 %v1890, 1e-05
    %v1899 = vadd.f32 %v1891, 1e-05
    %v1900 = vadd.f32 %v1892, 1e-05
    %v1901 = vadd.f32 %v1893, 1e-05
    %v1902 = vadd.f32 %v1894, 1e-05
    %v1903 = vadd.f32 %v1895, 1e-05
    %v1904 = vrsqrt.pop %v1896
    %v1905 = vrsqrt.pop %v1897
    %v1906 = vrsqrt.pop %v1898
    %v1907 = vrsqrt.pop %v1899
    %v1908 = vrsqrt.pop %v1900
    %v1909 = vrsqrt.pop %v1901
    %v1910 = vrsqrt.pop %v1902
    %v1911 = vrsqrt.pop %v1903
    %v1913 = vlaneseq
    %v1914 = vshrl.u32 %v1913, 7
    %v1915 = vsub.s32 0, %v1914
    %v1916 = vrot.slane %v1805, %v1915
    %v1918 = vmul.f32 %v1904, %v1916
    %v1919 = vmul.f32 %v1905, %v1916
    %v1920 = vmul.f32 %v1906, %v1916
    %v1921 = vmul.f32 %v1907, %v1916
    %v1922 = vmul.f32 %v1908, %v1916
    %v1923 = vmul.f32 %v1909, %v1916
    %v1924 = vmul.f32 %v1910, %v1916
    %v1925 = vmul.f32 %v1911, %v1916
    %v1926 = vmul.f32 %v1796, %v1918
    %v1927 = vmul.f32 %v1797, %v1919
    %v1928 = vmul.f32 %v1798, %v1920
    %v1929 = vmul.f32 %v1799, %v1921
    %v1930 = vmul.f32 %v1800, %v1922
    %v1931 = vmul.f32 %v1801, %v1923
    %v1932 = vmul.f32 %v1802, %v1924
    %v1933 = vmul.f32 %v1803, %v1925
    %v1934 = vmul.f32 %v1832, %v1918
    %v1935 = vmul.f32 %v1833, %v1919
    %v1936 = vmul.f32 %v1834, %v1920
    %v1937 = vmul.f32 %v1835, %v1921
    %v1938 = vmul.f32 %v1836, %v1922
    %v1939 = vmul.f32 %v1837, %v1923
    %v1940 = vmul.f32 %v1838, %v1924
    %v1941 = vmul.f32 %v1839, %v1925
    %v1943 = vlaneseq
    %v1944 = vshrl.u32 %v1943, 7
    %v1945 = vsub.s32 0, %v1944
    %v1946 = vrot.slane %v1807, %v1945
    %v1948 = vsub.f32 %v1946, %v1934
    %v1949 = vsub.f32 %v1946, %v1935
    %v1950 = vsub.f32 %v1946, %v1936
    %v1951 = vsub.f32 %v1946, %v1937
    %v1952 = vsub.f32 %v1946, %v1938
    %v1953 = vsub.f32 %v1946, %v1939
    %v1954 = vsub.f32 %v1946, %v1940
    %v1955 = vsub.f32 %v1946, %v1941
    %v1956 = vadd.f32 %v1926, %v1948
    %v1957 = vadd.f32 %v1927, %v1949
    %v1958 = vadd.f32 %v1928, %v1950
    %v1959 = vadd.f32 %v1929, %v1951
    %v1960 = vadd.f32 %v1930, %v1952
    %v1961 = vadd.f32 %v1931, %v1953
    %v1962 = vadd.f32 %v1932, %v1954
    %v1963 = vadd.f32 %v1933, %v1955
    %v1964 = vpack.c.bf16 %v1957, %v1956
    %v1965 = vpack.c.bf16 %v1959, %v1958
    %v1966 = vpack.c.bf16 %v1961, %v1960
    %v1967 = vpack.c.bf16 %v1963, %v1962
    %s1968 = scalar_lea.vmem %s3, 64
    %v1969 = vld [vmem:[%s1968] sm:$0xff]
    %v1970 = vld [vmem:[%s1968 + $0x8] sm:$0xff]
    %v1971 = vld [vmem:[%s1968 + $0x10] sm:$0xff]
    %v1972 = vld [vmem:[%s1968 + $0x18] sm:$0xff]
    %v1973 = vld [vmem:[%s1968 + $0x20] sm:$0xff]
    %v1974 = vld [vmem:[%s1968 + $0x28] sm:$0xff]
    %v1975 = vld [vmem:[%s1968 + $0x30] sm:$0xff]
    %v1976 = vld [vmem:[%s1968 + $0x38] sm:$0xff]
    %v1985 = vunpack.c.l.b16 %v1969
    %v1986 = vunpack.c.h.b16 %v1969
    %v1987 = vunpack.c.l.b16 %v1970
    %v1988 = vunpack.c.h.b16 %v1970
    %v1989 = vunpack.c.l.b16 %v1971
    %v1990 = vunpack.c.h.b16 %v1971
    %v1991 = vunpack.c.l.b16 %v1972
    %v1992 = vunpack.c.h.b16 %v1972
    %v1993 = vunpack.c.l.b16 %v1973
    %v1994 = vunpack.c.h.b16 %v1973
    %v1995 = vunpack.c.l.b16 %v1974
    %v1996 = vunpack.c.h.b16 %v1974
    %v1997 = vunpack.c.l.b16 %v1975
    %v1998 = vunpack.c.h.b16 %v1975
    %v1999 = vunpack.c.l.b16 %v1976
    %v2000 = vunpack.c.h.b16 %v1976
    %v2001 = vpack.c.b16 %v1987, %v1985
    %v2002 = vpack.c.b16 %v1988, %v1986
    %v2003 = vpack.c.b16 %v1991, %v1989
    %v2004 = vpack.c.b16 %v1992, %v1990
    %v2005 = vpack.c.b16 %v1995, %v1993
    %v2006 = vpack.c.b16 %v1996, %v1994
    %v2007 = vpack.c.b16 %v1999, %v1997
    %v2008 = vpack.c.b16 %v2000, %v1998
    %v2018 = vsel %vm143, %v1964, 0
    %v2021 = vsel %vm143, %v1965, 0
    %v2024 = vsel %vm143, %v1966, 0
    %v2027 = vsel %vm143, %v1967, 0
    %2029 = vmatprep.subr.bf16.mxu0 %v2002
    %2030 = vmatpush1.bf16.msra.mxu0 %v2001
    %2031 = vmatprep.subr.bf16.mxu0 %v2004
    %2032 = vmatpush1.bf16.msra.mxu0 %v2003
    %2033 = vmatprep.subr.bf16.mxu0 %v2006
    %2034 = vmatpush1.bf16.msra.mxu0 %v2005
    %2035 = vmatprep.subr.bf16.mxu0 %v2008
    %2036 = vmatpush1.bf16.msra.mxu0 %v2007
    %2037 = vmatprep.subr.bf16.mxu0 0
    %2038 = vmatpush1.bf16.msra.mxu0 0
    %2039 = vmatprep.subr.bf16.mxu0 0
    %2040 = vmatpush1.bf16.msra.mxu0 0
    %2041 = vmatprep.subr.bf16.mxu0 0
    %2042 = vmatpush1.bf16.msra.mxu0 0
    %2043 = vmatprep.subr.bf16.mxu0 0
    %2044 = vmatpush1.bf16.msra.mxu0 0
    %2045 = vmatprep.subr.bf16.mxu0 0
    %2046 = vmatpush1.bf16.msra.mxu0 0
    %2047 = vmatprep.subr.bf16.mxu0 0
    %2048 = vmatpush1.bf16.msra.mxu0 0
    %2049 = vmatprep.subr.bf16.mxu0 0
    %2050 = vmatpush1.bf16.msra.mxu0 0
    %2051 = vmatprep.subr.bf16.mxu0 0
    %2052 = vmatpush1.bf16.msra.mxu0 0
    %2053 = vmatprep.subr.bf16.mxu0 0
    %2054 = vmatpush1.bf16.msra.mxu0 0
    %2055 = vmatprep.subr.bf16.mxu0 0
    %2056 = vmatpush1.bf16.msra.mxu0 0
    %2057 = vmatprep.subr.bf16.mxu0 0
    %2058 = vmatpush1.bf16.msra.mxu0 0
    %2059 = vmatprep.subr.bf16.mxu0 0
    %2060 = vmatpush1.bf16.msra.mxu0 0
    %2061 = vmatprep.mubr.bf16.mxu0 0
    %2062 = vmatmul.mubr.bf16.gmra.mrb[0].mxu0 %v2018
    %v2063 = vpop.f32.mrb[0].mxu0
    %v2064 = vadd.f32 0.0, %v2063
    %v2065 = vpop.f32.mrb[0].mxu0
    %v2066 = vadd.f32 0.0, %v2065
    %v2067 = vpop.f32.mrb[0].mxu0
    %v2068 = vadd.f32 0.0, %v2067
    %v2069 = vpop.f32.mrb[0].mxu0
    %v2070 = vadd.f32 0.0, %v2069
    %2071 = vmatprep.mubr.bf16.mxu0 0
    %2072 = vmatmul.mubr.bf16.gmra.mrb[0].mxu0 %v2021
    %v2073 = vpop.f32.mrb[0].mxu0
    %v2074 = vadd.f32 0.0, %v2073
    %v2075 = vpop.f32.mrb[0].mxu0
    %v2076 = vadd.f32 0.0, %v2075
    %v2077 = vpop.f32.mrb[0].mxu0
    %v2078 = vadd.f32 0.0, %v2077
    %v2079 = vpop.f32.mrb[0].mxu0
    %v2080 = vadd.f32 0.0, %v2079
    %2081 = vmatprep.mubr.bf16.mxu0 0
    %2082 = vmatmul.mubr.bf16.gmra.mrb[0].mxu0 %v2024
    %v2083 = vpop.f32.mrb[0].mxu0
    %v2084 = vadd.f32 0.0, %v2083
    %v2085 = vpop.f32.mrb[0].mxu0
    %v2086 = vadd.f32 0.0, %v2085
    %v2087 = vpop.f32.mrb[0].mxu0
    %v2088 = vadd.f32 0.0, %v2087
    %v2089 = vpop.f32.mrb[0].mxu0
    %v2090 = vadd.f32 0.0, %v2089
    %2091 = vmatprep.mubr.bf16.mxu0 0
    %2092 = vmatmul.mubr.bf16.gmra.mrb[0].mxu0 %v2027
    %v2093 = vpop.f32.mrb[0].mxu0
    %v2094 = vadd.f32 0.0, %v2093
    %v2095 = vpop.f32.mrb[0].mxu0
    %v2096 = vadd.f32 0.0, %v2095
    %v2097 = vpop.f32.mrb[0].mxu0
    %v2098 = vadd.f32 0.0, %v2097
    %v2099 = vpop.f32.mrb[0].mxu0
    %v2100 = vadd.f32 0.0, %v2099
    %2101 = vdwg.mxu0
    %s2102 = scalar_lea.vmem %s4, 32
    %v2103 = vld [vmem:[%s2102] sm:$0xf]
    %v2104 = vld [vmem:[%s2102 + $0x4] sm:$0xf]
    %v2105 = vld [vmem:[%s2102 + $0x8] sm:$0xf]
    %v2106 = vld [vmem:[%s2102 + $0xc] sm:$0xf]
    %v2107 = vld [vmem:[%s2102 + $0x10] sm:$0xf]
    %v2108 = vld [vmem:[%s2102 + $0x14] sm:$0xf]
    %v2109 = vld [vmem:[%s2102 + $0x18] sm:$0xf]
    %v2110 = vld [vmem:[%s2102 + $0x1c] sm:$0xf]
    %v2111 = vmul.f32 %v2064, 0.17677669
    %v2112 = vmul.f32 %v2068, 0.17677669
    %v2113 = vmul.f32 %v2074, 0.17677669
    %v2114 = vmul.f32 %v2078, 0.17677669
    %v2115 = vmul.f32 %v2084, 0.17677669
    %v2116 = vmul.f32 %v2088, 0.17677669
    %v2117 = vmul.f32 %v2094, 0.17677669
    %v2118 = vmul.f32 %v2098, 0.17677669
    %v2119 = vpack.c.bf16 %v2112, %v2111
    %v2120 = vpack.c.bf16 %v2114, %v2113
    %v2121 = vpack.c.bf16 %v2116, %v2115
    %v2122 = vpack.c.bf16 %v2118, %v2117
    %v2123 = vpack.c.bf16 %v2068, %v2064
    %v2124 = vpack.c.bf16 %v2078, %v2074
    %v2125 = vpack.c.bf16 %v2088, %v2084
    %v2126 = vpack.c.bf16 %v2098, %v2094
    %2131 = vrot.lane.b32.xlu0 %v2123, 64
    %v2132 = vpop.permute.xlu0 %2131
    %2133 = vrot.lane.b32.xlu0 %v2124, 64
    %v2134 = vpop.permute.xlu0 %2133
    %2135 = vrot.lane.b32.xlu0 %v2125, 64
    %v2136 = vpop.permute.xlu0 %2135
    %2137 = vrot.lane.b32.xlu0 %v2126, 64
    %v2138 = vpop.permute.xlu0 %2137
    %v2140 = vsel %vm474, %v2119, 0
    %v2143 = vsel %vm474, %v2120, 0
    %v2146 = vsel %vm474, %v2121, 0
    %v2149 = vsel %vm474, %v2122, 0
    %v2152 = vsel %vm474, %v2132, 0
    %v2155 = vsel %vm474, %v2134, 0
    %v2158 = vsel %vm474, %v2136, 0
    %v2161 = vsel %vm474, %v2138, 0
    %2163 = vmatprep.subr.bf16.mxu0 0
    %2164 = vmatpush1.bf16.xpose.msra.mxu0 %v2152
    %2165 = vmatprep.subr.bf16.mxu0 0
    %2166 = vmatpush1.bf16.xpose.msra.mxu0 %v2155
    %2167 = vmatprep.subr.bf16.mxu0 0
    %2168 = vmatpush1.bf16.xpose.msra.mxu0 %v2158
    %2169 = vmatprep.subr.bf16.mxu0 0
    %2170 = vmatpush1.bf16.xpose.msra.mxu0 %v2161
    %2171 = vmatprep.subr.bf16.mxu0 0
    %2172 = vmatpush1.bf16.xpose.msra.mxu0 0
    %2173 = vmatprep.subr.bf16.mxu0 0
    %2174 = vmatpush1.bf16.xpose.msra.mxu0 0
    %2175 = vmatprep.subr.bf16.mxu0 0
    %2176 = vmatpush1.bf16.xpose.msra.mxu0 0
    %2177 = vmatprep.subr.bf16.mxu0 0
    %2178 = vmatpush1.bf16.xpose.msra.mxu0 0
    %2179 = vmatprep.subr.bf16.mxu0 0
    %2180 = vmatpush1.bf16.xpose.msra.mxu0 0
    %2181 = vmatprep.subr.bf16.mxu0 0
    %2182 = vmatpush1.bf16.xpose.msra.mxu0 0
    %2183 = vmatprep.subr.bf16.mxu0 0
    %2184 = vmatpush1.bf16.xpose.msra.mxu0 0
    %2185 = vmatprep.subr.bf16.mxu0 0
    %2186 = vmatpush1.bf16.xpose.msra.mxu0 0
    %2187 = vmatprep.subr.bf16.mxu0 0
    %2188 = vmatpush1.bf16.xpose.msra.mxu0 0
    %2189 = vmatprep.subr.bf16.mxu0 0
    %2190 = vmatpush1.bf16.xpose.msra.mxu0 0
    %2191 = vmatprep.subr.bf16.mxu0 0
    %2192 = vmatpush1.bf16.xpose.msra.mxu0 0
    %2193 = vmatprep.subr.bf16.mxu0 0
    %2194 = vmatpush1.bf16.xpose.msra.mxu0 0
    %2195 = vmatprep.mubr.bf16.mxu0 0
    %2196 = vmatmul.mubr.bf16.gmra.mrb[0].mxu0 %v2140
    %v2197 = vpop.f32.mrb[0].mxu0
    %v2198 = vadd.f32 %v133, %v2197
    %v2199 = vpop.f32.mrb[0].mxu0
    %v2200 = vpop.f32.mrb[0].mxu0
    %v2201 = vadd.f32 %v134, %v2200
    %v2202 = vpop.f32.mrb[0].mxu0
    %2203 = vmatprep.mubr.bf16.mxu0 0
    %2204 = vmatmul.mubr.bf16.gmra.mrb[0].mxu0 %v2143
    %v2205 = vpop.f32.mrb[0].mxu0
    %v2206 = vadd.f32 %v135, %v2205
    %v2207 = vpop.f32.mrb[0].mxu0
    %v2208 = vpop.f32.mrb[0].mxu0
    %v2209 = vadd.f32 %v136, %v2208
    %v2210 = vpop.f32.mrb[0].mxu0
    %2211 = vmatprep.mubr.bf16.mxu0 0
    %2212 = vmatmul.mubr.bf16.gmra.mrb[0].mxu0 %v2146
    %v2213 = vpop.f32.mrb[0].mxu0
    %v2214 = vadd.f32 %v137, %v2213
    %v2215 = vpop.f32.mrb[0].mxu0
    %v2216 = vpop.f32.mrb[0].mxu0
    %v2217 = vadd.f32 %v138, %v2216
    %v2218 = vpop.f32.mrb[0].mxu0
    %2219 = vmatprep.mubr.bf16.mxu0 0
    %2220 = vmatmul.mubr.bf16.gmra.mrb[0].mxu0 %v2149
    %v2221 = vpop.f32.mrb[0].mxu0
    %v2222 = vadd.f32 %v139, %v2221
    %v2223 = vpop.f32.mrb[0].mxu0
    %v2224 = vpop.f32.mrb[0].mxu0
    %v2225 = vadd.f32 %v140, %v2224
    %v2226 = vpop.f32.mrb[0].mxu0
    %2227 = vdwg.mxu0
    %v2228 = vsel %vm143, %v2198, -inf
    %2229 = vmax.xlane.f32.xlu0 %v2228
    %v2230 = vpop.xlane.xlu0 %2229
    %v2231 = vsel %vm143, %v2201, -inf
    %2232 = vmax.xlane.f32.xlu0 %v2231
    %v2233 = vpop.xlane.xlu0 %2232
    %v2234 = vsel %vm143, %v2206, -inf
    %2235 = vmax.xlane.f32.xlu0 %v2234
    %v2236 = vpop.xlane.xlu0 %2235
    %v2237 = vsel %vm143, %v2209, -inf
    %2238 = vmax.xlane.f32.xlu0 %v2237
    %v2239 = vpop.xlane.xlu0 %2238
    %v2240 = vsel %vm143, %v2214, -inf
    %2241 = vmax.xlane.f32.xlu0 %v2240
    %v2242 = vpop.xlane.xlu0 %2241
    %v2243 = vsel %vm143, %v2217, -inf
    %2244 = vmax.xlane.f32.xlu0 %v2243
    %v2245 = vpop.xlane.xlu0 %2244
    %v2246 = vsel %vm143, %v2222, -inf
    %2247 = vmax.xlane.f32.xlu0 %v2246
    %v2248 = vpop.xlane.xlu0 %2247
    %v2249 = vsel %vm143, %v2225, -inf
    %2250 = vmax.xlane.f32.xlu0 %v2249
    %v2251 = vpop.xlane.xlu0 %2250
    %v2252 = vsub.f32 %v2198, %v2230
    %v2253 = vsub.f32 %v2201, %v2233
    %v2254 = vsub.f32 %v2206, %v2236
    %v2255 = vsub.f32 %v2209, %v2239
    %v2256 = vsub.f32 %v2214, %v2242
    %v2257 = vsub.f32 %v2217, %v2245
    %v2258 = vsub.f32 %v2222, %v2248
    %v2259 = vsub.f32 %v2225, %v2251
    %v2260 = vmul.f32 %v2252, 1.442695
    %v2261 = vpow.pop %v2260
    %v2262 = vmul.f32 %v2253, 1.442695
    %v2263 = vpow.pop %v2262
    %v2264 = vmul.f32 %v2254, 1.442695
    %v2265 = vpow.pop %v2264
    %v2266 = vmul.f32 %v2255, 1.442695
    %v2267 = vpow.pop %v2266
    %v2268 = vmul.f32 %v2256, 1.442695
    %v2269 = vpow.pop %v2268
    %v2270 = vmul.f32 %v2257, 1.442695
    %v2271 = vpow.pop %v2270
    %v2272 = vmul.f32 %v2258, 1.442695
    %v2273 = vpow.pop %v2272
    %v2274 = vmul.f32 %v2259, 1.442695
    %v2275 = vpow.pop %v2274
    %v2276 = vsel %vm143, %v2261, 0.0
    %2277 = vadd.xlane.f32.xlu0 %v2276
    %v2278 = vpop.xlane.xlu0 %2277
    %v2279 = vsel %vm143, %v2263, 0.0
    %2280 = vadd.xlane.f32.xlu0 %v2279
    %v2281 = vpop.xlane.xlu0 %2280
    %v2282 = vsel %vm143, %v2265, 0.0
    %2283 = vadd.xlane.f32.xlu0 %v2282
    %v2284 = vpop.xlane.xlu0 %2283
    %v2285 = vsel %vm143, %v2267, 0.0
    %2286 = vadd.xlane.f32.xlu0 %v2285
    %v2287 = vpop.xlane.xlu0 %2286
    %v2288 = vsel %vm143, %v2269, 0.0
    %2289 = vadd.xlane.f32.xlu0 %v2288
    %v2290 = vpop.xlane.xlu0 %2289
    %v2291 = vsel %vm143, %v2271, 0.0
    %2292 = vadd.xlane.f32.xlu0 %v2291
    %v2293 = vpop.xlane.xlu0 %2292
    %v2294 = vsel %vm143, %v2273, 0.0
    %2295 = vadd.xlane.f32.xlu0 %v2294
    %v2296 = vpop.xlane.xlu0 %2295
    %v2297 = vsel %vm143, %v2275, 0.0
    %2298 = vadd.xlane.f32.xlu0 %v2297
    %v2299 = vpop.xlane.xlu0 %2298
    %v2300 = vrcp.pop %v2278
    %v2301 = vrcp.pop %v2281
    %v2302 = vrcp.pop %v2284
    %v2303 = vrcp.pop %v2287
    %v2304 = vrcp.pop %v2290
    %v2305 = vrcp.pop %v2293
    %v2306 = vrcp.pop %v2296
    %v2307 = vrcp.pop %v2299
    %v2308 = vmul.f32 %v2261, %v2300
    %v2309 = vmul.f32 %v2263, %v2301
    %v2310 = vmul.f32 %v2265, %v2302
    %v2311 = vmul.f32 %v2267, %v2303
    %v2312 = vmul.f32 %v2269, %v2304
    %v2313 = vmul.f32 %v2271, %v2305
    %v2314 = vmul.f32 %v2273, %v2306
    %v2315 = vmul.f32 %v2275, %v2307
    %s2316 = scalar_lea.vmem %s17, 128
    %2317 = vst.msk [vmem:[%s2316] sm:$0xff] %vm143, %v2308
    %2318 = vst.msk [vmem:[%s2316 + $0x8] sm:$0xff] %vm143, %v2309
    %2319 = vst.msk [vmem:[%s2316 + $0x10] sm:$0xff] %vm143, %v2310
    %2320 = vst.msk [vmem:[%s2316 + $0x18] sm:$0xff] %vm143, %v2311
    %2321 = vst.msk [vmem:[%s2316 + $0x20] sm:$0xff] %vm143, %v2312
    %2322 = vst.msk [vmem:[%s2316 + $0x28] sm:$0xff] %vm143, %v2313
    %2323 = vst.msk [vmem:[%s2316 + $0x30] sm:$0xff] %vm143, %v2314
    %2324 = vst.msk [vmem:[%s2316 + $0x38] sm:$0xff] %vm143, %v2315
    %v2325 = vpack.c.bf16 %v2309, %v2308
    %v2326 = vpack.c.bf16 %v2311, %v2310
    %v2327 = vpack.c.bf16 %v2313, %v2312
    %v2328 = vpack.c.bf16 %v2315, %v2314
    %v2329 = vpack.c.bf16 %v2070, %v2066
    %v2330 = vpack.c.bf16 %v2080, %v2076
    %v2331 = vpack.c.bf16 %v2090, %v2086
    %v2332 = vpack.c.bf16 %v2100, %v2096
    %v2334 = vsel %vm143, %v2325, 0
    %v2337 = vsel %vm143, %v2326, 0
    %v2340 = vsel %vm143, %v2327, 0
    %v2343 = vsel %vm143, %v2328, 0
    %2345 = vmatprep.subr.bf16.mxu0 0
    %2346 = vmatpush1.bf16.msra.mxu0 %v2329
    %2347 = vmatprep.subr.bf16.mxu0 0
    %2348 = vmatpush1.bf16.msra.mxu0 %v2330
    %2349 = vmatprep.subr.bf16.mxu0 0
    %2350 = vmatpush1.bf16.msra.mxu0 %v2331
    %2351 = vmatprep.subr.bf16.mxu0 0
    %2352 = vmatpush1.bf16.msra.mxu0 %v2332
    %2353 = vmatprep.subr.bf16.mxu0 0
    %2354 = vmatpush1.bf16.msra.mxu0 0
    %2355 = vmatprep.subr.bf16.mxu0 0
    %2356 = vmatpush1.bf16.msra.mxu0 0
    %2357 = vmatprep.subr.bf16.mxu0 0
    %2358 = vmatpush1.bf16.msra.mxu0 0
    %2359 = vmatprep.subr.bf16.mxu0 0
    %2360 = vmatpush1.bf16.msra.mxu0 0
    %2361 = vmatprep.subr.bf16.mxu0 0
    %2362 = vmatpush1.bf16.msra.mxu0 0
    %2363 = vmatprep.subr.bf16.mxu0 0
    %2364 = vmatpush1.bf16.msra.mxu0 0
    %2365 = vmatprep.subr.bf16.mxu0 0
    %2366 = vmatpush1.bf16.msra.mxu0 0
    %2367 = vmatprep.subr.bf16.mxu0 0
    %2368 = vmatpush1.bf16.msra.mxu0 0
    %2369 = vmatprep.subr.bf16.mxu0 0
    %2370 = vmatpush1.bf16.msra.mxu0 0
    %2371 = vmatprep.subr.bf16.mxu0 0
    %2372 = vmatpush1.bf16.msra.mxu0 0
    %2373 = vmatprep.subr.bf16.mxu0 0
    %2374 = vmatpush1.bf16.msra.mxu0 0
    %2375 = vmatprep.subr.bf16.mxu0 0
    %2376 = vmatpush1.bf16.msra.mxu0 0
    %2377 = vmatprep.mubr.bf16.mxu0 0
    %2378 = vmatmul.mubr.bf16.gmra.mrb[0].mxu0 %v2334
    %v2379 = vpop.f32.mrb[0].mxu0
    %v2380 = vadd.f32 0.0, %v2379
    %v2381 = vpop.f32.mrb[0].mxu0
    %v2382 = vpop.f32.mrb[0].mxu0
    %v2383 = vadd.f32 0.0, %v2382
    %v2384 = vpop.f32.mrb[0].mxu0
    %2385 = vmatprep.mubr.bf16.mxu0 0
    %2386 = vmatmul.mubr.bf16.gmra.mrb[0].mxu0 %v2337
    %v2387 = vpop.f32.mrb[0].mxu0
    %v2388 = vadd.f32 0.0, %v2387
    %v2389 = vpop.f32.mrb[0].mxu0
    %v2390 = vpop.f32.mrb[0].mxu0
    %v2391 = vadd.f32 0.0, %v2390
    %v2392 = vpop.f32.mrb[0].mxu0
    %2393 = vmatprep.mubr.bf16.mxu0 0
    %2394 = vmatmul.mubr.bf16.gmra.mrb[0].mxu0 %v2340
    %v2395 = vpop.f32.mrb[0].mxu0
    %v2396 = vadd.f32 0.0, %v2395
    %v2397 = vpop.f32.mrb[0].mxu0
    %v2398 = vpop.f32.mrb[0].mxu0
    %v2399 = vadd.f32 0.0, %v2398
    %v2400 = vpop.f32.mrb[0].mxu0
    %2401 = vmatprep.mubr.bf16.mxu0 0
    %2402 = vmatmul.mubr.bf16.gmra.mrb[0].mxu0 %v2343
    %v2403 = vpop.f32.mrb[0].mxu0
    %v2404 = vadd.f32 0.0, %v2403
    %v2405 = vpop.f32.mrb[0].mxu0
    %v2406 = vpop.f32.mrb[0].mxu0
    %v2407 = vadd.f32 0.0, %v2406
    %v2408 = vpop.f32.mrb[0].mxu0
    %2409 = vdwg.mxu0
    %v2410 = vpack.c.bf16 %v2383, %v2380
    %v2411 = vpack.c.bf16 %v2391, %v2388
    %v2412 = vpack.c.bf16 %v2399, %v2396
    %v2413 = vpack.c.bf16 %v2407, %v2404
    %2418 = vrot.lane.b32.xlu0 %v2119, 96
    %v2419 = vpop.permute.xlu0 %2418
    %2420 = vrot.lane.b32.xlu0 %v2120, 96
    %v2421 = vpop.permute.xlu0 %2420
    %2422 = vrot.lane.b32.xlu0 %v2121, 96
    %v2423 = vpop.permute.xlu0 %2422
    %2424 = vrot.lane.b32.xlu0 %v2122, 96
    %v2425 = vpop.permute.xlu0 %2424
    %2426 = vrot.lane.b32.xlu0 %v2123, 32
    %v2427 = vpop.permute.xlu0 %2426
    %2428 = vrot.lane.b32.xlu0 %v2124, 32
    %v2429 = vpop.permute.xlu0 %2428
    %2430 = vrot.lane.b32.xlu0 %v2125, 32
    %v2431 = vpop.permute.xlu0 %2430
    %2432 = vrot.lane.b32.xlu0 %v2126, 32
    %v2433 = vpop.permute.xlu0 %2432
    %v2435 = vsel %vm474, %v2419, 0
    %v2438 = vsel %vm474, %v2421, 0
    %v2441 = vsel %vm474, %v2423, 0
    %v2444 = vsel %vm474, %v2425, 0
    %v2447 = vsel %vm474, %v2427, 0
    %v2450 = vsel %vm474, %v2429, 0
    %v2453 = vsel %vm474, %v2431, 0
    %v2456 = vsel %vm474, %v2433, 0
    %2458 = vmatprep.subr.bf16.mxu0 0
    %2459 = vmatpush1.bf16.xpose.msra.mxu0 %v2447
    %2460 = vmatprep.subr.bf16.mxu0 0
    %2461 = vmatpush1.bf16.xpose.msra.mxu0 %v2450
    %2462 = vmatprep.subr.bf16.mxu0 0
    %2463 = vmatpush1.bf16.xpose.msra.mxu0 %v2453
    %2464 = vmatprep.subr.bf16.mxu0 0
    %2465 = vmatpush1.bf16.xpose.msra.mxu0 %v2456
    %2466 = vmatprep.subr.bf16.mxu0 0
    %2467 = vmatpush1.bf16.xpose.msra.mxu0 0
    %2468 = vmatprep.subr.bf16.mxu0 0
    %2469 = vmatpush1.bf16.xpose.msra.mxu0 0
    %2470 = vmatprep.subr.bf16.mxu0 0
    %2471 = vmatpush1.bf16.xpose.msra.mxu0 0
    %2472 = vmatprep.subr.bf16.mxu0 0
    %2473 = vmatpush1.bf16.xpose.msra.mxu0 0
    %2474 = vmatprep.subr.bf16.mxu0 0
    %2475 = vmatpush1.bf16.xpose.msra.mxu0 0
    %2476 = vmatprep.subr.bf16.mxu0 0
    %2477 = vmatpush1.bf16.xpose.msra.mxu0 0
    %2478 = vmatprep.subr.bf16.mxu0 0
    %2479 = vmatpush1.bf16.xpose.msra.mxu0 0
    %2480 = vmatprep.subr.bf16.mxu0 0
    %2481 = vmatpush1.bf16.xpose.msra.mxu0 0
    %2482 = vmatprep.subr.bf16.mxu0 0
    %2483 = vmatpush1.bf16.xpose.msra.mxu0 0
    %2484 = vmatprep.subr.bf16.mxu0 0
    %2485 = vmatpush1.bf16.xpose.msra.mxu0 0
    %2486 = vmatprep.subr.bf16.mxu0 0
    %2487 = vmatpush1.bf16.xpose.msra.mxu0 0
    %2488 = vmatprep.subr.bf16.mxu0 0
    %2489 = vmatpush1.bf16.xpose.msra.mxu0 0
    %2490 = vmatprep.mubr.bf16.mxu0 0
    %2491 = vmatmul.mubr.bf16.gmra.mrb[0].mxu0 %v2435
    %v2492 = vpop.f32.mrb[0].mxu0
    %v2493 = vadd.f32 %v133, %v2492
    %v2494 = vpop.f32.mrb[0].mxu0
    %v2495 = vpop.f32.mrb[0].mxu0
    %v2496 = vadd.f32 %v134, %v2495
    %v2497 = vpop.f32.mrb[0].mxu0
    %2498 = vmatprep.mubr.bf16.mxu0 0
    %2499 = vmatmul.mubr.bf16.gmra.mrb[0].mxu0 %v2438
    %v2500 = vpop.f32.mrb[0].mxu0
    %v2501 = vadd.f32 %v135, %v2500
    %v2502 = vpop.f32.mrb[0].mxu0
    %v2503 = vpop.f32.mrb[0].mxu0
    %v2504 = vadd.f32 %v136, %v2503
    %v2505 = vpop.f32.mrb[0].mxu0
    %2506 = vmatprep.mubr.bf16.mxu0 0
    %2507 = vmatmul.mubr.bf16.gmra.mrb[0].mxu0 %v2441
    %v2508 = vpop.f32.mrb[0].mxu0
    %v2509 = vadd.f32 %v137, %v2508
    %v2510 = vpop.f32.mrb[0].mxu0
    %v2511 = vpop.f32.mrb[0].mxu0
    %v2512 = vadd.f32 %v138, %v2511
    %v2513 = vpop.f32.mrb[0].mxu0
    %2514 = vmatprep.mubr.bf16.mxu0 0
    %2515 = vmatmul.mubr.bf16.gmra.mrb[0].mxu0 %v2444
    %v2516 = vpop.f32.mrb[0].mxu0
    %v2517 = vadd.f32 %v139, %v2516
    %v2518 = vpop.f32.mrb[0].mxu0
    %v2519 = vpop.f32.mrb[0].mxu0
    %v2520 = vadd.f32 %v140, %v2519
    %v2521 = vpop.f32.mrb[0].mxu0
    %2522 = vdwg.mxu0
    %v2523 = vsel %vm143, %v2493, -inf
    %2524 = vmax.xlane.f32.xlu0 %v2523
    %v2525 = vpop.xlane.xlu0 %2524
    %v2526 = vsel %vm143, %v2496, -inf
    %2527 = vmax.xlane.f32.xlu0 %v2526
    %v2528 = vpop.xlane.xlu0 %2527
    %v2529 = vsel %vm143, %v2501, -inf
    %2530 = vmax.xlane.f32.xlu0 %v2529
    %v2531 = vpop.xlane.xlu0 %2530
    %v2532 = vsel %vm143, %v2504, -inf
    %2533 = vmax.xlane.f32.xlu0 %v2532
    %v2534 = vpop.xlane.xlu0 %2533
    %v2535 = vsel %vm143, %v2509, -inf
    %2536 = vmax.xlane.f32.xlu0 %v2535
    %v2537 = vpop.xlane.xlu0 %2536
    %v2538 = vsel %vm143, %v2512, -inf
    %2539 = vmax.xlane.f32.xlu0 %v2538
    %v2540 = vpop.xlane.xlu0 %2539
    %v2541 = vsel %vm143, %v2517, -inf
    %2542 = vmax.xlane.f32.xlu0 %v2541
    %v2543 = vpop.xlane.xlu0 %2542
    %v2544 = vsel %vm143, %v2520, -inf
    %2545 = vmax.xlane.f32.xlu0 %v2544
    %v2546 = vpop.xlane.xlu0 %2545
    %v2547 = vsub.f32 %v2493, %v2525
    %v2548 = vsub.f32 %v2496, %v2528
    %v2549 = vsub.f32 %v2501, %v2531
    %v2550 = vsub.f32 %v2504, %v2534
    %v2551 = vsub.f32 %v2509, %v2537
    %v2552 = vsub.f32 %v2512, %v2540
    %v2553 = vsub.f32 %v2517, %v2543
    %v2554 = vsub.f32 %v2520, %v2546
    %v2555 = vmul.f32 %v2547, 1.442695
    %v2556 = vpow.pop %v2555
    %v2557 = vmul.f32 %v2548, 1.442695
    %v2558 = vpow.pop %v2557
    %v2559 = vmul.f32 %v2549, 1.442695
    %v2560 = vpow.pop %v2559
    %v2561 = vmul.f32 %v2550, 1.442695
    %v2562 = vpow.pop %v2561
    %v2563 = vmul.f32 %v2551, 1.442695
    %v2564 = vpow.pop %v2563
    %v2565 = vmul.f32 %v2552, 1.442695
    %v2566 = vpow.pop %v2565
    %v2567 = vmul.f32 %v2553, 1.442695
    %v2568 = vpow.pop %v2567
    %v2569 = vmul.f32 %v2554, 1.442695
    %v2570 = vpow.pop %v2569
    %v2571 = vsel %vm143, %v2556, 0.0
    %2572 = vadd.xlane.f32.xlu0 %v2571
    %v2573 = vpop.xlane.xlu0 %2572
    %v2574 = vsel %vm143, %v2558, 0.0
    %2575 = vadd.xlane.f32.xlu0 %v2574
    %v2576 = vpop.xlane.xlu0 %2575
    %v2577 = vsel %vm143, %v2560, 0.0
    %2578 = vadd.xlane.f32.xlu0 %v2577
    %v2579 = vpop.xlane.xlu0 %2578
    %v2580 = vsel %vm143, %v2562, 0.0
    %2581 = vadd.xlane.f32.xlu0 %v2580
    %v2582 = vpop.xlane.xlu0 %2581
    %v2583 = vsel %vm143, %v2564, 0.0
    %2584 = vadd.xlane.f32.xlu0 %v2583
    %v2585 = vpop.xlane.xlu0 %2584
    %v2586 = vsel %vm143, %v2566, 0.0
    %2587 = vadd.xlane.f32.xlu0 %v2586
    %v2588 = vpop.xlane.xlu0 %2587
    %v2589 = vsel %vm143, %v2568, 0.0
    %2590 = vadd.xlane.f32.xlu0 %v2589
    %v2591 = vpop.xlane.xlu0 %2590
    %v2592 = vsel %vm143, %v2570, 0.0
    %2593 = vadd.xlane.f32.xlu0 %v2592
    %v2594 = vpop.xlane.xlu0 %2593
    %v2595 = vrcp.pop %v2573
    %v2596 = vrcp.pop %v2576
    %v2597 = vrcp.pop %v2579
    %v2598 = vrcp.pop %v2582
    %v2599 = vrcp.pop %v2585
    %v2600 = vrcp.pop %v2588
    %v2601 = vrcp.pop %v2591
    %v2602 = vrcp.pop %v2594
    %v2603 = vmul.f32 %v2556, %v2595
    %v2604 = vmul.f32 %v2558, %v2596
    %v2605 = vmul.f32 %v2560, %v2597
    %v2606 = vmul.f32 %v2562, %v2598
    %v2607 = vmul.f32 %v2564, %v2599
    %v2608 = vmul.f32 %v2566, %v2600
    %v2609 = vmul.f32 %v2568, %v2601
    %v2610 = vmul.f32 %v2570, %v2602
    %s2611 = scalar_lea.vmem %s17, 192
    %2612 = vst.msk [vmem:[%s2611] sm:$0xff] %vm143, %v2603
    %2613 = vst.msk [vmem:[%s2611 + $0x8] sm:$0xff] %vm143, %v2604
    %2614 = vst.msk [vmem:[%s2611 + $0x10] sm:$0xff] %vm143, %v2605
    %2615 = vst.msk [vmem:[%s2611 + $0x18] sm:$0xff] %vm143, %v2606
    %2616 = vst.msk [vmem:[%s2611 + $0x20] sm:$0xff] %vm143, %v2607
    %2617 = vst.msk [vmem:[%s2611 + $0x28] sm:$0xff] %vm143, %v2608
    %2618 = vst.msk [vmem:[%s2611 + $0x30] sm:$0xff] %vm143, %v2609
    %2619 = vst.msk [vmem:[%s2611 + $0x38] sm:$0xff] %vm143, %v2610
    %v2620 = vpack.c.bf16 %v2604, %v2603
    %v2621 = vpack.c.bf16 %v2606, %v2605
    %v2622 = vpack.c.bf16 %v2608, %v2607
    %v2623 = vpack.c.bf16 %v2610, %v2609
    %2628 = vrot.lane.b32.xlu0 %v2329, 96
    %v2629 = vpop.permute.xlu0 %2628
    %2630 = vrot.lane.b32.xlu0 %v2330, 96
    %v2631 = vpop.permute.xlu0 %2630
    %2632 = vrot.lane.b32.xlu0 %v2331, 96
    %v2633 = vpop.permute.xlu0 %2632
    %2634 = vrot.lane.b32.xlu0 %v2332, 96
    %v2635 = vpop.permute.xlu0 %2634
    %v2641 = vsel %vm143, %v2620, 0
    %v2644 = vsel %vm143, %v2621, 0
    %v2647 = vsel %vm143, %v2622, 0
    %v2650 = vsel %vm143, %v2623, 0
    %2652 = vmatprep.subr.bf16.mxu0 0
    %2653 = vmatpush1.bf16.msra.mxu0 %v2629
    %2654 = vmatprep.subr.bf16.mxu0 0
    %2655 = vmatpush1.bf16.msra.mxu0 %v2631
    %2656 = vmatprep.subr.bf16.mxu0 0
    %2657 = vmatpush1.bf16.msra.mxu0 %v2633
    %2658 = vmatprep.subr.bf16.mxu0 0
    %2659 = vmatpush1.bf16.msra.mxu0 %v2635
    %2660 = vmatprep.subr.bf16.mxu0 0
    %2661 = vmatpush1.bf16.msra.mxu0 0
    %2662 = vmatprep.subr.bf16.mxu0 0
    %2663 = vmatpush1.bf16.msra.mxu0 0
    %2664 = vmatprep.subr.bf16.mxu0 0
    %2665 = vmatpush1.bf16.msra.mxu0 0
    %2666 = vmatprep.subr.bf16.mxu0 0
    %2667 = vmatpush1.bf16.msra.mxu0 0
    %2668 = vmatprep.subr.bf16.mxu0 0
    %2669 = vmatpush1.bf16.msra.mxu0 0
    %2670 = vmatprep.subr.bf16.mxu0 0
    %2671 = vmatpush1.bf16.msra.mxu0 0
    %2672 = vmatprep.subr.bf16.mxu0 0
    %2673 = vmatpush1.bf16.msra.mxu0 0
    %2674 = vmatprep.subr.bf16.mxu0 0
    %2675 = vmatpush1.bf16.msra.mxu0 0
    %2676 = vmatprep.subr.bf16.mxu0 0
    %2677 = vmatpush1.bf16.msra.mxu0 0
    %2678 = vmatprep.subr.bf16.mxu0 0
    %2679 = vmatpush1.bf16.msra.mxu0 0
    %2680 = vmatprep.subr.bf16.mxu0 0
    %2681 = vmatpush1.bf16.msra.mxu0 0
    %2682 = vmatprep.subr.bf16.mxu0 0
    %2683 = vmatpush1.bf16.msra.mxu0 0
    %2684 = vmatprep.mubr.bf16.mxu0 0
    %2685 = vmatmul.mubr.bf16.gmra.mrb[0].mxu0 %v2641
    %v2686 = vpop.f32.mrb[0].mxu0
    %v2687 = vadd.f32 0.0, %v2686
    %v2688 = vpop.f32.mrb[0].mxu0
    %v2689 = vpop.f32.mrb[0].mxu0
    %v2690 = vadd.f32 0.0, %v2689
    %v2691 = vpop.f32.mrb[0].mxu0
    %2692 = vmatprep.mubr.bf16.mxu0 0
    %2693 = vmatmul.mubr.bf16.gmra.mrb[0].mxu0 %v2644
    %v2694 = vpop.f32.mrb[0].mxu0
    %v2695 = vadd.f32 0.0, %v2694
    %v2696 = vpop.f32.mrb[0].mxu0
    %v2697 = vpop.f32.mrb[0].mxu0
    %v2698 = vadd.f32 0.0, %v2697
    %v2699 = vpop.f32.mrb[0].mxu0
    %2700 = vmatprep.mubr.bf16.mxu0 0
    %2701 = vmatmul.mubr.bf16.gmra.mrb[0].mxu0 %v2647
    %v2702 = vpop.f32.mrb[0].mxu0
    %v2703 = vadd.f32 0.0, %v2702
    %v2704 = vpop.f32.mrb[0].mxu0
    %v2705 = vpop.f32.mrb[0].mxu0
    %v2706 = vadd.f32 0.0, %v2705
    %v2707 = vpop.f32.mrb[0].mxu0
    %2708 = vmatprep.mubr.bf16.mxu0 0
    %2709 = vmatmul.mubr.bf16.gmra.mrb[0].mxu0 %v2650
    %v2710 = vpop.f32.mrb[0].mxu0
    %v2711 = vadd.f32 0.0, %v2710
    %v2712 = vpop.f32.mrb[0].mxu0
    %v2713 = vpop.f32.mrb[0].mxu0
    %v2714 = vadd.f32 0.0, %v2713
    %v2715 = vpop.f32.mrb[0].mxu0
    %2716 = vdwg.mxu0
    %v2717 = vpack.c.bf16 %v2690, %v2687
    %v2718 = vpack.c.bf16 %v2698, %v2695
    %v2719 = vpack.c.bf16 %v2706, %v2703
    %v2720 = vpack.c.bf16 %v2714, %v2711
    %v2725 = vunpack.c.l.b16 %v2107
    %v2726 = vunpack.c.l.b16 %v2108
    %v2727 = vunpack.c.l.b16 %v2109
    %v2728 = vunpack.c.l.b16 %v2110
    %v2729 = vpack.c.b16 %v2726, %v2725
    %v2730 = vpack.c.b16 %v2728, %v2727
    %v2734 = vsel %vm474, %v2717, 0
    %v2737 = vsel %vm474, %v2718, 0
    %v2740 = vsel %vm474, %v2719, 0
    %v2743 = vsel %vm474, %v2720, 0
    %2745 = vmatprep.subr.bf16.mxu0 0
    %2746 = vmatpush1.bf16.msra.mxu0 %v2729
    %2747 = vmatprep.subr.bf16.mxu0 0
    %2748 = vmatpush1.bf16.msra.mxu0 %v2730
    %2749 = vmatprep.subr.bf16.mxu0 0
    %2750 = vmatpush1.bf16.msra.mxu0 0
    %2751 = vmatprep.subr.bf16.mxu0 0
    %2752 = vmatpush1.bf16.msra.mxu0 0
    %2753 = vmatprep.subr.bf16.mxu0 0
    %2754 = vmatpush1.bf16.msra.mxu0 0
    %2755 = vmatprep.subr.bf16.mxu0 0
    %2756 = vmatpush1.bf16.msra.mxu0 0
    %2757 = vmatprep.subr.bf16.mxu0 0
    %2758 = vmatpush1.bf16.msra.mxu0 0
    %2759 = vmatprep.subr.bf16.mxu0 0
    %2760 = vmatpush1.bf16.msra.mxu0 0
    %2761 = vmatprep.subr.bf16.mxu0 0
    %2762 = vmatpush1.bf16.msra.mxu0 0
    %2763 = vmatprep.subr.bf16.mxu0 0
    %2764 = vmatpush1.bf16.msra.mxu0 0
    %2765 = vmatprep.subr.bf16.mxu0 0
    %2766 = vmatpush1.bf16.msra.mxu0 0
    %2767 = vmatprep.subr.bf16.mxu0 0
    %2768 = vmatpush1.bf16.msra.mxu0 0
    %2769 = vmatprep.subr.bf16.mxu0 0
    %2770 = vmatpush1.bf16.msra.mxu0 0
    %2771 = vmatprep.subr.bf16.mxu0 0
    %2772 = vmatpush1.bf16.msra.mxu0 0
    %2773 = vmatprep.subr.bf16.mxu0 0
    %2774 = vmatpush1.bf16.msra.mxu0 0
    %2775 = vmatprep.subr.bf16.mxu0 0
    %2776 = vmatpush1.bf16.msra.mxu0 0
    %2777 = vmatprep.mubr.bf16.mxu0 0
    %2778 = vmatmul.mubr.bf16.gmra.mrb[0].mxu0 %v2734
    %v2779 = vpop.f32.mrb[0].mxu0
    %v2780 = vadd.f32 0.0, %v2779
    %v2781 = vpop.f32.mrb[0].mxu0
    %v2782 = vpop.f32.mrb[0].mxu0
    %v2783 = vadd.f32 0.0, %v2782
    %v2784 = vpop.f32.mrb[0].mxu0
    %2785 = vmatprep.mubr.bf16.mxu0 0
    %2786 = vmatmul.mubr.bf16.gmra.mrb[0].mxu0 %v2737
    %v2787 = vpop.f32.mrb[0].mxu0
    %v2788 = vadd.f32 0.0, %v2787
    %v2789 = vpop.f32.mrb[0].mxu0
    %v2790 = vpop.f32.mrb[0].mxu0
    %v2791 = vadd.f32 0.0, %v2790
    %v2792 = vpop.f32.mrb[0].mxu0
    %2793 = vmatprep.mubr.bf16.mxu0 0
    %2794 = vmatmul.mubr.bf16.gmra.mrb[0].mxu0 %v2740
    %v2795 = vpop.f32.mrb[0].mxu0
    %v2796 = vadd.f32 0.0, %v2795
    %v2797 = vpop.f32.mrb[0].mxu0
    %v2798 = vpop.f32.mrb[0].mxu0
    %v2799 = vadd.f32 0.0, %v2798
    %v2800 = vpop.f32.mrb[0].mxu0
    %2801 = vmatprep.mubr.bf16.mxu0 0
    %2802 = vmatmul.mubr.bf16.gmra.mrb[0].mxu0 %v2743
    %v2803 = vpop.f32.mrb[0].mxu0
    %v2804 = vadd.f32 0.0, %v2803
    %v2805 = vpop.f32.mrb[0].mxu0
    %v2806 = vpop.f32.mrb[0].mxu0
    %v2807 = vadd.f32 0.0, %v2806
    %v2808 = vpop.f32.mrb[0].mxu0
    %2809 = vdwg.mxu0
    %v2814 = vunpack.c.l.b16 %v2103
    %v2815 = vunpack.c.l.b16 %v2104
    %v2816 = vunpack.c.l.b16 %v2105
    %v2817 = vunpack.c.l.b16 %v2106
    %v2818 = vpack.c.b16 %v2815, %v2814
    %v2819 = vpack.c.b16 %v2817, %v2816
    %v2823 = vsel %vm474, %v2410, 0
    %v2826 = vsel %vm474, %v2411, 0
    %v2829 = vsel %vm474, %v2412, 0
    %v2832 = vsel %vm474, %v2413, 0
    %2834 = vmatprep.subr.bf16.mxu0 0
    %2835 = vmatpush1.bf16.msra.mxu0 %v2818
    %2836 = vmatprep.subr.bf16.mxu0 0
    %2837 = vmatpush1.bf16.msra.mxu0 %v2819
    %2838 = vmatprep.subr.bf16.mxu0 0
    %2839 = vmatpush1.bf16.msra.mxu0 0
    %2840 = vmatprep.subr.bf16.mxu0 0
    %2841 = vmatpush1.bf16.msra.mxu0 0
    %2842 = vmatprep.subr.bf16.mxu0 0
    %2843 = vmatpush1.bf16.msra.mxu0 0
    %2844 = vmatprep.subr.bf16.mxu0 0
    %2845 = vmatpush1.bf16.msra.mxu0 0
    %2846 = vmatprep.subr.bf16.mxu0 0
    %2847 = vmatpush1.bf16.msra.mxu0 0
    %2848 = vmatprep.subr.bf16.mxu0 0
    %2849 = vmatpush1.bf16.msra.mxu0 0
    %2850 = vmatprep.subr.bf16.mxu0 0
    %2851 = vmatpush1.bf16.msra.mxu0 0
    %2852 = vmatprep.subr.bf16.mxu0 0
    %2853 = vmatpush1.bf16.msra.mxu0 0
    %2854 = vmatprep.subr.bf16.mxu0 0
    %2855 = vmatpush1.bf16.msra.mxu0 0
    %2856 = vmatprep.subr.bf16.mxu0 0
    %2857 = vmatpush1.bf16.msra.mxu0 0
    %2858 = vmatprep.subr.bf16.mxu0 0
    %2859 = vmatpush1.bf16.msra.mxu0 0
    %2860 = vmatprep.subr.bf16.mxu0 0
    %2861 = vmatpush1.bf16.msra.mxu0 0
    %2862 = vmatprep.subr.bf16.mxu0 0
    %2863 = vmatpush1.bf16.msra.mxu0 0
    %2864 = vmatprep.subr.bf16.mxu0 0
    %2865 = vmatpush1.bf16.msra.mxu0 0
    %2866 = vmatprep.mubr.bf16.mxu0 0
    %2867 = vmatmul.mubr.bf16.gmra.mrb[0].mxu0 %v2823
    %v2868 = vpop.f32.mrb[0].mxu0
    %v2869 = vadd.f32 %v2780, %v2868
    %v2870 = vpop.f32.mrb[0].mxu0
    %v2871 = vpop.f32.mrb[0].mxu0
    %v2872 = vadd.f32 %v2783, %v2871
    %v2873 = vpop.f32.mrb[0].mxu0
    %2874 = vmatprep.mubr.bf16.mxu0 0
    %2875 = vmatmul.mubr.bf16.gmra.mrb[0].mxu0 %v2826
    %v2876 = vpop.f32.mrb[0].mxu0
    %v2877 = vadd.f32 %v2788, %v2876
    %v2878 = vpop.f32.mrb[0].mxu0
    %v2879 = vpop.f32.mrb[0].mxu0
    %v2880 = vadd.f32 %v2791, %v2879
    %v2881 = vpop.f32.mrb[0].mxu0
    %2882 = vmatprep.mubr.bf16.mxu0 0
    %2883 = vmatmul.mubr.bf16.gmra.mrb[0].mxu0 %v2829
    %v2884 = vpop.f32.mrb[0].mxu0
    %v2885 = vadd.f32 %v2796, %v2884
    %v2886 = vpop.f32.mrb[0].mxu0
    %v2887 = vpop.f32.mrb[0].mxu0
    %v2888 = vadd.f32 %v2799, %v2887
    %v2889 = vpop.f32.mrb[0].mxu0
    %2890 = vmatprep.mubr.bf16.mxu0 0
    %2891 = vmatmul.mubr.bf16.gmra.mrb[0].mxu0 %v2832
    %v2892 = vpop.f32.mrb[0].mxu0
    %v2893 = vadd.f32 %v2804, %v2892
    %v2894 = vpop.f32.mrb[0].mxu0
    %v2895 = vpop.f32.mrb[0].mxu0
    %v2896 = vadd.f32 %v2807, %v2895
    %v2897 = vpop.f32.mrb[0].mxu0
    %2898 = vdwg.mxu0
    %v2899 = vadd.f32 %v1796, %v2869
    %v2900 = vadd.f32 %v1797, %v2872
    %v2901 = vadd.f32 %v1798, %v2877
    %v2902 = vadd.f32 %v1799, %v2880
    %v2903 = vadd.f32 %v1800, %v2885
    %v2904 = vadd.f32 %v1801, %v2888
    %v2905 = vadd.f32 %v1802, %v2893
    %v2906 = vadd.f32 %v1803, %v2896
    %s2907 = scalar_lea.vmem %s5, 1
    %v2908 = vld [vmem:[%s2907] sm:$0x1]
    %v2910 = vlaneseq
    %v2911 = vshrl.u32 %v2910, 7
    %v2912 = vsub.s32 0, %v2911
    %v2913 = vrot.slane %v2908, %v2912
    %v2915 = vadd.f32 %v2899, %v2913
    %v2916 = vadd.f32 %v2900, %v2913
    %v2917 = vadd.f32 %v2901, %v2913
    %v2918 = vadd.f32 %v2902, %v2913
    %v2919 = vadd.f32 %v2903, %v2913
    %v2920 = vadd.f32 %v2904, %v2913
    %v2921 = vadd.f32 %v2905, %v2913
    %v2922 = vadd.f32 %v2906, %v2913
    %s2923 = scalar_lea.vmem %s6, 1
    %v2924 = vld [vmem:[%s2923] sm:$0x1]
    %s2925 = scalar_lea.vmem %s7, 1
    %v2926 = vld [vmem:[%s2925] sm:$0x1]
    %v2927 = vsel %vm143, %v2915, 0.0
    %2928 = vadd.xlane.f32.xlu0 %v2927
    %v2929 = vpop.xlane.xlu0 %2928
    %v2930 = vsel %vm143, %v2916, 0.0
    %2931 = vadd.xlane.f32.xlu0 %v2930
    %v2932 = vpop.xlane.xlu0 %2931
    %v2933 = vsel %vm143, %v2917, 0.0
    %2934 = vadd.xlane.f32.xlu0 %v2933
    %v2935 = vpop.xlane.xlu0 %2934
    %v2936 = vsel %vm143, %v2918, 0.0
    %2937 = vadd.xlane.f32.xlu0 %v2936
    %v2938 = vpop.xlane.xlu0 %2937
    %v2939 = vsel %vm143, %v2919, 0.0
    %2940 = vadd.xlane.f32.xlu0 %v2939
    %v2941 = vpop.xlane.xlu0 %2940
    %v2942 = vsel %vm143, %v2920, 0.0
    %2943 = vadd.xlane.f32.xlu0 %v2942
    %v2944 = vpop.xlane.xlu0 %2943
    %v2945 = vsel %vm143, %v2921, 0.0
    %2946 = vadd.xlane.f32.xlu0 %v2945
    %v2947 = vpop.xlane.xlu0 %2946
    %v2948 = vsel %vm143, %v2922, 0.0
    %2949 = vadd.xlane.f32.xlu0 %v2948
    %v2950 = vpop.xlane.xlu0 %2949
    %v2951 = vmul.f32 %v2929, %v168
    %v2952 = vmul.f32 %v2932, %v168
    %v2953 = vmul.f32 %v2935, %v168
    %v2954 = vmul.f32 %v2938, %v168
    %v2955 = vmul.f32 %v2941, %v168
    %v2956 = vmul.f32 %v2944, %v168
    %v2957 = vmul.f32 %v2947, %v168
    %v2958 = vmul.f32 %v2950, %v168
    %v2959 = vmul.f32 %v2915, %v2915
    %v2960 = vmul.f32 %v2916, %v2916
    %v2961 = vmul.f32 %v2917, %v2917
    %v2962 = vmul.f32 %v2918, %v2918
    %v2963 = vmul.f32 %v2919, %v2919
    %v2964 = vmul.f32 %v2920, %v2920
    %v2965 = vmul.f32 %v2921, %v2921
    %v2966 = vmul.f32 %v2922, %v2922
    %v2967 = vsel %vm143, %v2959, 0.0
    %2968 = vadd.xlane.f32.xlu0 %v2967
    %v2969 = vpop.xlane.xlu0 %2968
    %v2970 = vsel %vm143, %v2960, 0.0
    %2971 = vadd.xlane.f32.xlu0 %v2970
    %v2972 = vpop.xlane.xlu0 %2971
    %v2973 = vsel %vm143, %v2961, 0.0
    %2974 = vadd.xlane.f32.xlu0 %v2973
    %v2975 = vpop.xlane.xlu0 %2974
    %v2976 = vsel %vm143, %v2962, 0.0
    %2977 = vadd.xlane.f32.xlu0 %v2976
    %v2978 = vpop.xlane.xlu0 %2977
    %v2979 = vsel %vm143, %v2963, 0.0
    %2980 = vadd.xlane.f32.xlu0 %v2979
    %v2981 = vpop.xlane.xlu0 %2980
    %v2982 = vsel %vm143, %v2964, 0.0
    %2983 = vadd.xlane.f32.xlu0 %v2982
    %v2984 = vpop.xlane.xlu0 %2983
    %v2985 = vsel %vm143, %v2965, 0.0
    %2986 = vadd.xlane.f32.xlu0 %v2985
    %v2987 = vpop.xlane.xlu0 %2986
    %v2988 = vsel %vm143, %v2966, 0.0
    %2989 = vadd.xlane.f32.xlu0 %v2988
    %v2990 = vpop.xlane.xlu0 %2989
    %v2991 = vmul.f32 %v2969, %v168
    %v2992 = vmul.f32 %v2972, %v168
    %v2993 = vmul.f32 %v2975, %v168
    %v2994 = vmul.f32 %v2978, %v168
    %v2995 = vmul.f32 %v2981, %v168
    %v2996 = vmul.f32 %v2984, %v168
    %v2997 = vmul.f32 %v2987, %v168
    %v2998 = vmul.f32 %v2990, %v168
    %v2999 = vmul.f32 %v2951, %v2951
    %v3000 = vmul.f32 %v2952, %v2952
    %v3001 = vmul.f32 %v2953, %v2953
    %v3002 = vmul.f32 %v2954, %v2954
    %v3003 = vmul.f32 %v2955, %v2955
    %v3004 = vmul.f32 %v2956, %v2956
    %v3005 = vmul.f32 %v2957, %v2957
    %v3006 = vmul.f32 %v2958, %v2958
    %v3007 = vsub.f32 %v2991, %v2999
    %v3008 = vsub.f32 %v2992, %v3000
    %v3009 = vsub.f32 %v2993, %v3001
    %v3010 = vsub.f32 %v2994, %v3002
    %v3011 = vsub.f32 %v2995, %v3003
    %v3012 = vsub.f32 %v2996, %v3004
    %v3013 = vsub.f32 %v2997, %v3005
    %v3014 = vsub.f32 %v2998, %v3006
    %v3015 = vadd.f32 %v3007, 1e-05
    %v3016 = vadd.f32 %v3008, 1e-05
    %v3017 = vadd.f32 %v3009, 1e-05
    %v3018 = vadd.f32 %v3010, 1e-05
    %v3019 = vadd.f32 %v3011, 1e-05
    %v3020 = vadd.f32 %v3012, 1e-05
    %v3021 = vadd.f32 %v3013, 1e-05
    %v3022 = vadd.f32 %v3014, 1e-05
    %v3023 = vrsqrt.pop %v3015
    %v3024 = vrsqrt.pop %v3016
    %v3025 = vrsqrt.pop %v3017
    %v3026 = vrsqrt.pop %v3018
    %v3027 = vrsqrt.pop %v3019
    %v3028 = vrsqrt.pop %v3020
    %v3029 = vrsqrt.pop %v3021
    %v3030 = vrsqrt.pop %v3022
    %v3032 = vlaneseq
    %v3033 = vshrl.u32 %v3032, 7
    %v3034 = vsub.s32 0, %v3033
    %v3035 = vrot.slane %v2924, %v3034
    %v3037 = vmul.f32 %v3023, %v3035
    %v3038 = vmul.f32 %v3024, %v3035
    %v3039 = vmul.f32 %v3025, %v3035
    %v3040 = vmul.f32 %v3026, %v3035
    %v3041 = vmul.f32 %v3027, %v3035
    %v3042 = vmul.f32 %v3028, %v3035
    %v3043 = vmul.f32 %v3029, %v3035
    %v3044 = vmul.f32 %v3030, %v3035
    %v3045 = vmul.f32 %v2915, %v3037
    %v3046 = vmul.f32 %v2916, %v3038
    %v3047 = vmul.f32 %v2917, %v3039
    %v3048 = vmul.f32 %v2918, %v3040
    %v3049 = vmul.f32 %v2919, %v3041
    %v3050 = vmul.f32 %v2920, %v3042
    %v3051 = vmul.f32 %v2921, %v3043
    %v3052 = vmul.f32 %v2922, %v3044
    %v3053 = vmul.f32 %v2951, %v3037
    %v3054 = vmul.f32 %v2952, %v3038
    %v3055 = vmul.f32 %v2953, %v3039
    %v3056 = vmul.f32 %v2954, %v3040
    %v3057 = vmul.f32 %v2955, %v3041
    %v3058 = vmul.f32 %v2956, %v3042
    %v3059 = vmul.f32 %v2957, %v3043
    %v3060 = vmul.f32 %v2958, %v3044
    %v3062 = vlaneseq
    %v3063 = vshrl.u32 %v3062, 7
    %v3064 = vsub.s32 0, %v3063
    %v3065 = vrot.slane %v2926, %v3064
    %v3067 = vsub.f32 %v3065, %v3053
    %v3068 = vsub.f32 %v3065, %v3054
    %v3069 = vsub.f32 %v3065, %v3055
    %v3070 = vsub.f32 %v3065, %v3056
    %v3071 = vsub.f32 %v3065, %v3057
    %v3072 = vsub.f32 %v3065, %v3058
    %v3073 = vsub.f32 %v3065, %v3059
    %v3074 = vsub.f32 %v3065, %v3060
    %v3075 = vadd.f32 %v3045, %v3067
    %v3076 = vadd.f32 %v3046, %v3068
    %v3077 = vadd.f32 %v3047, %v3069
    %v3078 = vadd.f32 %v3048, %v3070
    %v3079 = vadd.f32 %v3049, %v3071
    %v3080 = vadd.f32 %v3050, %v3072
    %v3081 = vadd.f32 %v3051, %v3073
    %v3082 = vadd.f32 %v3052, %v3074
    %v3083 = vpack.c.bf16 %v3076, %v3075
    %v3084 = vpack.c.bf16 %v3078, %v3077
    %v3085 = vpack.c.bf16 %v3080, %v3079
    %v3086 = vpack.c.bf16 %v3082, %v3081
    %s3087 = scalar_lea.vmem %s8, 64
    %v3088 = vld [vmem:[%s3087] sm:$0xff]
    %v3089 = vld [vmem:[%s3087 + $0x8] sm:$0xff]
    %v3090 = vld [vmem:[%s3087 + $0x10] sm:$0xff]
    %v3091 = vld [vmem:[%s3087 + $0x18] sm:$0xff]
    %v3092 = vld [vmem:[%s3087 + $0x20] sm:$0xff]
    %v3093 = vld [vmem:[%s3087 + $0x28] sm:$0xff]
    %v3094 = vld [vmem:[%s3087 + $0x30] sm:$0xff]
    %v3095 = vld [vmem:[%s3087 + $0x38] sm:$0xff]
    %s3096 = scalar_lea.vmem %s9, 2
    %v3097 = vld [vmem:[%s3096] sm:$0x3]
    %v3099 = vlaneseq
    %v3100 = vshrl.u32 %v3099, 7
    %v3101 = vsub.s32 0, %v3100
    %v3102 = vrot.slane %v3097, %v3101
    %v3103 = vlaneseq
    %v3104 = vshrl.u32 %v3103, 7
    %v3105 = vsub.s32 1, %v3104
    %v3106 = vrot.slane %v3097, %v3105
    %v3117 = vunpack.c.l.b16 %v3088
    %v3118 = vunpack.c.h.b16 %v3088
    %v3119 = vunpack.c.l.b16 %v3089
    %v3120 = vunpack.c.h.b16 %v3089
    %v3121 = vunpack.c.l.b16 %v3090
    %v3122 = vunpack.c.h.b16 %v3090
    %v3123 = vunpack.c.l.b16 %v3091
    %v3124 = vunpack.c.h.b16 %v3091
    %v3125 = vunpack.c.l.b16 %v3092
    %v3126 = vunpack.c.h.b16 %v3092
    %v3127 = vunpack.c.l.b16 %v3093
    %v3128 = vunpack.c.h.b16 %v3093
    %v3129 = vunpack.c.l.b16 %v3094
    %v3130 = vunpack.c.h.b16 %v3094
    %v3131 = vunpack.c.l.b16 %v3095
    %v3132 = vunpack.c.h.b16 %v3095
    %v3133 = vpack.c.b16 %v3119, %v3117
    %v3134 = vpack.c.b16 %v3120, %v3118
    %v3135 = vpack.c.b16 %v3123, %v3121
    %v3136 = vpack.c.b16 %v3124, %v3122
    %v3137 = vpack.c.b16 %v3127, %v3125
    %v3138 = vpack.c.b16 %v3128, %v3126
    %v3139 = vpack.c.b16 %v3131, %v3129
    %v3140 = vpack.c.b16 %v3132, %v3130
    %v3150 = vsel %vm143, %v3083, 0
    %v3153 = vsel %vm143, %v3084, 0
    %v3156 = vsel %vm143, %v3085, 0
    %v3159 = vsel %vm143, %v3086, 0
    %3161 = vmatprep.subr.bf16.mxu0 %v3134
    %3162 = vmatpush1.bf16.msra.mxu0 %v3133
    %3163 = vmatprep.subr.bf16.mxu0 %v3136
    %3164 = vmatpush1.bf16.msra.mxu0 %v3135
    %3165 = vmatprep.subr.bf16.mxu0 %v3138
    %3166 = vmatpush1.bf16.msra.mxu0 %v3137
    %3167 = vmatprep.subr.bf16.mxu0 %v3140
    %3168 = vmatpush1.bf16.msra.mxu0 %v3139
    %3169 = vmatprep.subr.bf16.mxu0 0
    %3170 = vmatpush1.bf16.msra.mxu0 0
    %3171 = vmatprep.subr.bf16.mxu0 0
    %3172 = vmatpush1.bf16.msra.mxu0 0
    %3173 = vmatprep.subr.bf16.mxu0 0
    %3174 = vmatpush1.bf16.msra.mxu0 0
    %3175 = vmatprep.subr.bf16.mxu0 0
    %3176 = vmatpush1.bf16.msra.mxu0 0
    %3177 = vmatprep.subr.bf16.mxu0 0
    %3178 = vmatpush1.bf16.msra.mxu0 0
    %3179 = vmatprep.subr.bf16.mxu0 0
    %3180 = vmatpush1.bf16.msra.mxu0 0
    %3181 = vmatprep.subr.bf16.mxu0 0
    %3182 = vmatpush1.bf16.msra.mxu0 0
    %3183 = vmatprep.subr.bf16.mxu0 0
    %3184 = vmatpush1.bf16.msra.mxu0 0
    %3185 = vmatprep.subr.bf16.mxu0 0
    %3186 = vmatpush1.bf16.msra.mxu0 0
    %3187 = vmatprep.subr.bf16.mxu0 0
    %3188 = vmatpush1.bf16.msra.mxu0 0
    %3189 = vmatprep.subr.bf16.mxu0 0
    %3190 = vmatpush1.bf16.msra.mxu0 0
    %3191 = vmatprep.subr.bf16.mxu0 0
    %3192 = vmatpush1.bf16.msra.mxu0 0
    %3193 = vmatprep.mubr.bf16.mxu0 0
    %3194 = vmatmul.mubr.bf16.gmra.mrb[0].mxu0 %v3150
    %v3195 = vpop.f32.mrb[0].mxu0
    %v3196 = vadd.f32 %v3102, %v3195
    %v3197 = vpop.f32.mrb[0].mxu0
    %v3198 = vadd.f32 %v3106, %v3197
    %v3199 = vpop.f32.mrb[0].mxu0
    %v3200 = vadd.f32 %v3102, %v3199
    %v3201 = vpop.f32.mrb[0].mxu0
    %v3202 = vadd.f32 %v3106, %v3201
    %3203 = vmatprep.mubr.bf16.mxu0 0
    %3204 = vmatmul.mubr.bf16.gmra.mrb[0].mxu0 %v3153
    %v3205 = vpop.f32.mrb[0].mxu0
    %v3206 = vadd.f32 %v3102, %v3205
    %v3207 = vpop.f32.mrb[0].mxu0
    %v3208 = vadd.f32 %v3106, %v3207
    %v3209 = vpop.f32.mrb[0].mxu0
    %v3210 = vadd.f32 %v3102, %v3209
    %v3211 = vpop.f32.mrb[0].mxu0
    %v3212 = vadd.f32 %v3106, %v3211
    %3213 = vmatprep.mubr.bf16.mxu0 0
    %3214 = vmatmul.mubr.bf16.gmra.mrb[0].mxu0 %v3156
    %v3215 = vpop.f32.mrb[0].mxu0
    %v3216 = vadd.f32 %v3102, %v3215
    %v3217 = vpop.f32.mrb[0].mxu0
    %v3218 = vadd.f32 %v3106, %v3217
    %v3219 = vpop.f32.mrb[0].mxu0
    %v3220 = vadd.f32 %v3102, %v3219
    %v3221 = vpop.f32.mrb[0].mxu0
    %v3222 = vadd.f32 %v3106, %v3221
    %3223 = vmatprep.mubr.bf16.mxu0 0
    %3224 = vmatmul.mubr.bf16.gmra.mrb[0].mxu0 %v3159
    %v3225 = vpop.f32.mrb[0].mxu0
    %v3226 = vadd.f32 %v3102, %v3225
    %v3227 = vpop.f32.mrb[0].mxu0
    %v3228 = vadd.f32 %v3106, %v3227
    %v3229 = vpop.f32.mrb[0].mxu0
    %v3230 = vadd.f32 %v3102, %v3229
    %v3231 = vpop.f32.mrb[0].mxu0
    %v3232 = vadd.f32 %v3106, %v3231
    %3233 = vdwg.mxu0
    %v3234 = vmax.f32 %v3196, 0.0
    %v3235 = vmax.f32 %v3198, 0.0
    %v3236 = vmax.f32 %v3200, 0.0
    %v3237 = vmax.f32 %v3202, 0.0
    %v3238 = vmax.f32 %v3206, 0.0
    %v3239 = vmax.f32 %v3208, 0.0
    %v3240 = vmax.f32 %v3210, 0.0
    %v3241 = vmax.f32 %v3212, 0.0
    %v3242 = vmax.f32 %v3216, 0.0
    %v3243 = vmax.f32 %v3218, 0.0
    %v3244 = vmax.f32 %v3220, 0.0
    %v3245 = vmax.f32 %v3222, 0.0
    %v3246 = vmax.f32 %v3226, 0.0
    %v3247 = vmax.f32 %v3228, 0.0
    %v3248 = vmax.f32 %v3230, 0.0
    %v3249 = vmax.f32 %v3232, 0.0
    %v3250 = vpack.c.bf16 %v3236, %v3234
    %v3251 = vpack.c.bf16 %v3237, %v3235
    %v3252 = vpack.c.bf16 %v3240, %v3238
    %v3253 = vpack.c.bf16 %v3241, %v3239
    %v3254 = vpack.c.bf16 %v3244, %v3242
    %v3255 = vpack.c.bf16 %v3245, %v3243
    %v3256 = vpack.c.bf16 %v3248, %v3246
    %v3257 = vpack.c.bf16 %v3249, %v3247
    %s3258 = scalar_lea.vmem %s10, 128
    %v3259 = vld [vmem:[%s3258] sm:$0xf]
    %v3260 = vld [vmem:[%s3258 + $0x4] sm:$0xf]
    %v3261 = vld [vmem:[%s3258 + $0x8] sm:$0xf]
    %v3262 = vld [vmem:[%s3258 + $0xc] sm:$0xf]
    %v3263 = vld [vmem:[%s3258 + $0x10] sm:$0xf]
    %v3264 = vld [vmem:[%s3258 + $0x14] sm:$0xf]
    %v3265 = vld [vmem:[%s3258 + $0x18] sm:$0xf]
    %v3266 = vld [vmem:[%s3258 + $0x1c] sm:$0xf]
    %v3267 = vld [vmem:[%s3258 + $0x20] sm:$0xf]
    %v3268 = vld [vmem:[%s3258 + $0x24] sm:$0xf]
    %v3269 = vld [vmem:[%s3258 + $0x28] sm:$0xf]
    %v3270 = vld [vmem:[%s3258 + $0x2c] sm:$0xf]
    %v3271 = vld [vmem:[%s3258 + $0x30] sm:$0xf]
    %v3272 = vld [vmem:[%s3258 + $0x34] sm:$0xf]
    %v3273 = vld [vmem:[%s3258 + $0x38] sm:$0xf]
    %v3274 = vld [vmem:[%s3258 + $0x3c] sm:$0xf]
    %v3275 = vld [vmem:[%s3258 + $0x40] sm:$0xf]
    %v3276 = vld [vmem:[%s3258 + $0x44] sm:$0xf]
    %v3277 = vld [vmem:[%s3258 + $0x48] sm:$0xf]
    %v3278 = vld [vmem:[%s3258 + $0x4c] sm:$0xf]
    %v3279 = vld [vmem:[%s3258 + $0x50] sm:$0xf]
    %v3280 = vld [vmem:[%s3258 + $0x54] sm:$0xf]
    %v3281 = vld [vmem:[%s3258 + $0x58] sm:$0xf]
    %v3282 = vld [vmem:[%s3258 + $0x5c] sm:$0xf]
    %v3283 = vld [vmem:[%s3258 + $0x60] sm:$0xf]
    %v3284 = vld [vmem:[%s3258 + $0x64] sm:$0xf]
    %v3285 = vld [vmem:[%s3258 + $0x68] sm:$0xf]
    %v3286 = vld [vmem:[%s3258 + $0x6c] sm:$0xf]
    %v3287 = vld [vmem:[%s3258 + $0x70] sm:$0xf]
    %v3288 = vld [vmem:[%s3258 + $0x74] sm:$0xf]
    %v3289 = vld [vmem:[%s3258 + $0x78] sm:$0xf]
    %v3290 = vld [vmem:[%s3258 + $0x7c] sm:$0xf]
    %v3323 = vunpack.c.l.b16 %v3259
    %v3324 = vunpack.c.l.b16 %v3260
    %v3325 = vunpack.c.l.b16 %v3261
    %v3326 = vunpack.c.l.b16 %v3262
    %v3327 = vunpack.c.l.b16 %v3263
    %v3328 = vunpack.c.l.b16 %v3264
    %v3329 = vunpack.c.l.b16 %v3265
    %v3330 = vunpack.c.l.b16 %v3266
    %v3331 = vunpack.c.l.b16 %v3267
    %v3332 = vunpack.c.l.b16 %v3268
    %v3333 = vunpack.c.l.b16 %v3269
    %v3334 = vunpack.c.l.b16 %v3270
    %v3335 = vunpack.c.l.b16 %v3271
    %v3336 = vunpack.c.l.b16 %v3272
    %v3337 = vunpack.c.l.b16 %v3273
    %v3338 = vunpack.c.l.b16 %v3274
    %v3339 = vunpack.c.l.b16 %v3275
    %v3340 = vunpack.c.l.b16 %v3276
    %v3341 = vunpack.c.l.b16 %v3277
    %v3342 = vunpack.c.l.b16 %v3278
    %v3343 = vunpack.c.l.b16 %v3279
    %v3344 = vunpack.c.l.b16 %v3280
    %v3345 = vunpack.c.l.b16 %v3281
    %v3346 = vunpack.c.l.b16 %v3282
    %v3347 = vunpack.c.l.b16 %v3283
    %v3348 = vunpack.c.l.b16 %v3284
    %v3349 = vunpack.c.l.b16 %v3285
    %v3350 = vunpack.c.l.b16 %v3286
    %v3351 = vunpack.c.l.b16 %v3287
    %v3352 = vunpack.c.l.b16 %v3288
    %v3353 = vunpack.c.l.b16 %v3289
    %v3354 = vunpack.c.l.b16 %v3290
    %v3355 = vpack.c.b16 %v3324, %v3323
    %v3356 = vpack.c.b16 %v3326, %v3325
    %v3357 = vpack.c.b16 %v3328, %v3327
    %v3358 = vpack.c.b16 %v3330, %v3329
    %v3359 = vpack.c.b16 %v3332, %v3331
    %v3360 = vpack.c.b16 %v3334, %v3333
    %v3361 = vpack.c.b16 %v3336, %v3335
    %v3362 = vpack.c.b16 %v3338, %v3337
    %v3363 = vpack.c.b16 %v3340, %v3339
    %v3364 = vpack.c.b16 %v3342, %v3341
    %v3365 = vpack.c.b16 %v3344, %v3343
    %v3366 = vpack.c.b16 %v3346, %v3345
    %v3367 = vpack.c.b16 %v3348, %v3347
    %v3368 = vpack.c.b16 %v3350, %v3349
    %v3369 = vpack.c.b16 %v3352, %v3351
    %v3370 = vpack.c.b16 %v3354, %v3353
    %3387 = vmatprep.subr.bf16.mxu0 0
    %3388 = vmatpush1.bf16.msra.mxu0 %v3355
    %3389 = vmatprep.subr.bf16.mxu0 0
    %3390 = vmatpush1.bf16.msra.mxu0 %v3356
    %3391 = vmatprep.subr.bf16.mxu0 0
    %3392 = vmatpush1.bf16.msra.mxu0 %v3357
    %3393 = vmatprep.subr.bf16.mxu0 0
    %3394 = vmatpush1.bf16.msra.mxu0 %v3358
    %3395 = vmatprep.subr.bf16.mxu0 0
    %3396 = vmatpush1.bf16.msra.mxu0 %v3359
    %3397 = vmatprep.subr.bf16.mxu0 0
    %3398 = vmatpush1.bf16.msra.mxu0 %v3360
    %3399 = vmatprep.subr.bf16.mxu0 0
    %3400 = vmatpush1.bf16.msra.mxu0 %v3361
    %3401 = vmatprep.subr.bf16.mxu0 0
    %3402 = vmatpush1.bf16.msra.mxu0 %v3362
    %3403 = vmatprep.subr.bf16.mxu0 0
    %3404 = vmatpush1.bf16.msra.mxu0 %v3363
    %3405 = vmatprep.subr.bf16.mxu0 0
    %3406 = vmatpush1.bf16.msra.mxu0 %v3364
    %3407 = vmatprep.subr.bf16.mxu0 0
    %3408 = vmatpush1.bf16.msra.mxu0 %v3365
    %3409 = vmatprep.subr.bf16.mxu0 0
    %3410 = vmatpush1.bf16.msra.mxu0 %v3366
    %3411 = vmatprep.subr.bf16.mxu0 0
    %3412 = vmatpush1.bf16.msra.mxu0 %v3367
    %3413 = vmatprep.subr.bf16.mxu0 0
    %3414 = vmatpush1.bf16.msra.mxu0 %v3368
    %3415 = vmatprep.subr.bf16.mxu0 0
    %3416 = vmatpush1.bf16.msra.mxu0 %v3369
    %3417 = vmatprep.subr.bf16.mxu0 0
    %3418 = vmatpush1.bf16.msra.mxu0 %v3370
    %3419 = vmatprep.mubr.bf16.mxu0 %v3251
    %3420 = vmatmul.mubr.bf16.gmra.mrb[0].mxu0 %v3250
    %v3421 = vpop.f32.mrb[0].mxu0
    %v3422 = vadd.f32 0.0, %v3421
    %v3423 = vpop.f32.mrb[0].mxu0
    %v3424 = vpop.f32.mrb[0].mxu0
    %v3425 = vadd.f32 0.0, %v3424
    %v3426 = vpop.f32.mrb[0].mxu0
    %3427 = vmatprep.mubr.bf16.mxu0 %v3253
    %3428 = vmatmul.mubr.bf16.gmra.mrb[0].mxu0 %v3252
    %v3429 = vpop.f32.mrb[0].mxu0
    %v3430 = vadd.f32 0.0, %v3429
    %v3431 = vpop.f32.mrb[0].mxu0
    %v3432 = vpop.f32.mrb[0].mxu0
    %v3433 = vadd.f32 0.0, %v3432
    %v3434 = vpop.f32.mrb[0].mxu0
    %3435 = vmatprep.mubr.bf16.mxu0 %v3255
    %3436 = vmatmul.mubr.bf16.gmra.mrb[0].mxu0 %v3254
    %v3437 = vpop.f32.mrb[0].mxu0
    %v3438 = vadd.f32 0.0, %v3437
    %v3439 = vpop.f32.mrb[0].mxu0
    %v3440 = vpop.f32.mrb[0].mxu0
    %v3441 = vadd.f32 0.0, %v3440
    %v3442 = vpop.f32.mrb[0].mxu0
    %3443 = vmatprep.mubr.bf16.mxu0 %v3257
    %3444 = vmatmul.mubr.bf16.gmra.mrb[0].mxu0 %v3256
    %v3445 = vpop.f32.mrb[0].mxu0
    %v3446 = vadd.f32 0.0, %v3445
    %v3447 = vpop.f32.mrb[0].mxu0
    %v3448 = vpop.f32.mrb[0].mxu0
    %v3449 = vadd.f32 0.0, %v3448
    %v3450 = vpop.f32.mrb[0].mxu0
    %3451 = vdwg.mxu0
    %v3452 = vadd.f32 %v2915, %v3422
    %v3453 = vadd.f32 %v2916, %v3425
    %v3454 = vadd.f32 %v2917, %v3430
    %v3455 = vadd.f32 %v2918, %v3433
    %v3456 = vadd.f32 %v2919, %v3438
    %v3457 = vadd.f32 %v2920, %v3441
    %v3458 = vadd.f32 %v2921, %v3446
    %v3459 = vadd.f32 %v2922, %v3449
    %s3460 = scalar_lea.vmem %s11, 1
    %v3461 = vld [vmem:[%s3460] sm:$0x1]
    %v3463 = vlaneseq
    %v3464 = vshrl.u32 %v3463, 7
    %v3465 = vsub.s32 0, %v3464
    %v3466 = vrot.slane %v3461, %v3465
    %v3468 = vadd.f32 %v3452, %v3466
    %v3469 = vadd.f32 %v3453, %v3466
    %v3470 = vadd.f32 %v3454, %v3466
    %v3471 = vadd.f32 %v3455, %v3466
    %v3472 = vadd.f32 %v3456, %v3466
    %v3473 = vadd.f32 %v3457, %v3466
    %v3474 = vadd.f32 %v3458, %v3466
    %v3475 = vadd.f32 %v3459, %v3466
    %s3476 = scalar_lea.vmem %s1, 2
    %v3477 = vld [vmem:[%s3476] sm:$0x1]
    %s3478 = scalar_lea.vmem %s2, 2
    %v3479 = vld [vmem:[%s3478] sm:$0x1]
    %v3480 = vsel %vm143, %v3468, 0.0
    %3481 = vadd.xlane.f32.xlu0 %v3480
    %v3482 = vpop.xlane.xlu0 %3481
    %v3483 = vsel %vm143, %v3469, 0.0
    %3484 = vadd.xlane.f32.xlu0 %v3483
    %v3485 = vpop.xlane.xlu0 %3484
    %v3486 = vsel %vm143, %v3470, 0.0
    %3487 = vadd.xlane.f32.xlu0 %v3486
    %v3488 = vpop.xlane.xlu0 %3487
    %v3489 = vsel %vm143, %v3471, 0.0
    %3490 = vadd.xlane.f32.xlu0 %v3489
    %v3491 = vpop.xlane.xlu0 %3490
    %v3492 = vsel %vm143, %v3472, 0.0
    %3493 = vadd.xlane.f32.xlu0 %v3492
    %v3494 = vpop.xlane.xlu0 %3493
    %v3495 = vsel %vm143, %v3473, 0.0
    %3496 = vadd.xlane.f32.xlu0 %v3495
    %v3497 = vpop.xlane.xlu0 %3496
    %v3498 = vsel %vm143, %v3474, 0.0
    %3499 = vadd.xlane.f32.xlu0 %v3498
    %v3500 = vpop.xlane.xlu0 %3499
    %v3501 = vsel %vm143, %v3475, 0.0
    %3502 = vadd.xlane.f32.xlu0 %v3501
    %v3503 = vpop.xlane.xlu0 %3502
    %v3504 = vmul.f32 %v3482, %v168
    %v3505 = vmul.f32 %v3485, %v168
    %v3506 = vmul.f32 %v3488, %v168
    %v3507 = vmul.f32 %v3491, %v168
    %v3508 = vmul.f32 %v3494, %v168
    %v3509 = vmul.f32 %v3497, %v168
    %v3510 = vmul.f32 %v3500, %v168
    %v3511 = vmul.f32 %v3503, %v168
    %v3512 = vmul.f32 %v3468, %v3468
    %v3513 = vmul.f32 %v3469, %v3469
    %v3514 = vmul.f32 %v3470, %v3470
    %v3515 = vmul.f32 %v3471, %v3471
    %v3516 = vmul.f32 %v3472, %v3472
    %v3517 = vmul.f32 %v3473, %v3473
    %v3518 = vmul.f32 %v3474, %v3474
    %v3519 = vmul.f32 %v3475, %v3475
    %v3520 = vsel %vm143, %v3512, 0.0
    %3521 = vadd.xlane.f32.xlu0 %v3520
    %v3522 = vpop.xlane.xlu0 %3521
    %v3523 = vsel %vm143, %v3513, 0.0
    %3524 = vadd.xlane.f32.xlu0 %v3523
    %v3525 = vpop.xlane.xlu0 %3524
    %v3526 = vsel %vm143, %v3514, 0.0
    %3527 = vadd.xlane.f32.xlu0 %v3526
    %v3528 = vpop.xlane.xlu0 %3527
    %v3529 = vsel %vm143, %v3515, 0.0
    %3530 = vadd.xlane.f32.xlu0 %v3529
    %v3531 = vpop.xlane.xlu0 %3530
    %v3532 = vsel %vm143, %v3516, 0.0
    %3533 = vadd.xlane.f32.xlu0 %v3532
    %v3534 = vpop.xlane.xlu0 %3533
    %v3535 = vsel %vm143, %v3517, 0.0
    %3536 = vadd.xlane.f32.xlu0 %v3535
    %v3537 = vpop.xlane.xlu0 %3536
    %v3538 = vsel %vm143, %v3518, 0.0
    %3539 = vadd.xlane.f32.xlu0 %v3538
    %v3540 = vpop.xlane.xlu0 %3539
    %v3541 = vsel %vm143, %v3519, 0.0
    %3542 = vadd.xlane.f32.xlu0 %v3541
    %v3543 = vpop.xlane.xlu0 %3542
    %v3544 = vmul.f32 %v3522, %v168
    %v3545 = vmul.f32 %v3525, %v168
    %v3546 = vmul.f32 %v3528, %v168
    %v3547 = vmul.f32 %v3531, %v168
    %v3548 = vmul.f32 %v3534, %v168
    %v3549 = vmul.f32 %v3537, %v168
    %v3550 = vmul.f32 %v3540, %v168
    %v3551 = vmul.f32 %v3543, %v168
    %v3552 = vmul.f32 %v3504, %v3504
    %v3553 = vmul.f32 %v3505, %v3505
    %v3554 = vmul.f32 %v3506, %v3506
    %v3555 = vmul.f32 %v3507, %v3507
    %v3556 = vmul.f32 %v3508, %v3508
    %v3557 = vmul.f32 %v3509, %v3509
    %v3558 = vmul.f32 %v3510, %v3510
    %v3559 = vmul.f32 %v3511, %v3511
    %v3560 = vsub.f32 %v3544, %v3552
    %v3561 = vsub.f32 %v3545, %v3553
    %v3562 = vsub.f32 %v3546, %v3554
    %v3563 = vsub.f32 %v3547, %v3555
    %v3564 = vsub.f32 %v3548, %v3556
    %v3565 = vsub.f32 %v3549, %v3557
    %v3566 = vsub.f32 %v3550, %v3558
    %v3567 = vsub.f32 %v3551, %v3559
    %v3568 = vadd.f32 %v3560, 1e-05
    %v3569 = vadd.f32 %v3561, 1e-05
    %v3570 = vadd.f32 %v3562, 1e-05
    %v3571 = vadd.f32 %v3563, 1e-05
    %v3572 = vadd.f32 %v3564, 1e-05
    %v3573 = vadd.f32 %v3565, 1e-05
    %v3574 = vadd.f32 %v3566, 1e-05
    %v3575 = vadd.f32 %v3567, 1e-05
    %v3576 = vrsqrt.pop %v3568
    %v3577 = vrsqrt.pop %v3569
    %v3578 = vrsqrt.pop %v3570
    %v3579 = vrsqrt.pop %v3571
    %v3580 = vrsqrt.pop %v3572
    %v3581 = vrsqrt.pop %v3573
    %v3582 = vrsqrt.pop %v3574
    %v3583 = vrsqrt.pop %v3575
    %v3585 = vlaneseq
    %v3586 = vshrl.u32 %v3585, 7
    %v3587 = vsub.s32 0, %v3586
    %v3588 = vrot.slane %v3477, %v3587
    %v3590 = vmul.f32 %v3576, %v3588
    %v3591 = vmul.f32 %v3577, %v3588
    %v3592 = vmul.f32 %v3578, %v3588
    %v3593 = vmul.f32 %v3579, %v3588
    %v3594 = vmul.f32 %v3580, %v3588
    %v3595 = vmul.f32 %v3581, %v3588
    %v3596 = vmul.f32 %v3582, %v3588
    %v3597 = vmul.f32 %v3583, %v3588
    %v3598 = vmul.f32 %v3468, %v3590
    %v3599 = vmul.f32 %v3469, %v3591
    %v3600 = vmul.f32 %v3470, %v3592
    %v3601 = vmul.f32 %v3471, %v3593
    %v3602 = vmul.f32 %v3472, %v3594
    %v3603 = vmul.f32 %v3473, %v3595
    %v3604 = vmul.f32 %v3474, %v3596
    %v3605 = vmul.f32 %v3475, %v3597
    %v3606 = vmul.f32 %v3504, %v3590
    %v3607 = vmul.f32 %v3505, %v3591
    %v3608 = vmul.f32 %v3506, %v3592
    %v3609 = vmul.f32 %v3507, %v3593
    %v3610 = vmul.f32 %v3508, %v3594
    %v3611 = vmul.f32 %v3509, %v3595
    %v3612 = vmul.f32 %v3510, %v3596
    %v3613 = vmul.f32 %v3511, %v3597
    %v3615 = vlaneseq
    %v3616 = vshrl.u32 %v3615, 7
    %v3617 = vsub.s32 0, %v3616
    %v3618 = vrot.slane %v3479, %v3617
    %v3620 = vsub.f32 %v3618, %v3606
    %v3621 = vsub.f32 %v3618, %v3607
    %v3622 = vsub.f32 %v3618, %v3608
    %v3623 = vsub.f32 %v3618, %v3609
    %v3624 = vsub.f32 %v3618, %v3610
    %v3625 = vsub.f32 %v3618, %v3611
    %v3626 = vsub.f32 %v3618, %v3612
    %v3627 = vsub.f32 %v3618, %v3613
    %v3628 = vadd.f32 %v3598, %v3620
    %v3629 = vadd.f32 %v3599, %v3621
    %v3630 = vadd.f32 %v3600, %v3622
    %v3631 = vadd.f32 %v3601, %v3623
    %v3632 = vadd.f32 %v3602, %v3624
    %v3633 = vadd.f32 %v3603, %v3625
    %v3634 = vadd.f32 %v3604, %v3626
    %v3635 = vadd.f32 %v3605, %v3627
    %v3636 = vpack.c.bf16 %v3629, %v3628
    %v3637 = vpack.c.bf16 %v3631, %v3630
    %v3638 = vpack.c.bf16 %v3633, %v3632
    %v3639 = vpack.c.bf16 %v3635, %v3634
    %s3640 = scalar_lea.vmem %s3, 128
    %v3641 = vld [vmem:[%s3640] sm:$0xff]
    %v3642 = vld [vmem:[%s3640 + $0x8] sm:$0xff]
    %v3643 = vld [vmem:[%s3640 + $0x10] sm:$0xff]
    %v3644 = vld [vmem:[%s3640 + $0x18] sm:$0xff]
    %v3645 = vld [vmem:[%s3640 + $0x20] sm:$0xff]
    %v3646 = vld [vmem:[%s3640 + $0x28] sm:$0xff]
    %v3647 = vld [vmem:[%s3640 + $0x30] sm:$0xff]
    %v3648 = vld [vmem:[%s3640 + $0x38] sm:$0xff]
    %v3657 = vunpack.c.l.b16 %v3641
    %v3658 = vunpack.c.h.b16 %v3641
    %v3659 = vunpack.c.l.b16 %v3642
    %v3660 = vunpack.c.h.b16 %v3642
    %v3661 = vunpack.c.l.b16 %v3643
    %v3662 = vunpack.c.h.b16 %v3643
    %v3663 = vunpack.c.l.b16 %v3644
    %v3664 = vunpack.c.h.b16 %v3644
    %v3665 = vunpack.c.l.b16 %v3645
    %v3666 = vunpack.c.h.b16 %v3645
    %v3667 = vunpack.c.l.b16 %v3646
    %v3668 = vunpack.c.h.b16 %v3646
    %v3669 = vunpack.c.l.b16 %v3647
    %v3670 = vunpack.c.h.b16 %v3647
    %v3671 = vunpack.c.l.b16 %v3648
    %v3672 = vunpack.c.h.b16 %v3648
    %v3673 = vpack.c.b16 %v3659, %v3657
    %v3674 = vpack.c.b16 %v3660, %v3658
    %v3675 = vpack.c.b16 %v3663, %v3661
    %v3676 = vpack.c.b16 %v3664, %v3662
    %v3677 = vpack.c.b16 %v3667, %v3665
    %v3678 = vpack.c.b16 %v3668, %v3666
    %v3679 = vpack.c.b16 %v3671, %v3669
    %v3680 = vpack.c.b16 %v3672, %v3670
    %v3690 = vsel %vm143, %v3636, 0
    %v3693 = vsel %vm143, %v3637, 0
    %v3696 = vsel %vm143, %v3638, 0
    %v3699 = vsel %vm143, %v3639, 0
    %3701 = vmatprep.subr.bf16.mxu0 %v3674
    %3702 = vmatpush1.bf16.msra.mxu0 %v3673
    %3703 = vmatprep.subr.bf16.mxu0 %v3676
    %3704 = vmatpush1.bf16.msra.mxu0 %v3675
    %3705 = vmatprep.subr.bf16.mxu0 %v3678
    %3706 = vmatpush1.bf16.msra.mxu0 %v3677
    %3707 = vmatprep.subr.bf16.mxu0 %v3680
    %3708 = vmatpush1.bf16.msra.mxu0 %v3679
    %3709 = vmatprep.subr.bf16.mxu0 0
    %3710 = vmatpush1.bf16.msra.mxu0 0
    %3711 = vmatprep.subr.bf16.mxu0 0
    %3712 = vmatpush1.bf16.msra.mxu0 0
    %3713 = vmatprep.subr.bf16.mxu0 0
    %3714 = vmatpush1.bf16.msra.mxu0 0
    %3715 = vmatprep.subr.bf16.mxu0 0
    %3716 = vmatpush1.bf16.msra.mxu0 0
    %3717 = vmatprep.subr.bf16.mxu0 0
    %3718 = vmatpush1.bf16.msra.mxu0 0
    %3719 = vmatprep.subr.bf16.mxu0 0
    %3720 = vmatpush1.bf16.msra.mxu0 0
    %3721 = vmatprep.subr.bf16.mxu0 0
    %3722 = vmatpush1.bf16.msra.mxu0 0
    %3723 = vmatprep.subr.bf16.mxu0 0
    %3724 = vmatpush1.bf16.msra.mxu0 0
    %3725 = vmatprep.subr.bf16.mxu0 0
    %3726 = vmatpush1.bf16.msra.mxu0 0
    %3727 = vmatprep.subr.bf16.mxu0 0
    %3728 = vmatpush1.bf16.msra.mxu0 0
    %3729 = vmatprep.subr.bf16.mxu0 0
    %3730 = vmatpush1.bf16.msra.mxu0 0
    %3731 = vmatprep.subr.bf16.mxu0 0
    %3732 = vmatpush1.bf16.msra.mxu0 0
    %3733 = vmatprep.mubr.bf16.mxu0 0
    %3734 = vmatmul.mubr.bf16.gmra.mrb[0].mxu0 %v3690
    %v3735 = vpop.f32.mrb[0].mxu0
    %v3736 = vadd.f32 0.0, %v3735
    %v3737 = vpop.f32.mrb[0].mxu0
    %v3738 = vadd.f32 0.0, %v3737
    %v3739 = vpop.f32.mrb[0].mxu0
    %v3740 = vadd.f32 0.0, %v3739
    %v3741 = vpop.f32.mrb[0].mxu0
    %v3742 = vadd.f32 0.0, %v3741
    %3743 = vmatprep.mubr.bf16.mxu0 0
    %3744 = vmatmul.mubr.bf16.gmra.mrb[0].mxu0 %v3693
    %v3745 = vpop.f32.mrb[0].mxu0
    %v3746 = vadd.f32 0.0, %v3745
    %v3747 = vpop.f32.mrb[0].mxu0
    %v3748 = vadd.f32 0.0, %v3747
    %v3749 = vpop.f32.mrb[0].mxu0
    %v3750 = vadd.f32 0.0, %v3749
    %v3751 = vpop.f32.mrb[0].mxu0
    %v3752 = vadd.f32 0.0, %v3751
    %3753 = vmatprep.mubr.bf16.mxu0 0
    %3754 = vmatmul.mubr.bf16.gmra.mrb[0].mxu0 %v3696
    %v3755 = vpop.f32.mrb[0].mxu0
    %v3756 = vadd.f32 0.0, %v3755
    %v3757 = vpop.f32.mrb[0].mxu0
    %v3758 = vadd.f32 0.0, %v3757
    %v3759 = vpop.f32.mrb[0].mxu0
    %v3760 = vadd.f32 0.0, %v3759
    %v3761 = vpop.f32.mrb[0].mxu0
    %v3762 = vadd.f32 0.0, %v3761
    %3763 = vmatprep.mubr.bf16.mxu0 0
    %3764 = vmatmul.mubr.bf16.gmra.mrb[0].mxu0 %v3699
    %v3765 = vpop.f32.mrb[0].mxu0
    %v3766 = vadd.f32 0.0, %v3765
    %v3767 = vpop.f32.mrb[0].mxu0
    %v3768 = vadd.f32 0.0, %v3767
    %v3769 = vpop.f32.mrb[0].mxu0
    %v3770 = vadd.f32 0.0, %v3769
    %v3771 = vpop.f32.mrb[0].mxu0
    %v3772 = vadd.f32 0.0, %v3771
    %3773 = vdwg.mxu0
    %s3774 = scalar_lea.vmem %s4, 64
    %v3775 = vld [vmem:[%s3774] sm:$0xf]
    %v3776 = vld [vmem:[%s3774 + $0x4] sm:$0xf]
    %v3777 = vld [vmem:[%s3774 + $0x8] sm:$0xf]
    %v3778 = vld [vmem:[%s3774 + $0xc] sm:$0xf]
    %v3779 = vld [vmem:[%s3774 + $0x10] sm:$0xf]
    %v3780 = vld [vmem:[%s3774 + $0x14] sm:$0xf]
    %v3781 = vld [vmem:[%s3774 + $0x18] sm:$0xf]
    %v3782 = vld [vmem:[%s3774 + $0x1c] sm:$0xf]
    %v3783 = vmul.f32 %v3736, 0.17677669
    %v3784 = vmul.f32 %v3740, 0.17677669
    %v3785 = vmul.f32 %v3746, 0.17677669
    %v3786 = vmul.f32 %v3750, 0.17677669
    %v3787 = vmul.f32 %v3756, 0.17677669
    %v3788 = vmul.f32 %v3760, 0.17677669
    %v3789 = vmul.f32 %v3766, 0.17677669
    %v3790 = vmul.f32 %v3770, 0.17677669
    %v3791 = vpack.c.bf16 %v3784, %v3783
    %v3792 = vpack.c.bf16 %v3786, %v3785
    %v3793 = vpack.c.bf16 %v3788, %v3787
    %v3794 = vpack.c.bf16 %v3790, %v3789
    %v3795 = vpack.c.bf16 %v3740, %v3736
    %v3796 = vpack.c.bf16 %v3750, %v3746
    %v3797 = vpack.c.bf16 %v3760, %v3756
    %v3798 = vpack.c.bf16 %v3770, %v3766
    %3803 = vrot.lane.b32.xlu0 %v3795, 64
    %v3804 = vpop.permute.xlu0 %3803
    %3805 = vrot.lane.b32.xlu0 %v3796, 64
    %v3806 = vpop.permute.xlu0 %3805
    %3807 = vrot.lane.b32.xlu0 %v3797, 64
    %v3808 = vpop.permute.xlu0 %3807
    %3809 = vrot.lane.b32.xlu0 %v3798, 64
    %v3810 = vpop.permute.xlu0 %3809
    %v3812 = vsel %vm474, %v3791, 0
    %v3815 = vsel %vm474, %v3792, 0
    %v3818 = vsel %vm474, %v3793, 0
    %v3821 = vsel %vm474, %v3794, 0
    %v3824 = vsel %vm474, %v3804, 0
    %v3827 = vsel %vm474, %v3806, 0
    %v3830 = vsel %vm474, %v3808, 0
    %v3833 = vsel %vm474, %v3810, 0
    %3835 = vmatprep.subr.bf16.mxu0 0
    %3836 = vmatpush1.bf16.xpose.msra.mxu0 %v3824
    %3837 = vmatprep.subr.bf16.mxu0 0
    %3838 = vmatpush1.bf16.xpose.msra.mxu0 %v3827
    %3839 = vmatprep.subr.bf16.mxu0 0
    %3840 = vmatpush1.bf16.xpose.msra.mxu0 %v3830
    %3841 = vmatprep.subr.bf16.mxu0 0
    %3842 = vmatpush1.bf16.xpose.msra.mxu0 %v3833
    %3843 = vmatprep.subr.bf16.mxu0 0
    %3844 = vmatpush1.bf16.xpose.msra.mxu0 0
    %3845 = vmatprep.subr.bf16.mxu0 0
    %3846 = vmatpush1.bf16.xpose.msra.mxu0 0
    %3847 = vmatprep.subr.bf16.mxu0 0
    %3848 = vmatpush1.bf16.xpose.msra.mxu0 0
    %3849 = vmatprep.subr.bf16.mxu0 0
    %3850 = vmatpush1.bf16.xpose.msra.mxu0 0
    %3851 = vmatprep.subr.bf16.mxu0 0
    %3852 = vmatpush1.bf16.xpose.msra.mxu0 0
    %3853 = vmatprep.subr.bf16.mxu0 0
    %3854 = vmatpush1.bf16.xpose.msra.mxu0 0
    %3855 = vmatprep.subr.bf16.mxu0 0
    %3856 = vmatpush1.bf16.xpose.msra.mxu0 0
    %3857 = vmatprep.subr.bf16.mxu0 0
    %3858 = vmatpush1.bf16.xpose.msra.mxu0 0
    %3859 = vmatprep.subr.bf16.mxu0 0
    %3860 = vmatpush1.bf16.xpose.msra.mxu0 0
    %3861 = vmatprep.subr.bf16.mxu0 0
    %3862 = vmatpush1.bf16.xpose.msra.mxu0 0
    %3863 = vmatprep.subr.bf16.mxu0 0
    %3864 = vmatpush1.bf16.xpose.msra.mxu0 0
    %3865 = vmatprep.subr.bf16.mxu0 0
    %3866 = vmatpush1.bf16.xpose.msra.mxu0 0
    %3867 = vmatprep.mubr.bf16.mxu0 0
    %3868 = vmatmul.mubr.bf16.gmra.mrb[0].mxu0 %v3812
    %v3869 = vpop.f32.mrb[0].mxu0
    %v3870 = vadd.f32 %v133, %v3869
    %v3871 = vpop.f32.mrb[0].mxu0
    %v3872 = vpop.f32.mrb[0].mxu0
    %v3873 = vadd.f32 %v134, %v3872
    %v3874 = vpop.f32.mrb[0].mxu0
    %3875 = vmatprep.mubr.bf16.mxu0 0
    %3876 = vmatmul.mubr.bf16.gmra.mrb[0].mxu0 %v3815
    %v3877 = vpop.f32.mrb[0].mxu0
    %v3878 = vadd.f32 %v135, %v3877
    %v3879 = vpop.f32.mrb[0].mxu0
    %v3880 = vpop.f32.mrb[0].mxu0
    %v3881 = vadd.f32 %v136, %v3880
    %v3882 = vpop.f32.mrb[0].mxu0
    %3883 = vmatprep.mubr.bf16.mxu0 0
    %3884 = vmatmul.mubr.bf16.gmra.mrb[0].mxu0 %v3818
    %v3885 = vpop.f32.mrb[0].mxu0
    %v3886 = vadd.f32 %v137, %v3885
    %v3887 = vpop.f32.mrb[0].mxu0
    %v3888 = vpop.f32.mrb[0].mxu0
    %v3889 = vadd.f32 %v138, %v3888
    %v3890 = vpop.f32.mrb[0].mxu0
    %3891 = vmatprep.mubr.bf16.mxu0 0
    %3892 = vmatmul.mubr.bf16.gmra.mrb[0].mxu0 %v3821
    %v3893 = vpop.f32.mrb[0].mxu0
    %v3894 = vadd.f32 %v139, %v3893
    %v3895 = vpop.f32.mrb[0].mxu0
    %v3896 = vpop.f32.mrb[0].mxu0
    %v3897 = vadd.f32 %v140, %v3896
    %v3898 = vpop.f32.mrb[0].mxu0
    %3899 = vdwg.mxu0
    %v3900 = vsel %vm143, %v3870, -inf
    %3901 = vmax.xlane.f32.xlu0 %v3900
    %v3902 = vpop.xlane.xlu0 %3901
    %v3903 = vsel %vm143, %v3873, -inf
    %3904 = vmax.xlane.f32.xlu0 %v3903
    %v3905 = vpop.xlane.xlu0 %3904
    %v3906 = vsel %vm143, %v3878, -inf
    %3907 = vmax.xlane.f32.xlu0 %v3906
    %v3908 = vpop.xlane.xlu0 %3907
    %v3909 = vsel %vm143, %v3881, -inf
    %3910 = vmax.xlane.f32.xlu0 %v3909
    %v3911 = vpop.xlane.xlu0 %3910
    %v3912 = vsel %vm143, %v3886, -inf
    %3913 = vmax.xlane.f32.xlu0 %v3912
    %v3914 = vpop.xlane.xlu0 %3913
    %v3915 = vsel %vm143, %v3889, -inf
    %3916 = vmax.xlane.f32.xlu0 %v3915
    %v3917 = vpop.xlane.xlu0 %3916
    %v3918 = vsel %vm143, %v3894, -inf
    %3919 = vmax.xlane.f32.xlu0 %v3918
    %v3920 = vpop.xlane.xlu0 %3919
    %v3921 = vsel %vm143, %v3897, -inf
    %3922 = vmax.xlane.f32.xlu0 %v3921
    %v3923 = vpop.xlane.xlu0 %3922
    %v3924 = vsub.f32 %v3870, %v3902
    %v3925 = vsub.f32 %v3873, %v3905
    %v3926 = vsub.f32 %v3878, %v3908
    %v3927 = vsub.f32 %v3881, %v3911
    %v3928 = vsub.f32 %v3886, %v3914
    %v3929 = vsub.f32 %v3889, %v3917
    %v3930 = vsub.f32 %v3894, %v3920
    %v3931 = vsub.f32 %v3897, %v3923
    %v3932 = vmul.f32 %v3924, 1.442695
    %v3933 = vpow.pop %v3932
    %v3934 = vmul.f32 %v3925, 1.442695
    %v3935 = vpow.pop %v3934
    %v3936 = vmul.f32 %v3926, 1.442695
    %v3937 = vpow.pop %v3936
    %v3938 = vmul.f32 %v3927, 1.442695
    %v3939 = vpow.pop %v3938
    %v3940 = vmul.f32 %v3928, 1.442695
    %v3941 = vpow.pop %v3940
    %v3942 = vmul.f32 %v3929, 1.442695
    %v3943 = vpow.pop %v3942
    %v3944 = vmul.f32 %v3930, 1.442695
    %v3945 = vpow.pop %v3944
    %v3946 = vmul.f32 %v3931, 1.442695
    %v3947 = vpow.pop %v3946
    %v3948 = vsel %vm143, %v3933, 0.0
    %3949 = vadd.xlane.f32.xlu0 %v3948
    %v3950 = vpop.xlane.xlu0 %3949
    %v3951 = vsel %vm143, %v3935, 0.0
    %3952 = vadd.xlane.f32.xlu0 %v3951
    %v3953 = vpop.xlane.xlu0 %3952
    %v3954 = vsel %vm143, %v3937, 0.0
    %3955 = vadd.xlane.f32.xlu0 %v3954
    %v3956 = vpop.xlane.xlu0 %3955
    %v3957 = vsel %vm143, %v3939, 0.0
    %3958 = vadd.xlane.f32.xlu0 %v3957
    %v3959 = vpop.xlane.xlu0 %3958
    %v3960 = vsel %vm143, %v3941, 0.0
    %3961 = vadd.xlane.f32.xlu0 %v3960
    %v3962 = vpop.xlane.xlu0 %3961
    %v3963 = vsel %vm143, %v3943, 0.0
    %3964 = vadd.xlane.f32.xlu0 %v3963
    %v3965 = vpop.xlane.xlu0 %3964
    %v3966 = vsel %vm143, %v3945, 0.0
    %3967 = vadd.xlane.f32.xlu0 %v3966
    %v3968 = vpop.xlane.xlu0 %3967
    %v3969 = vsel %vm143, %v3947, 0.0
    %3970 = vadd.xlane.f32.xlu0 %v3969
    %v3971 = vpop.xlane.xlu0 %3970
    %v3972 = vrcp.pop %v3950
    %v3973 = vrcp.pop %v3953
    %v3974 = vrcp.pop %v3956
    %v3975 = vrcp.pop %v3959
    %v3976 = vrcp.pop %v3962
    %v3977 = vrcp.pop %v3965
    %v3978 = vrcp.pop %v3968
    %v3979 = vrcp.pop %v3971
    %v3980 = vmul.f32 %v3933, %v3972
    %v3981 = vmul.f32 %v3935, %v3973
    %v3982 = vmul.f32 %v3937, %v3974
    %v3983 = vmul.f32 %v3939, %v3975
    %v3984 = vmul.f32 %v3941, %v3976
    %v3985 = vmul.f32 %v3943, %v3977
    %v3986 = vmul.f32 %v3945, %v3978
    %v3987 = vmul.f32 %v3947, %v3979
    %s3988 = scalar_lea.vmem %s17, 256
    %3989 = vst.msk [vmem:[%s3988] sm:$0xff] %vm143, %v3980
    %3990 = vst.msk [vmem:[%s3988 + $0x8] sm:$0xff] %vm143, %v3981
    %3991 = vst.msk [vmem:[%s3988 + $0x10] sm:$0xff] %vm143, %v3982
    %3992 = vst.msk [vmem:[%s3988 + $0x18] sm:$0xff] %vm143, %v3983
    %3993 = vst.msk [vmem:[%s3988 + $0x20] sm:$0xff] %vm143, %v3984
    %3994 = vst.msk [vmem:[%s3988 + $0x28] sm:$0xff] %vm143, %v3985
    %3995 = vst.msk [vmem:[%s3988 + $0x30] sm:$0xff] %vm143, %v3986
    %3996 = vst.msk [vmem:[%s3988 + $0x38] sm:$0xff] %vm143, %v3987
    %v3997 = vpack.c.bf16 %v3981, %v3980
    %v3998 = vpack.c.bf16 %v3983, %v3982
    %v3999 = vpack.c.bf16 %v3985, %v3984
    %v4000 = vpack.c.bf16 %v3987, %v3986
    %v4001 = vpack.c.bf16 %v3742, %v3738
    %v4002 = vpack.c.bf16 %v3752, %v3748
    %v4003 = vpack.c.bf16 %v3762, %v3758
    %v4004 = vpack.c.bf16 %v3772, %v3768
    %v4006 = vsel %vm143, %v3997, 0
    %v4009 = vsel %vm143, %v3998, 0
    %v4012 = vsel %vm143, %v3999, 0
    %v4015 = vsel %vm143, %v4000, 0
    %4017 = vmatprep.subr.bf16.mxu0 0
    %4018 = vmatpush1.bf16.msra.mxu0 %v4001
    %4019 = vmatprep.subr.bf16.mxu0 0
    %4020 = vmatpush1.bf16.msra.mxu0 %v4002
    %4021 = vmatprep.subr.bf16.mxu0 0
    %4022 = vmatpush1.bf16.msra.mxu0 %v4003
    %4023 = vmatprep.subr.bf16.mxu0 0
    %4024 = vmatpush1.bf16.msra.mxu0 %v4004
    %4025 = vmatprep.subr.bf16.mxu0 0
    %4026 = vmatpush1.bf16.msra.mxu0 0
    %4027 = vmatprep.subr.bf16.mxu0 0
    %4028 = vmatpush1.bf16.msra.mxu0 0
    %4029 = vmatprep.subr.bf16.mxu0 0
    %4030 = vmatpush1.bf16.msra.mxu0 0
    %4031 = vmatprep.subr.bf16.mxu0 0
    %4032 = vmatpush1.bf16.msra.mxu0 0
    %4033 = vmatprep.subr.bf16.mxu0 0
    %4034 = vmatpush1.bf16.msra.mxu0 0
    %4035 = vmatprep.subr.bf16.mxu0 0
    %4036 = vmatpush1.bf16.msra.mxu0 0
    %4037 = vmatprep.subr.bf16.mxu0 0
    %4038 = vmatpush1.bf16.msra.mxu0 0
    %4039 = vmatprep.subr.bf16.mxu0 0
    %4040 = vmatpush1.bf16.msra.mxu0 0
    %4041 = vmatprep.subr.bf16.mxu0 0
    %4042 = vmatpush1.bf16.msra.mxu0 0
    %4043 = vmatprep.subr.bf16.mxu0 0
    %4044 = vmatpush1.bf16.msra.mxu0 0
    %4045 = vmatprep.subr.bf16.mxu0 0
    %4046 = vmatpush1.bf16.msra.mxu0 0
    %4047 = vmatprep.subr.bf16.mxu0 0
    %4048 = vmatpush1.bf16.msra.mxu0 0
    %4049 = vmatprep.mubr.bf16.mxu0 0
    %4050 = vmatmul.mubr.bf16.gmra.mrb[0].mxu0 %v4006
    %v4051 = vpop.f32.mrb[0].mxu0
    %v4052 = vadd.f32 0.0, %v4051
    %v4053 = vpop.f32.mrb[0].mxu0
    %v4054 = vpop.f32.mrb[0].mxu0
    %v4055 = vadd.f32 0.0, %v4054
    %v4056 = vpop.f32.mrb[0].mxu0
    %4057 = vmatprep.mubr.bf16.mxu0 0
    %4058 = vmatmul.mubr.bf16.gmra.mrb[0].mxu0 %v4009
    %v4059 = vpop.f32.mrb[0].mxu0
    %v4060 = vadd.f32 0.0, %v4059
    %v4061 = vpop.f32.mrb[0].mxu0
    %v4062 = vpop.f32.mrb[0].mxu0
    %v4063 = vadd.f32 0.0, %v4062
    %v4064 = vpop.f32.mrb[0].mxu0
    %4065 = vmatprep.mubr.bf16.mxu0 0
    %4066 = vmatmul.mubr.bf16.gmra.mrb[0].mxu0 %v4012
    %v4067 = vpop.f32.mrb[0].mxu0
    %v4068 = vadd.f32 0.0, %v4067
    %v4069 = vpop.f32.mrb[0].mxu0
    %v4070 = vpop.f32.mrb[0].mxu0
    %v4071 = vadd.f32 0.0, %v4070
    %v4072 = vpop.f32.mrb[0].mxu0
    %4073 = vmatprep.mubr.bf16.mxu0 0
    %4074 = vmatmul.mubr.bf16.gmra.mrb[0].mxu0 %v4015
    %v4075 = vpop.f32.mrb[0].mxu0
    %v4076 = vadd.f32 0.0, %v4075
    %v4077 = vpop.f32.mrb[0].mxu0
    %v4078 = vpop.f32.mrb[0].mxu0
    %v4079 = vadd.f32 0.0, %v4078
    %v4080 = vpop.f32.mrb[0].mxu0
    %4081 = vdwg.mxu0
    %v4082 = vpack.c.bf16 %v4055, %v4052
    %v4083 = vpack.c.bf16 %v4063, %v4060
    %v4084 = vpack.c.bf16 %v4071, %v4068
    %v4085 = vpack.c.bf16 %v4079, %v4076
    %4090 = vrot.lane.b32.xlu0 %v3791, 96
    %v4091 = vpop.permute.xlu0 %4090
    %4092 = vrot.lane.b32.xlu0 %v3792, 96
    %v4093 = vpop.permute.xlu0 %4092
    %4094 = vrot.lane.b32.xlu0 %v3793, 96
    %v4095 = vpop.permute.xlu0 %4094
    %4096 = vrot.lane.b32.xlu0 %v3794, 96
    %v4097 = vpop.permute.xlu0 %4096
    %4098 = vrot.lane.b32.xlu0 %v3795, 32
    %v4099 = vpop.permute.xlu0 %4098
    %4100 = vrot.lane.b32.xlu0 %v3796, 32
    %v4101 = vpop.permute.xlu0 %4100
    %4102 = vrot.lane.b32.xlu0 %v3797, 32
    %v4103 = vpop.permute.xlu0 %4102
    %4104 = vrot.lane.b32.xlu0 %v3798, 32
    %v4105 = vpop.permute.xlu0 %4104
    %v4107 = vsel %vm474, %v4091, 0
    %v4110 = vsel %vm474, %v4093, 0
    %v4113 = vsel %vm474, %v4095, 0
    %v4116 = vsel %vm474, %v4097, 0
    %v4119 = vsel %vm474, %v4099, 0
    %v4122 = vsel %vm474, %v4101, 0
    %v4125 = vsel %vm474, %v4103, 0
    %v4128 = vsel %vm474, %v4105, 0
    %4130 = vmatprep.subr.bf16.mxu0 0
    %4131 = vmatpush1.bf16.xpose.msra.mxu0 %v4119
    %4132 = vmatprep.subr.bf16.mxu0 0
    %4133 = vmatpush1.bf16.xpose.msra.mxu0 %v4122
    %4134 = vmatprep.subr.bf16.mxu0 0
    %4135 = vmatpush1.bf16.xpose.msra.mxu0 %v4125
    %4136 = vmatprep.subr.bf16.mxu0 0
    %4137 = vmatpush1.bf16.xpose.msra.mxu0 %v4128
    %4138 = vmatprep.subr.bf16.mxu0 0
    %4139 = vmatpush1.bf16.xpose.msra.mxu0 0
    %4140 = vmatprep.subr.bf16.mxu0 0
    %4141 = vmatpush1.bf16.xpose.msra.mxu0 0
    %4142 = vmatprep.subr.bf16.mxu0 0
    %4143 = vmatpush1.bf16.xpose.msra.mxu0 0
    %4144 = vmatprep.subr.bf16.mxu0 0
    %4145 = vmatpush1.bf16.xpose.msra.mxu0 0
    %4146 = vmatprep.subr.bf16.mxu0 0
    %4147 = vmatpush1.bf16.xpose.msra.mxu0 0
    %4148 = vmatprep.subr.bf16.mxu0 0
    %4149 = vmatpush1.bf16.xpose.msra.mxu0 0
    %4150 = vmatprep.subr.bf16.mxu0 0
    %4151 = vmatpush1.bf16.xpose.msra.mxu0 0
    %4152 = vmatprep.subr.bf16.mxu0 0
    %4153 = vmatpush1.bf16.xpose.msra.mxu0 0
    %4154 = vmatprep.subr.bf16.mxu0 0
    %4155 = vmatpush1.bf16.xpose.msra.mxu0 0
    %4156 = vmatprep.subr.bf16.mxu0 0
    %4157 = vmatpush1.bf16.xpose.msra.mxu0 0
    %4158 = vmatprep.subr.bf16.mxu0 0
    %4159 = vmatpush1.bf16.xpose.msra.mxu0 0
    %4160 = vmatprep.subr.bf16.mxu0 0
    %4161 = vmatpush1.bf16.xpose.msra.mxu0 0
    %4162 = vmatprep.mubr.bf16.mxu0 0
    %4163 = vmatmul.mubr.bf16.gmra.mrb[0].mxu0 %v4107
    %v4164 = vpop.f32.mrb[0].mxu0
    %v4165 = vadd.f32 %v133, %v4164
    %v4166 = vpop.f32.mrb[0].mxu0
    %v4167 = vpop.f32.mrb[0].mxu0
    %v4168 = vadd.f32 %v134, %v4167
    %v4169 = vpop.f32.mrb[0].mxu0
    %4170 = vmatprep.mubr.bf16.mxu0 0
    %4171 = vmatmul.mubr.bf16.gmra.mrb[0].mxu0 %v4110
    %v4172 = vpop.f32.mrb[0].mxu0
    %v4173 = vadd.f32 %v135, %v4172
    %v4174 = vpop.f32.mrb[0].mxu0
    %v4175 = vpop.f32.mrb[0].mxu0
    %v4176 = vadd.f32 %v136, %v4175
    %v4177 = vpop.f32.mrb[0].mxu0
    %4178 = vmatprep.mubr.bf16.mxu0 0
    %4179 = vmatmul.mubr.bf16.gmra.mrb[0].mxu0 %v4113
    %v4180 = vpop.f32.mrb[0].mxu0
    %v4181 = vadd.f32 %v137, %v4180
    %v4182 = vpop.f32.mrb[0].mxu0
    %v4183 = vpop.f32.mrb[0].mxu0
    %v4184 = vadd.f32 %v138, %v4183
    %v4185 = vpop.f32.mrb[0].mxu0
    %4186 = vmatprep.mubr.bf16.mxu0 0
    %4187 = vmatmul.mubr.bf16.gmra.mrb[0].mxu0 %v4116
    %v4188 = vpop.f32.mrb[0].mxu0
    %v4189 = vadd.f32 %v139, %v4188
    %v4190 = vpop.f32.mrb[0].mxu0
    %v4191 = vpop.f32.mrb[0].mxu0
    %v4192 = vadd.f32 %v140, %v4191
    %v4193 = vpop.f32.mrb[0].mxu0
    %4194 = vdwg.mxu0
    %v4195 = vsel %vm143, %v4165, -inf
    %4196 = vmax.xlane.f32.xlu0 %v4195
    %v4197 = vpop.xlane.xlu0 %4196
    %v4198 = vsel %vm143, %v4168, -inf
    %4199 = vmax.xlane.f32.xlu0 %v4198
    %v4200 = vpop.xlane.xlu0 %4199
    %v4201 = vsel %vm143, %v4173, -inf
    %4202 = vmax.xlane.f32.xlu0 %v4201
    %v4203 = vpop.xlane.xlu0 %4202
    %v4204 = vsel %vm143, %v4176, -inf
    %4205 = vmax.xlane.f32.xlu0 %v4204
    %v4206 = vpop.xlane.xlu0 %4205
    %v4207 = vsel %vm143, %v4181, -inf
    %4208 = vmax.xlane.f32.xlu0 %v4207
    %v4209 = vpop.xlane.xlu0 %4208
    %v4210 = vsel %vm143, %v4184, -inf
    %4211 = vmax.xlane.f32.xlu0 %v4210
    %v4212 = vpop.xlane.xlu0 %4211
    %v4213 = vsel %vm143, %v4189, -inf
    %4214 = vmax.xlane.f32.xlu0 %v4213
    %v4215 = vpop.xlane.xlu0 %4214
    %v4216 = vsel %vm143, %v4192, -inf
    %4217 = vmax.xlane.f32.xlu0 %v4216
    %v4218 = vpop.xlane.xlu0 %4217
    %v4219 = vsub.f32 %v4165, %v4197
    %v4220 = vsub.f32 %v4168, %v4200
    %v4221 = vsub.f32 %v4173, %v4203
    %v4222 = vsub.f32 %v4176, %v4206
    %v4223 = vsub.f32 %v4181, %v4209
    %v4224 = vsub.f32 %v4184, %v4212
    %v4225 = vsub.f32 %v4189, %v4215
    %v4226 = vsub.f32 %v4192, %v4218
    %v4227 = vmul.f32 %v4219, 1.442695
    %v4228 = vpow.pop %v4227
    %v4229 = vmul.f32 %v4220, 1.442695
    %v4230 = vpow.pop %v4229
    %v4231 = vmul.f32 %v4221, 1.442695
    %v4232 = vpow.pop %v4231
    %v4233 = vmul.f32 %v4222, 1.442695
    %v4234 = vpow.pop %v4233
    %v4235 = vmul.f32 %v4223, 1.442695
    %v4236 = vpow.pop %v4235
    %v4237 = vmul.f32 %v4224, 1.442695
    %v4238 = vpow.pop %v4237
    %v4239 = vmul.f32 %v4225, 1.442695
    %v4240 = vpow.pop %v4239
    %v4241 = vmul.f32 %v4226, 1.442695
    %v4242 = vpow.pop %v4241
    %v4243 = vsel %vm143, %v4228, 0.0
    %4244 = vadd.xlane.f32.xlu0 %v4243
    %v4245 = vpop.xlane.xlu0 %4244
    %v4246 = vsel %vm143, %v4230, 0.0
    %4247 = vadd.xlane.f32.xlu0 %v4246
    %v4248 = vpop.xlane.xlu0 %4247
    %v4249 = vsel %vm143, %v4232, 0.0
    %4250 = vadd.xlane.f32.xlu0 %v4249
    %v4251 = vpop.xlane.xlu0 %4250
    %v4252 = vsel %vm143, %v4234, 0.0
    %4253 = vadd.xlane.f32.xlu0 %v4252
    %v4254 = vpop.xlane.xlu0 %4253
    %v4255 = vsel %vm143, %v4236, 0.0
    %4256 = vadd.xlane.f32.xlu0 %v4255
    %v4257 = vpop.xlane.xlu0 %4256
    %v4258 = vsel %vm143, %v4238, 0.0
    %4259 = vadd.xlane.f32.xlu0 %v4258
    %v4260 = vpop.xlane.xlu0 %4259
    %v4261 = vsel %vm143, %v4240, 0.0
    %4262 = vadd.xlane.f32.xlu0 %v4261
    %v4263 = vpop.xlane.xlu0 %4262
    %v4264 = vsel %vm143, %v4242, 0.0
    %4265 = vadd.xlane.f32.xlu0 %v4264
    %v4266 = vpop.xlane.xlu0 %4265
    %v4267 = vrcp.pop %v4245
    %v4268 = vrcp.pop %v4248
    %v4269 = vrcp.pop %v4251
    %v4270 = vrcp.pop %v4254
    %v4271 = vrcp.pop %v4257
    %v4272 = vrcp.pop %v4260
    %v4273 = vrcp.pop %v4263
    %v4274 = vrcp.pop %v4266
    %v4275 = vmul.f32 %v4228, %v4267
    %v4276 = vmul.f32 %v4230, %v4268
    %v4277 = vmul.f32 %v4232, %v4269
    %v4278 = vmul.f32 %v4234, %v4270
    %v4279 = vmul.f32 %v4236, %v4271
    %v4280 = vmul.f32 %v4238, %v4272
    %v4281 = vmul.f32 %v4240, %v4273
    %v4282 = vmul.f32 %v4242, %v4274
    %s4283 = scalar_lea.vmem %s17, 320
    %4284 = vst.msk [vmem:[%s4283] sm:$0xff] %vm143, %v4275
    %4285 = vst.msk [vmem:[%s4283 + $0x8] sm:$0xff] %vm143, %v4276
    %4286 = vst.msk [vmem:[%s4283 + $0x10] sm:$0xff] %vm143, %v4277
    %4287 = vst.msk [vmem:[%s4283 + $0x18] sm:$0xff] %vm143, %v4278
    %4288 = vst.msk [vmem:[%s4283 + $0x20] sm:$0xff] %vm143, %v4279
    %4289 = vst.msk [vmem:[%s4283 + $0x28] sm:$0xff] %vm143, %v4280
    %4290 = vst.msk [vmem:[%s4283 + $0x30] sm:$0xff] %vm143, %v4281
    %4291 = vst.msk [vmem:[%s4283 + $0x38] sm:$0xff] %vm143, %v4282
    %v4292 = vpack.c.bf16 %v4276, %v4275
    %v4293 = vpack.c.bf16 %v4278, %v4277
    %v4294 = vpack.c.bf16 %v4280, %v4279
    %v4295 = vpack.c.bf16 %v4282, %v4281
    %4300 = vrot.lane.b32.xlu0 %v4001, 96
    %v4301 = vpop.permute.xlu0 %4300
    %4302 = vrot.lane.b32.xlu0 %v4002, 96
    %v4303 = vpop.permute.xlu0 %4302
    %4304 = vrot.lane.b32.xlu0 %v4003, 96
    %v4305 = vpop.permute.xlu0 %4304
    %4306 = vrot.lane.b32.xlu0 %v4004, 96
    %v4307 = vpop.permute.xlu0 %4306
    %v4313 = vsel %vm143, %v4292, 0
    %v4316 = vsel %vm143, %v4293, 0
    %v4319 = vsel %vm143, %v4294, 0
    %v4322 = vsel %vm143, %v4295, 0
    %4324 = vmatprep.subr.bf16.mxu0 0
    %4325 = vmatpush1.bf16.msra.mxu0 %v4301
    %4326 = vmatprep.subr.bf16.mxu0 0
    %4327 = vmatpush1.bf16.msra.mxu0 %v4303
    %4328 = vmatprep.subr.bf16.mxu0 0
    %4329 = vmatpush1.bf16.msra.mxu0 %v4305
    %4330 = vmatprep.subr.bf16.mxu0 0
    %4331 = vmatpush1.bf16.msra.mxu0 %v4307
    %4332 = vmatprep.subr.bf16.mxu0 0
    %4333 = vmatpush1.bf16.msra.mxu0 0
    %4334 = vmatprep.subr.bf16.mxu0 0
    %4335 = vmatpush1.bf16.msra.mxu0 0
    %4336 = vmatprep.subr.bf16.mxu0 0
    %4337 = vmatpush1.bf16.msra.mxu0 0
    %4338 = vmatprep.subr.bf16.mxu0 0
    %4339 = vmatpush1.bf16.msra.mxu0 0
    %4340 = vmatprep.subr.bf16.mxu0 0
    %4341 = vmatpush1.bf16.msra.mxu0 0
    %4342 = vmatprep.subr.bf16.mxu0 0
    %4343 = vmatpush1.bf16.msra.mxu0 0
    %4344 = vmatprep.subr.bf16.mxu0 0
    %4345 = vmatpush1.bf16.msra.mxu0 0
    %4346 = vmatprep.subr.bf16.mxu0 0
    %4347 = vmatpush1.bf16.msra.mxu0 0
    %4348 = vmatprep.subr.bf16.mxu0 0
    %4349 = vmatpush1.bf16.msra.mxu0 0
    %4350 = vmatprep.subr.bf16.mxu0 0
    %4351 = vmatpush1.bf16.msra.mxu0 0
    %4352 = vmatprep.subr.bf16.mxu0 0
    %4353 = vmatpush1.bf16.msra.mxu0 0
    %4354 = vmatprep.subr.bf16.mxu0 0
    %4355 = vmatpush1.bf16.msra.mxu0 0
    %4356 = vmatprep.mubr.bf16.mxu0 0
    %4357 = vmatmul.mubr.bf16.gmra.mrb[0].mxu0 %v4313
    %v4358 = vpop.f32.mrb[0].mxu0
    %v4359 = vadd.f32 0.0, %v4358
    %v4360 = vpop.f32.mrb[0].mxu0
    %v4361 = vpop.f32.mrb[0].mxu0
    %v4362 = vadd.f32 0.0, %v4361
    %v4363 = vpop.f32.mrb[0].mxu0
    %4364 = vmatprep.mubr.bf16.mxu0 0
    %4365 = vmatmul.mubr.bf16.gmra.mrb[0].mxu0 %v4316
    %v4366 = vpop.f32.mrb[0].mxu0
    %v4367 = vadd.f32 0.0, %v4366
    %v4368 = vpop.f32.mrb[0].mxu0
    %v4369 = vpop.f32.mrb[0].mxu0
    %v4370 = vadd.f32 0.0, %v4369
    %v4371 = vpop.f32.mrb[0].mxu0
    %4372 = vmatprep.mubr.bf16.mxu0 0
    %4373 = vmatmul.mubr.bf16.gmra.mrb[0].mxu0 %v4319
    %v4374 = vpop.f32.mrb[0].mxu0
    %v4375 = vadd.f32 0.0, %v4374
    %v4376 = vpop.f32.mrb[0].mxu0
    %v4377 = vpop.f32.mrb[0].mxu0
    %v4378 = vadd.f32 0.0, %v4377
    %v4379 = vpop.f32.mrb[0].mxu0
    %4380 = vmatprep.mubr.bf16.mxu0 0
    %4381 = vmatmul.mubr.bf16.gmra.mrb[0].mxu0 %v4322
    %v4382 = vpop.f32.mrb[0].mxu0
    %v4383 = vadd.f32 0.0, %v4382
    %v4384 = vpop.f32.mrb[0].mxu0
    %v4385 = vpop.f32.mrb[0].mxu0
    %v4386 = vadd.f32 0.0, %v4385
    %v4387 = vpop.f32.mrb[0].mxu0
    %4388 = vdwg.mxu0
    %v4389 = vpack.c.bf16 %v4362, %v4359
    %v4390 = vpack.c.bf16 %v4370, %v4367
    %v4391 = vpack.c.bf16 %v4378, %v4375
    %v4392 = vpack.c.bf16 %v4386, %v4383
    %v4397 = vunpack.c.l.b16 %v3779
    %v4398 = vunpack.c.l.b16 %v3780
    %v4399 = vunpack.c.l.b16 %v3781
    %v4400 = vunpack.c.l.b16 %v3782
    %v4401 = vpack.c.b16 %v4398, %v4397
    %v4402 = vpack.c.b16 %v4400, %v4399
    %v4406 = vsel %vm474, %v4389, 0
    %v4409 = vsel %vm474, %v4390, 0
    %v4412 = vsel %vm474, %v4391, 0
    %v4415 = vsel %vm474, %v4392, 0
    %4417 = vmatprep.subr.bf16.mxu0 0
    %4418 = vmatpush1.bf16.msra.mxu0 %v4401
    %4419 = vmatprep.subr.bf16.mxu0 0
    %4420 = vmatpush1.bf16.msra.mxu0 %v4402
    %4421 = vmatprep.subr.bf16.mxu0 0
    %4422 = vmatpush1.bf16.msra.mxu0 0
    %4423 = vmatprep.subr.bf16.mxu0 0
    %4424 = vmatpush1.bf16.msra.mxu0 0
    %4425 = vmatprep.subr.bf16.mxu0 0
    %4426 = vmatpush1.bf16.msra.mxu0 0
    %4427 = vmatprep.subr.bf16.mxu0 0
    %4428 = vmatpush1.bf16.msra.mxu0 0
    %4429 = vmatprep.subr.bf16.mxu0 0
    %4430 = vmatpush1.bf16.msra.mxu0 0
    %4431 = vmatprep.subr.bf16.mxu0 0
    %4432 = vmatpush1.bf16.msra.mxu0 0
    %4433 = vmatprep.subr.bf16.mxu0 0
    %4434 = vmatpush1.bf16.msra.mxu0 0
    %4435 = vmatprep.subr.bf16.mxu0 0
    %4436 = vmatpush1.bf16.msra.mxu0 0
    %4437 = vmatprep.subr.bf16.mxu0 0
    %4438 = vmatpush1.bf16.msra.mxu0 0
    %4439 = vmatprep.subr.bf16.mxu0 0
    %4440 = vmatpush1.bf16.msra.mxu0 0
    %4441 = vmatprep.subr.bf16.mxu0 0
    %4442 = vmatpush1.bf16.msra.mxu0 0
    %4443 = vmatprep.subr.bf16.mxu0 0
    %4444 = vmatpush1.bf16.msra.mxu0 0
    %4445 = vmatprep.subr.bf16.mxu0 0
    %4446 = vmatpush1.bf16.msra.mxu0 0
    %4447 = vmatprep.subr.bf16.mxu0 0
    %4448 = vmatpush1.bf16.msra.mxu0 0
    %4449 = vmatprep.mubr.bf16.mxu0 0
    %4450 = vmatmul.mubr.bf16.gmra.mrb[0].mxu0 %v4406
    %v4451 = vpop.f32.mrb[0].mxu0
    %v4452 = vadd.f32 0.0, %v4451
    %v4453 = vpop.f32.mrb[0].mxu0
    %v4454 = vpop.f32.mrb[0].mxu0
    %v4455 = vadd.f32 0.0, %v4454
    %v4456 = vpop.f32.mrb[0].mxu0
    %4457 = vmatprep.mubr.bf16.mxu0 0
    %4458 = vmatmul.mubr.bf16.gmra.mrb[0].mxu0 %v4409
    %v4459 = vpop.f32.mrb[0].mxu0
    %v4460 = vadd.f32 0.0, %v4459
    %v4461 = vpop.f32.mrb[0].mxu0
    %v4462 = vpop.f32.mrb[0].mxu0
    %v4463 = vadd.f32 0.0, %v4462
    %v4464 = vpop.f32.mrb[0].mxu0
    %4465 = vmatprep.mubr.bf16.mxu0 0
    %4466 = vmatmul.mubr.bf16.gmra.mrb[0].mxu0 %v4412
    %v4467 = vpop.f32.mrb[0].mxu0
    %v4468 = vadd.f32 0.0, %v4467
    %v4469 = vpop.f32.mrb[0].mxu0
    %v4470 = vpop.f32.mrb[0].mxu0
    %v4471 = vadd.f32 0.0, %v4470
    %v4472 = vpop.f32.mrb[0].mxu0
    %4473 = vmatprep.mubr.bf16.mxu0 0
    %4474 = vmatmul.mubr.bf16.gmra.mrb[0].mxu0 %v4415
    %v4475 = vpop.f32.mrb[0].mxu0
    %v4476 = vadd.f32 0.0, %v4475
    %v4477 = vpop.f32.mrb[0].mxu0
    %v4478 = vpop.f32.mrb[0].mxu0
    %v4479 = vadd.f32 0.0, %v4478
    %v4480 = vpop.f32.mrb[0].mxu0
    %4481 = vdwg.mxu0
    %v4486 = vunpack.c.l.b16 %v3775
    %v4487 = vunpack.c.l.b16 %v3776
    %v4488 = vunpack.c.l.b16 %v3777
    %v4489 = vunpack.c.l.b16 %v3778
    %v4490 = vpack.c.b16 %v4487, %v4486
    %v4491 = vpack.c.b16 %v4489, %v4488
    %v4495 = vsel %vm474, %v4082, 0
    %v4498 = vsel %vm474, %v4083, 0
    %v4501 = vsel %vm474, %v4084, 0
    %v4504 = vsel %vm474, %v4085, 0
    %4506 = vmatprep.subr.bf16.mxu0 0
    %4507 = vmatpush1.bf16.msra.mxu0 %v4490
    %4508 = vmatprep.subr.bf16.mxu0 0
    %4509 = vmatpush1.bf16.msra.mxu0 %v4491
    %4510 = vmatprep.subr.bf16.mxu0 0
    %4511 = vmatpush1.bf16.msra.mxu0 0
    %4512 = vmatprep.subr.bf16.mxu0 0
    %4513 = vmatpush1.bf16.msra.mxu0 0
    %4514 = vmatprep.subr.bf16.mxu0 0
    %4515 = vmatpush1.bf16.msra.mxu0 0
    %4516 = vmatprep.subr.bf16.mxu0 0
    %4517 = vmatpush1.bf16.msra.mxu0 0
    %4518 = vmatprep.subr.bf16.mxu0 0
    %4519 = vmatpush1.bf16.msra.mxu0 0
    %4520 = vmatprep.subr.bf16.mxu0 0
    %4521 = vmatpush1.bf16.msra.mxu0 0
    %4522 = vmatprep.subr.bf16.mxu0 0
    %4523 = vmatpush1.bf16.msra.mxu0 0
    %4524 = vmatprep.subr.bf16.mxu0 0
    %4525 = vmatpush1.bf16.msra.mxu0 0
    %4526 = vmatprep.subr.bf16.mxu0 0
    %4527 = vmatpush1.bf16.msra.mxu0 0
    %4528 = vmatprep.subr.bf16.mxu0 0
    %4529 = vmatpush1.bf16.msra.mxu0 0
    %4530 = vmatprep.subr.bf16.mxu0 0
    %4531 = vmatpush1.bf16.msra.mxu0 0
    %4532 = vmatprep.subr.bf16.mxu0 0
    %4533 = vmatpush1.bf16.msra.mxu0 0
    %4534 = vmatprep.subr.bf16.mxu0 0
    %4535 = vmatpush1.bf16.msra.mxu0 0
    %4536 = vmatprep.subr.bf16.mxu0 0
    %4537 = vmatpush1.bf16.msra.mxu0 0
    %4538 = vmatprep.mubr.bf16.mxu0 0
    %4539 = vmatmul.mubr.bf16.gmra.mrb[0].mxu0 %v4495
    %v4540 = vpop.f32.mrb[0].mxu0
    %v4541 = vadd.f32 %v4452, %v4540
    %v4542 = vpop.f32.mrb[0].mxu0
    %v4543 = vpop.f32.mrb[0].mxu0
    %v4544 = vadd.f32 %v4455, %v4543
    %v4545 = vpop.f32.mrb[0].mxu0
    %4546 = vmatprep.mubr.bf16.mxu0 0
    %4547 = vmatmul.mubr.bf16.gmra.mrb[0].mxu0 %v4498
    %v4548 = vpop.f32.mrb[0].mxu0
    %v4549 = vadd.f32 %v4460, %v4548
    %v4550 = vpop.f32.mrb[0].mxu0
    %v4551 = vpop.f32.mrb[0].mxu0
    %v4552 = vadd.f32 %v4463, %v4551
    %v4553 = vpop.f32.mrb[0].mxu0
    %4554 = vmatprep.mubr.bf16.mxu0 0
    %4555 = vmatmul.mubr.bf16.gmra.mrb[0].mxu0 %v4501
    %v4556 = vpop.f32.mrb[0].mxu0
    %v4557 = vadd.f32 %v4468, %v4556
    %v4558 = vpop.f32.mrb[0].mxu0
    %v4559 = vpop.f32.mrb[0].mxu0
    %v4560 = vadd.f32 %v4471, %v4559
    %v4561 = vpop.f32.mrb[0].mxu0
    %4562 = vmatprep.mubr.bf16.mxu0 0
    %4563 = vmatmul.mubr.bf16.gmra.mrb[0].mxu0 %v4504
    %v4564 = vpop.f32.mrb[0].mxu0
    %v4565 = vadd.f32 %v4476, %v4564
    %v4566 = vpop.f32.mrb[0].mxu0
    %v4567 = vpop.f32.mrb[0].mxu0
    %v4568 = vadd.f32 %v4479, %v4567
    %v4569 = vpop.f32.mrb[0].mxu0
    %4570 = vdwg.mxu0
    %v4571 = vadd.f32 %v3468, %v4541
    %v4572 = vadd.f32 %v3469, %v4544
    %v4573 = vadd.f32 %v3470, %v4549
    %v4574 = vadd.f32 %v3471, %v4552
    %v4575 = vadd.f32 %v3472, %v4557
    %v4576 = vadd.f32 %v3473, %v4560
    %v4577 = vadd.f32 %v3474, %v4565
    %v4578 = vadd.f32 %v3475, %v4568
    %s4579 = scalar_lea.vmem %s5, 2
    %v4580 = vld [vmem:[%s4579] sm:$0x1]
    %v4582 = vlaneseq
    %v4583 = vshrl.u32 %v4582, 7
    %v4584 = vsub.s32 0, %v4583
    %v4585 = vrot.slane %v4580, %v4584
    %v4587 = vadd.f32 %v4571, %v4585
    %v4588 = vadd.f32 %v4572, %v4585
    %v4589 = vadd.f32 %v4573, %v4585
    %v4590 = vadd.f32 %v4574, %v4585
    %v4591 = vadd.f32 %v4575, %v4585
    %v4592 = vadd.f32 %v4576, %v4585
    %v4593 = vadd.f32 %v4577, %v4585
    %v4594 = vadd.f32 %v4578, %v4585
    %s4595 = scalar_lea.vmem %s6, 2
    %v4596 = vld [vmem:[%s4595] sm:$0x1]
    %s4597 = scalar_lea.vmem %s7, 2
    %v4598 = vld [vmem:[%s4597] sm:$0x1]
    %v4599 = vsel %vm143, %v4587, 0.0
    %4600 = vadd.xlane.f32.xlu0 %v4599
    %v4601 = vpop.xlane.xlu0 %4600
    %v4602 = vsel %vm143, %v4588, 0.0
    %4603 = vadd.xlane.f32.xlu0 %v4602
    %v4604 = vpop.xlane.xlu0 %4603
    %v4605 = vsel %vm143, %v4589, 0.0
    %4606 = vadd.xlane.f32.xlu0 %v4605
    %v4607 = vpop.xlane.xlu0 %4606
    %v4608 = vsel %vm143, %v4590, 0.0
    %4609 = vadd.xlane.f32.xlu0 %v4608
    %v4610 = vpop.xlane.xlu0 %4609
    %v4611 = vsel %vm143, %v4591, 0.0
    %4612 = vadd.xlane.f32.xlu0 %v4611
    %v4613 = vpop.xlane.xlu0 %4612
    %v4614 = vsel %vm143, %v4592, 0.0
    %4615 = vadd.xlane.f32.xlu0 %v4614
    %v4616 = vpop.xlane.xlu0 %4615
    %v4617 = vsel %vm143, %v4593, 0.0
    %4618 = vadd.xlane.f32.xlu0 %v4617
    %v4619 = vpop.xlane.xlu0 %4618
    %v4620 = vsel %vm143, %v4594, 0.0
    %4621 = vadd.xlane.f32.xlu0 %v4620
    %v4622 = vpop.xlane.xlu0 %4621
    %v4623 = vmul.f32 %v4601, %v168
    %v4624 = vmul.f32 %v4604, %v168
    %v4625 = vmul.f32 %v4607, %v168
    %v4626 = vmul.f32 %v4610, %v168
    %v4627 = vmul.f32 %v4613, %v168
    %v4628 = vmul.f32 %v4616, %v168
    %v4629 = vmul.f32 %v4619, %v168
    %v4630 = vmul.f32 %v4622, %v168
    %v4631 = vmul.f32 %v4587, %v4587
    %v4632 = vmul.f32 %v4588, %v4588
    %v4633 = vmul.f32 %v4589, %v4589
    %v4634 = vmul.f32 %v4590, %v4590
    %v4635 = vmul.f32 %v4591, %v4591
    %v4636 = vmul.f32 %v4592, %v4592
    %v4637 = vmul.f32 %v4593, %v4593
    %v4638 = vmul.f32 %v4594, %v4594
    %v4639 = vsel %vm143, %v4631, 0.0
    %4640 = vadd.xlane.f32.xlu0 %v4639
    %v4641 = vpop.xlane.xlu0 %4640
    %v4642 = vsel %vm143, %v4632, 0.0
    %4643 = vadd.xlane.f32.xlu0 %v4642
    %v4644 = vpop.xlane.xlu0 %4643
    %v4645 = vsel %vm143, %v4633, 0.0
    %4646 = vadd.xlane.f32.xlu0 %v4645
    %v4647 = vpop.xlane.xlu0 %4646
    %v4648 = vsel %vm143, %v4634, 0.0
    %4649 = vadd.xlane.f32.xlu0 %v4648
    %v4650 = vpop.xlane.xlu0 %4649
    %v4651 = vsel %vm143, %v4635, 0.0
    %4652 = vadd.xlane.f32.xlu0 %v4651
    %v4653 = vpop.xlane.xlu0 %4652
    %v4654 = vsel %vm143, %v4636, 0.0
    %4655 = vadd.xlane.f32.xlu0 %v4654
    %v4656 = vpop.xlane.xlu0 %4655
    %v4657 = vsel %vm143, %v4637, 0.0
    %4658 = vadd.xlane.f32.xlu0 %v4657
    %v4659 = vpop.xlane.xlu0 %4658
    %v4660 = vsel %vm143, %v4638, 0.0
    %4661 = vadd.xlane.f32.xlu0 %v4660
    %v4662 = vpop.xlane.xlu0 %4661
    %v4663 = vmul.f32 %v4641, %v168
    %v4664 = vmul.f32 %v4644, %v168
    %v4665 = vmul.f32 %v4647, %v168
    %v4666 = vmul.f32 %v4650, %v168
    %v4667 = vmul.f32 %v4653, %v168
    %v4668 = vmul.f32 %v4656, %v168
    %v4669 = vmul.f32 %v4659, %v168
    %v4670 = vmul.f32 %v4662, %v168
    %v4671 = vmul.f32 %v4623, %v4623
    %v4672 = vmul.f32 %v4624, %v4624
    %v4673 = vmul.f32 %v4625, %v4625
    %v4674 = vmul.f32 %v4626, %v4626
    %v4675 = vmul.f32 %v4627, %v4627
    %v4676 = vmul.f32 %v4628, %v4628
    %v4677 = vmul.f32 %v4629, %v4629
    %v4678 = vmul.f32 %v4630, %v4630
    %v4679 = vsub.f32 %v4663, %v4671
    %v4680 = vsub.f32 %v4664, %v4672
    %v4681 = vsub.f32 %v4665, %v4673
    %v4682 = vsub.f32 %v4666, %v4674
    %v4683 = vsub.f32 %v4667, %v4675
    %v4684 = vsub.f32 %v4668, %v4676
    %v4685 = vsub.f32 %v4669, %v4677
    %v4686 = vsub.f32 %v4670, %v4678
    %v4687 = vadd.f32 %v4679, 1e-05
    %v4688 = vadd.f32 %v4680, 1e-05
    %v4689 = vadd.f32 %v4681, 1e-05
    %v4690 = vadd.f32 %v4682, 1e-05
    %v4691 = vadd.f32 %v4683, 1e-05
    %v4692 = vadd.f32 %v4684, 1e-05
    %v4693 = vadd.f32 %v4685, 1e-05
    %v4694 = vadd.f32 %v4686, 1e-05
    %v4695 = vrsqrt.pop %v4687
    %v4696 = vrsqrt.pop %v4688
    %v4697 = vrsqrt.pop %v4689
    %v4698 = vrsqrt.pop %v4690
    %v4699 = vrsqrt.pop %v4691
    %v4700 = vrsqrt.pop %v4692
    %v4701 = vrsqrt.pop %v4693
    %v4702 = vrsqrt.pop %v4694
    %v4704 = vlaneseq
    %v4705 = vshrl.u32 %v4704, 7
    %v4706 = vsub.s32 0, %v4705
    %v4707 = vrot.slane %v4596, %v4706
    %v4709 = vmul.f32 %v4695, %v4707
    %v4710 = vmul.f32 %v4696, %v4707
    %v4711 = vmul.f32 %v4697, %v4707
    %v4712 = vmul.f32 %v4698, %v4707
    %v4713 = vmul.f32 %v4699, %v4707
    %v4714 = vmul.f32 %v4700, %v4707
    %v4715 = vmul.f32 %v4701, %v4707
    %v4716 = vmul.f32 %v4702, %v4707
    %v4717 = vmul.f32 %v4587, %v4709
    %v4718 = vmul.f32 %v4588, %v4710
    %v4719 = vmul.f32 %v4589, %v4711
    %v4720 = vmul.f32 %v4590, %v4712
    %v4721 = vmul.f32 %v4591, %v4713
    %v4722 = vmul.f32 %v4592, %v4714
    %v4723 = vmul.f32 %v4593, %v4715
    %v4724 = vmul.f32 %v4594, %v4716
    %v4725 = vmul.f32 %v4623, %v4709
    %v4726 = vmul.f32 %v4624, %v4710
    %v4727 = vmul.f32 %v4625, %v4711
    %v4728 = vmul.f32 %v4626, %v4712
    %v4729 = vmul.f32 %v4627, %v4713
    %v4730 = vmul.f32 %v4628, %v4714
    %v4731 = vmul.f32 %v4629, %v4715
    %v4732 = vmul.f32 %v4630, %v4716
    %v4734 = vlaneseq
    %v4735 = vshrl.u32 %v4734, 7
    %v4736 = vsub.s32 0, %v4735
    %v4737 = vrot.slane %v4598, %v4736
    %v4739 = vsub.f32 %v4737, %v4725
    %v4740 = vsub.f32 %v4737, %v4726
    %v4741 = vsub.f32 %v4737, %v4727
    %v4742 = vsub.f32 %v4737, %v4728
    %v4743 = vsub.f32 %v4737, %v4729
    %v4744 = vsub.f32 %v4737, %v4730
    %v4745 = vsub.f32 %v4737, %v4731
    %v4746 = vsub.f32 %v4737, %v4732
    %v4747 = vadd.f32 %v4717, %v4739
    %v4748 = vadd.f32 %v4718, %v4740
    %v4749 = vadd.f32 %v4719, %v4741
    %v4750 = vadd.f32 %v4720, %v4742
    %v4751 = vadd.f32 %v4721, %v4743
    %v4752 = vadd.f32 %v4722, %v4744
    %v4753 = vadd.f32 %v4723, %v4745
    %v4754 = vadd.f32 %v4724, %v4746
    %v4755 = vpack.c.bf16 %v4748, %v4747
    %v4756 = vpack.c.bf16 %v4750, %v4749
    %v4757 = vpack.c.bf16 %v4752, %v4751
    %v4758 = vpack.c.bf16 %v4754, %v4753
    %s4759 = scalar_lea.vmem %s8, 128
    %v4760 = vld [vmem:[%s4759] sm:$0xff]
    %v4761 = vld [vmem:[%s4759 + $0x8] sm:$0xff]
    %v4762 = vld [vmem:[%s4759 + $0x10] sm:$0xff]
    %v4763 = vld [vmem:[%s4759 + $0x18] sm:$0xff]
    %v4764 = vld [vmem:[%s4759 + $0x20] sm:$0xff]
    %v4765 = vld [vmem:[%s4759 + $0x28] sm:$0xff]
    %v4766 = vld [vmem:[%s4759 + $0x30] sm:$0xff]
    %v4767 = vld [vmem:[%s4759 + $0x38] sm:$0xff]
    %s4768 = scalar_lea.vmem %s9, 4
    %v4769 = vld [vmem:[%s4768] sm:$0x3]
    %v4771 = vlaneseq
    %v4772 = vshrl.u32 %v4771, 7
    %v4773 = vsub.s32 0, %v4772
    %v4774 = vrot.slane %v4769, %v4773
    %v4775 = vlaneseq
    %v4776 = vshrl.u32 %v4775, 7
    %v4777 = vsub.s32 1, %v4776
    %v4778 = vrot.slane %v4769, %v4777
    %v4789 = vunpack.c.l.b16 %v4760
    %v4790 = vunpack.c.h.b16 %v4760
    %v4791 = vunpack.c.l.b16 %v4761
    %v4792 = vunpack.c.h.b16 %v4761
    %v4793 = vunpack.c.l.b16 %v4762
    %v4794 = vunpack.c.h.b16 %v4762
    %v4795 = vunpack.c.l.b16 %v4763
    %v4796 = vunpack.c.h.b16 %v4763
    %v4797 = vunpack.c.l.b16 %v4764
    %v4798 = vunpack.c.h.b16 %v4764
    %v4799 = vunpack.c.l.b16 %v4765
    %v4800 = vunpack.c.h.b16 %v4765
    %v4801 = vunpack.c.l.b16 %v4766
    %v4802 = vunpack.c.h.b16 %v4766
    %v4803 = vunpack.c.l.b16 %v4767
    %v4804 = vunpack.c.h.b16 %v4767
    %v4805 = vpack.c.b16 %v4791, %v4789
    %v4806 = vpack.c.b16 %v4792, %v4790
    %v4807 = vpack.c.b16 %v4795, %v4793
    %v4808 = vpack.c.b16 %v4796, %v4794
    %v4809 = vpack.c.b16 %v4799, %v4797
    %v4810 = vpack.c.b16 %v4800, %v4798
    %v4811 = vpack.c.b16 %v4803, %v4801
    %v4812 = vpack.c.b16 %v4804, %v4802
    %v4822 = vsel %vm143, %v4755, 0
    %v4825 = vsel %vm143, %v4756, 0
    %v4828 = vsel %vm143, %v4757, 0
    %v4831 = vsel %vm143, %v4758, 0
    %4833 = vmatprep.subr.bf16.mxu0 %v4806
    %4834 = vmatpush1.bf16.msra.mxu0 %v4805
    %4835 = vmatprep.subr.bf16.mxu0 %v4808
    %4836 = vmatpush1.bf16.msra.mxu0 %v4807
    %4837 = vmatprep.subr.bf16.mxu0 %v4810
    %4838 = vmatpush1.bf16.msra.mxu0 %v4809
    %4839 = vmatprep.subr.bf16.mxu0 %v4812
    %4840 = vmatpush1.bf16.msra.mxu0 %v4811
    %4841 = vmatprep.subr.bf16.mxu0 0
    %4842 = vmatpush1.bf16.msra.mxu0 0
    %4843 = vmatprep.subr.bf16.mxu0 0
    %4844 = vmatpush1.bf16.msra.mxu0 0
    %4845 = vmatprep.subr.bf16.mxu0 0
    %4846 = vmatpush1.bf16.msra.mxu0 0
    %4847 = vmatprep.subr.bf16.mxu0 0
    %4848 = vmatpush1.bf16.msra.mxu0 0
    %4849 = vmatprep.subr.bf16.mxu0 0
    %4850 = vmatpush1.bf16.msra.mxu0 0
    %4851 = vmatprep.subr.bf16.mxu0 0
    %4852 = vmatpush1.bf16.msra.mxu0 0
    %4853 = vmatprep.subr.bf16.mxu0 0
    %4854 = vmatpush1.bf16.msra.mxu0 0
    %4855 = vmatprep.subr.bf16.mxu0 0
    %4856 = vmatpush1.bf16.msra.mxu0 0
    %4857 = vmatprep.subr.bf16.mxu0 0
    %4858 = vmatpush1.bf16.msra.mxu0 0
    %4859 = vmatprep.subr.bf16.mxu0 0
    %4860 = vmatpush1.bf16.msra.mxu0 0
    %4861 = vmatprep.subr.bf16.mxu0 0
    %4862 = vmatpush1.bf16.msra.mxu0 0
    %4863 = vmatprep.subr.bf16.mxu0 0
    %4864 = vmatpush1.bf16.msra.mxu0 0
    %4865 = vmatprep.mubr.bf16.mxu0 0
    %4866 = vmatmul.mubr.bf16.gmra.mrb[0].mxu0 %v4822
    %v4867 = vpop.f32.mrb[0].mxu0
    %v4868 = vadd.f32 %v4774, %v4867
    %v4869 = vpop.f32.mrb[0].mxu0
    %v4870 = vadd.f32 %v4778, %v4869
    %v4871 = vpop.f32.mrb[0].mxu0
    %v4872 = vadd.f32 %v4774, %v4871
    %v4873 = vpop.f32.mrb[0].mxu0
    %v4874 = vadd.f32 %v4778, %v4873
    %4875 = vmatprep.mubr.bf16.mxu0 0
    %4876 = vmatmul.mubr.bf16.gmra.mrb[0].mxu0 %v4825
    %v4877 = vpop.f32.mrb[0].mxu0
    %v4878 = vadd.f32 %v4774, %v4877
    %v4879 = vpop.f32.mrb[0].mxu0
    %v4880 = vadd.f32 %v4778, %v4879
    %v4881 = vpop.f32.mrb[0].mxu0
    %v4882 = vadd.f32 %v4774, %v4881
    %v4883 = vpop.f32.mrb[0].mxu0
    %v4884 = vadd.f32 %v4778, %v4883
    %4885 = vmatprep.mubr.bf16.mxu0 0
    %4886 = vmatmul.mubr.bf16.gmra.mrb[0].mxu0 %v4828
    %v4887 = vpop.f32.mrb[0].mxu0
    %v4888 = vadd.f32 %v4774, %v4887
    %v4889 = vpop.f32.mrb[0].mxu0
    %v4890 = vadd.f32 %v4778, %v4889
    %v4891 = vpop.f32.mrb[0].mxu0
    %v4892 = vadd.f32 %v4774, %v4891
    %v4893 = vpop.f32.mrb[0].mxu0
    %v4894 = vadd.f32 %v4778, %v4893
    %4895 = vmatprep.mubr.bf16.mxu0 0
    %4896 = vmatmul.mubr.bf16.gmra.mrb[0].mxu0 %v4831
    %v4897 = vpop.f32.mrb[0].mxu0
    %v4898 = vadd.f32 %v4774, %v4897
    %v4899 = vpop.f32.mrb[0].mxu0
    %v4900 = vadd.f32 %v4778, %v4899
    %v4901 = vpop.f32.mrb[0].mxu0
    %v4902 = vadd.f32 %v4774, %v4901
    %v4903 = vpop.f32.mrb[0].mxu0
    %v4904 = vadd.f32 %v4778, %v4903
    %4905 = vdwg.mxu0
    %v4906 = vmax.f32 %v4868, 0.0
    %v4907 = vmax.f32 %v4870, 0.0
    %v4908 = vmax.f32 %v4872, 0.0
    %v4909 = vmax.f32 %v4874, 0.0
    %v4910 = vmax.f32 %v4878, 0.0
    %v4911 = vmax.f32 %v4880, 0.0
    %v4912 = vmax.f32 %v4882, 0.0
    %v4913 = vmax.f32 %v4884, 0.0
    %v4914 = vmax.f32 %v4888, 0.0
    %v4915 = vmax.f32 %v4890, 0.0
    %v4916 = vmax.f32 %v4892, 0.0
    %v4917 = vmax.f32 %v4894, 0.0
    %v4918 = vmax.f32 %v4898, 0.0
    %v4919 = vmax.f32 %v4900, 0.0
    %v4920 = vmax.f32 %v4902, 0.0
    %v4921 = vmax.f32 %v4904, 0.0
    %v4922 = vpack.c.bf16 %v4908, %v4906
    %v4923 = vpack.c.bf16 %v4909, %v4907
    %v4924 = vpack.c.bf16 %v4912, %v4910
    %v4925 = vpack.c.bf16 %v4913, %v4911
    %v4926 = vpack.c.bf16 %v4916, %v4914
    %v4927 = vpack.c.bf16 %v4917, %v4915
    %v4928 = vpack.c.bf16 %v4920, %v4918
    %v4929 = vpack.c.bf16 %v4921, %v4919
    %s4930 = scalar_lea.vmem %s10, 256
    %v4931 = vld [vmem:[%s4930] sm:$0xf]
    %v4932 = vld [vmem:[%s4930 + $0x4] sm:$0xf]
    %v4933 = vld [vmem:[%s4930 + $0x8] sm:$0xf]
    %v4934 = vld [vmem:[%s4930 + $0xc] sm:$0xf]
    %v4935 = vld [vmem:[%s4930 + $0x10] sm:$0xf]
    %v4936 = vld [vmem:[%s4930 + $0x14] sm:$0xf]
    %v4937 = vld [vmem:[%s4930 + $0x18] sm:$0xf]
    %v4938 = vld [vmem:[%s4930 + $0x1c] sm:$0xf]
    %v4939 = vld [vmem:[%s4930 + $0x20] sm:$0xf]
    %v4940 = vld [vmem:[%s4930 + $0x24] sm:$0xf]
    %v4941 = vld [vmem:[%s4930 + $0x28] sm:$0xf]
    %v4942 = vld [vmem:[%s4930 + $0x2c] sm:$0xf]
    %v4943 = vld [vmem:[%s4930 + $0x30] sm:$0xf]
    %v4944 = vld [vmem:[%s4930 + $0x34] sm:$0xf]
    %v4945 = vld [vmem:[%s4930 + $0x38] sm:$0xf]
    %v4946 = vld [vmem:[%s4930 + $0x3c] sm:$0xf]
    %v4947 = vld [vmem:[%s4930 + $0x40] sm:$0xf]
    %v4948 = vld [vmem:[%s4930 + $0x44] sm:$0xf]
    %v4949 = vld [vmem:[%s4930 + $0x48] sm:$0xf]
    %v4950 = vld [vmem:[%s4930 + $0x4c] sm:$0xf]
    %v4951 = vld [vmem:[%s4930 + $0x50] sm:$0xf]
    %v4952 = vld [vmem:[%s4930 + $0x54] sm:$0xf]
    %v4953 = vld [vmem:[%s4930 + $0x58] sm:$0xf]
    %v4954 = vld [vmem:[%s4930 + $0x5c] sm:$0xf]
    %v4955 = vld [vmem:[%s4930 + $0x60] sm:$0xf]
    %v4956 = vld [vmem:[%s4930 + $0x64] sm:$0xf]
    %v4957 = vld [vmem:[%s4930 + $0x68] sm:$0xf]
    %v4958 = vld [vmem:[%s4930 + $0x6c] sm:$0xf]
    %v4959 = vld [vmem:[%s4930 + $0x70] sm:$0xf]
    %v4960 = vld [vmem:[%s4930 + $0x74] sm:$0xf]
    %v4961 = vld [vmem:[%s4930 + $0x78] sm:$0xf]
    %v4962 = vld [vmem:[%s4930 + $0x7c] sm:$0xf]
    %v4995 = vunpack.c.l.b16 %v4931
    %v4996 = vunpack.c.l.b16 %v4932
    %v4997 = vunpack.c.l.b16 %v4933
    %v4998 = vunpack.c.l.b16 %v4934
    %v4999 = vunpack.c.l.b16 %v4935
    %v5000 = vunpack.c.l.b16 %v4936
    %v5001 = vunpack.c.l.b16 %v4937
    %v5002 = vunpack.c.l.b16 %v4938
    %v5003 = vunpack.c.l.b16 %v4939
    %v5004 = vunpack.c.l.b16 %v4940
    %v5005 = vunpack.c.l.b16 %v4941
    %v5006 = vunpack.c.l.b16 %v4942
    %v5007 = vunpack.c.l.b16 %v4943
    %v5008 = vunpack.c.l.b16 %v4944
    %v5009 = vunpack.c.l.b16 %v4945
    %v5010 = vunpack.c.l.b16 %v4946
    %v5011 = vunpack.c.l.b16 %v4947
    %v5012 = vunpack.c.l.b16 %v4948
    %v5013 = vunpack.c.l.b16 %v4949
    %v5014 = vunpack.c.l.b16 %v4950
    %v5015 = vunpack.c.l.b16 %v4951
    %v5016 = vunpack.c.l.b16 %v4952
    %v5017 = vunpack.c.l.b16 %v4953
    %v5018 = vunpack.c.l.b16 %v4954
    %v5019 = vunpack.c.l.b16 %v4955
    %v5020 = vunpack.c.l.b16 %v4956
    %v5021 = vunpack.c.l.b16 %v4957
    %v5022 = vunpack.c.l.b16 %v4958
    %v5023 = vunpack.c.l.b16 %v4959
    %v5024 = vunpack.c.l.b16 %v4960
    %v5025 = vunpack.c.l.b16 %v4961
    %v5026 = vunpack.c.l.b16 %v4962
    %v5027 = vpack.c.b16 %v4996, %v4995
    %v5028 = vpack.c.b16 %v4998, %v4997
    %v5029 = vpack.c.b16 %v5000, %v4999
    %v5030 = vpack.c.b16 %v5002, %v5001
    %v5031 = vpack.c.b16 %v5004, %v5003
    %v5032 = vpack.c.b16 %v5006, %v5005
    %v5033 = vpack.c.b16 %v5008, %v5007
    %v5034 = vpack.c.b16 %v5010, %v5009
    %v5035 = vpack.c.b16 %v5012, %v5011
    %v5036 = vpack.c.b16 %v5014, %v5013
    %v5037 = vpack.c.b16 %v5016, %v5015
    %v5038 = vpack.c.b16 %v5018, %v5017
    %v5039 = vpack.c.b16 %v5020, %v5019
    %v5040 = vpack.c.b16 %v5022, %v5021
    %v5041 = vpack.c.b16 %v5024, %v5023
    %v5042 = vpack.c.b16 %v5026, %v5025
    %5059 = vmatprep.subr.bf16.mxu0 0
    %5060 = vmatpush1.bf16.msra.mxu0 %v5027
    %5061 = vmatprep.subr.bf16.mxu0 0
    %5062 = vmatpush1.bf16.msra.mxu0 %v5028
    %5063 = vmatprep.subr.bf16.mxu0 0
    %5064 = vmatpush1.bf16.msra.mxu0 %v5029
    %5065 = vmatprep.subr.bf16.mxu0 0
    %5066 = vmatpush1.bf16.msra.mxu0 %v5030
    %5067 = vmatprep.subr.bf16.mxu0 0
    %5068 = vmatpush1.bf16.msra.mxu0 %v5031
    %5069 = vmatprep.subr.bf16.mxu0 0
    %5070 = vmatpush1.bf16.msra.mxu0 %v5032
    %5071 = vmatprep.subr.bf16.mxu0 0
    %5072 = vmatpush1.bf16.msra.mxu0 %v5033
    %5073 = vmatprep.subr.bf16.mxu0 0
    %5074 = vmatpush1.bf16.msra.mxu0 %v5034
    %5075 = vmatprep.subr.bf16.mxu0 0
    %5076 = vmatpush1.bf16.msra.mxu0 %v5035
    %5077 = vmatprep.subr.bf16.mxu0 0
    %5078 = vmatpush1.bf16.msra.mxu0 %v5036
    %5079 = vmatprep.subr.bf16.mxu0 0
    %5080 = vmatpush1.bf16.msra.mxu0 %v5037
    %5081 = vmatprep.subr.bf16.mxu0 0
    %5082 = vmatpush1.bf16.msra.mxu0 %v5038
    %5083 = vmatprep.subr.bf16.mxu0 0
    %5084 = vmatpush1.bf16.msra.mxu0 %v5039
    %5085 = vmatprep.subr.bf16.mxu0 0
    %5086 = vmatpush1.bf16.msra.mxu0 %v5040
    %5087 = vmatprep.subr.bf16.mxu0 0
    %5088 = vmatpush1.bf16.msra.mxu0 %v5041
    %5089 = vmatprep.subr.bf16.mxu0 0
    %5090 = vmatpush1.bf16.msra.mxu0 %v5042
    %5091 = vmatprep.mubr.bf16.mxu0 %v4923
    %5092 = vmatmul.mubr.bf16.gmra.mrb[0].mxu0 %v4922
    %v5093 = vpop.f32.mrb[0].mxu0
    %v5094 = vadd.f32 0.0, %v5093
    %v5095 = vpop.f32.mrb[0].mxu0
    %v5096 = vpop.f32.mrb[0].mxu0
    %v5097 = vadd.f32 0.0, %v5096
    %v5098 = vpop.f32.mrb[0].mxu0
    %5099 = vmatprep.mubr.bf16.mxu0 %v4925
    %5100 = vmatmul.mubr.bf16.gmra.mrb[0].mxu0 %v4924
    %v5101 = vpop.f32.mrb[0].mxu0
    %v5102 = vadd.f32 0.0, %v5101
    %v5103 = vpop.f32.mrb[0].mxu0
    %v5104 = vpop.f32.mrb[0].mxu0
    %v5105 = vadd.f32 0.0, %v5104
    %v5106 = vpop.f32.mrb[0].mxu0
    %5107 = vmatprep.mubr.bf16.mxu0 %v4927
    %5108 = vmatmul.mubr.bf16.gmra.mrb[0].mxu0 %v4926
    %v5109 = vpop.f32.mrb[0].mxu0
    %v5110 = vadd.f32 0.0, %v5109
    %v5111 = vpop.f32.mrb[0].mxu0
    %v5112 = vpop.f32.mrb[0].mxu0
    %v5113 = vadd.f32 0.0, %v5112
    %v5114 = vpop.f32.mrb[0].mxu0
    %5115 = vmatprep.mubr.bf16.mxu0 %v4929
    %5116 = vmatmul.mubr.bf16.gmra.mrb[0].mxu0 %v4928
    %v5117 = vpop.f32.mrb[0].mxu0
    %v5118 = vadd.f32 0.0, %v5117
    %v5119 = vpop.f32.mrb[0].mxu0
    %v5120 = vpop.f32.mrb[0].mxu0
    %v5121 = vadd.f32 0.0, %v5120
    %v5122 = vpop.f32.mrb[0].mxu0
    %5123 = vdwg.mxu0
    %v5124 = vadd.f32 %v4587, %v5094
    %v5125 = vadd.f32 %v4588, %v5097
    %v5126 = vadd.f32 %v4589, %v5102
    %v5127 = vadd.f32 %v4590, %v5105
    %v5128 = vadd.f32 %v4591, %v5110
    %v5129 = vadd.f32 %v4592, %v5113
    %v5130 = vadd.f32 %v4593, %v5118
    %v5131 = vadd.f32 %v4594, %v5121
    %s5132 = scalar_lea.vmem %s11, 2
    %v5133 = vld [vmem:[%s5132] sm:$0x1]
    %v5135 = vlaneseq
    %v5136 = vshrl.u32 %v5135, 7
    %v5137 = vsub.s32 0, %v5136
    %v5138 = vrot.slane %v5133, %v5137
    %v5140 = vadd.f32 %v5124, %v5138
    %v5141 = vadd.f32 %v5125, %v5138
    %v5142 = vadd.f32 %v5126, %v5138
    %v5143 = vadd.f32 %v5127, %v5138
    %v5144 = vadd.f32 %v5128, %v5138
    %v5145 = vadd.f32 %v5129, %v5138
    %v5146 = vadd.f32 %v5130, %v5138
    %v5147 = vadd.f32 %v5131, %v5138
    %s5148 = scalar_lea.vmem %s1, 3
    %v5149 = vld [vmem:[%s5148] sm:$0x1]
    %s5150 = scalar_lea.vmem %s2, 3
    %v5151 = vld [vmem:[%s5150] sm:$0x1]
    %v5152 = vsel %vm143, %v5140, 0.0
    %5153 = vadd.xlane.f32.xlu0 %v5152
    %v5154 = vpop.xlane.xlu0 %5153
    %v5155 = vsel %vm143, %v5141, 0.0
    %5156 = vadd.xlane.f32.xlu0 %v5155
    %v5157 = vpop.xlane.xlu0 %5156
    %v5158 = vsel %vm143, %v5142, 0.0
    %5159 = vadd.xlane.f32.xlu0 %v5158
    %v5160 = vpop.xlane.xlu0 %5159
    %v5161 = vsel %vm143, %v5143, 0.0
    %5162 = vadd.xlane.f32.xlu0 %v5161
    %v5163 = vpop.xlane.xlu0 %5162
    %v5164 = vsel %vm143, %v5144, 0.0
    %5165 = vadd.xlane.f32.xlu0 %v5164
    %v5166 = vpop.xlane.xlu0 %5165
    %v5167 = vsel %vm143, %v5145, 0.0
    %5168 = vadd.xlane.f32.xlu0 %v5167
    %v5169 = vpop.xlane.xlu0 %5168
    %v5170 = vsel %vm143, %v5146, 0.0
    %5171 = vadd.xlane.f32.xlu0 %v5170
    %v5172 = vpop.xlane.xlu0 %5171
    %v5173 = vsel %vm143, %v5147, 0.0
    %5174 = vadd.xlane.f32.xlu0 %v5173
    %v5175 = vpop.xlane.xlu0 %5174
    %v5176 = vmul.f32 %v5154, %v168
    %v5177 = vmul.f32 %v5157, %v168
    %v5178 = vmul.f32 %v5160, %v168
    %v5179 = vmul.f32 %v5163, %v168
    %v5180 = vmul.f32 %v5166, %v168
    %v5181 = vmul.f32 %v5169, %v168
    %v5182 = vmul.f32 %v5172, %v168
    %v5183 = vmul.f32 %v5175, %v168
    %v5184 = vmul.f32 %v5140, %v5140
    %v5185 = vmul.f32 %v5141, %v5141
    %v5186 = vmul.f32 %v5142, %v5142
    %v5187 = vmul.f32 %v5143, %v5143
    %v5188 = vmul.f32 %v5144, %v5144
    %v5189 = vmul.f32 %v5145, %v5145
    %v5190 = vmul.f32 %v5146, %v5146
    %v5191 = vmul.f32 %v5147, %v5147
    %v5192 = vsel %vm143, %v5184, 0.0
    %5193 = vadd.xlane.f32.xlu0 %v5192
    %v5194 = vpop.xlane.xlu0 %5193
    %v5195 = vsel %vm143, %v5185, 0.0
    %5196 = vadd.xlane.f32.xlu0 %v5195
    %v5197 = vpop.xlane.xlu0 %5196
    %v5198 = vsel %vm143, %v5186, 0.0
    %5199 = vadd.xlane.f32.xlu0 %v5198
    %v5200 = vpop.xlane.xlu0 %5199
    %v5201 = vsel %vm143, %v5187, 0.0
    %5202 = vadd.xlane.f32.xlu0 %v5201
    %v5203 = vpop.xlane.xlu0 %5202
    %v5204 = vsel %vm143, %v5188, 0.0
    %5205 = vadd.xlane.f32.xlu0 %v5204
    %v5206 = vpop.xlane.xlu0 %5205
    %v5207 = vsel %vm143, %v5189, 0.0
    %5208 = vadd.xlane.f32.xlu0 %v5207
    %v5209 = vpop.xlane.xlu0 %5208
    %v5210 = vsel %vm143, %v5190, 0.0
    %5211 = vadd.xlane.f32.xlu0 %v5210
    %v5212 = vpop.xlane.xlu0 %5211
    %v5213 = vsel %vm143, %v5191, 0.0
    %5214 = vadd.xlane.f32.xlu0 %v5213
    %v5215 = vpop.xlane.xlu0 %5214
    %v5216 = vmul.f32 %v5194, %v168
    %v5217 = vmul.f32 %v5197, %v168
    %v5218 = vmul.f32 %v5200, %v168
    %v5219 = vmul.f32 %v5203, %v168
    %v5220 = vmul.f32 %v5206, %v168
    %v5221 = vmul.f32 %v5209, %v168
    %v5222 = vmul.f32 %v5212, %v168
    %v5223 = vmul.f32 %v5215, %v168
    %v5224 = vmul.f32 %v5176, %v5176
    %v5225 = vmul.f32 %v5177, %v5177
    %v5226 = vmul.f32 %v5178, %v5178
    %v5227 = vmul.f32 %v5179, %v5179
    %v5228 = vmul.f32 %v5180, %v5180
    %v5229 = vmul.f32 %v5181, %v5181
    %v5230 = vmul.f32 %v5182, %v5182
    %v5231 = vmul.f32 %v5183, %v5183
    %v5232 = vsub.f32 %v5216, %v5224
    %v5233 = vsub.f32 %v5217, %v5225
    %v5234 = vsub.f32 %v5218, %v5226
    %v5235 = vsub.f32 %v5219, %v5227
    %v5236 = vsub.f32 %v5220, %v5228
    %v5237 = vsub.f32 %v5221, %v5229
    %v5238 = vsub.f32 %v5222, %v5230
    %v5239 = vsub.f32 %v5223, %v5231
    %v5240 = vadd.f32 %v5232, 1e-05
    %v5241 = vadd.f32 %v5233, 1e-05
    %v5242 = vadd.f32 %v5234, 1e-05
    %v5243 = vadd.f32 %v5235, 1e-05
    %v5244 = vadd.f32 %v5236, 1e-05
    %v5245 = vadd.f32 %v5237, 1e-05
    %v5246 = vadd.f32 %v5238, 1e-05
    %v5247 = vadd.f32 %v5239, 1e-05
    %v5248 = vrsqrt.pop %v5240
    %v5249 = vrsqrt.pop %v5241
    %v5250 = vrsqrt.pop %v5242
    %v5251 = vrsqrt.pop %v5243
    %v5252 = vrsqrt.pop %v5244
    %v5253 = vrsqrt.pop %v5245
    %v5254 = vrsqrt.pop %v5246
    %v5255 = vrsqrt.pop %v5247
    %v5257 = vlaneseq
    %v5258 = vshrl.u32 %v5257, 7
    %v5259 = vsub.s32 0, %v5258
    %v5260 = vrot.slane %v5149, %v5259
    %v5262 = vmul.f32 %v5248, %v5260
    %v5263 = vmul.f32 %v5249, %v5260
    %v5264 = vmul.f32 %v5250, %v5260
    %v5265 = vmul.f32 %v5251, %v5260
    %v5266 = vmul.f32 %v5252, %v5260
    %v5267 = vmul.f32 %v5253, %v5260
    %v5268 = vmul.f32 %v5254, %v5260
    %v5269 = vmul.f32 %v5255, %v5260
    %v5270 = vmul.f32 %v5140, %v5262
    %v5271 = vmul.f32 %v5141, %v5263
    %v5272 = vmul.f32 %v5142, %v5264
    %v5273 = vmul.f32 %v5143, %v5265
    %v5274 = vmul.f32 %v5144, %v5266
    %v5275 = vmul.f32 %v5145, %v5267
    %v5276 = vmul.f32 %v5146, %v5268
    %v5277 = vmul.f32 %v5147, %v5269
    %v5278 = vmul.f32 %v5176, %v5262
    %v5279 = vmul.f32 %v5177, %v5263
    %v5280 = vmul.f32 %v5178, %v5264
    %v5281 = vmul.f32 %v5179, %v5265
    %v5282 = vmul.f32 %v5180, %v5266
    %v5283 = vmul.f32 %v5181, %v5267
    %v5284 = vmul.f32 %v5182, %v5268
    %v5285 = vmul.f32 %v5183, %v5269
    %v5287 = vlaneseq
    %v5288 = vshrl.u32 %v5287, 7
    %v5289 = vsub.s32 0, %v5288
    %v5290 = vrot.slane %v5151, %v5289
    %v5292 = vsub.f32 %v5290, %v5278
    %v5293 = vsub.f32 %v5290, %v5279
    %v5294 = vsub.f32 %v5290, %v5280
    %v5295 = vsub.f32 %v5290, %v5281
    %v5296 = vsub.f32 %v5290, %v5282
    %v5297 = vsub.f32 %v5290, %v5283
    %v5298 = vsub.f32 %v5290, %v5284
    %v5299 = vsub.f32 %v5290, %v5285
    %v5300 = vadd.f32 %v5270, %v5292
    %v5301 = vadd.f32 %v5271, %v5293
    %v5302 = vadd.f32 %v5272, %v5294
    %v5303 = vadd.f32 %v5273, %v5295
    %v5304 = vadd.f32 %v5274, %v5296
    %v5305 = vadd.f32 %v5275, %v5297
    %v5306 = vadd.f32 %v5276, %v5298
    %v5307 = vadd.f32 %v5277, %v5299
    %v5308 = vpack.c.bf16 %v5301, %v5300
    %v5309 = vpack.c.bf16 %v5303, %v5302
    %v5310 = vpack.c.bf16 %v5305, %v5304
    %v5311 = vpack.c.bf16 %v5307, %v5306
    %s5312 = scalar_lea.vmem %s3, 192
    %v5313 = vld [vmem:[%s5312] sm:$0xff]
    %v5314 = vld [vmem:[%s5312 + $0x8] sm:$0xff]
    %v5315 = vld [vmem:[%s5312 + $0x10] sm:$0xff]
    %v5316 = vld [vmem:[%s5312 + $0x18] sm:$0xff]
    %v5317 = vld [vmem:[%s5312 + $0x20] sm:$0xff]
    %v5318 = vld [vmem:[%s5312 + $0x28] sm:$0xff]
    %v5319 = vld [vmem:[%s5312 + $0x30] sm:$0xff]
    %v5320 = vld [vmem:[%s5312 + $0x38] sm:$0xff]
    %v5329 = vunpack.c.l.b16 %v5313
    %v5330 = vunpack.c.h.b16 %v5313
    %v5331 = vunpack.c.l.b16 %v5314
    %v5332 = vunpack.c.h.b16 %v5314
    %v5333 = vunpack.c.l.b16 %v5315
    %v5334 = vunpack.c.h.b16 %v5315
    %v5335 = vunpack.c.l.b16 %v5316
    %v5336 = vunpack.c.h.b16 %v5316
    %v5337 = vunpack.c.l.b16 %v5317
    %v5338 = vunpack.c.h.b16 %v5317
    %v5339 = vunpack.c.l.b16 %v5318
    %v5340 = vunpack.c.h.b16 %v5318
    %v5341 = vunpack.c.l.b16 %v5319
    %v5342 = vunpack.c.h.b16 %v5319
    %v5343 = vunpack.c.l.b16 %v5320
    %v5344 = vunpack.c.h.b16 %v5320
    %v5345 = vpack.c.b16 %v5331, %v5329
    %v5346 = vpack.c.b16 %v5332, %v5330
    %v5347 = vpack.c.b16 %v5335, %v5333
    %v5348 = vpack.c.b16 %v5336, %v5334
    %v5349 = vpack.c.b16 %v5339, %v5337
    %v5350 = vpack.c.b16 %v5340, %v5338
    %v5351 = vpack.c.b16 %v5343, %v5341
    %v5352 = vpack.c.b16 %v5344, %v5342
    %v5362 = vsel %vm143, %v5308, 0
    %v5365 = vsel %vm143, %v5309, 0
    %v5368 = vsel %vm143, %v5310, 0
    %v5371 = vsel %vm143, %v5311, 0
    %5373 = vmatprep.subr.bf16.mxu0 %v5346
    %5374 = vmatpush1.bf16.msra.mxu0 %v5345
    %5375 = vmatprep.subr.bf16.mxu0 %v5348
    %5376 = vmatpush1.bf16.msra.mxu0 %v5347
    %5377 = vmatprep.subr.bf16.mxu0 %v5350
    %5378 = vmatpush1.bf16.msra.mxu0 %v5349
    %5379 = vmatprep.subr.bf16.mxu0 %v5352
    %5380 = vmatpush1.bf16.msra.mxu0 %v5351
    %5381 = vmatprep.subr.bf16.mxu0 0
    %5382 = vmatpush1.bf16.msra.mxu0 0
    %5383 = vmatprep.subr.bf16.mxu0 0
    %5384 = vmatpush1.bf16.msra.mxu0 0
    %5385 = vmatprep.subr.bf16.mxu0 0
    %5386 = vmatpush1.bf16.msra.mxu0 0
    %5387 = vmatprep.subr.bf16.mxu0 0
    %5388 = vmatpush1.bf16.msra.mxu0 0
    %5389 = vmatprep.subr.bf16.mxu0 0
    %5390 = vmatpush1.bf16.msra.mxu0 0
    %5391 = vmatprep.subr.bf16.mxu0 0
    %5392 = vmatpush1.bf16.msra.mxu0 0
    %5393 = vmatprep.subr.bf16.mxu0 0
    %5394 = vmatpush1.bf16.msra.mxu0 0
    %5395 = vmatprep.subr.bf16.mxu0 0
    %5396 = vmatpush1.bf16.msra.mxu0 0
    %5397 = vmatprep.subr.bf16.mxu0 0
    %5398 = vmatpush1.bf16.msra.mxu0 0
    %5399 = vmatprep.subr.bf16.mxu0 0
    %5400 = vmatpush1.bf16.msra.mxu0 0
    %5401 = vmatprep.subr.bf16.mxu0 0
    %5402 = vmatpush1.bf16.msra.mxu0 0
    %5403 = vmatprep.subr.bf16.mxu0 0
    %5404 = vmatpush1.bf16.msra.mxu0 0
    %5405 = vmatprep.mubr.bf16.mxu0 0
    %5406 = vmatmul.mubr.bf16.gmra.mrb[0].mxu0 %v5362
    %v5407 = vpop.f32.mrb[0].mxu0
    %v5408 = vadd.f32 0.0, %v5407
    %v5409 = vpop.f32.mrb[0].mxu0
    %v5410 = vadd.f32 0.0, %v5409
    %v5411 = vpop.f32.mrb[0].mxu0
    %v5412 = vadd.f32 0.0, %v5411
    %v5413 = vpop.f32.mrb[0].mxu0
    %v5414 = vadd.f32 0.0, %v5413
    %5415 = vmatprep.mubr.bf16.mxu0 0
    %5416 = vmatmul.mubr.bf16.gmra.mrb[0].mxu0 %v5365
    %v5417 = vpop.f32.mrb[0].mxu0
    %v5418 = vadd.f32 0.0, %v5417
    %v5419 = vpop.f32.mrb[0].mxu0
    %v5420 = vadd.f32 0.0, %v5419
    %v5421 = vpop.f32.mrb[0].mxu0
    %v5422 = vadd.f32 0.0, %v5421
    %v5423 = vpop.f32.mrb[0].mxu0
    %v5424 = vadd.f32 0.0, %v5423
    %5425 = vmatprep.mubr.bf16.mxu0 0
    %5426 = vmatmul.mubr.bf16.gmra.mrb[0].mxu0 %v5368
    %v5427 = vpop.f32.mrb[0].mxu0
    %v5428 = vadd.f32 0.0, %v5427
    %v5429 = vpop.f32.mrb[0].mxu0
    %v5430 = vadd.f32 0.0, %v5429
    %v5431 = vpop.f32.mrb[0].mxu0
    %v5432 = vadd.f32 0.0, %v5431
    %v5433 = vpop.f32.mrb[0].mxu0
    %v5434 = vadd.f32 0.0, %v5433
    %5435 = vmatprep.mubr.bf16.mxu0 0
    %5436 = vmatmul.mubr.bf16.gmra.mrb[0].mxu0 %v5371
    %v5437 = vpop.f32.mrb[0].mxu0
    %v5438 = vadd.f32 0.0, %v5437
    %v5439 = vpop.f32.mrb[0].mxu0
    %v5440 = vadd.f32 0.0, %v5439
    %v5441 = vpop.f32.mrb[0].mxu0
    %v5442 = vadd.f32 0.0, %v5441
    %v5443 = vpop.f32.mrb[0].mxu0
    %v5444 = vadd.f32 0.0, %v5443
    %5445 = vdwg.mxu0
    %s5446 = scalar_lea.vmem %s4, 96
    %v5447 = vld [vmem:[%s5446] sm:$0xf]
    %v5448 = vld [vmem:[%s5446 + $0x4] sm:$0xf]
    %v5449 = vld [vmem:[%s5446 + $0x8] sm:$0xf]
    %v5450 = vld [vmem:[%s5446 + $0xc] sm:$0xf]
    %v5451 = vld [vmem:[%s5446 + $0x10] sm:$0xf]
    %v5452 = vld [vmem:[%s5446 + $0x14] sm:$0xf]
    %v5453 = vld [vmem:[%s5446 + $0x18] sm:$0xf]
    %v5454 = vld [vmem:[%s5446 + $0x1c] sm:$0xf]
    %v5455 = vmul.f32 %v5408, 0.17677669
    %v5456 = vmul.f32 %v5412, 0.17677669
    %v5457 = vmul.f32 %v5418, 0.17677669
    %v5458 = vmul.f32 %v5422, 0.17677669
    %v5459 = vmul.f32 %v5428, 0.17677669
    %v5460 = vmul.f32 %v5432, 0.17677669
    %v5461 = vmul.f32 %v5438, 0.17677669
    %v5462 = vmul.f32 %v5442, 0.17677669
    %v5463 = vpack.c.bf16 %v5456, %v5455
    %v5464 = vpack.c.bf16 %v5458, %v5457
    %v5465 = vpack.c.bf16 %v5460, %v5459
    %v5466 = vpack.c.bf16 %v5462, %v5461
    %v5467 = vpack.c.bf16 %v5412, %v5408
    %v5468 = vpack.c.bf16 %v5422, %v5418
    %v5469 = vpack.c.bf16 %v5432, %v5428
    %v5470 = vpack.c.bf16 %v5442, %v5438
    %5475 = vrot.lane.b32.xlu0 %v5467, 64
    %v5476 = vpop.permute.xlu0 %5475
    %5477 = vrot.lane.b32.xlu0 %v5468, 64
    %v5478 = vpop.permute.xlu0 %5477
    %5479 = vrot.lane.b32.xlu0 %v5469, 64
    %v5480 = vpop.permute.xlu0 %5479
    %5481 = vrot.lane.b32.xlu0 %v5470, 64
    %v5482 = vpop.permute.xlu0 %5481
    %v5484 = vsel %vm474, %v5463, 0
    %v5487 = vsel %vm474, %v5464, 0
    %v5490 = vsel %vm474, %v5465, 0
    %v5493 = vsel %vm474, %v5466, 0
    %v5496 = vsel %vm474, %v5476, 0
    %v5499 = vsel %vm474, %v5478, 0
    %v5502 = vsel %vm474, %v5480, 0
    %v5505 = vsel %vm474, %v5482, 0
    %5507 = vmatprep.subr.bf16.mxu0 0
    %5508 = vmatpush1.bf16.xpose.msra.mxu0 %v5496
    %5509 = vmatprep.subr.bf16.mxu0 0
    %5510 = vmatpush1.bf16.xpose.msra.mxu0 %v5499
    %5511 = vmatprep.subr.bf16.mxu0 0
    %5512 = vmatpush1.bf16.xpose.msra.mxu0 %v5502
    %5513 = vmatprep.subr.bf16.mxu0 0
    %5514 = vmatpush1.bf16.xpose.msra.mxu0 %v5505
    %5515 = vmatprep.subr.bf16.mxu0 0
    %5516 = vmatpush1.bf16.xpose.msra.mxu0 0
    %5517 = vmatprep.subr.bf16.mxu0 0
    %5518 = vmatpush1.bf16.xpose.msra.mxu0 0
    %5519 = vmatprep.subr.bf16.mxu0 0
    %5520 = vmatpush1.bf16.xpose.msra.mxu0 0
    %5521 = vmatprep.subr.bf16.mxu0 0
    %5522 = vmatpush1.bf16.xpose.msra.mxu0 0
    %5523 = vmatprep.subr.bf16.mxu0 0
    %5524 = vmatpush1.bf16.xpose.msra.mxu0 0
    %5525 = vmatprep.subr.bf16.mxu0 0
    %5526 = vmatpush1.bf16.xpose.msra.mxu0 0
    %5527 = vmatprep.subr.bf16.mxu0 0
    %5528 = vmatpush1.bf16.xpose.msra.mxu0 0
    %5529 = vmatprep.subr.bf16.mxu0 0
    %5530 = vmatpush1.bf16.xpose.msra.mxu0 0
    %5531 = vmatprep.subr.bf16.mxu0 0
    %5532 = vmatpush1.bf16.xpose.msra.mxu0 0
    %5533 = vmatprep.subr.bf16.mxu0 0
    %5534 = vmatpush1.bf16.xpose.msra.mxu0 0
    %5535 = vmatprep.subr.bf16.mxu0 0
    %5536 = vmatpush1.bf16.xpose.msra.mxu0 0
    %5537 = vmatprep.subr.bf16.mxu0 0
    %5538 = vmatpush1.bf16.xpose.msra.mxu0 0
    %5539 = vmatprep.mubr.bf16.mxu0 0
    %5540 = vmatmul.mubr.bf16.gmra.mrb[0].mxu0 %v5484
    %v5541 = vpop.f32.mrb[0].mxu0
    %v5542 = vadd.f32 %v133, %v5541
    %v5543 = vpop.f32.mrb[0].mxu0
    %v5544 = vpop.f32.mrb[0].mxu0
    %v5545 = vadd.f32 %v134, %v5544
    %v5546 = vpop.f32.mrb[0].mxu0
    %5547 = vmatprep.mubr.bf16.mxu0 0
    %5548 = vmatmul.mubr.bf16.gmra.mrb[0].mxu0 %v5487
    %v5549 = vpop.f32.mrb[0].mxu0
    %v5550 = vadd.f32 %v135, %v5549
    %v5551 = vpop.f32.mrb[0].mxu0
    %v5552 = vpop.f32.mrb[0].mxu0
    %v5553 = vadd.f32 %v136, %v5552
    %v5554 = vpop.f32.mrb[0].mxu0
    %5555 = vmatprep.mubr.bf16.mxu0 0
    %5556 = vmatmul.mubr.bf16.gmra.mrb[0].mxu0 %v5490
    %v5557 = vpop.f32.mrb[0].mxu0
    %v5558 = vadd.f32 %v137, %v5557
    %v5559 = vpop.f32.mrb[0].mxu0
    %v5560 = vpop.f32.mrb[0].mxu0
    %v5561 = vadd.f32 %v138, %v5560
    %v5562 = vpop.f32.mrb[0].mxu0
    %5563 = vmatprep.mubr.bf16.mxu0 0
    %5564 = vmatmul.mubr.bf16.gmra.mrb[0].mxu0 %v5493
    %v5565 = vpop.f32.mrb[0].mxu0
    %v5566 = vadd.f32 %v139, %v5565
    %v5567 = vpop.f32.mrb[0].mxu0
    %v5568 = vpop.f32.mrb[0].mxu0
    %v5569 = vadd.f32 %v140, %v5568
    %v5570 = vpop.f32.mrb[0].mxu0
    %5571 = vdwg.mxu0
    %v5572 = vsel %vm143, %v5542, -inf
    %5573 = vmax.xlane.f32.xlu0 %v5572
    %v5574 = vpop.xlane.xlu0 %5573
    %v5575 = vsel %vm143, %v5545, -inf
    %5576 = vmax.xlane.f32.xlu0 %v5575
    %v5577 = vpop.xlane.xlu0 %5576
    %v5578 = vsel %vm143, %v5550, -inf
    %5579 = vmax.xlane.f32.xlu0 %v5578
    %v5580 = vpop.xlane.xlu0 %5579
    %v5581 = vsel %vm143, %v5553, -inf
    %5582 = vmax.xlane.f32.xlu0 %v5581
    %v5583 = vpop.xlane.xlu0 %5582
    %v5584 = vsel %vm143, %v5558, -inf
    %5585 = vmax.xlane.f32.xlu0 %v5584
    %v5586 = vpop.xlane.xlu0 %5585
    %v5587 = vsel %vm143, %v5561, -inf
    %5588 = vmax.xlane.f32.xlu0 %v5587
    %v5589 = vpop.xlane.xlu0 %5588
    %v5590 = vsel %vm143, %v5566, -inf
    %5591 = vmax.xlane.f32.xlu0 %v5590
    %v5592 = vpop.xlane.xlu0 %5591
    %v5593 = vsel %vm143, %v5569, -inf
    %5594 = vmax.xlane.f32.xlu0 %v5593
    %v5595 = vpop.xlane.xlu0 %5594
    %v5596 = vsub.f32 %v5542, %v5574
    %v5597 = vsub.f32 %v5545, %v5577
    %v5598 = vsub.f32 %v5550, %v5580
    %v5599 = vsub.f32 %v5553, %v5583
    %v5600 = vsub.f32 %v5558, %v5586
    %v5601 = vsub.f32 %v5561, %v5589
    %v5602 = vsub.f32 %v5566, %v5592
    %v5603 = vsub.f32 %v5569, %v5595
    %v5604 = vmul.f32 %v5596, 1.442695
    %v5605 = vpow.pop %v5604
    %v5606 = vmul.f32 %v5597, 1.442695
    %v5607 = vpow.pop %v5606
    %v5608 = vmul.f32 %v5598, 1.442695
    %v5609 = vpow.pop %v5608
    %v5610 = vmul.f32 %v5599, 1.442695
    %v5611 = vpow.pop %v5610
    %v5612 = vmul.f32 %v5600, 1.442695
    %v5613 = vpow.pop %v5612
    %v5614 = vmul.f32 %v5601, 1.442695
    %v5615 = vpow.pop %v5614
    %v5616 = vmul.f32 %v5602, 1.442695
    %v5617 = vpow.pop %v5616
    %v5618 = vmul.f32 %v5603, 1.442695
    %v5619 = vpow.pop %v5618
    %v5620 = vsel %vm143, %v5605, 0.0
    %5621 = vadd.xlane.f32.xlu0 %v5620
    %v5622 = vpop.xlane.xlu0 %5621
    %v5623 = vsel %vm143, %v5607, 0.0
    %5624 = vadd.xlane.f32.xlu0 %v5623
    %v5625 = vpop.xlane.xlu0 %5624
    %v5626 = vsel %vm143, %v5609, 0.0
    %5627 = vadd.xlane.f32.xlu0 %v5626
    %v5628 = vpop.xlane.xlu0 %5627
    %v5629 = vsel %vm143, %v5611, 0.0
    %5630 = vadd.xlane.f32.xlu0 %v5629
    %v5631 = vpop.xlane.xlu0 %5630
    %v5632 = vsel %vm143, %v5613, 0.0
    %5633 = vadd.xlane.f32.xlu0 %v5632
    %v5634 = vpop.xlane.xlu0 %5633
    %v5635 = vsel %vm143, %v5615, 0.0
    %5636 = vadd.xlane.f32.xlu0 %v5635
    %v5637 = vpop.xlane.xlu0 %5636
    %v5638 = vsel %vm143, %v5617, 0.0
    %5639 = vadd.xlane.f32.xlu0 %v5638
    %v5640 = vpop.xlane.xlu0 %5639
    %v5641 = vsel %vm143, %v5619, 0.0
    %5642 = vadd.xlane.f32.xlu0 %v5641
    %v5643 = vpop.xlane.xlu0 %5642
    %v5644 = vrcp.pop %v5622
    %v5645 = vrcp.pop %v5625
    %v5646 = vrcp.pop %v5628
    %v5647 = vrcp.pop %v5631
    %v5648 = vrcp.pop %v5634
    %v5649 = vrcp.pop %v5637
    %v5650 = vrcp.pop %v5640
    %v5651 = vrcp.pop %v5643
    %v5652 = vmul.f32 %v5605, %v5644
    %v5653 = vmul.f32 %v5607, %v5645
    %v5654 = vmul.f32 %v5609, %v5646
    %v5655 = vmul.f32 %v5611, %v5647
    %v5656 = vmul.f32 %v5613, %v5648
    %v5657 = vmul.f32 %v5615, %v5649
    %v5658 = vmul.f32 %v5617, %v5650
    %v5659 = vmul.f32 %v5619, %v5651
    %s5660 = scalar_lea.vmem %s17, 384
    %5661 = vst.msk [vmem:[%s5660] sm:$0xff] %vm143, %v5652
    %5662 = vst.msk [vmem:[%s5660 + $0x8] sm:$0xff] %vm143, %v5653
    %5663 = vst.msk [vmem:[%s5660 + $0x10] sm:$0xff] %vm143, %v5654
    %5664 = vst.msk [vmem:[%s5660 + $0x18] sm:$0xff] %vm143, %v5655
    %5665 = vst.msk [vmem:[%s5660 + $0x20] sm:$0xff] %vm143, %v5656
    %5666 = vst.msk [vmem:[%s5660 + $0x28] sm:$0xff] %vm143, %v5657
    %5667 = vst.msk [vmem:[%s5660 + $0x30] sm:$0xff] %vm143, %v5658
    %5668 = vst.msk [vmem:[%s5660 + $0x38] sm:$0xff] %vm143, %v5659
    %v5669 = vpack.c.bf16 %v5653, %v5652
    %v5670 = vpack.c.bf16 %v5655, %v5654
    %v5671 = vpack.c.bf16 %v5657, %v5656
    %v5672 = vpack.c.bf16 %v5659, %v5658
    %v5673 = vpack.c.bf16 %v5414, %v5410
    %v5674 = vpack.c.bf16 %v5424, %v5420
    %v5675 = vpack.c.bf16 %v5434, %v5430
    %v5676 = vpack.c.bf16 %v5444, %v5440
    %v5678 = vsel %vm143, %v5669, 0
    %v5681 = vsel %vm143, %v5670, 0
    %v5684 = vsel %vm143, %v5671, 0
    %v5687 = vsel %vm143, %v5672, 0
    %5689 = vmatprep.subr.bf16.mxu0 0
    %5690 = vmatpush1.bf16.msra.mxu0 %v5673
    %5691 = vmatprep.subr.bf16.mxu0 0
    %5692 = vmatpush1.bf16.msra.mxu0 %v5674
    %5693 = vmatprep.subr.bf16.mxu0 0
    %5694 = vmatpush1.bf16.msra.mxu0 %v5675
    %5695 = vmatprep.subr.bf16.mxu0 0
    %5696 = vmatpush1.bf16.msra.mxu0 %v5676
    %5697 = vmatprep.subr.bf16.mxu0 0
    %5698 = vmatpush1.bf16.msra.mxu0 0
    %5699 = vmatprep.subr.bf16.mxu0 0
    %5700 = vmatpush1.bf16.msra.mxu0 0
    %5701 = vmatprep.subr.bf16.mxu0 0
    %5702 = vmatpush1.bf16.msra.mxu0 0
    %5703 = vmatprep.subr.bf16.mxu0 0
    %5704 = vmatpush1.bf16.msra.mxu0 0
    %5705 = vmatprep.subr.bf16.mxu0 0
    %5706 = vmatpush1.bf16.msra.mxu0 0
    %5707 = vmatprep.subr.bf16.mxu0 0
    %5708 = vmatpush1.bf16.msra.mxu0 0
    %5709 = vmatprep.subr.bf16.mxu0 0
    %5710 = vmatpush1.bf16.msra.mxu0 0
    %5711 = vmatprep.subr.bf16.mxu0 0
    %5712 = vmatpush1.bf16.msra.mxu0 0
    %5713 = vmatprep.subr.bf16.mxu0 0
    %5714 = vmatpush1.bf16.msra.mxu0 0
    %5715 = vmatprep.subr.bf16.mxu0 0
    %5716 = vmatpush1.bf16.msra.mxu0 0
    %5717 = vmatprep.subr.bf16.mxu0 0
    %5718 = vmatpush1.bf16.msra.mxu0 0
    %5719 = vmatprep.subr.bf16.mxu0 0
    %5720 = vmatpush1.bf16.msra.mxu0 0
    %5721 = vmatprep.mubr.bf16.mxu0 0
    %5722 = vmatmul.mubr.bf16.gmra.mrb[0].mxu0 %v5678
    %v5723 = vpop.f32.mrb[0].mxu0
    %v5724 = vadd.f32 0.0, %v5723
    %v5725 = vpop.f32.mrb[0].mxu0
    %v5726 = vpop.f32.mrb[0].mxu0
    %v5727 = vadd.f32 0.0, %v5726
    %v5728 = vpop.f32.mrb[0].mxu0
    %5729 = vmatprep.mubr.bf16.mxu0 0
    %5730 = vmatmul.mubr.bf16.gmra.mrb[0].mxu0 %v5681
    %v5731 = vpop.f32.mrb[0].mxu0
    %v5732 = vadd.f32 0.0, %v5731
    %v5733 = vpop.f32.mrb[0].mxu0
    %v5734 = vpop.f32.mrb[0].mxu0
    %v5735 = vadd.f32 0.0, %v5734
    %v5736 = vpop.f32.mrb[0].mxu0
    %5737 = vmatprep.mubr.bf16.mxu0 0
    %5738 = vmatmul.mubr.bf16.gmra.mrb[0].mxu0 %v5684
    %v5739 = vpop.f32.mrb[0].mxu0
    %v5740 = vadd.f32 0.0, %v5739
    %v5741 = vpop.f32.mrb[0].mxu0
    %v5742 = vpop.f32.mrb[0].mxu0
    %v5743 = vadd.f32 0.0, %v5742
    %v5744 = vpop.f32.mrb[0].mxu0
    %5745 = vmatprep.mubr.bf16.mxu0 0
    %5746 = vmatmul.mubr.bf16.gmra.mrb[0].mxu0 %v5687
    %v5747 = vpop.f32.mrb[0].mxu0
    %v5748 = vadd.f32 0.0, %v5747
    %v5749 = vpop.f32.mrb[0].mxu0
    %v5750 = vpop.f32.mrb[0].mxu0
    %v5751 = vadd.f32 0.0, %v5750
    %v5752 = vpop.f32.mrb[0].mxu0
    %5753 = vdwg.mxu0
    %v5754 = vpack.c.bf16 %v5727, %v5724
    %v5755 = vpack.c.bf16 %v5735, %v5732
    %v5756 = vpack.c.bf16 %v5743, %v5740
    %v5757 = vpack.c.bf16 %v5751, %v5748
    %5762 = vrot.lane.b32.xlu0 %v5463, 96
    %v5763 = vpop.permute.xlu0 %5762
    %5764 = vrot.lane.b32.xlu0 %v5464, 96
    %v5765 = vpop.permute.xlu0 %5764
    %5766 = vrot.lane.b32.xlu0 %v5465, 96
    %v5767 = vpop.permute.xlu0 %5766
    %5768 = vrot.lane.b32.xlu0 %v5466, 96
    %v5769 = vpop.permute.xlu0 %5768
    %5770 = vrot.lane.b32.xlu0 %v5467, 32
    %v5771 = vpop.permute.xlu0 %5770
    %5772 = vrot.lane.b32.xlu0 %v5468, 32
    %v5773 = vpop.permute.xlu0 %5772
    %5774 = vrot.lane.b32.xlu0 %v5469, 32
    %v5775 = vpop.permute.xlu0 %5774
    %5776 = vrot.lane.b32.xlu0 %v5470, 32
    %v5777 = vpop.permute.xlu0 %5776
    %v5779 = vsel %vm474, %v5763, 0
    %v5782 = vsel %vm474, %v5765, 0
    %v5785 = vsel %vm474, %v5767, 0
    %v5788 = vsel %vm474, %v5769, 0
    %v5791 = vsel %vm474, %v5771, 0
    %v5794 = vsel %vm474, %v5773, 0
    %v5797 = vsel %vm474, %v5775, 0
    %v5800 = vsel %vm474, %v5777, 0
    %5802 = vmatprep.subr.bf16.mxu0 0
    %5803 = vmatpush1.bf16.xpose.msra.mxu0 %v5791
    %5804 = vmatprep.subr.bf16.mxu0 0
    %5805 = vmatpush1.bf16.xpose.msra.mxu0 %v5794
    %5806 = vmatprep.subr.bf16.mxu0 0
    %5807 = vmatpush1.bf16.xpose.msra.mxu0 %v5797
    %5808 = vmatprep.subr.bf16.mxu0 0
    %5809 = vmatpush1.bf16.xpose.msra.mxu0 %v5800
    %5810 = vmatprep.subr.bf16.mxu0 0
    %5811 = vmatpush1.bf16.xpose.msra.mxu0 0
    %5812 = vmatprep.subr.bf16.mxu0 0
    %5813 = vmatpush1.bf16.xpose.msra.mxu0 0
    %5814 = vmatprep.subr.bf16.mxu0 0
    %5815 = vmatpush1.bf16.xpose.msra.mxu0 0
    %5816 = vmatprep.subr.bf16.mxu0 0
    %5817 = vmatpush1.bf16.xpose.msra.mxu0 0
    %5818 = vmatprep.subr.bf16.mxu0 0
    %5819 = vmatpush1.bf16.xpose.msra.mxu0 0
    %5820 = vmatprep.subr.bf16.mxu0 0
    %5821 = vmatpush1.bf16.xpose.msra.mxu0 0
    %5822 = vmatprep.subr.bf16.mxu0 0
    %5823 = vmatpush1.bf16.xpose.msra.mxu0 0
    %5824 = vmatprep.subr.bf16.mxu0 0
    %5825 = vmatpush1.bf16.xpose.msra.mxu0 0
    %5826 = vmatprep.subr.bf16.mxu0 0
    %5827 = vmatpush1.bf16.xpose.msra.mxu0 0
    %5828 = vmatprep.subr.bf16.mxu0 0
    %5829 = vmatpush1.bf16.xpose.msra.mxu0 0
    %5830 = vmatprep.subr.bf16.mxu0 0
    %5831 = vmatpush1.bf16.xpose.msra.mxu0 0
    %5832 = vmatprep.subr.bf16.mxu0 0
    %5833 = vmatpush1.bf16.xpose.msra.mxu0 0
    %5834 = vmatprep.mubr.bf16.mxu0 0
    %5835 = vmatmul.mubr.bf16.gmra.mrb[0].mxu0 %v5779
    %v5836 = vpop.f32.mrb[0].mxu0
    %v5837 = vadd.f32 %v133, %v5836
    %v5838 = vpop.f32.mrb[0].mxu0
    %v5839 = vpop.f32.mrb[0].mxu0
    %v5840 = vadd.f32 %v134, %v5839
    %v5841 = vpop.f32.mrb[0].mxu0
    %5842 = vmatprep.mubr.bf16.mxu0 0
    %5843 = vmatmul.mubr.bf16.gmra.mrb[0].mxu0 %v5782
    %v5844 = vpop.f32.mrb[0].mxu0
    %v5845 = vadd.f32 %v135, %v5844
    %v5846 = vpop.f32.mrb[0].mxu0
    %v5847 = vpop.f32.mrb[0].mxu0
    %v5848 = vadd.f32 %v136, %v5847
    %v5849 = vpop.f32.mrb[0].mxu0
    %5850 = vmatprep.mubr.bf16.mxu0 0
    %5851 = vmatmul.mubr.bf16.gmra.mrb[0].mxu0 %v5785
    %v5852 = vpop.f32.mrb[0].mxu0
    %v5853 = vadd.f32 %v137, %v5852
    %v5854 = vpop.f32.mrb[0].mxu0
    %v5855 = vpop.f32.mrb[0].mxu0
    %v5856 = vadd.f32 %v138, %v5855
    %v5857 = vpop.f32.mrb[0].mxu0
    %5858 = vmatprep.mubr.bf16.mxu0 0
    %5859 = vmatmul.mubr.bf16.gmra.mrb[0].mxu0 %v5788
    %v5860 = vpop.f32.mrb[0].mxu0
    %v5861 = vadd.f32 %v139, %v5860
    %v5862 = vpop.f32.mrb[0].mxu0
    %v5863 = vpop.f32.mrb[0].mxu0
    %v5864 = vadd.f32 %v140, %v5863
    %v5865 = vpop.f32.mrb[0].mxu0
    %5866 = vdwg.mxu0
    %v5867 = vsel %vm143, %v5837, -inf
    %5868 = vmax.xlane.f32.xlu0 %v5867
    %v5869 = vpop.xlane.xlu0 %5868
    %v5870 = vsel %vm143, %v5840, -inf
    %5871 = vmax.xlane.f32.xlu0 %v5870
    %v5872 = vpop.xlane.xlu0 %5871
    %v5873 = vsel %vm143, %v5845, -inf
    %5874 = vmax.xlane.f32.xlu0 %v5873
    %v5875 = vpop.xlane.xlu0 %5874
    %v5876 = vsel %vm143, %v5848, -inf
    %5877 = vmax.xlane.f32.xlu0 %v5876
    %v5878 = vpop.xlane.xlu0 %5877
    %v5879 = vsel %vm143, %v5853, -inf
    %5880 = vmax.xlane.f32.xlu0 %v5879
    %v5881 = vpop.xlane.xlu0 %5880
    %v5882 = vsel %vm143, %v5856, -inf
    %5883 = vmax.xlane.f32.xlu0 %v5882
    %v5884 = vpop.xlane.xlu0 %5883
    %v5885 = vsel %vm143, %v5861, -inf
    %5886 = vmax.xlane.f32.xlu0 %v5885
    %v5887 = vpop.xlane.xlu0 %5886
    %v5888 = vsel %vm143, %v5864, -inf
    %5889 = vmax.xlane.f32.xlu0 %v5888
    %v5890 = vpop.xlane.xlu0 %5889
    %v5891 = vsub.f32 %v5837, %v5869
    %v5892 = vsub.f32 %v5840, %v5872
    %v5893 = vsub.f32 %v5845, %v5875
    %v5894 = vsub.f32 %v5848, %v5878
    %v5895 = vsub.f32 %v5853, %v5881
    %v5896 = vsub.f32 %v5856, %v5884
    %v5897 = vsub.f32 %v5861, %v5887
    %v5898 = vsub.f32 %v5864, %v5890
    %v5899 = vmul.f32 %v5891, 1.442695
    %v5900 = vpow.pop %v5899
    %v5901 = vmul.f32 %v5892, 1.442695
    %v5902 = vpow.pop %v5901
    %v5903 = vmul.f32 %v5893, 1.442695
    %v5904 = vpow.pop %v5903
    %v5905 = vmul.f32 %v5894, 1.442695
    %v5906 = vpow.pop %v5905
    %v5907 = vmul.f32 %v5895, 1.442695
    %v5908 = vpow.pop %v5907
    %v5909 = vmul.f32 %v5896, 1.442695
    %v5910 = vpow.pop %v5909
    %v5911 = vmul.f32 %v5897, 1.442695
    %v5912 = vpow.pop %v5911
    %v5913 = vmul.f32 %v5898, 1.442695
    %v5914 = vpow.pop %v5913
    %v5915 = vsel %vm143, %v5900, 0.0
    %5916 = vadd.xlane.f32.xlu0 %v5915
    %v5917 = vpop.xlane.xlu0 %5916
    %v5918 = vsel %vm143, %v5902, 0.0
    %5919 = vadd.xlane.f32.xlu0 %v5918
    %v5920 = vpop.xlane.xlu0 %5919
    %v5921 = vsel %vm143, %v5904, 0.0
    %5922 = vadd.xlane.f32.xlu0 %v5921
    %v5923 = vpop.xlane.xlu0 %5922
    %v5924 = vsel %vm143, %v5906, 0.0
    %5925 = vadd.xlane.f32.xlu0 %v5924
    %v5926 = vpop.xlane.xlu0 %5925
    %v5927 = vsel %vm143, %v5908, 0.0
    %5928 = vadd.xlane.f32.xlu0 %v5927
    %v5929 = vpop.xlane.xlu0 %5928
    %v5930 = vsel %vm143, %v5910, 0.0
    %5931 = vadd.xlane.f32.xlu0 %v5930
    %v5932 = vpop.xlane.xlu0 %5931
    %v5933 = vsel %vm143, %v5912, 0.0
    %5934 = vadd.xlane.f32.xlu0 %v5933
    %v5935 = vpop.xlane.xlu0 %5934
    %v5936 = vsel %vm143, %v5914, 0.0
    %5937 = vadd.xlane.f32.xlu0 %v5936
    %v5938 = vpop.xlane.xlu0 %5937
    %v5939 = vrcp.pop %v5917
    %v5940 = vrcp.pop %v5920
    %v5941 = vrcp.pop %v5923
    %v5942 = vrcp.pop %v5926
    %v5943 = vrcp.pop %v5929
    %v5944 = vrcp.pop %v5932
    %v5945 = vrcp.pop %v5935
    %v5946 = vrcp.pop %v5938
    %v5947 = vmul.f32 %v5900, %v5939
    %v5948 = vmul.f32 %v5902, %v5940
    %v5949 = vmul.f32 %v5904, %v5941
    %v5950 = vmul.f32 %v5906, %v5942
    %v5951 = vmul.f32 %v5908, %v5943
    %v5952 = vmul.f32 %v5910, %v5944
    %v5953 = vmul.f32 %v5912, %v5945
    %v5954 = vmul.f32 %v5914, %v5946
    %s5955 = scalar_lea.vmem %s17, 448
    %5956 = vst.msk [vmem:[%s5955] sm:$0xff] %vm143, %v5947
    %5957 = vst.msk [vmem:[%s5955 + $0x8] sm:$0xff] %vm143, %v5948
    %5958 = vst.msk [vmem:[%s5955 + $0x10] sm:$0xff] %vm143, %v5949
    %5959 = vst.msk [vmem:[%s5955 + $0x18] sm:$0xff] %vm143, %v5950
    %5960 = vst.msk [vmem:[%s5955 + $0x20] sm:$0xff] %vm143, %v5951
    %5961 = vst.msk [vmem:[%s5955 + $0x28] sm:$0xff] %vm143, %v5952
    %5962 = vst.msk [vmem:[%s5955 + $0x30] sm:$0xff] %vm143, %v5953
    %5963 = vst.msk [vmem:[%s5955 + $0x38] sm:$0xff] %vm143, %v5954
    %v5964 = vpack.c.bf16 %v5948, %v5947
    %v5965 = vpack.c.bf16 %v5950, %v5949
    %v5966 = vpack.c.bf16 %v5952, %v5951
    %v5967 = vpack.c.bf16 %v5954, %v5953
    %5972 = vrot.lane.b32.xlu0 %v5673, 96
    %v5973 = vpop.permute.xlu0 %5972
    %5974 = vrot.lane.b32.xlu0 %v5674, 96
    %v5975 = vpop.permute.xlu0 %5974
    %5976 = vrot.lane.b32.xlu0 %v5675, 96
    %v5977 = vpop.permute.xlu0 %5976
    %5978 = vrot.lane.b32.xlu0 %v5676, 96
    %v5979 = vpop.permute.xlu0 %5978
    %v5985 = vsel %vm143, %v5964, 0
    %v5988 = vsel %vm143, %v5965, 0
    %v5991 = vsel %vm143, %v5966, 0
    %v5994 = vsel %vm143, %v5967, 0
    %5996 = vmatprep.subr.bf16.mxu0 0
    %5997 = vmatpush1.bf16.msra.mxu0 %v5973
    %5998 = vmatprep.subr.bf16.mxu0 0
    %5999 = vmatpush1.bf16.msra.mxu0 %v5975
    %6000 = vmatprep.subr.bf16.mxu0 0
    %6001 = vmatpush1.bf16.msra.mxu0 %v5977
    %6002 = vmatprep.subr.bf16.mxu0 0
    %6003 = vmatpush1.bf16.msra.mxu0 %v5979
    %6004 = vmatprep.subr.bf16.mxu0 0
    %6005 = vmatpush1.bf16.msra.mxu0 0
    %6006 = vmatprep.subr.bf16.mxu0 0
    %6007 = vmatpush1.bf16.msra.mxu0 0
    %6008 = vmatprep.subr.bf16.mxu0 0
    %6009 = vmatpush1.bf16.msra.mxu0 0
    %6010 = vmatprep.subr.bf16.mxu0 0
    %6011 = vmatpush1.bf16.msra.mxu0 0
    %6012 = vmatprep.subr.bf16.mxu0 0
    %6013 = vmatpush1.bf16.msra.mxu0 0
    %6014 = vmatprep.subr.bf16.mxu0 0
    %6015 = vmatpush1.bf16.msra.mxu0 0
    %6016 = vmatprep.subr.bf16.mxu0 0
    %6017 = vmatpush1.bf16.msra.mxu0 0
    %6018 = vmatprep.subr.bf16.mxu0 0
    %6019 = vmatpush1.bf16.msra.mxu0 0
    %6020 = vmatprep.subr.bf16.mxu0 0
    %6021 = vmatpush1.bf16.msra.mxu0 0
    %6022 = vmatprep.subr.bf16.mxu0 0
    %6023 = vmatpush1.bf16.msra.mxu0 0
    %6024 = vmatprep.subr.bf16.mxu0 0
    %6025 = vmatpush1.bf16.msra.mxu0 0
    %6026 = vmatprep.subr.bf16.mxu0 0
    %6027 = vmatpush1.bf16.msra.mxu0 0
    %6028 = vmatprep.mubr.bf16.mxu0 0
    %6029 = vmatmul.mubr.bf16.gmra.mrb[0].mxu0 %v5985
    %v6030 = vpop.f32.mrb[0].mxu0
    %v6031 = vadd.f32 0.0, %v6030
    %v6032 = vpop.f32.mrb[0].mxu0
    %v6033 = vpop.f32.mrb[0].mxu0
    %v6034 = vadd.f32 0.0, %v6033
    %v6035 = vpop.f32.mrb[0].mxu0
    %6036 = vmatprep.mubr.bf16.mxu0 0
    %6037 = vmatmul.mubr.bf16.gmra.mrb[0].mxu0 %v5988
    %v6038 = vpop.f32.mrb[0].mxu0
    %v6039 = vadd.f32 0.0, %v6038
    %v6040 = vpop.f32.mrb[0].mxu0
    %v6041 = vpop.f32.mrb[0].mxu0
    %v6042 = vadd.f32 0.0, %v6041
    %v6043 = vpop.f32.mrb[0].mxu0
    %6044 = vmatprep.mubr.bf16.mxu0 0
    %6045 = vmatmul.mubr.bf16.gmra.mrb[0].mxu0 %v5991
    %v6046 = vpop.f32.mrb[0].mxu0
    %v6047 = vadd.f32 0.0, %v6046
    %v6048 = vpop.f32.mrb[0].mxu0
    %v6049 = vpop.f32.mrb[0].mxu0
    %v6050 = vadd.f32 0.0, %v6049
    %v6051 = vpop.f32.mrb[0].mxu0
    %6052 = vmatprep.mubr.bf16.mxu0 0
    %6053 = vmatmul.mubr.bf16.gmra.mrb[0].mxu0 %v5994
    %v6054 = vpop.f32.mrb[0].mxu0
    %v6055 = vadd.f32 0.0, %v6054
    %v6056 = vpop.f32.mrb[0].mxu0
    %v6057 = vpop.f32.mrb[0].mxu0
    %v6058 = vadd.f32 0.0, %v6057
    %v6059 = vpop.f32.mrb[0].mxu0
    %6060 = vdwg.mxu0
    %v6061 = vpack.c.bf16 %v6034, %v6031
    %v6062 = vpack.c.bf16 %v6042, %v6039
    %v6063 = vpack.c.bf16 %v6050, %v6047
    %v6064 = vpack.c.bf16 %v6058, %v6055
    %v6069 = vunpack.c.l.b16 %v5451
    %v6070 = vunpack.c.l.b16 %v5452
    %v6071 = vunpack.c.l.b16 %v5453
    %v6072 = vunpack.c.l.b16 %v5454
    %v6073 = vpack.c.b16 %v6070, %v6069
    %v6074 = vpack.c.b16 %v6072, %v6071
    %v6078 = vsel %vm474, %v6061, 0
    %v6081 = vsel %vm474, %v6062, 0
    %v6084 = vsel %vm474, %v6063, 0
    %v6087 = vsel %vm474, %v6064, 0
    %6089 = vmatprep.subr.bf16.mxu0 0
    %6090 = vmatpush1.bf16.msra.mxu0 %v6073
    %6091 = vmatprep.subr.bf16.mxu0 0
    %6092 = vmatpush1.bf16.msra.mxu0 %v6074
    %6093 = vmatprep.subr.bf16.mxu0 0
    %6094 = vmatpush1.bf16.msra.mxu0 0
    %6095 = vmatprep.subr.bf16.mxu0 0
    %6096 = vmatpush1.bf16.msra.mxu0 0
    %6097 = vmatprep.subr.bf16.mxu0 0
    %6098 = vmatpush1.bf16.msra.mxu0 0
    %6099 = vmatprep.subr.bf16.mxu0 0
    %6100 = vmatpush1.bf16.msra.mxu0 0
    %6101 = vmatprep.subr.bf16.mxu0 0
    %6102 = vmatpush1.bf16.msra.mxu0 0
    %6103 = vmatprep.subr.bf16.mxu0 0
    %6104 = vmatpush1.bf16.msra.mxu0 0
    %6105 = vmatprep.subr.bf16.mxu0 0
    %6106 = vmatpush1.bf16.msra.mxu0 0
    %6107 = vmatprep.subr.bf16.mxu0 0
    %6108 = vmatpush1.bf16.msra.mxu0 0
    %6109 = vmatprep.subr.bf16.mxu0 0
    %6110 = vmatpush1.bf16.msra.mxu0 0
    %6111 = vmatprep.subr.bf16.mxu0 0
    %6112 = vmatpush1.bf16.msra.mxu0 0
    %6113 = vmatprep.subr.bf16.mxu0 0
    %6114 = vmatpush1.bf16.msra.mxu0 0
    %6115 = vmatprep.subr.bf16.mxu0 0
    %6116 = vmatpush1.bf16.msra.mxu0 0
    %6117 = vmatprep.subr.bf16.mxu0 0
    %6118 = vmatpush1.bf16.msra.mxu0 0
    %6119 = vmatprep.subr.bf16.mxu0 0
    %6120 = vmatpush1.bf16.msra.mxu0 0
    %6121 = vmatprep.mubr.bf16.mxu0 0
    %6122 = vmatmul.mubr.bf16.gmra.mrb[0].mxu0 %v6078
    %v6123 = vpop.f32.mrb[0].mxu0
    %v6124 = vadd.f32 0.0, %v6123
    %v6125 = vpop.f32.mrb[0].mxu0
    %v6126 = vpop.f32.mrb[0].mxu0
    %v6127 = vadd.f32 0.0, %v6126
    %v6128 = vpop.f32.mrb[0].mxu0
    %6129 = vmatprep.mubr.bf16.mxu0 0
    %6130 = vmatmul.mubr.bf16.gmra.mrb[0].mxu0 %v6081
    %v6131 = vpop.f32.mrb[0].mxu0
    %v6132 = vadd.f32 0.0, %v6131
    %v6133 = vpop.f32.mrb[0].mxu0
    %v6134 = vpop.f32.mrb[0].mxu0
    %v6135 = vadd.f32 0.0, %v6134
    %v6136 = vpop.f32.mrb[0].mxu0
    %6137 = vmatprep.mubr.bf16.mxu0 0
    %6138 = vmatmul.mubr.bf16.gmra.mrb[0].mxu0 %v6084
    %v6139 = vpop.f32.mrb[0].mxu0
    %v6140 = vadd.f32 0.0, %v6139
    %v6141 = vpop.f32.mrb[0].mxu0
    %v6142 = vpop.f32.mrb[0].mxu0
    %v6143 = vadd.f32 0.0, %v6142
    %v6144 = vpop.f32.mrb[0].mxu0
    %6145 = vmatprep.mubr.bf16.mxu0 0
    %6146 = vmatmul.mubr.bf16.gmra.mrb[0].mxu0 %v6087
    %v6147 = vpop.f32.mrb[0].mxu0
    %v6148 = vadd.f32 0.0, %v6147
    %v6149 = vpop.f32.mrb[0].mxu0
    %v6150 = vpop.f32.mrb[0].mxu0
    %v6151 = vadd.f32 0.0, %v6150
    %v6152 = vpop.f32.mrb[0].mxu0
    %6153 = vdwg.mxu0
    %v6158 = vunpack.c.l.b16 %v5447
    %v6159 = vunpack.c.l.b16 %v5448
    %v6160 = vunpack.c.l.b16 %v5449
    %v6161 = vunpack.c.l.b16 %v5450
    %v6162 = vpack.c.b16 %v6159, %v6158
    %v6163 = vpack.c.b16 %v6161, %v6160
    %v6167 = vsel %vm474, %v5754, 0
    %v6170 = vsel %vm474, %v5755, 0
    %v6173 = vsel %vm474, %v5756, 0
    %v6176 = vsel %vm474, %v5757, 0
    %6178 = vmatprep.subr.bf16.mxu0 0
    %6179 = vmatpush1.bf16.msra.mxu0 %v6162
    %6180 = vmatprep.subr.bf16.mxu0 0
    %6181 = vmatpush1.bf16.msra.mxu0 %v6163
    %6182 = vmatprep.subr.bf16.mxu0 0
    %6183 = vmatpush1.bf16.msra.mxu0 0
    %6184 = vmatprep.subr.bf16.mxu0 0
    %6185 = vmatpush1.bf16.msra.mxu0 0
    %6186 = vmatprep.subr.bf16.mxu0 0
    %6187 = vmatpush1.bf16.msra.mxu0 0
    %6188 = vmatprep.subr.bf16.mxu0 0
    %6189 = vmatpush1.bf16.msra.mxu0 0
    %6190 = vmatprep.subr.bf16.mxu0 0
    %6191 = vmatpush1.bf16.msra.mxu0 0
    %6192 = vmatprep.subr.bf16.mxu0 0
    %6193 = vmatpush1.bf16.msra.mxu0 0
    %6194 = vmatprep.subr.bf16.mxu0 0
    %6195 = vmatpush1.bf16.msra.mxu0 0
    %6196 = vmatprep.subr.bf16.mxu0 0
    %6197 = vmatpush1.bf16.msra.mxu0 0
    %6198 = vmatprep.subr.bf16.mxu0 0
    %6199 = vmatpush1.bf16.msra.mxu0 0
    %6200 = vmatprep.subr.bf16.mxu0 0
    %6201 = vmatpush1.bf16.msra.mxu0 0
    %6202 = vmatprep.subr.bf16.mxu0 0
    %6203 = vmatpush1.bf16.msra.mxu0 0
    %6204 = vmatprep.subr.bf16.mxu0 0
    %6205 = vmatpush1.bf16.msra.mxu0 0
    %6206 = vmatprep.subr.bf16.mxu0 0
    %6207 = vmatpush1.bf16.msra.mxu0 0
    %6208 = vmatprep.subr.bf16.mxu0 0
    %6209 = vmatpush1.bf16.msra.mxu0 0
    %6210 = vmatprep.mubr.bf16.mxu0 0
    %6211 = vmatmul.mubr.bf16.gmra.mrb[0].mxu0 %v6167
    %v6212 = vpop.f32.mrb[0].mxu0
    %v6213 = vadd.f32 %v6124, %v6212
    %v6214 = vpop.f32.mrb[0].mxu0
    %v6215 = vpop.f32.mrb[0].mxu0
    %v6216 = vadd.f32 %v6127, %v6215
    %v6217 = vpop.f32.mrb[0].mxu0
    %6218 = vmatprep.mubr.bf16.mxu0 0
    %6219 = vmatmul.mubr.bf16.gmra.mrb[0].mxu0 %v6170
    %v6220 = vpop.f32.mrb[0].mxu0
    %v6221 = vadd.f32 %v6132, %v6220
    %v6222 = vpop.f32.mrb[0].mxu0
    %v6223 = vpop.f32.mrb[0].mxu0
    %v6224 = vadd.f32 %v6135, %v6223
    %v6225 = vpop.f32.mrb[0].mxu0
    %6226 = vmatprep.mubr.bf16.mxu0 0
    %6227 = vmatmul.mubr.bf16.gmra.mrb[0].mxu0 %v6173
    %v6228 = vpop.f32.mrb[0].mxu0
    %v6229 = vadd.f32 %v6140, %v6228
    %v6230 = vpop.f32.mrb[0].mxu0
    %v6231 = vpop.f32.mrb[0].mxu0
    %v6232 = vadd.f32 %v6143, %v6231
    %v6233 = vpop.f32.mrb[0].mxu0
    %6234 = vmatprep.mubr.bf16.mxu0 0
    %6235 = vmatmul.mubr.bf16.gmra.mrb[0].mxu0 %v6176
    %v6236 = vpop.f32.mrb[0].mxu0
    %v6237 = vadd.f32 %v6148, %v6236
    %v6238 = vpop.f32.mrb[0].mxu0
    %v6239 = vpop.f32.mrb[0].mxu0
    %v6240 = vadd.f32 %v6151, %v6239
    %v6241 = vpop.f32.mrb[0].mxu0
    %6242 = vdwg.mxu0
    %v6243 = vadd.f32 %v5140, %v6213
    %v6244 = vadd.f32 %v5141, %v6216
    %v6245 = vadd.f32 %v5142, %v6221
    %v6246 = vadd.f32 %v5143, %v6224
    %v6247 = vadd.f32 %v5144, %v6229
    %v6248 = vadd.f32 %v5145, %v6232
    %v6249 = vadd.f32 %v5146, %v6237
    %v6250 = vadd.f32 %v5147, %v6240
    %s6251 = scalar_lea.vmem %s5, 3
    %v6252 = vld [vmem:[%s6251] sm:$0x1]
    %v6254 = vlaneseq
    %v6255 = vshrl.u32 %v6254, 7
    %v6256 = vsub.s32 0, %v6255
    %v6257 = vrot.slane %v6252, %v6256
    %v6259 = vadd.f32 %v6243, %v6257
    %v6260 = vadd.f32 %v6244, %v6257
    %v6261 = vadd.f32 %v6245, %v6257
    %v6262 = vadd.f32 %v6246, %v6257
    %v6263 = vadd.f32 %v6247, %v6257
    %v6264 = vadd.f32 %v6248, %v6257
    %v6265 = vadd.f32 %v6249, %v6257
    %v6266 = vadd.f32 %v6250, %v6257
    %s6267 = scalar_lea.vmem %s6, 3
    %v6268 = vld [vmem:[%s6267] sm:$0x1]
    %s6269 = scalar_lea.vmem %s7, 3
    %v6270 = vld [vmem:[%s6269] sm:$0x1]
    %v6271 = vsel %vm143, %v6259, 0.0
    %6272 = vadd.xlane.f32.xlu0 %v6271
    %v6273 = vpop.xlane.xlu0 %6272
    %v6274 = vsel %vm143, %v6260, 0.0
    %6275 = vadd.xlane.f32.xlu0 %v6274
    %v6276 = vpop.xlane.xlu0 %6275
    %v6277 = vsel %vm143, %v6261, 0.0
    %6278 = vadd.xlane.f32.xlu0 %v6277
    %v6279 = vpop.xlane.xlu0 %6278
    %v6280 = vsel %vm143, %v6262, 0.0
    %6281 = vadd.xlane.f32.xlu0 %v6280
    %v6282 = vpop.xlane.xlu0 %6281
    %v6283 = vsel %vm143, %v6263, 0.0
    %6284 = vadd.xlane.f32.xlu0 %v6283
    %v6285 = vpop.xlane.xlu0 %6284
    %v6286 = vsel %vm143, %v6264, 0.0
    %6287 = vadd.xlane.f32.xlu0 %v6286
    %v6288 = vpop.xlane.xlu0 %6287
    %v6289 = vsel %vm143, %v6265, 0.0
    %6290 = vadd.xlane.f32.xlu0 %v6289
    %v6291 = vpop.xlane.xlu0 %6290
    %v6292 = vsel %vm143, %v6266, 0.0
    %6293 = vadd.xlane.f32.xlu0 %v6292
    %v6294 = vpop.xlane.xlu0 %6293
    %v6295 = vmul.f32 %v6273, %v168
    %v6296 = vmul.f32 %v6276, %v168
    %v6297 = vmul.f32 %v6279, %v168
    %v6298 = vmul.f32 %v6282, %v168
    %v6299 = vmul.f32 %v6285, %v168
    %v6300 = vmul.f32 %v6288, %v168
    %v6301 = vmul.f32 %v6291, %v168
    %v6302 = vmul.f32 %v6294, %v168
    %v6303 = vmul.f32 %v6259, %v6259
    %v6304 = vmul.f32 %v6260, %v6260
    %v6305 = vmul.f32 %v6261, %v6261
    %v6306 = vmul.f32 %v6262, %v6262
    %v6307 = vmul.f32 %v6263, %v6263
    %v6308 = vmul.f32 %v6264, %v6264
    %v6309 = vmul.f32 %v6265, %v6265
    %v6310 = vmul.f32 %v6266, %v6266
    %v6311 = vsel %vm143, %v6303, 0.0
    %6312 = vadd.xlane.f32.xlu0 %v6311
    %v6313 = vpop.xlane.xlu0 %6312
    %v6314 = vsel %vm143, %v6304, 0.0
    %6315 = vadd.xlane.f32.xlu0 %v6314
    %v6316 = vpop.xlane.xlu0 %6315
    %v6317 = vsel %vm143, %v6305, 0.0
    %6318 = vadd.xlane.f32.xlu0 %v6317
    %v6319 = vpop.xlane.xlu0 %6318
    %v6320 = vsel %vm143, %v6306, 0.0
    %6321 = vadd.xlane.f32.xlu0 %v6320
    %v6322 = vpop.xlane.xlu0 %6321
    %v6323 = vsel %vm143, %v6307, 0.0
    %6324 = vadd.xlane.f32.xlu0 %v6323
    %v6325 = vpop.xlane.xlu0 %6324
    %v6326 = vsel %vm143, %v6308, 0.0
    %6327 = vadd.xlane.f32.xlu0 %v6326
    %v6328 = vpop.xlane.xlu0 %6327
    %v6329 = vsel %vm143, %v6309, 0.0
    %6330 = vadd.xlane.f32.xlu0 %v6329
    %v6331 = vpop.xlane.xlu0 %6330
    %v6332 = vsel %vm143, %v6310, 0.0
    %6333 = vadd.xlane.f32.xlu0 %v6332
    %v6334 = vpop.xlane.xlu0 %6333
    %v6335 = vmul.f32 %v6313, %v168
    %v6336 = vmul.f32 %v6316, %v168
    %v6337 = vmul.f32 %v6319, %v168
    %v6338 = vmul.f32 %v6322, %v168
    %v6339 = vmul.f32 %v6325, %v168
    %v6340 = vmul.f32 %v6328, %v168
    %v6341 = vmul.f32 %v6331, %v168
    %v6342 = vmul.f32 %v6334, %v168
    %v6343 = vmul.f32 %v6295, %v6295
    %v6344 = vmul.f32 %v6296, %v6296
    %v6345 = vmul.f32 %v6297, %v6297
    %v6346 = vmul.f32 %v6298, %v6298
    %v6347 = vmul.f32 %v6299, %v6299
    %v6348 = vmul.f32 %v6300, %v6300
    %v6349 = vmul.f32 %v6301, %v6301
    %v6350 = vmul.f32 %v6302, %v6302
    %v6351 = vsub.f32 %v6335, %v6343
    %v6352 = vsub.f32 %v6336, %v6344
    %v6353 = vsub.f32 %v6337, %v6345
    %v6354 = vsub.f32 %v6338, %v6346
    %v6355 = vsub.f32 %v6339, %v6347
    %v6356 = vsub.f32 %v6340, %v6348
    %v6357 = vsub.f32 %v6341, %v6349
    %v6358 = vsub.f32 %v6342, %v6350
    %v6359 = vadd.f32 %v6351, 1e-05
    %v6360 = vadd.f32 %v6352, 1e-05
    %v6361 = vadd.f32 %v6353, 1e-05
    %v6362 = vadd.f32 %v6354, 1e-05
    %v6363 = vadd.f32 %v6355, 1e-05
    %v6364 = vadd.f32 %v6356, 1e-05
    %v6365 = vadd.f32 %v6357, 1e-05
    %v6366 = vadd.f32 %v6358, 1e-05
    %v6367 = vrsqrt.pop %v6359
    %v6368 = vrsqrt.pop %v6360
    %v6369 = vrsqrt.pop %v6361
    %v6370 = vrsqrt.pop %v6362
    %v6371 = vrsqrt.pop %v6363
    %v6372 = vrsqrt.pop %v6364
    %v6373 = vrsqrt.pop %v6365
    %v6374 = vrsqrt.pop %v6366
    %v6376 = vlaneseq
    %v6377 = vshrl.u32 %v6376, 7
    %v6378 = vsub.s32 0, %v6377
    %v6379 = vrot.slane %v6268, %v6378
    %v6381 = vmul.f32 %v6367, %v6379
    %v6382 = vmul.f32 %v6368, %v6379
    %v6383 = vmul.f32 %v6369, %v6379
    %v6384 = vmul.f32 %v6370, %v6379
    %v6385 = vmul.f32 %v6371, %v6379
    %v6386 = vmul.f32 %v6372, %v6379
    %v6387 = vmul.f32 %v6373, %v6379
    %v6388 = vmul.f32 %v6374, %v6379
    %v6389 = vmul.f32 %v6259, %v6381
    %v6390 = vmul.f32 %v6260, %v6382
    %v6391 = vmul.f32 %v6261, %v6383
    %v6392 = vmul.f32 %v6262, %v6384
    %v6393 = vmul.f32 %v6263, %v6385
    %v6394 = vmul.f32 %v6264, %v6386
    %v6395 = vmul.f32 %v6265, %v6387
    %v6396 = vmul.f32 %v6266, %v6388
    %v6397 = vmul.f32 %v6295, %v6381
    %v6398 = vmul.f32 %v6296, %v6382
    %v6399 = vmul.f32 %v6297, %v6383
    %v6400 = vmul.f32 %v6298, %v6384
    %v6401 = vmul.f32 %v6299, %v6385
    %v6402 = vmul.f32 %v6300, %v6386
    %v6403 = vmul.f32 %v6301, %v6387
    %v6404 = vmul.f32 %v6302, %v6388
    %v6406 = vlaneseq
    %v6407 = vshrl.u32 %v6406, 7
    %v6408 = vsub.s32 0, %v6407
    %v6409 = vrot.slane %v6270, %v6408
    %v6411 = vsub.f32 %v6409, %v6397
    %v6412 = vsub.f32 %v6409, %v6398
    %v6413 = vsub.f32 %v6409, %v6399
    %v6414 = vsub.f32 %v6409, %v6400
    %v6415 = vsub.f32 %v6409, %v6401
    %v6416 = vsub.f32 %v6409, %v6402
    %v6417 = vsub.f32 %v6409, %v6403
    %v6418 = vsub.f32 %v6409, %v6404
    %v6419 = vadd.f32 %v6389, %v6411
    %v6420 = vadd.f32 %v6390, %v6412
    %v6421 = vadd.f32 %v6391, %v6413
    %v6422 = vadd.f32 %v6392, %v6414
    %v6423 = vadd.f32 %v6393, %v6415
    %v6424 = vadd.f32 %v6394, %v6416
    %v6425 = vadd.f32 %v6395, %v6417
    %v6426 = vadd.f32 %v6396, %v6418
    %v6427 = vpack.c.bf16 %v6420, %v6419
    %v6428 = vpack.c.bf16 %v6422, %v6421
    %v6429 = vpack.c.bf16 %v6424, %v6423
    %v6430 = vpack.c.bf16 %v6426, %v6425
    %s6431 = scalar_lea.vmem %s8, 192
    %v6432 = vld [vmem:[%s6431] sm:$0xff]
    %v6433 = vld [vmem:[%s6431 + $0x8] sm:$0xff]
    %v6434 = vld [vmem:[%s6431 + $0x10] sm:$0xff]
    %v6435 = vld [vmem:[%s6431 + $0x18] sm:$0xff]
    %v6436 = vld [vmem:[%s6431 + $0x20] sm:$0xff]
    %v6437 = vld [vmem:[%s6431 + $0x28] sm:$0xff]
    %v6438 = vld [vmem:[%s6431 + $0x30] sm:$0xff]
    %v6439 = vld [vmem:[%s6431 + $0x38] sm:$0xff]
    %s6440 = scalar_lea.vmem %s9, 6
    %v6441 = vld [vmem:[%s6440] sm:$0x3]
    %v6443 = vlaneseq
    %v6444 = vshrl.u32 %v6443, 7
    %v6445 = vsub.s32 0, %v6444
    %v6446 = vrot.slane %v6441, %v6445
    %v6447 = vlaneseq
    %v6448 = vshrl.u32 %v6447, 7
    %v6449 = vsub.s32 1, %v6448
    %v6450 = vrot.slane %v6441, %v6449
    %v6461 = vunpack.c.l.b16 %v6432
    %v6462 = vunpack.c.h.b16 %v6432
    %v6463 = vunpack.c.l.b16 %v6433
    %v6464 = vunpack.c.h.b16 %v6433
    %v6465 = vunpack.c.l.b16 %v6434
    %v6466 = vunpack.c.h.b16 %v6434
    %v6467 = vunpack.c.l.b16 %v6435
    %v6468 = vunpack.c.h.b16 %v6435
    %v6469 = vunpack.c.l.b16 %v6436
    %v6470 = vunpack.c.h.b16 %v6436
    %v6471 = vunpack.c.l.b16 %v6437
    %v6472 = vunpack.c.h.b16 %v6437
    %v6473 = vunpack.c.l.b16 %v6438
    %v6474 = vunpack.c.h.b16 %v6438
    %v6475 = vunpack.c.l.b16 %v6439
    %v6476 = vunpack.c.h.b16 %v6439
    %v6477 = vpack.c.b16 %v6463, %v6461
    %v6478 = vpack.c.b16 %v6464, %v6462
    %v6479 = vpack.c.b16 %v6467, %v6465
    %v6480 = vpack.c.b16 %v6468, %v6466
    %v6481 = vpack.c.b16 %v6471, %v6469
    %v6482 = vpack.c.b16 %v6472, %v6470
    %v6483 = vpack.c.b16 %v6475, %v6473
    %v6484 = vpack.c.b16 %v6476, %v6474
    %v6494 = vsel %vm143, %v6427, 0
    %v6497 = vsel %vm143, %v6428, 0
    %v6500 = vsel %vm143, %v6429, 0
    %v6503 = vsel %vm143, %v6430, 0
    %6505 = vmatprep.subr.bf16.mxu0 %v6478
    %6506 = vmatpush1.bf16.msra.mxu0 %v6477
    %6507 = vmatprep.subr.bf16.mxu0 %v6480
    %6508 = vmatpush1.bf16.msra.mxu0 %v6479
    %6509 = vmatprep.subr.bf16.mxu0 %v6482
    %6510 = vmatpush1.bf16.msra.mxu0 %v6481
    %6511 = vmatprep.subr.bf16.mxu0 %v6484
    %6512 = vmatpush1.bf16.msra.mxu0 %v6483
    %6513 = vmatprep.subr.bf16.mxu0 0
    %6514 = vmatpush1.bf16.msra.mxu0 0
    %6515 = vmatprep.subr.bf16.mxu0 0
    %6516 = vmatpush1.bf16.msra.mxu0 0
    %6517 = vmatprep.subr.bf16.mxu0 0
    %6518 = vmatpush1.bf16.msra.mxu0 0
    %6519 = vmatprep.subr.bf16.mxu0 0
    %6520 = vmatpush1.bf16.msra.mxu0 0
    %6521 = vmatprep.subr.bf16.mxu0 0
    %6522 = vmatpush1.bf16.msra.mxu0 0
    %6523 = vmatprep.subr.bf16.mxu0 0
    %6524 = vmatpush1.bf16.msra.mxu0 0
    %6525 = vmatprep.subr.bf16.mxu0 0
    %6526 = vmatpush1.bf16.msra.mxu0 0
    %6527 = vmatprep.subr.bf16.mxu0 0
    %6528 = vmatpush1.bf16.msra.mxu0 0
    %6529 = vmatprep.subr.bf16.mxu0 0
    %6530 = vmatpush1.bf16.msra.mxu0 0
    %6531 = vmatprep.subr.bf16.mxu0 0
    %6532 = vmatpush1.bf16.msra.mxu0 0
    %6533 = vmatprep.subr.bf16.mxu0 0
    %6534 = vmatpush1.bf16.msra.mxu0 0
    %6535 = vmatprep.subr.bf16.mxu0 0
    %6536 = vmatpush1.bf16.msra.mxu0 0
    %6537 = vmatprep.mubr.bf16.mxu0 0
    %6538 = vmatmul.mubr.bf16.gmra.mrb[0].mxu0 %v6494
    %v6539 = vpop.f32.mrb[0].mxu0
    %v6540 = vadd.f32 %v6446, %v6539
    %v6541 = vpop.f32.mrb[0].mxu0
    %v6542 = vadd.f32 %v6450, %v6541
    %v6543 = vpop.f32.mrb[0].mxu0
    %v6544 = vadd.f32 %v6446, %v6543
    %v6545 = vpop.f32.mrb[0].mxu0
    %v6546 = vadd.f32 %v6450, %v6545
    %6547 = vmatprep.mubr.bf16.mxu0 0
    %6548 = vmatmul.mubr.bf16.gmra.mrb[0].mxu0 %v6497
    %v6549 = vpop.f32.mrb[0].mxu0
    %v6550 = vadd.f32 %v6446, %v6549
    %v6551 = vpop.f32.mrb[0].mxu0
    %v6552 = vadd.f32 %v6450, %v6551
    %v6553 = vpop.f32.mrb[0].mxu0
    %v6554 = vadd.f32 %v6446, %v6553
    %v6555 = vpop.f32.mrb[0].mxu0
    %v6556 = vadd.f32 %v6450, %v6555
    %6557 = vmatprep.mubr.bf16.mxu0 0
    %6558 = vmatmul.mubr.bf16.gmra.mrb[0].mxu0 %v6500
    %v6559 = vpop.f32.mrb[0].mxu0
    %v6560 = vadd.f32 %v6446, %v6559
    %v6561 = vpop.f32.mrb[0].mxu0
    %v6562 = vadd.f32 %v6450, %v6561
    %v6563 = vpop.f32.mrb[0].mxu0
    %v6564 = vadd.f32 %v6446, %v6563
    %v6565 = vpop.f32.mrb[0].mxu0
    %v6566 = vadd.f32 %v6450, %v6565
    %6567 = vmatprep.mubr.bf16.mxu0 0
    %6568 = vmatmul.mubr.bf16.gmra.mrb[0].mxu0 %v6503
    %v6569 = vpop.f32.mrb[0].mxu0
    %v6570 = vadd.f32 %v6446, %v6569
    %v6571 = vpop.f32.mrb[0].mxu0
    %v6572 = vadd.f32 %v6450, %v6571
    %v6573 = vpop.f32.mrb[0].mxu0
    %v6574 = vadd.f32 %v6446, %v6573
    %v6575 = vpop.f32.mrb[0].mxu0
    %v6576 = vadd.f32 %v6450, %v6575
    %6577 = vdwg.mxu0
    %v6578 = vmax.f32 %v6540, 0.0
    %v6579 = vmax.f32 %v6542, 0.0
    %v6580 = vmax.f32 %v6544, 0.0
    %v6581 = vmax.f32 %v6546, 0.0
    %v6582 = vmax.f32 %v6550, 0.0
    %v6583 = vmax.f32 %v6552, 0.0
    %v6584 = vmax.f32 %v6554, 0.0
    %v6585 = vmax.f32 %v6556, 0.0
    %v6586 = vmax.f32 %v6560, 0.0
    %v6587 = vmax.f32 %v6562, 0.0
    %v6588 = vmax.f32 %v6564, 0.0
    %v6589 = vmax.f32 %v6566, 0.0
    %v6590 = vmax.f32 %v6570, 0.0
    %v6591 = vmax.f32 %v6572, 0.0
    %v6592 = vmax.f32 %v6574, 0.0
    %v6593 = vmax.f32 %v6576, 0.0
    %v6594 = vpack.c.bf16 %v6580, %v6578
    %v6595 = vpack.c.bf16 %v6581, %v6579
    %v6596 = vpack.c.bf16 %v6584, %v6582
    %v6597 = vpack.c.bf16 %v6585, %v6583
    %v6598 = vpack.c.bf16 %v6588, %v6586
    %v6599 = vpack.c.bf16 %v6589, %v6587
    %v6600 = vpack.c.bf16 %v6592, %v6590
    %v6601 = vpack.c.bf16 %v6593, %v6591
    %s6602 = scalar_lea.vmem %s10, 384
    %v6603 = vld [vmem:[%s6602] sm:$0xf]
    %v6604 = vld [vmem:[%s6602 + $0x4] sm:$0xf]
    %v6605 = vld [vmem:[%s6602 + $0x8] sm:$0xf]
    %v6606 = vld [vmem:[%s6602 + $0xc] sm:$0xf]
    %v6607 = vld [vmem:[%s6602 + $0x10] sm:$0xf]
    %v6608 = vld [vmem:[%s6602 + $0x14] sm:$0xf]
    %v6609 = vld [vmem:[%s6602 + $0x18] sm:$0xf]
    %v6610 = vld [vmem:[%s6602 + $0x1c] sm:$0xf]
    %v6611 = vld [vmem:[%s6602 + $0x20] sm:$0xf]
    %v6612 = vld [vmem:[%s6602 + $0x24] sm:$0xf]
    %v6613 = vld [vmem:[%s6602 + $0x28] sm:$0xf]
    %v6614 = vld [vmem:[%s6602 + $0x2c] sm:$0xf]
    %v6615 = vld [vmem:[%s6602 + $0x30] sm:$0xf]
    %v6616 = vld [vmem:[%s6602 + $0x34] sm:$0xf]
    %v6617 = vld [vmem:[%s6602 + $0x38] sm:$0xf]
    %v6618 = vld [vmem:[%s6602 + $0x3c] sm:$0xf]
    %v6619 = vld [vmem:[%s6602 + $0x40] sm:$0xf]
    %v6620 = vld [vmem:[%s6602 + $0x44] sm:$0xf]
    %v6621 = vld [vmem:[%s6602 + $0x48] sm:$0xf]
    %v6622 = vld [vmem:[%s6602 + $0x4c] sm:$0xf]
    %v6623 = vld [vmem:[%s6602 + $0x50] sm:$0xf]
    %v6624 = vld [vmem:[%s6602 + $0x54] sm:$0xf]
    %v6625 = vld [vmem:[%s6602 + $0x58] sm:$0xf]
    %v6626 = vld [vmem:[%s6602 + $0x5c] sm:$0xf]
    %v6627 = vld [vmem:[%s6602 + $0x60] sm:$0xf]
    %v6628 = vld [vmem:[%s6602 + $0x64] sm:$0xf]
    %v6629 = vld [vmem:[%s6602 + $0x68] sm:$0xf]
    %v6630 = vld [vmem:[%s6602 + $0x6c] sm:$0xf]
    %v6631 = vld [vmem:[%s6602 + $0x70] sm:$0xf]
    %v6632 = vld [vmem:[%s6602 + $0x74] sm:$0xf]
    %v6633 = vld [vmem:[%s6602 + $0x78] sm:$0xf]
    %v6634 = vld [vmem:[%s6602 + $0x7c] sm:$0xf]
    %v6667 = vunpack.c.l.b16 %v6603
    %v6668 = vunpack.c.l.b16 %v6604
    %v6669 = vunpack.c.l.b16 %v6605
    %v6670 = vunpack.c.l.b16 %v6606
    %v6671 = vunpack.c.l.b16 %v6607
    %v6672 = vunpack.c.l.b16 %v6608
    %v6673 = vunpack.c.l.b16 %v6609
    %v6674 = vunpack.c.l.b16 %v6610
    %v6675 = vunpack.c.l.b16 %v6611
    %v6676 = vunpack.c.l.b16 %v6612
    %v6677 = vunpack.c.l.b16 %v6613
    %v6678 = vunpack.c.l.b16 %v6614
    %v6679 = vunpack.c.l.b16 %v6615
    %v6680 = vunpack.c.l.b16 %v6616
    %v6681 = vunpack.c.l.b16 %v6617
    %v6682 = vunpack.c.l.b16 %v6618
    %v6683 = vunpack.c.l.b16 %v6619
    %v6684 = vunpack.c.l.b16 %v6620
    %v6685 = vunpack.c.l.b16 %v6621
    %v6686 = vunpack.c.l.b16 %v6622
    %v6687 = vunpack.c.l.b16 %v6623
    %v6688 = vunpack.c.l.b16 %v6624
    %v6689 = vunpack.c.l.b16 %v6625
    %v6690 = vunpack.c.l.b16 %v6626
    %v6691 = vunpack.c.l.b16 %v6627
    %v6692 = vunpack.c.l.b16 %v6628
    %v6693 = vunpack.c.l.b16 %v6629
    %v6694 = vunpack.c.l.b16 %v6630
    %v6695 = vunpack.c.l.b16 %v6631
    %v6696 = vunpack.c.l.b16 %v6632
    %v6697 = vunpack.c.l.b16 %v6633
    %v6698 = vunpack.c.l.b16 %v6634
    %v6699 = vpack.c.b16 %v6668, %v6667
    %v6700 = vpack.c.b16 %v6670, %v6669
    %v6701 = vpack.c.b16 %v6672, %v6671
    %v6702 = vpack.c.b16 %v6674, %v6673
    %v6703 = vpack.c.b16 %v6676, %v6675
    %v6704 = vpack.c.b16 %v6678, %v6677
    %v6705 = vpack.c.b16 %v6680, %v6679
    %v6706 = vpack.c.b16 %v6682, %v6681
    %v6707 = vpack.c.b16 %v6684, %v6683
    %v6708 = vpack.c.b16 %v6686, %v6685
    %v6709 = vpack.c.b16 %v6688, %v6687
    %v6710 = vpack.c.b16 %v6690, %v6689
    %v6711 = vpack.c.b16 %v6692, %v6691
    %v6712 = vpack.c.b16 %v6694, %v6693
    %v6713 = vpack.c.b16 %v6696, %v6695
    %v6714 = vpack.c.b16 %v6698, %v6697
    %6731 = vmatprep.subr.bf16.mxu0 0
    %6732 = vmatpush1.bf16.msra.mxu0 %v6699
    %6733 = vmatprep.subr.bf16.mxu0 0
    %6734 = vmatpush1.bf16.msra.mxu0 %v6700
    %6735 = vmatprep.subr.bf16.mxu0 0
    %6736 = vmatpush1.bf16.msra.mxu0 %v6701
    %6737 = vmatprep.subr.bf16.mxu0 0
    %6738 = vmatpush1.bf16.msra.mxu0 %v6702
    %6739 = vmatprep.subr.bf16.mxu0 0
    %6740 = vmatpush1.bf16.msra.mxu0 %v6703
    %6741 = vmatprep.subr.bf16.mxu0 0
    %6742 = vmatpush1.bf16.msra.mxu0 %v6704
    %6743 = vmatprep.subr.bf16.mxu0 0
    %6744 = vmatpush1.bf16.msra.mxu0 %v6705
    %6745 = vmatprep.subr.bf16.mxu0 0
    %6746 = vmatpush1.bf16.msra.mxu0 %v6706
    %6747 = vmatprep.subr.bf16.mxu0 0
    %6748 = vmatpush1.bf16.msra.mxu0 %v6707
    %6749 = vmatprep.subr.bf16.mxu0 0
    %6750 = vmatpush1.bf16.msra.mxu0 %v6708
    %6751 = vmatprep.subr.bf16.mxu0 0
    %6752 = vmatpush1.bf16.msra.mxu0 %v6709
    %6753 = vmatprep.subr.bf16.mxu0 0
    %6754 = vmatpush1.bf16.msra.mxu0 %v6710
    %6755 = vmatprep.subr.bf16.mxu0 0
    %6756 = vmatpush1.bf16.msra.mxu0 %v6711
    %6757 = vmatprep.subr.bf16.mxu0 0
    %6758 = vmatpush1.bf16.msra.mxu0 %v6712
    %6759 = vmatprep.subr.bf16.mxu0 0
    %6760 = vmatpush1.bf16.msra.mxu0 %v6713
    %6761 = vmatprep.subr.bf16.mxu0 0
    %6762 = vmatpush1.bf16.msra.mxu0 %v6714
    %6763 = vmatprep.mubr.bf16.mxu0 %v6595
    %6764 = vmatmul.mubr.bf16.gmra.mrb[0].mxu0 %v6594
    %v6765 = vpop.f32.mrb[0].mxu0
    %v6766 = vadd.f32 0.0, %v6765
    %v6767 = vpop.f32.mrb[0].mxu0
    %v6768 = vpop.f32.mrb[0].mxu0
    %v6769 = vadd.f32 0.0, %v6768
    %v6770 = vpop.f32.mrb[0].mxu0
    %6771 = vmatprep.mubr.bf16.mxu0 %v6597
    %6772 = vmatmul.mubr.bf16.gmra.mrb[0].mxu0 %v6596
    %v6773 = vpop.f32.mrb[0].mxu0
    %v6774 = vadd.f32 0.0, %v6773
    %v6775 = vpop.f32.mrb[0].mxu0
    %v6776 = vpop.f32.mrb[0].mxu0
    %v6777 = vadd.f32 0.0, %v6776
    %v6778 = vpop.f32.mrb[0].mxu0
    %6779 = vmatprep.mubr.bf16.mxu0 %v6599
    %6780 = vmatmul.mubr.bf16.gmra.mrb[0].mxu0 %v6598
    %v6781 = vpop.f32.mrb[0].mxu0
    %v6782 = vadd.f32 0.0, %v6781
    %v6783 = vpop.f32.mrb[0].mxu0
    %v6784 = vpop.f32.mrb[0].mxu0
    %v6785 = vadd.f32 0.0, %v6784
    %v6786 = vpop.f32.mrb[0].mxu0
    %6787 = vmatprep.mubr.bf16.mxu0 %v6601
    %6788 = vmatmul.mubr.bf16.gmra.mrb[0].mxu0 %v6600
    %v6789 = vpop.f32.mrb[0].mxu0
    %v6790 = vadd.f32 0.0, %v6789
    %v6791 = vpop.f32.mrb[0].mxu0
    %v6792 = vpop.f32.mrb[0].mxu0
    %v6793 = vadd.f32 0.0, %v6792
    %v6794 = vpop.f32.mrb[0].mxu0
    %6795 = vdwg.mxu0
    %v6796 = vadd.f32 %v6259, %v6766
    %v6797 = vadd.f32 %v6260, %v6769
    %v6798 = vadd.f32 %v6261, %v6774
    %v6799 = vadd.f32 %v6262, %v6777
    %v6800 = vadd.f32 %v6263, %v6782
    %v6801 = vadd.f32 %v6264, %v6785
    %v6802 = vadd.f32 %v6265, %v6790
    %v6803 = vadd.f32 %v6266, %v6793
    %s6804 = scalar_lea.vmem %s11, 3
    %v6805 = vld [vmem:[%s6804] sm:$0x1]
    %v6807 = vlaneseq
    %v6808 = vshrl.u32 %v6807, 7
    %v6809 = vsub.s32 0, %v6808
    %v6810 = vrot.slane %v6805, %v6809
    %v6812 = vadd.f32 %v6796, %v6810
    %v6813 = vadd.f32 %v6797, %v6810
    %v6814 = vadd.f32 %v6798, %v6810
    %v6815 = vadd.f32 %v6799, %v6810
    %v6816 = vadd.f32 %v6800, %v6810
    %v6817 = vadd.f32 %v6801, %v6810
    %v6818 = vadd.f32 %v6802, %v6810
    %v6819 = vadd.f32 %v6803, %v6810
    %v6820 = vld [vmem:[%s12] sm:$0x1]
    %v6821 = vld [vmem:[%s13] sm:$0x1]
    %v6822 = vsel %vm143, %v6812, 0.0
    %6823 = vadd.xlane.f32.xlu0 %v6822
    %v6824 = vpop.xlane.xlu0 %6823
    %v6825 = vsel %vm143, %v6813, 0.0
    %6826 = vadd.xlane.f32.xlu0 %v6825
    %v6827 = vpop.xlane.xlu0 %6826
    %v6828 = vsel %vm143, %v6814, 0.0
    %6829 = vadd.xlane.f32.xlu0 %v6828
    %v6830 = vpop.xlane.xlu0 %6829
    %v6831 = vsel %vm143, %v6815, 0.0
    %6832 = vadd.xlane.f32.xlu0 %v6831
    %v6833 = vpop.xlane.xlu0 %6832
    %v6834 = vsel %vm143, %v6816, 0.0
    %6835 = vadd.xlane.f32.xlu0 %v6834
    %v6836 = vpop.xlane.xlu0 %6835
    %v6837 = vsel %vm143, %v6817, 0.0
    %6838 = vadd.xlane.f32.xlu0 %v6837
    %v6839 = vpop.xlane.xlu0 %6838
    %v6840 = vsel %vm143, %v6818, 0.0
    %6841 = vadd.xlane.f32.xlu0 %v6840
    %v6842 = vpop.xlane.xlu0 %6841
    %v6843 = vsel %vm143, %v6819, 0.0
    %6844 = vadd.xlane.f32.xlu0 %v6843
    %v6845 = vpop.xlane.xlu0 %6844
    %v6846 = vmul.f32 %v6824, %v168
    %v6847 = vmul.f32 %v6827, %v168
    %v6848 = vmul.f32 %v6830, %v168
    %v6849 = vmul.f32 %v6833, %v168
    %v6850 = vmul.f32 %v6836, %v168
    %v6851 = vmul.f32 %v6839, %v168
    %v6852 = vmul.f32 %v6842, %v168
    %v6853 = vmul.f32 %v6845, %v168
    %v6854 = vmul.f32 %v6812, %v6812
    %v6855 = vmul.f32 %v6813, %v6813
    %v6856 = vmul.f32 %v6814, %v6814
    %v6857 = vmul.f32 %v6815, %v6815
    %v6858 = vmul.f32 %v6816, %v6816
    %v6859 = vmul.f32 %v6817, %v6817
    %v6860 = vmul.f32 %v6818, %v6818
    %v6861 = vmul.f32 %v6819, %v6819
    %v6862 = vsel %vm143, %v6854, 0.0
    %6863 = vadd.xlane.f32.xlu0 %v6862
    %v6864 = vpop.xlane.xlu0 %6863
    %v6865 = vsel %vm143, %v6855, 0.0
    %6866 = vadd.xlane.f32.xlu0 %v6865
    %v6867 = vpop.xlane.xlu0 %6866
    %v6868 = vsel %vm143, %v6856, 0.0
    %6869 = vadd.xlane.f32.xlu0 %v6868
    %v6870 = vpop.xlane.xlu0 %6869
    %v6871 = vsel %vm143, %v6857, 0.0
    %6872 = vadd.xlane.f32.xlu0 %v6871
    %v6873 = vpop.xlane.xlu0 %6872
    %v6874 = vsel %vm143, %v6858, 0.0
    %6875 = vadd.xlane.f32.xlu0 %v6874
    %v6876 = vpop.xlane.xlu0 %6875
    %v6877 = vsel %vm143, %v6859, 0.0
    %6878 = vadd.xlane.f32.xlu0 %v6877
    %v6879 = vpop.xlane.xlu0 %6878
    %v6880 = vsel %vm143, %v6860, 0.0
    %6881 = vadd.xlane.f32.xlu0 %v6880
    %v6882 = vpop.xlane.xlu0 %6881
    %v6883 = vsel %vm143, %v6861, 0.0
    %6884 = vadd.xlane.f32.xlu0 %v6883
    %v6885 = vpop.xlane.xlu0 %6884
    %v6886 = vmul.f32 %v6864, %v168
    %v6887 = vmul.f32 %v6867, %v168
    %v6888 = vmul.f32 %v6870, %v168
    %v6889 = vmul.f32 %v6873, %v168
    %v6890 = vmul.f32 %v6876, %v168
    %v6891 = vmul.f32 %v6879, %v168
    %v6892 = vmul.f32 %v6882, %v168
    %v6893 = vmul.f32 %v6885, %v168
    %v6894 = vmul.f32 %v6846, %v6846
    %v6895 = vmul.f32 %v6847, %v6847
    %v6896 = vmul.f32 %v6848, %v6848
    %v6897 = vmul.f32 %v6849, %v6849
    %v6898 = vmul.f32 %v6850, %v6850
    %v6899 = vmul.f32 %v6851, %v6851
    %v6900 = vmul.f32 %v6852, %v6852
    %v6901 = vmul.f32 %v6853, %v6853
    %v6902 = vsub.f32 %v6886, %v6894
    %v6903 = vsub.f32 %v6887, %v6895
    %v6904 = vsub.f32 %v6888, %v6896
    %v6905 = vsub.f32 %v6889, %v6897
    %v6906 = vsub.f32 %v6890, %v6898
    %v6907 = vsub.f32 %v6891, %v6899
    %v6908 = vsub.f32 %v6892, %v6900
    %v6909 = vsub.f32 %v6893, %v6901
    %v6910 = vadd.f32 %v6902, 1e-05
    %v6911 = vadd.f32 %v6903, 1e-05
    %v6912 = vadd.f32 %v6904, 1e-05
    %v6913 = vadd.f32 %v6905, 1e-05
    %v6914 = vadd.f32 %v6906, 1e-05
    %v6915 = vadd.f32 %v6907, 1e-05
    %v6916 = vadd.f32 %v6908, 1e-05
    %v6917 = vadd.f32 %v6909, 1e-05
    %v6918 = vrsqrt.pop %v6910
    %v6919 = vrsqrt.pop %v6911
    %v6920 = vrsqrt.pop %v6912
    %v6921 = vrsqrt.pop %v6913
    %v6922 = vrsqrt.pop %v6914
    %v6923 = vrsqrt.pop %v6915
    %v6924 = vrsqrt.pop %v6916
    %v6925 = vrsqrt.pop %v6917
    %v6927 = vlaneseq
    %v6928 = vshrl.u32 %v6927, 7
    %v6929 = vsub.s32 0, %v6928
    %v6930 = vrot.slane %v6820, %v6929
    %v6932 = vmul.f32 %v6918, %v6930
    %v6933 = vmul.f32 %v6919, %v6930
    %v6934 = vmul.f32 %v6920, %v6930
    %v6935 = vmul.f32 %v6921, %v6930
    %v6936 = vmul.f32 %v6922, %v6930
    %v6937 = vmul.f32 %v6923, %v6930
    %v6938 = vmul.f32 %v6924, %v6930
    %v6939 = vmul.f32 %v6925, %v6930
    %v6940 = vmul.f32 %v6812, %v6932
    %v6941 = vmul.f32 %v6813, %v6933
    %v6942 = vmul.f32 %v6814, %v6934
    %v6943 = vmul.f32 %v6815, %v6935
    %v6944 = vmul.f32 %v6816, %v6936
    %v6945 = vmul.f32 %v6817, %v6937
    %v6946 = vmul.f32 %v6818, %v6938
    %v6947 = vmul.f32 %v6819, %v6939
    %v6948 = vmul.f32 %v6846, %v6932
    %v6949 = vmul.f32 %v6847, %v6933
    %v6950 = vmul.f32 %v6848, %v6934
    %v6951 = vmul.f32 %v6849, %v6935
    %v6952 = vmul.f32 %v6850, %v6936
    %v6953 = vmul.f32 %v6851, %v6937
    %v6954 = vmul.f32 %v6852, %v6938
    %v6955 = vmul.f32 %v6853, %v6939
    %v6957 = vlaneseq
    %v6958 = vshrl.u32 %v6957, 7
    %v6959 = vsub.s32 0, %v6958
    %v6960 = vrot.slane %v6821, %v6959
    %v6962 = vsub.f32 %v6960, %v6948
    %v6963 = vsub.f32 %v6960, %v6949
    %v6964 = vsub.f32 %v6960, %v6950
    %v6965 = vsub.f32 %v6960, %v6951
    %v6966 = vsub.f32 %v6960, %v6952
    %v6967 = vsub.f32 %v6960, %v6953
    %v6968 = vsub.f32 %v6960, %v6954
    %v6969 = vsub.f32 %v6960, %v6955
    %v6970 = vadd.f32 %v6940, %v6962
    %v6971 = vadd.f32 %v6941, %v6963
    %v6972 = vadd.f32 %v6942, %v6964
    %v6973 = vadd.f32 %v6943, %v6965
    %v6974 = vadd.f32 %v6944, %v6966
    %v6975 = vadd.f32 %v6945, %v6967
    %v6976 = vadd.f32 %v6946, %v6968
    %v6977 = vadd.f32 %v6947, %v6969
    %v6978 = vpack.c.bf16 %v6971, %v6970
    %v6979 = vpack.c.bf16 %v6973, %v6972
    %v6980 = vpack.c.bf16 %v6975, %v6974
    %v6981 = vpack.c.bf16 %v6977, %v6976
    %v6982 = vld [vmem:[%s14] sm:$0xf]
    %v6983 = vld [vmem:[%s14 + $0x4] sm:$0xf]
    %v6984 = vld [vmem:[%s14 + $0x8] sm:$0xf]
    %v6985 = vld [vmem:[%s14 + $0xc] sm:$0xf]
    %v6986 = vld [vmem:[%s14 + $0x10] sm:$0xf]
    %v6987 = vld [vmem:[%s14 + $0x14] sm:$0xf]
    %v6988 = vld [vmem:[%s14 + $0x18] sm:$0xf]
    %v6989 = vld [vmem:[%s14 + $0x1c] sm:$0xf]
    %v6990 = vld [vmem:[%s15] sm:$0x1]
    %v6992 = vlaneseq
    %v6993 = vshrl.u32 %v6992, 7
    %v6994 = vsub.s32 0, %v6993
    %v6995 = vrot.slane %v6990, %v6994
    %v7005 = vunpack.c.l.b16 %v6982
    %v7006 = vunpack.c.l.b16 %v6983
    %v7007 = vunpack.c.l.b16 %v6984
    %v7008 = vunpack.c.l.b16 %v6985
    %v7009 = vunpack.c.l.b16 %v6986
    %v7010 = vunpack.c.l.b16 %v6987
    %v7011 = vunpack.c.l.b16 %v6988
    %v7012 = vunpack.c.l.b16 %v6989
    %v7013 = vpack.c.b16 %v7006, %v7005
    %v7014 = vpack.c.b16 %v7008, %v7007
    %v7015 = vpack.c.b16 %v7010, %v7009
    %v7016 = vpack.c.b16 %v7012, %v7011
    %v7022 = vsel %vm143, %v6978, 0
    %v7025 = vsel %vm143, %v6979, 0
    %v7028 = vsel %vm143, %v6980, 0
    %v7031 = vsel %vm143, %v6981, 0
    %7033 = vmatprep.subr.bf16.mxu0 0
    %7034 = vmatpush1.bf16.msra.mxu0 %v7013
    %7035 = vmatprep.subr.bf16.mxu0 0
    %7036 = vmatpush1.bf16.msra.mxu0 %v7014
    %7037 = vmatprep.subr.bf16.mxu0 0
    %7038 = vmatpush1.bf16.msra.mxu0 %v7015
    %7039 = vmatprep.subr.bf16.mxu0 0
    %7040 = vmatpush1.bf16.msra.mxu0 %v7016
    %7041 = vmatprep.subr.bf16.mxu0 0
    %7042 = vmatpush1.bf16.msra.mxu0 0
    %7043 = vmatprep.subr.bf16.mxu0 0
    %7044 = vmatpush1.bf16.msra.mxu0 0
    %7045 = vmatprep.subr.bf16.mxu0 0
    %7046 = vmatpush1.bf16.msra.mxu0 0
    %7047 = vmatprep.subr.bf16.mxu0 0
    %7048 = vmatpush1.bf16.msra.mxu0 0
    %7049 = vmatprep.subr.bf16.mxu0 0
    %7050 = vmatpush1.bf16.msra.mxu0 0
    %7051 = vmatprep.subr.bf16.mxu0 0
    %7052 = vmatpush1.bf16.msra.mxu0 0
    %7053 = vmatprep.subr.bf16.mxu0 0
    %7054 = vmatpush1.bf16.msra.mxu0 0
    %7055 = vmatprep.subr.bf16.mxu0 0
    %7056 = vmatpush1.bf16.msra.mxu0 0
    %7057 = vmatprep.subr.bf16.mxu0 0
    %7058 = vmatpush1.bf16.msra.mxu0 0
    %7059 = vmatprep.subr.bf16.mxu0 0
    %7060 = vmatpush1.bf16.msra.mxu0 0
    %7061 = vmatprep.subr.bf16.mxu0 0
    %7062 = vmatpush1.bf16.msra.mxu0 0
    %7063 = vmatprep.subr.bf16.mxu0 0
    %7064 = vmatpush1.bf16.msra.mxu0 0
    %7065 = vmatprep.mubr.bf16.mxu0 0
    %7066 = vmatmul.mubr.bf16.gmra.mrb[0].mxu0 %v7022
    %v7067 = vpop.f32.mrb[0].mxu0
    %v7068 = vadd.f32 %v6995, %v7067
    %v7069 = vpop.f32.mrb[0].mxu0
    %v7070 = vpop.f32.mrb[0].mxu0
    %v7071 = vadd.f32 %v6995, %v7070
    %v7072 = vpop.f32.mrb[0].mxu0
    %7073 = vmatprep.mubr.bf16.mxu0 0
    %7074 = vmatmul.mubr.bf16.gmra.mrb[0].mxu0 %v7025
    %v7075 = vpop.f32.mrb[0].mxu0
    %v7076 = vadd.f32 %v6995, %v7075
    %v7077 = vpop.f32.mrb[0].mxu0
    %v7078 = vpop.f32.mrb[0].mxu0
    %v7079 = vadd.f32 %v6995, %v7078
    %v7080 = vpop.f32.mrb[0].mxu0
    %7081 = vmatprep.mubr.bf16.mxu0 0
    %7082 = vmatmul.mubr.bf16.gmra.mrb[0].mxu0 %v7028
    %v7083 = vpop.f32.mrb[0].mxu0
    %v7084 = vadd.f32 %v6995, %v7083
    %v7085 = vpop.f32.mrb[0].mxu0
    %v7086 = vpop.f32.mrb[0].mxu0
    %v7087 = vadd.f32 %v6995, %v7086
    %v7088 = vpop.f32.mrb[0].mxu0
    %7089 = vmatprep.mubr.bf16.mxu0 0
    %7090 = vmatmul.mubr.bf16.gmra.mrb[0].mxu0 %v7031
    %v7091 = vpop.f32.mrb[0].mxu0
    %v7092 = vadd.f32 %v6995, %v7091
    %v7093 = vpop.f32.mrb[0].mxu0
    %v7094 = vpop.f32.mrb[0].mxu0
    %v7095 = vadd.f32 %v6995, %v7094
    %v7096 = vpop.f32.mrb[0].mxu0
    %7097 = vdwg.mxu0
    %7098 = vst [vmem:[#allocation2] sm:$0xff] %v7068
    %7099 = vst [vmem:[#allocation2 + $0x8] sm:$0xff] %v7071
    %7100 = vst [vmem:[#allocation2 + $0x10] sm:$0xff] %v7076
    %7101 = vst [vmem:[#allocation2 + $0x18] sm:$0xff] %v7079
    %7102 = vst [vmem:[#allocation2 + $0x20] sm:$0xff] %v7084
    %7103 = vst [vmem:[#allocation2 + $0x28] sm:$0xff] %v7087
    %7104 = vst [vmem:[#allocation2 + $0x30] sm:$0xff] %v7092
    %7105 = vst [vmem:[#allocation2 + $0x38] sm:$0xff] %v7095
    // Predicated region
    $region66: #{sparse_decoder_forward.1} parent=1 // pred_check
      _
    $region67: #{sparse_decoder_forward.1} parent=1 // pred_check_branch
      %7107 = sbr.rel (0) target = $region69
    $region68: #{sparse_decoder_forward.1} parent=1 // pred_region
      %s7109 = ssub.s32 1024, 1024
      %7110 = vsyncadd [#allocation3], %s7109
      %s7111 = sshll.u32 [#allocation2], 4
      %s7112 = int_to_ptr.vmem [resolvable:$true] %s7111
      %7117 = dma.vmem_to_hbm [thread:$0]  %s7112, 1024, %s16, [#allocation3], 128, 128, 8
    $region69: #{sparse_decoder_forward.1} parent=1 // pred_fallthru
      _
    // Predicated region
    $region70: #{sparse_decoder_forward.1} parent=1 // pred_check
      _
    $region71: #{sparse_decoder_forward.1} parent=1 // pred_check_branch
      %7119 = sbr.rel (0) target = $region73
    $region72: #{sparse_decoder_forward.1} parent=1 // pred_region
      _
    $region73: #{sparse_decoder_forward.1} parent=1 // pred_fallthru
      _
    // Predicated region
    $region74: #{sparse_decoder_forward.1} parent=1 // pred_check
      _
    $region75: #{sparse_decoder_forward.1} parent=1 // pred_check_branch
      %7121 = sbr.rel (0) target = $region77
    $region76: #{sparse_decoder_forward.1} parent=1 // pred_region
      %7122 = dma.done [#allocation3], 1024
    $region77: #{sparse_decoder_forward.1} parent=1 // pred_fallthru
      _
    // Predicated region
    $region78: #{sparse_decoder_forward.1} parent=1 // pred_check
      _
    $region79: #{sparse_decoder_forward.1} parent=1 // pred_check_branch
      %7124 = sbr.rel (0) target = $region81
    $region80: #{sparse_decoder_forward.1} parent=1 // pred_region
      _
    $region81: #{sparse_decoder_forward.1} parent=1 // pred_fallthru
      _
    %7125 = vsyncpa [#allocation3], 1

</llo_original>
